<compile_context>
chip_gen: v7x
topology: tpu7x:2x2x1
jax: 0.10.0
libtpu: 0.0.40
codegen_flags: <defaults>
</compile_context>

<pallas_src>
import functools

import jax
import jax.numpy as jnp
from jax.experimental import pallas as pl
from jax.experimental.pallas import tpu as pltpu

EPS = 1e-5  # torch.nn.InstanceNorm2d default


def _resblock_kernel(x_ref, w1_ref, b1_ref, w2_ref, b2_ref, o_ref, pad_ref,
                     *, H, W, C, WP):
    # x_ref   : (1, H, W, C)    f32 input block (C already lane-padded)
    # w*_ref  : (3, 3*C, C)     bf16 conv weights, kj taps stacked along K
    # b*_ref  : (1, C)          f32 conv biases
    # o_ref   : (1, H, W, C)    f32 output block (aliased onto x in HBM)
    # pad_ref : (H+2, WP, C)    bf16 VMEM scratch, WP = roundup(W+2, 8)
    inv_hw = 1.0 / float(H * W)
    pad_cols = WP - (W + 2)

    def reflect_pad_store(y):
        # y: (H, W, C) bf16.  Build the ReflectionPad2d(1) halo as a value and
        # write it with a single full-tile store.
        rows = jnp.concatenate([y[1:2], y, y[H - 2:H - 1]], axis=0)   # (H+2, W, C)
        pieces = [rows[:, 1:2], rows, rows[:, W - 2:W - 1]]           # -> W+2 cols
        if pad_cols:
            pieces.append(jnp.zeros((H + 2, pad_cols, C), jnp.bfloat16))
        pad_ref[...] = jnp.concatenate(pieces, axis=1)                # (H+2, WP, C)

    def conv3x3(w_ref, b_ref):
        # 3 MXU matmuls with K = 3*C (kj taps im2col'ed along the lane axis).
        acc = jnp.zeros((H * W, C), jnp.float32)
        for ki in range(3):
            patch = jnp.concatenate(
                [pad_ref[ki:ki + H, kj:kj + W, :] for kj in range(3)], axis=-1)
            acc = acc + jnp.dot(patch.reshape(H * W, 3 * C), w_ref[ki],
                                preferred_element_type=jnp.float32)
        return acc + b_ref[...]                                       # (H*W, C) f32

    def instance_norm(a):
        # Per-channel stats over the spatial axis, one pass (biased variance).
        s = jnp.sum(a, axis=0, keepdims=True)
        ss = jnp.sum(a * a, axis=0, keepdims=True)
        mean = s * inv_hw
        var = jnp.maximum(ss * inv_hw - mean * mean, 0.0)
        return (a - mean) * jax.lax.rsqrt(var + EPS)

    # ---- conv1 -> IN -> ReLU ----
    reflect_pad_store(x_ref[0].astype(jnp.bfloat16))
    y = jnp.maximum(instance_norm(conv3x3(w1_ref, b1_ref)), 0.0)

    # ---- conv2 -> IN -> residual add ----
    reflect_pad_store(y.reshape(H, W, C).astype(jnp.bfloat16))
    y2 = instance_norm(conv3x3(w2_ref, b2_ref))

    o_ref[0] = x_ref[0] + y2.reshape(H, W, C)


@jax.jit
def residual_block(x_nhwc, w1, b1, w2, b2):
    N, H, W, C = x_nhwc.shape
    Cp = ((C + 127) // 128) * 128          # lane-pad channels to a multiple of 128
    WP = ((W + 2 + 7) // 8) * 8            # sublane-aligned scratch row pitch

    x = x_nhwc.astype(jnp.float32)
    if Cp != C:
        x = jnp.pad(x, ((0, 0), (0, 0), (0, 0), (0, Cp - C)))
        w1 = jnp.pad(w1, ((0, 0), (0, 0), (0, Cp - C), (0, Cp - C)))
        w2 = jnp.pad(w2, ((0, 0), (0, 0), (0, Cp - C), (0, Cp - C)))
        b1 = jnp.pad(b1, ((0, Cp - C),))
        b2 = jnp.pad(b2, ((0, Cp - C),))

    # (3, 3, Cp, Cp) HWIO -> (3, 3*Cp, Cp): kj taps stacked along the K axis,
    # matching the kernel's channel-axis im2col order.  bf16 for the MXU.
    w1r = w1.astype(jnp.bfloat16).reshape(3, 3 * Cp, Cp)
    w2r = w2.astype(jnp.bfloat16).reshape(3, 3 * Cp, Cp)
    b1r = b1.astype(jnp.float32).reshape(1, Cp)
    b2r = b2.astype(jnp.float32).reshape(1, Cp)

    kernel = functools.partial(_resblock_kernel, H=H, W=W, C=Cp, WP=WP)
    out = pl.pallas_call(
        kernel,
        out_shape=jax.ShapeDtypeStruct((N, H, W, Cp), jnp.float32),
        grid_spec=pltpu.PrefetchScalarGridSpec(
            num_scalar_prefetch=0,
            grid=(N,),
            in_specs=[
                pl.BlockSpec((1, H, W, Cp), lambda n: (n, 0, 0, 0)),
                pl.BlockSpec((3, 3 * Cp, Cp), lambda n: (0, 0, 0)),
                pl.BlockSpec((1, Cp), lambda n: (0, 0)),
                pl.BlockSpec((3, 3 * Cp, Cp), lambda n: (0, 0, 0)),
                pl.BlockSpec((1, Cp), lambda n: (0, 0)),
            ],
            out_specs=pl.BlockSpec((1, H, W, Cp), lambda n: (n, 0, 0, 0)),
            scratch_shapes=[pltpu.VMEM((H + 2, WP, Cp), jnp.bfloat16)],
        ),
        input_output_aliases={0: 0},   # write the result in place over padded x
        compiler_params=pltpu.CompilerParams(
            dimension_semantics=("parallel",),
            vmem_limit_bytes=64 * 1024 * 1024,
        ),
    )(x, w1r, b1r, w2r, b2r)
    return out[..., :C]


def _reference(x_nhwc, w1, b1, w2, b2):
    """Pure-JAX f32 reference (same math as the PyTorch module, NHWC)."""
    def conv(x, w, b):
        xp = jnp.pad(x, ((0, 0), (1, 1), (1, 1), (0, 0)), mode="reflect")
        y = jax.lax.conv_general_dilated(
            xp, w, (1, 1), "VALID",
            dimension_numbers=("NHWC", "HWIO", "NHWC"),
            precision=jax.lax.Precision.HIGHEST)
        return y + b.reshape(1, 1, 1, -1)

    def inorm(y):
        m = jnp.mean(y, axis=(1, 2), keepdims=True)
        v = jnp.mean((y - m) ** 2, axis=(1, 2), keepdims=True)
        return (y - m) * jax.lax.rsqrt(v + EPS)

    y = jax.nn.relu(inorm(conv(x_nhwc, w1, b1)))
    y = inorm(conv(y, w2, b2))
    return x_nhwc + y


if __name__ == "__main__":
    N, C, H, W = 2, 4, 16, 16  # dim = 4

    key = jax.random.PRNGKey(0)
    kx, kw1, kb1, kw2, kb2 = jax.random.split(key, 5)

    # PyTorch-style NCHW input, transposed to the kernel's NHWC layout.
    x_nchw = jax.random.normal(kx, (N, C, H, W), jnp.float32)
    x_nhwc = jnp.transpose(x_nchw, (0, 2, 3, 1))

    # Synthetic nn.Conv2d(dim, dim, 3) parameters, created directly in HWIO.
    w1 = 0.1 * jax.random.normal(kw1, (3, 3, C, C), jnp.float32)
    b1 = 0.1 * jax.random.normal(kb1, (C,), jnp.float32)
    w2 = 0.1 * jax.random.normal(kw2, (3, 3, C, C), jnp.float32)
    b2 = 0.1 * jax.random.normal(kb2, (C,), jnp.float32)

    out = residual_block(x_nhwc, w1, b1, w2, b2)
    out = jax.block_until_ready(out)

    ref = _reference(x_nhwc, w1, b1, w2, b2)
    max_err = float(jnp.max(jnp.abs(out - ref)))
    assert out.shape == (N, H, W, C)
    # bf16 MXU inputs with f32 accumulation vs. an all-f32 reference.
    assert max_err < 5e-2, f"max abs error {max_err}"

    # back to PyTorch's NCHW convention for the final result
    out_nchw = jnp.transpose(out, (0, 3, 1, 2))
    assert out_nchw.shape == x_nchw.shape

    print("KERNEL_OK")
</pallas_src>

<mosaic_0001>
module attributes {stable_mosaic.version = 11 : i64} {
  func.func @_resblock_kernel(%arg0: i32, %arg1: memref<1x16x16x128xf32, #tpu.memory_space<vmem>>, %arg2: memref<3x384x128xbf16, #tpu.memory_space<vmem>>, %arg3: memref<1x128xf32, #tpu.memory_space<vmem>>, %arg4: memref<3x384x128xbf16, #tpu.memory_space<vmem>>, %arg5: memref<1x128xf32, #tpu.memory_space<vmem>>, %arg6: memref<1x16x16x128xf32, #tpu.memory_space<vmem>>, %arg7: memref<18x24x128xbf16, #tpu.memory_space<vmem>>) attributes {dimension_semantics = [#tpu.dimension_semantics<parallel>], iteration_bounds = array<i64: 2>, scalar_prefetch = 0 : i64, scratch_operands = 1 : i64, tpu.core_type = #tpu.core_type<tc>, window_params = [{transform_indices = @transform_0, window_bounds = array<i64: 1, 16, 16, 128>}, {pipeline_mode = #tpu.pipeline_mode<synchronous>, transform_indices = @transform_1, window_bounds = array<i64: 3, 384, 128>}, {pipeline_mode = #tpu.pipeline_mode<synchronous>, transform_indices = @transform_2, window_bounds = array<i64: 1, 128>}, {pipeline_mode = #tpu.pipeline_mode<synchronous>, transform_indices = @transform_3, window_bounds = array<i64: 3, 384, 128>}, {pipeline_mode = #tpu.pipeline_mode<synchronous>, transform_indices = @transform_4, window_bounds = array<i64: 1, 128>}, {transform_indices = @transform_5, window_bounds = array<i64: 1, 16, 16, 128>}]} {
    %c0 = arith.constant 0 : index
    %c0_0 = arith.constant 0 : index
    %c0_1 = arith.constant 0 : index
    %c0_2 = arith.constant 0 : index
    %0 = vector.load %arg1[%c0, %c0_0, %c0_1, %c0_2] : memref<1x16x16x128xf32, #tpu.memory_space<vmem>>, vector<1x16x16x128xf32>
    %1 = vector.shape_cast %0 : vector<1x16x16x128xf32> to vector<16x16x128xf32>
    %2 = arith.truncf %1 : vector<16x16x128xf32> to vector<16x16x128xbf16>
    %3 = vector.extract_strided_slice %2 {offsets = [1, 0, 0], sizes = [1, 16, 128], strides = [1, 1, 1]} : vector<16x16x128xbf16> to vector<1x16x128xbf16>
    %4 = vector.extract_strided_slice %2 {offsets = [14, 0, 0], sizes = [1, 16, 128], strides = [1, 1, 1]} : vector<16x16x128xbf16> to vector<1x16x128xbf16>
    %5 = tpu.concatenate %3, %2, %4 in 0 : vector<1x16x128xbf16>, vector<16x16x128xbf16>, vector<1x16x128xbf16> -> vector<18x16x128xbf16>
    %6 = vector.extract_strided_slice %5 {offsets = [0, 1, 0], sizes = [18, 1, 128], strides = [1, 1, 1]} : vector<18x16x128xbf16> to vector<18x1x128xbf16>
    %7 = vector.extract_strided_slice %5 {offsets = [0, 14, 0], sizes = [18, 1, 128], strides = [1, 1, 1]} : vector<18x16x128xbf16> to vector<18x1x128xbf16>
    %cst = arith.constant 0.000000e+00 : bf16
    %8 = vector.broadcast %cst : bf16 to vector<18x6x128xbf16>
    %9 = tpu.concatenate %6, %5, %7, %8 in 1 : vector<18x1x128xbf16>, vector<18x16x128xbf16>, vector<18x1x128xbf16>, vector<18x6x128xbf16> -> vector<18x24x128xbf16>
    %c0_3 = arith.constant 0 : index
    %c0_4 = arith.constant 0 : index
    %c0_5 = arith.constant 0 : index
    %10 = vector.load %arg7[%c0_3, %c0_4, %c0_5] : memref<18x24x128xbf16, #tpu.memory_space<vmem>>, vector<18x24x128xbf16>
    tpu.vector_store %arg7[%c0_3, %c0_4, %c0_5], %9 {strides = array<i32>} : memref<18x24x128xbf16, #tpu.memory_space<vmem>>, vector<18x24x128xbf16>,
    %cst_6 = arith.constant 0.000000e+00 : f32
    %11 = vector.broadcast %cst_6 : f32 to vector<256x128xf32>
    %c0_7 = arith.constant 0 : index
    %c0_8 = arith.constant 0 : index
    %c0_9 = arith.constant 0 : index
    %12 = vector.load %arg7[%c0_7, %c0_8, %c0_9] : memref<18x24x128xbf16, #tpu.memory_space<vmem>>, vector<16x16x128xbf16>
    %c0_10 = arith.constant 0 : index
    %c1 = arith.constant 1 : index
    %c0_11 = arith.constant 0 : index
    %13 = vector.load %arg7[%c0_10, %c1, %c0_11] : memref<18x24x128xbf16, #tpu.memory_space<vmem>>, vector<16x16x128xbf16>
    %c0_12 = arith.constant 0 : index
    %c2 = arith.constant 2 : index
    %c0_13 = arith.constant 0 : index
    %14 = vector.load %arg7[%c0_12, %c2, %c0_13] : memref<18x24x128xbf16, #tpu.memory_space<vmem>>, vector<16x16x128xbf16>
    %15 = tpu.concatenate %12, %13, %14 in 2 : vector<16x16x128xbf16>, vector<16x16x128xbf16>, vector<16x16x128xbf16> -> vector<16x16x384xbf16>
    %16 = vector.shape_cast %15 : vector<16x16x384xbf16> to vector<256x384xbf16>
    %c0_14 = arith.constant 0 : index
    %c0_15 = arith.constant 0 : index
    %c0_16 = arith.constant 0 : index
    %17 = vector.load %arg2[%c0_14, %c0_15, %c0_16] : memref<3x384x128xbf16, #tpu.memory_space<vmem>>, vector<1x384x128xbf16>
    %18 = vector.shape_cast %17 : vector<1x384x128xbf16> to vector<384x128xbf16>
    %cst_17 = arith.constant dense<0.000000e+00> : vector<256x128xf32>
    %19 = tpu.matmul %16, %18, %cst_17 {dimension_numbers = #tpu.dot_dimension_numbers<[1], [0], [0], [1], [0, 0, 1, 1], [], []>} : vector<256x384xbf16>, vector<384x128xbf16>, vector<256x128xf32> -> vector<256x128xf32>
    %20 = arith.addf %11, %19 : vector<256x128xf32>
    %c1_18 = arith.constant 1 : index
    %c0_19 = arith.constant 0 : index
    %c0_20 = arith.constant 0 : index
    %21 = vector.load %arg7[%c1_18, %c0_19, %c0_20] : memref<18x24x128xbf16, #tpu.memory_space<vmem>>, vector<16x16x128xbf16>
    %c1_21 = arith.constant 1 : index
    %c1_22 = arith.constant 1 : index
    %c0_23 = arith.constant 0 : index
    %22 = vector.load %arg7[%c1_21, %c1_22, %c0_23] : memref<18x24x128xbf16, #tpu.memory_space<vmem>>, vector<16x16x128xbf16>
    %c1_24 = arith.constant 1 : index
    %c2_25 = arith.constant 2 : index
    %c0_26 = arith.constant 0 : index
    %23 = vector.load %arg7[%c1_24, %c2_25, %c0_26] : memref<18x24x128xbf16, #tpu.memory_space<vmem>>, vector<16x16x128xbf16>
    %24 = tpu.concatenate %21, %22, %23 in 2 : vector<16x16x128xbf16>, vector<16x16x128xbf16>, vector<16x16x128xbf16> -> vector<16x16x384xbf16>
    %25 = vector.shape_cast %24 : vector<16x16x384xbf16> to vector<256x384xbf16>
    %c1_27 = arith.constant 1 : index
    %c0_28 = arith.constant 0 : index
    %c0_29 = arith.constant 0 : index
    %26 = vector.load %arg2[%c1_27, %c0_28, %c0_29] : memref<3x384x128xbf16, #tpu.memory_space<vmem>>, vector<1x384x128xbf16>
    %27 = vector.shape_cast %26 : vector<1x384x128xbf16> to vector<384x128xbf16>
    %cst_30 = arith.constant dense<0.000000e+00> : vector<256x128xf32>
    %28 = tpu.matmul %25, %27, %cst_30 {dimension_numbers = #tpu.dot_dimension_numbers<[1], [0], [0], [1], [0, 0, 1, 1], [], []>} : vector<256x384xbf16>, vector<384x128xbf16>, vector<256x128xf32> -> vector<256x128xf32>
    %29 = arith.addf %20, %28 : vector<256x128xf32>
    %c2_31 = arith.constant 2 : index
    %c0_32 = arith.constant 0 : index
    %c0_33 = arith.constant 0 : index
    %30 = vector.load %arg7[%c2_31, %c0_32, %c0_33] : memref<18x24x128xbf16, #tpu.memory_space<vmem>>, vector<16x16x128xbf16>
    %c2_34 = arith.constant 2 : index
    %c1_35 = arith.constant 1 : index
    %c0_36 = arith.constant 0 : index
    %31 = vector.load %arg7[%c2_34, %c1_35, %c0_36] : memref<18x24x128xbf16, #tpu.memory_space<vmem>>, vector<16x16x128xbf16>
    %c2_37 = arith.constant 2 : index
    %c2_38 = arith.constant 2 : index
    %c0_39 = arith.constant 0 : index
    %32 = vector.load %arg7[%c2_37, %c2_38, %c0_39] : memref<18x24x128xbf16, #tpu.memory_space<vmem>>, vector<16x16x128xbf16>
    %33 = tpu.concatenate %30, %31, %32 in 2 : vector<16x16x128xbf16>, vector<16x16x128xbf16>, vector<16x16x128xbf16> -> vector<16x16x384xbf16>
    %34 = vector.shape_cast %33 : vector<16x16x384xbf16> to vector<256x384xbf16>
    %c2_40 = arith.constant 2 : index
    %c0_41 = arith.constant 0 : index
    %c0_42 = arith.constant 0 : index
    %35 = vector.load %arg2[%c2_40, %c0_41, %c0_42] : memref<3x384x128xbf16, #tpu.memory_space<vmem>>, vector<1x384x128xbf16>
    %36 = vector.shape_cast %35 : vector<1x384x128xbf16> to vector<384x128xbf16>
    %cst_43 = arith.constant dense<0.000000e+00> : vector<256x128xf32>
    %37 = tpu.matmul %34, %36, %cst_43 {dimension_numbers = #tpu.dot_dimension_numbers<[1], [0], [0], [1], [0, 0, 1, 1], [], []>} : vector<256x384xbf16>, vector<384x128xbf16>, vector<256x128xf32> -> vector<256x128xf32>
    %38 = arith.addf %29, %37 : vector<256x128xf32>
    %c0_44 = arith.constant 0 : index
    %c0_45 = arith.constant 0 : index
    %39 = vector.load %arg3[%c0_44, %c0_45] : memref<1x128xf32, #tpu.memory_space<vmem>>, vector<1x128xf32>
    %40 = vector.broadcast %39 : vector<1x128xf32> to vector<256x128xf32>
    %41 = arith.addf %38, %40 : vector<256x128xf32>
    %cst_46 = arith.constant dense<0.000000e+00> : vector<128xf32>
    %42 = vector.multi_reduction <add>, %41, %cst_46 [0] : vector<256x128xf32> to vector<128xf32>
    %43 = vector.shape_cast %42 : vector<128xf32> to vector<1x128xf32>
    %44 = arith.mulf %41, %41 : vector<256x128xf32>
    %cst_47 = arith.constant dense<0.000000e+00> : vector<128xf32>
    %45 = vector.multi_reduction <add>, %44, %cst_47 [0] : vector<256x128xf32> to vector<128xf32>
    %46 = vector.shape_cast %45 : vector<128xf32> to vector<1x128xf32>
    %cst_48 = arith.constant 3.906250e-03 : f32
    %47 = vector.broadcast %cst_48 : f32 to vector<1x128xf32>
    %48 = arith.mulf %43, %47 : vector<1x128xf32>
    %cst_49 = arith.constant 3.906250e-03 : f32
    %49 = vector.broadcast %cst_49 : f32 to vector<1x128xf32>
    %50 = arith.mulf %46, %49 : vector<1x128xf32>
    %51 = arith.mulf %48, %48 : vector<1x128xf32>
    %52 = arith.subf %50, %51 : vector<1x128xf32>
    %cst_50 = arith.constant 0.000000e+00 : f32
    %53 = vector.broadcast %cst_50 : f32 to vector<1x128xf32>
    %54 = arith.maximumf %52, %53 : vector<1x128xf32>
    %55 = vector.broadcast %48 : vector<1x128xf32> to vector<256x128xf32>
    %56 = arith.subf %41, %55 : vector<256x128xf32>
    %cst_51 = arith.constant 9.99999974E-6 : f32
    %57 = vector.broadcast %cst_51 : f32 to vector<1x128xf32>
    %58 = arith.addf %54, %57 : vector<1x128xf32>
    %59 = math.rsqrt %58 : vector<1x128xf32>
    %60 = vector.broadcast %59 : vector<1x128xf32> to vector<256x128xf32>
    %61 = arith.mulf %56, %60 : vector<256x128xf32>
    %cst_52 = arith.constant 0.000000e+00 : f32
    %62 = vector.broadcast %cst_52 : f32 to vector<256x128xf32>
    %63 = arith.maximumf %61, %62 : vector<256x128xf32>
    %64 = vector.shape_cast %63 : vector<256x128xf32> to vector<16x16x128xf32>
    %65 = arith.truncf %64 : vector<16x16x128xf32> to vector<16x16x128xbf16>
    %66 = vector.extract_strided_slice %65 {offsets = [1, 0, 0], sizes = [1, 16, 128], strides = [1, 1, 1]} : vector<16x16x128xbf16> to vector<1x16x128xbf16>
    %67 = vector.extract_strided_slice %65 {offsets = [14, 0, 0], sizes = [1, 16, 128], strides = [1, 1, 1]} : vector<16x16x128xbf16> to vector<1x16x128xbf16>
    %68 = tpu.concatenate %66, %65, %67 in 0 : vector<1x16x128xbf16>, vector<16x16x128xbf16>, vector<1x16x128xbf16> -> vector<18x16x128xbf16>
    %69 = vector.extract_strided_slice %68 {offsets = [0, 1, 0], sizes = [18, 1, 128], strides = [1, 1, 1]} : vector<18x16x128xbf16> to vector<18x1x128xbf16>
    %70 = vector.extract_strided_slice %68 {offsets = [0, 14, 0], sizes = [18, 1, 128], strides = [1, 1, 1]} : vector<18x16x128xbf16> to vector<18x1x128xbf16>
    %cst_53 = arith.constant 0.000000e+00 : bf16
    %71 = vector.broadcast %cst_53 : bf16 to vector<18x6x128xbf16>
    %72 = tpu.concatenate %69, %68, %70, %71 in 1 : vector<18x1x128xbf16>, vector<18x16x128xbf16>, vector<18x1x128xbf16>, vector<18x6x128xbf16> -> vector<18x24x128xbf16>
    %c0_54 = arith.constant 0 : index
    %c0_55 = arith.constant 0 : index
    %c0_56 = arith.constant 0 : index
    %73 = vector.load %arg7[%c0_54, %c0_55, %c0_56] : memref<18x24x128xbf16, #tpu.memory_space<vmem>>, vector<18x24x128xbf16>
    tpu.vector_store %arg7[%c0_54, %c0_55, %c0_56], %72 {strides = array<i32>} : memref<18x24x128xbf16, #tpu.memory_space<vmem>>, vector<18x24x128xbf16>,
    %cst_57 = arith.constant 0.000000e+00 : f32
    %74 = vector.broadcast %cst_57 : f32 to vector<256x128xf32>
    %c0_58 = arith.constant 0 : index
    %c0_59 = arith.constant 0 : index
    %c0_60 = arith.constant 0 : index
    %75 = vector.load %arg7[%c0_58, %c0_59, %c0_60] : memref<18x24x128xbf16, #tpu.memory_space<vmem>>, vector<16x16x128xbf16>
    %c0_61 = arith.constant 0 : index
    %c1_62 = arith.constant 1 : index
    %c0_63 = arith.constant 0 : index
    %76 = vector.load %arg7[%c0_61, %c1_62, %c0_63] : memref<18x24x128xbf16, #tpu.memory_space<vmem>>, vector<16x16x128xbf16>
    %c0_64 = arith.constant 0 : index
    %c2_65 = arith.constant 2 : index
    %c0_66 = arith.constant 0 : index
    %77 = vector.load %arg7[%c0_64, %c2_65, %c0_66] : memref<18x24x128xbf16, #tpu.memory_space<vmem>>, vector<16x16x128xbf16>
    %78 = tpu.concatenate %75, %76, %77 in 2 : vector<16x16x128xbf16>, vector<16x16x128xbf16>, vector<16x16x128xbf16> -> vector<16x16x384xbf16>
    %79 = vector.shape_cast %78 : vector<16x16x384xbf16> to vector<256x384xbf16>
    %c0_67 = arith.constant 0 : index
    %c0_68 = arith.constant 0 : index
    %c0_69 = arith.constant 0 : index
    %80 = vector.load %arg4[%c0_67, %c0_68, %c0_69] : memref<3x384x128xbf16, #tpu.memory_space<vmem>>, vector<1x384x128xbf16>
    %81 = vector.shape_cast %80 : vector<1x384x128xbf16> to vector<384x128xbf16>
    %cst_70 = arith.constant dense<0.000000e+00> : vector<256x128xf32>
    %82 = tpu.matmul %79, %81, %cst_70 {dimension_numbers = #tpu.dot_dimension_numbers<[1], [0], [0], [1], [0, 0, 1, 1], [], []>} : vector<256x384xbf16>, vector<384x128xbf16>, vector<256x128xf32> -> vector<256x128xf32>
    %83 = arith.addf %74, %82 : vector<256x128xf32>
    %c1_71 = arith.constant 1 : index
    %c0_72 = arith.constant 0 : index
    %c0_73 = arith.constant 0 : index
    %84 = vector.load %arg7[%c1_71, %c0_72, %c0_73] : memref<18x24x128xbf16, #tpu.memory_space<vmem>>, vector<16x16x128xbf16>
    %c1_74 = arith.constant 1 : index
    %c1_75 = arith.constant 1 : index
    %c0_76 = arith.constant 0 : index
    %85 = vector.load %arg7[%c1_74, %c1_75, %c0_76] : memref<18x24x128xbf16, #tpu.memory_space<vmem>>, vector<16x16x128xbf16>
    %c1_77 = arith.constant 1 : index
    %c2_78 = arith.constant 2 : index
    %c0_79 = arith.constant 0 : index
    %86 = vector.load %arg7[%c1_77, %c2_78, %c0_79] : memref<18x24x128xbf16, #tpu.memory_space<vmem>>, vector<16x16x128xbf16>
    %87 = tpu.concatenate %84, %85, %86 in 2 : vector<16x16x128xbf16>, vector<16x16x128xbf16>, vector<16x16x128xbf16> -> vector<16x16x384xbf16>
    %88 = vector.shape_cast %87 : vector<16x16x384xbf16> to vector<256x384xbf16>
    %c1_80 = arith.constant 1 : index
    %c0_81 = arith.constant 0 : index
    %c0_82 = arith.constant 0 : index
    %89 = vector.load %arg4[%c1_80, %c0_81, %c0_82] : memref<3x384x128xbf16, #tpu.memory_space<vmem>>, vector<1x384x128xbf16>
    %90 = vector.shape_cast %89 : vector<1x384x128xbf16> to vector<384x128xbf16>
    %cst_83 = arith.constant dense<0.000000e+00> : vector<256x128xf32>
    %91 = tpu.matmul %88, %90, %cst_83 {dimension_numbers = #tpu.dot_dimension_numbers<[1], [0], [0], [1], [0, 0, 1, 1], [], []>} : vector<256x384xbf16>, vector<384x128xbf16>, vector<256x128xf32> -> vector<256x128xf32>
    %92 = arith.addf %83, %91 : vector<256x128xf32>
    %c2_84 = arith.constant 2 : index
    %c0_85 = arith.constant 0 : index
    %c0_86 = arith.constant 0 : index
    %93 = vector.load %arg7[%c2_84, %c0_85, %c0_86] : memref<18x24x128xbf16, #tpu.memory_space<vmem>>, vector<16x16x128xbf16>
    %c2_87 = arith.constant 2 : index
    %c1_88 = arith.constant 1 : index
    %c0_89 = arith.constant 0 : index
    %94 = vector.load %arg7[%c2_87, %c1_88, %c0_89] : memref<18x24x128xbf16, #tpu.memory_space<vmem>>, vector<16x16x128xbf16>
    %c2_90 = arith.constant 2 : index
    %c2_91 = arith.constant 2 : index
    %c0_92 = arith.constant 0 : index
    %95 = vector.load %arg7[%c2_90, %c2_91, %c0_92] : memref<18x24x128xbf16, #tpu.memory_space<vmem>>, vector<16x16x128xbf16>
    %96 = tpu.concatenate %93, %94, %95 in 2 : vector<16x16x128xbf16>, vector<16x16x128xbf16>, vector<16x16x128xbf16> -> vector<16x16x384xbf16>
    %97 = vector.shape_cast %96 : vector<16x16x384xbf16> to vector<256x384xbf16>
    %c2_93 = arith.constant 2 : index
    %c0_94 = arith.constant 0 : index
    %c0_95 = arith.constant 0 : index
    %98 = vector.load %arg4[%c2_93, %c0_94, %c0_95] : memref<3x384x128xbf16, #tpu.memory_space<vmem>>, vector<1x384x128xbf16>
    %99 = vector.shape_cast %98 : vector<1x384x128xbf16> to vector<384x128xbf16>
    %cst_96 = arith.constant dense<0.000000e+00> : vector<256x128xf32>
    %100 = tpu.matmul %97, %99, %cst_96 {dimension_numbers = #tpu.dot_dimension_numbers<[1], [0], [0], [1], [0, 0, 1, 1], [], []>} : vector<256x384xbf16>, vector<384x128xbf16>, vector<256x128xf32> -> vector<256x128xf32>
    %101 = arith.addf %92, %100 : vector<256x128xf32>
    %c0_97 = arith.constant 0 : index
    %c0_98 = arith.constant 0 : index
    %102 = vector.load %arg5[%c0_97, %c0_98] : memref<1x128xf32, #tpu.memory_space<vmem>>, vector<1x128xf32>
    %103 = vector.broadcast %102 : vector<1x128xf32> to vector<256x128xf32>
    %104 = arith.addf %101, %103 : vector<256x128xf32>
    %cst_99 = arith.constant dense<0.000000e+00> : vector<128xf32>
    %105 = vector.multi_reduction <add>, %104, %cst_99 [0] : vector<256x128xf32> to vector<128xf32>
    %106 = vector.shape_cast %105 : vector<128xf32> to vector<1x128xf32>
    %107 = arith.mulf %104, %104 : vector<256x128xf32>
    %cst_100 = arith.constant dense<0.000000e+00> : vector<128xf32>
    %108 = vector.multi_reduction <add>, %107, %cst_100 [0] : vector<256x128xf32> to vector<128xf32>
    %109 = vector.shape_cast %108 : vector<128xf32> to vector<1x128xf32>
    %cst_101 = arith.constant 3.906250e-03 : f32
    %110 = vector.broadcast %cst_101 : f32 to vector<1x128xf32>
    %111 = arith.mulf %106, %110 : vector<1x128xf32>
    %cst_102 = arith.constant 3.906250e-03 : f32
    %112 = vector.broadcast %cst_102 : f32 to vector<1x128xf32>
    %113 = arith.mulf %109, %112 : vector<1x128xf32>
    %114 = arith.mulf %111, %111 : vector<1x128xf32>
    %115 = arith.subf %113, %114 : vector<1x128xf32>
    %cst_103 = arith.constant 0.000000e+00 : f32
    %116 = vector.broadcast %cst_103 : f32 to vector<1x128xf32>
    %117 = arith.maximumf %115, %116 : vector<1x128xf32>
    %118 = vector.broadcast %111 : vector<1x128xf32> to vector<256x128xf32>
    %119 = arith.subf %104, %118 : vector<256x128xf32>
    %cst_104 = arith.constant 9.99999974E-6 : f32
    %120 = vector.broadcast %cst_104 : f32 to vector<1x128xf32>
    %121 = arith.addf %117, %120 : vector<1x128xf32>
    %122 = math.rsqrt %121 : vector<1x128xf32>
    %123 = vector.broadcast %122 : vector<1x128xf32> to vector<256x128xf32>
    %124 = arith.mulf %119, %123 : vector<256x128xf32>
    %c0_105 = arith.constant 0 : index
    %c0_106 = arith.constant 0 : index
    %c0_107 = arith.constant 0 : index
    %c0_108 = arith.constant 0 : index
    %125 = vector.load %arg1[%c0_105, %c0_106, %c0_107, %c0_108] : memref<1x16x16x128xf32, #tpu.memory_space<vmem>>, vector<1x16x16x128xf32>
    %126 = vector.shape_cast %125 : vector<1x16x16x128xf32> to vector<16x16x128xf32>
    %127 = vector.shape_cast %124 : vector<256x128xf32> to vector<16x16x128xf32>
    %128 = arith.addf %126, %127 : vector<16x16x128xf32>
    %c0_109 = arith.constant 0 : index
    %c0_110 = arith.constant 0 : index
    %c0_111 = arith.constant 0 : index
    %c0_112 = arith.constant 0 : index
    %129 = vector.load %arg6[%c0_109, %c0_110, %c0_111, %c0_112] : memref<1x16x16x128xf32, #tpu.memory_space<vmem>>, vector<1x16x16x128xf32>
    %130 = vector.shape_cast %129 : vector<1x16x16x128xf32> to vector<16x16x128xf32>
    %131 = vector.shape_cast %128 : vector<16x16x128xf32> to vector<1x16x16x128xf32>
    tpu.vector_store %arg6[%c0_109, %c0_110, %c0_111, %c0_112], %131 {strides = array<i32>} : memref<1x16x16x128xf32, #tpu.memory_space<vmem>>, vector<1x16x16x128xf32>,
    return
  }
  func.func @transform_0(%arg0: i32) -> (i32, i32, i32, i32) {
    %c0_i32 = arith.constant 0 : i32
    %c0_i32_0 = arith.constant 0 : i32
    %c0_i32_1 = arith.constant 0 : i32
    %c0_i32_2 = arith.constant 0 : i32
    return %arg0, %c0_i32, %c0_i32_0, %c0_i32_1 : i32, i32, i32, i32
  }
  func.func @transform_1(%arg0: i32) -> (i32, i32, i32) {
    %c0_i32 = arith.constant 0 : i32
    %c0_i32_0 = arith.constant 0 : i32
    %c0_i32_1 = arith.constant 0 : i32
    %c0_i32_2 = arith.constant 0 : i32
    return %c0_i32, %c0_i32_0, %c0_i32_1 : i32, i32, i32
  }
  func.func @transform_2(%arg0: i32) -> (i32, i32) {
    %c0_i32 = arith.constant 0 : i32
    %c0_i32_0 = arith.constant 0 : i32
    %c0_i32_1 = arith.constant 0 : i32
    return %c0_i32, %c0_i32_0 : i32, i32
  }
  func.func @transform_3(%arg0: i32) -> (i32, i32, i32) {
    %c0_i32 = arith.constant 0 : i32
    %c0_i32_0 = arith.constant 0 : i32
    %c0_i32_1 = arith.constant 0 : i32
    %c0_i32_2 = arith.constant 0 : i32
    return %c0_i32, %c0_i32_0, %c0_i32_1 : i32, i32, i32
  }
  func.func @transform_4(%arg0: i32) -> (i32, i32) {
    %c0_i32 = arith.constant 0 : i32
    %c0_i32_0 = arith.constant 0 : i32
    %c0_i32_1 = arith.constant 0 : i32
    return %c0_i32, %c0_i32_0 : i32, i32
  }
  func.func @transform_5(%arg0: i32) -> (i32, i32, i32, i32) {
    %c0_i32 = arith.constant 0 : i32
    %c0_i32_0 = arith.constant 0 : i32
    %c0_i32_1 = arith.constant 0 : i32
    %c0_i32_2 = arith.constant 0 : i32
    return %arg0, %c0_i32, %c0_i32_0, %c0_i32_1 : i32, i32, i32, i32
  }
}

</mosaic_0001>

<llo_original>
// kernel: residual_block.1
$region0: #{residual_block.1}
  #allocation0 [shape = 'u32[]', space=smem, size = 0x4, offset = 0x4, fixed_abs, tag = 'smem constant byte address 0x4 - core index']
  #allocation1 [shape = 'u32[144,128]{1,0:T(1,128)}', space=vmem, size = 0x12000, scoped, tag = 'internal scratch']
  #allocation2 [shape = 'bf16[18,24,128]{2,1,0:T(8,128)(2,1)}', space=vmem, size = 0x1b000, scoped, tag = 'scratch operand']
  %s0 = inlined_call_operand.hbm [shape: f32[2,16,16,128], index: 0, kind: input, shape index: {}, may-alias: {0,5}]
  %s1 = inlined_call_operand.hbm [shape: bf16[3,384,128], index: 1, kind: input, shape index: {}]
  %s2 = inlined_call_operand.hbm [shape: f32[1,128], index: 2, kind: input, shape index: {}]
  %s3 = inlined_call_operand.hbm [shape: bf16[3,384,128], index: 3, kind: input, shape index: {}]
  %s4 = inlined_call_operand.hbm [shape: f32[1,128], index: 4, kind: input, shape index: {}]
  %s5 = inlined_call_operand.hbm [shape: f32[2,16,16,128], index: 5, kind: output, shape index: {}, may-alias: {0,5}]
  %s6 = sld [smem:[#allocation0]]
  $region73: #{residual_block.1} parent=0
    _
  %s8 = ssub.s32 1, %s6
  %s9 = scalar_select 0, %s8, %s6
  $region1: #{residual_block.1} parent=0
    #allocation3 [shape = 'u8[262144]{0}', space=vmem, size = 0x40000, scoped, tag = 'input window, operand 0']
    #allocation4 [shape = 's32[2]{0}', space=sflag, size = 0x8, scoped, tag = 'scoped memory for residual_block.1']
    #allocation5 [shape = 's32[2]{0}', space=sflag, size = 0x8, scoped, tag = 'scoped memory for residual_block.1']
    #allocation6 [shape = 'u8[294912]{0}', space=vmem, size = 0x48000, scoped, tag = 'input window, operand 1, single buffered']
    #allocation7 [shape = 's32[1]{0}', space=sflag, size = 0x4, scoped, tag = 'scoped memory for residual_block.1']
    #allocation8 [shape = 'u8[512]{0}', space=vmem, size = 0x400, scoped, tag = 'input window, operand 2, single buffered']
    #allocation9 [shape = 'u8[294912]{0}', space=vmem, size = 0x48000, scoped, tag = 'input window, operand 3, single buffered']
    #allocation10 [shape = 's32[1]{0}', space=sflag, size = 0x4, scoped, tag = 'scoped memory for residual_block.1']
    #allocation11 [shape = 'u8[512]{0}', space=vmem, size = 0x400, scoped, tag = 'input window, operand 4, single buffered']
    #allocation12 [shape = 'u8[262144]{0}', space=vmem, size = 0x40000, scoped, tag = 'output window, operand 0']
    %10 = vsyncpa [#allocation4], 0
    %s11 = scalar_lea.sflag [#allocation4], 1
    %12 = vsyncpa %s11, 0
    %13 = vsyncpa [#allocation7], 0
    %14 = vsyncpa [#allocation10], 0
    %15 = vsyncpa [#allocation5], 0
    %s16 = scalar_lea.sflag [#allocation5], 1
    %17 = vsyncpa %s16, 0
    loop: start=0, step=1, limit=4
    $region2: #{residual_block.1} parent=1 // loop_pre_header
      _
    $region3: #{residual_block.1} parent=1 // loop_header
      %s19 = sphi 0, %s23
      %p20 = scmp.ge.s32.totalorder %s19, 4
      %s29 = sphi 0, %s31
      %s32 = sphi 0, %s29
      %s33 = sphi 0, %s32
      %s49 = sphi 0, %s33
      %s53 = sphi 0, %s53
      %s55 = sphi 0, %s53
      %s56 = sphi 0, %s55
      %s70 = sphi 0, %s56
      %s74 = sphi 0, %s74
      %s76 = sphi 0, %s74
      %s77 = sphi 0, %s76
      %s91 = sphi 0, %s77
      %s95 = sphi 0, %s95
      %s97 = sphi 0, %s95
      %s98 = sphi 0, %s97
      %s112 = sphi 0, %s98
      %s116 = sphi 0, %s116
      %s118 = sphi 0, %s116
      %s119 = sphi 0, %s118
      %s133 = sphi 0, %s119
      %s139 = sphi 0, %s141
      %s142 = sphi 0, %s139
      %s143 = sphi 0, %s142
      %s159 = sphi 0, %s143
    $region4: #{residual_block.1} parent=1 // loop_header_branch
      %22 = sbr.rel (%p20) target = $region8
    $region5: #{residual_block.1} parent=1 // loop_body
      %s24 = ssub.s32 %s19, 1
      %s25 = ssub.s32 %s19, 2
      %s26 = sadd.s32 %s19, 1
      %s27 = ssub.s32 %s19, %s26
      %p28 = scmp.eq.s32.totalorder %s27, 0
      %s30 = sadd.s32 %s29, 1
      %s31 = scalar_select %p28, %s29, %s30
      %p34 = pneg %p28
      %p35 = scmp.eq.s32.totalorder %s19, 1
      %p36 = por %p34, %p35
      %p37 = scmp.ne.s32.totalorder %s29, %s32
      %p38 = scmp.eq.s32.totalorder %s19, 0
      %p39 = por %p37, %p38
      %p40 = scmp.ne.s32.totalorder %s29, %s32
      %p41 = scmp.eq.s32.totalorder %s24, 1
      %p42 = por %p40, %p41
      %p43 = scmp.ne.s32.totalorder %s32, %s33
      %p44 = scmp.eq.s32.totalorder %s24, 0
      %p45 = por %p43, %p44
      %p46 = scmp.ne.s32.totalorder %s32, %s33
      %p47 = scmp.eq.s32.totalorder %s25, 1
      %p48 = por %p46, %p47
      %p50 = scmp.ne.s32.totalorder %s33, %s49
      %p51 = scmp.eq.s32.totalorder %s25, 0
      %p52 = por %p50, %p51
      %s54 = sadd.s32 %s53, 1
      %p57 = scmp.eq.s32.totalorder %s19, 1
      %p58 = scmp.ne.s32.totalorder %s53, %s55
      %p59 = scmp.eq.s32.totalorder %s19, 0
      %p60 = por %p58, %p59
      %p61 = scmp.ne.s32.totalorder %s53, %s55
      %p62 = scmp.eq.s32.totalorder %s24, 1
      %p63 = por %p61, %p62
      %p64 = scmp.ne.s32.totalorder %s55, %s56
      %p65 = scmp.eq.s32.totalorder %s24, 0
      %p66 = por %p64, %p65
      %p67 = scmp.ne.s32.totalorder %s55, %s56
      %p68 = scmp.eq.s32.totalorder %s25, 1
      %p69 = por %p67, %p68
      %p71 = scmp.ne.s32.totalorder %s56, %s70
      %p72 = scmp.eq.s32.totalorder %s25, 0
      %p73 = por %p71, %p72
      %s75 = sadd.s32 %s74, 1
      %p78 = scmp.eq.s32.totalorder %s19, 1
      %p79 = scmp.ne.s32.totalorder %s74, %s76
      %p80 = scmp.eq.s32.totalorder %s19, 0
      %p81 = por %p79, %p80
      %p82 = scmp.ne.s32.totalorder %s74, %s76
      %p83 = scmp.eq.s32.totalorder %s24, 1
      %p84 = por %p82, %p83
      %p85 = scmp.ne.s32.totalorder %s76, %s77
      %p86 = scmp.eq.s32.totalorder %s24, 0
      %p87 = por %p85, %p86
      %p88 = scmp.ne.s32.totalorder %s76, %s77
      %p89 = scmp.eq.s32.totalorder %s25, 1
      %p90 = por %p88, %p89
      %p92 = scmp.ne.s32.totalorder %s77, %s91
      %p93 = scmp.eq.s32.totalorder %s25, 0
      %p94 = por %p92, %p93
      %s96 = sadd.s32 %s95, 1
      %p99 = scmp.eq.s32.totalorder %s19, 1
      %p100 = scmp.ne.s32.totalorder %s95, %s97
      %p101 = scmp.eq.s32.totalorder %s19, 0
      %p102 = por %p100, %p101
      %p103 = scmp.ne.s32.totalorder %s95, %s97
      %p104 = scmp.eq.s32.totalorder %s24, 1
      %p105 = por %p103, %p104
      %p106 = scmp.ne.s32.totalorder %s97, %s98
      %p107 = scmp.eq.s32.totalorder %s24, 0
      %p108 = por %p106, %p107
      %p109 = scmp.ne.s32.totalorder %s97, %s98
      %p110 = scmp.eq.s32.totalorder %s25, 1
      %p111 = por %p109, %p110
      %p113 = scmp.ne.s32.totalorder %s98, %s112
      %p114 = scmp.eq.s32.totalorder %s25, 0
      %p115 = por %p113, %p114
      %s117 = sadd.s32 %s116, 1
      %p120 = scmp.eq.s32.totalorder %s19, 1
      %p121 = scmp.ne.s32.totalorder %s116, %s118
      %p122 = scmp.eq.s32.totalorder %s19, 0
      %p123 = por %p121, %p122
      %p124 = scmp.ne.s32.totalorder %s116, %s118
      %p125 = scmp.eq.s32.totalorder %s24, 1
      %p126 = por %p124, %p125
      %p127 = scmp.ne.s32.totalorder %s118, %s119
      %p128 = scmp.eq.s32.totalorder %s24, 0
      %p129 = por %p127, %p128
      %p130 = scmp.ne.s32.totalorder %s118, %s119
      %p131 = scmp.eq.s32.totalorder %s25, 1
      %p132 = por %p130, %p131
      %p134 = scmp.ne.s32.totalorder %s119, %s133
      %p135 = scmp.eq.s32.totalorder %s25, 0
      %p136 = por %p134, %p135
      %s137 = ssub.s32 %s19, %s26
      %p138 = scmp.eq.s32.totalorder %s137, 0
      %s140 = sadd.s32 %s139, 1
      %s141 = scalar_select %p138, %s139, %s140
      %p144 = pneg %p138
      %p145 = scmp.eq.s32.totalorder %s19, 1
      %p146 = por %p144, %p145
      %p147 = scmp.ne.s32.totalorder %s139, %s142
      %p148 = scmp.eq.s32.totalorder %s19, 0
      %p149 = por %p147, %p148
      %p150 = scmp.ne.s32.totalorder %s139, %s142
      %p151 = scmp.eq.s32.totalorder %s24, 1
      %p152 = por %p150, %p151
      %p153 = scmp.ne.s32.totalorder %s142, %s143
      %p154 = scmp.eq.s32.totalorder %s24, 0
      %p155 = por %p153, %p154
      %p156 = scmp.ne.s32.totalorder %s142, %s143
      %p157 = scmp.eq.s32.totalorder %s25, 1
      %p158 = por %p156, %p157
      %p160 = scmp.ne.s32.totalorder %s143, %s159
      %p161 = scmp.eq.s32.totalorder %s25, 0
      %p162 = por %p160, %p161
      %p163 = scmp.le.s32.totalorder 1, %s19
      %p164 = scmp.lt.s32.totalorder %s19, 3
      %p165 = pnand %p163, %p164
      %p166 = pneg %p165
      // Predicated region
      $region9: #{residual_block.1} parent=5 // pred_check
        _
      $region10: #{residual_block.1} parent=5 // pred_check_branch
        %168 = sbr.rel (%p165) target = $region12
      $region11: #{residual_block.1} parent=5 // pred_region
        %s169 = ssub.s32 %s19, 1
        // Predicated region
        $region13: #{residual_block.1} parent=11 // pred_check
          %p170 = pneg %p66
        $region14: #{residual_block.1} parent=11 // pred_check_branch
          %172 = sbr.rel (%p170) target = $region16
        $region15: #{residual_block.1} parent=11 // pred_region
          %s174 = ssub.s32 9216, 9216
          %175 = vsyncadd [#allocation7], %s174
          %s176 = sshll.u32 [#allocation6], 4
          %s177 = int_to_ptr.vmem [resolvable:$true] %s176
          %182 = dma.hbm_to_vmem [thread:$0]  %s1, 9216, %s177, [#allocation7], 64, 64, 4
        $region16: #{residual_block.1} parent=11 // pred_fallthru
          _
        // Predicated region
        $region17: #{residual_block.1} parent=11 // pred_check
          %p183 = pneg %p87
        $region18: #{residual_block.1} parent=11 // pred_check_branch
          %185 = sbr.rel (%p183) target = $region20
        $region19: #{residual_block.1} parent=11 // pred_region
          %s187 = ssub.s32 16, 16
          %188 = vsyncadd [#allocation7], %s187
          %s190 = sshll.u32 [#allocation8], 4
          %s191 = int_to_ptr.vmem [resolvable:$true] %s190
          %193 = dma.hbm_to_vmem [thread:$0]  %s2, 16, %s191, [#allocation7]
        $region20: #{residual_block.1} parent=11 // pred_fallthru
          _
        // Predicated region
        $region21: #{residual_block.1} parent=11 // pred_check
          %p194 = pneg %p108
        $region22: #{residual_block.1} parent=11 // pred_check_branch
          %196 = sbr.rel (%p194) target = $region24
        $region23: #{residual_block.1} parent=11 // pred_region
          %s198 = ssub.s32 9216, 9216
          %199 = vsyncadd [#allocation10], %s198
          %s200 = sshll.u32 [#allocation9], 4
          %s201 = int_to_ptr.vmem [resolvable:$true] %s200
          %206 = dma.hbm_to_vmem [thread:$0]  %s3, 9216, %s201, [#allocation10], 64, 64, 4
        $region24: #{residual_block.1} parent=11 // pred_fallthru
          _
        // Predicated region
        $region25: #{residual_block.1} parent=11 // pred_check
          %p207 = pneg %p129
        $region26: #{residual_block.1} parent=11 // pred_check_branch
          %209 = sbr.rel (%p207) target = $region28
        $region27: #{residual_block.1} parent=11 // pred_region
          %s211 = ssub.s32 16, 16
          %212 = vsyncadd [#allocation10], %s211
          %s214 = sshll.u32 [#allocation11], 4
          %s215 = int_to_ptr.vmem [resolvable:$true] %s214
          %217 = dma.hbm_to_vmem [thread:$0]  %s4, 16, %s215, [#allocation10]
        $region28: #{residual_block.1} parent=11 // pred_fallthru
          _
      $region12: #{residual_block.1} parent=5 // pred_fallthru
        _
      %p218 = scmp.lt.s32.totalorder %s19, 2
      // Predicated region
      $region29: #{residual_block.1} parent=5 // pred_check
        %p219 = pneg %p218
      $region30: #{residual_block.1} parent=5 // pred_check_branch
        %221 = sbr.rel (%p219) target = $region32
      $region31: #{residual_block.1} parent=5 // pred_region
        // Predicated region
        $region33: #{residual_block.1} parent=31 // pred_check
          %p222 = pneg %p39
        $region34: #{residual_block.1} parent=31 // pred_check_branch
          %224 = sbr.rel (%p222) target = $region36
        $region35: #{residual_block.1} parent=31 // pred_region
          %s225 = sand.u32 %s29, 1
          %s226 = scalar_lea.sflag [#allocation4], %s225
          %s227 = sand.u32 %s29, 1
          %s228 = smul.addr %s227, 256
          %s229 = scalar_lea.vmem [#allocation3], %s228
          %s231 = ssub.s32 4096, 4096
          %232 = vsyncadd %s226, %s231
          %s233 = smul.addr %s19, 32
          %s234 = smul.addr %s233, 128
          %s235 = scalar_lea.hbm %s0, %s234
          %s236 = sshll.u32 %s229, 4
          %s237 = int_to_ptr.vmem [resolvable:$true] %s236
          %242 = dma.hbm_to_vmem [thread:$0]  %s235, 4096, %s237, %s226, 128, 128, 8
        $region36: #{residual_block.1} parent=31 // pred_fallthru
          _
      $region32: #{residual_block.1} parent=5 // pred_fallthru
        _
      %p243 = scmp.le.s32.totalorder 1, %s19
      %p244 = scmp.lt.s32.totalorder %s19, 3
      %p245 = pnand %p243, %p244
      %p246 = pneg %p245
      // Predicated region
      $region37: #{residual_block.1} parent=5 // pred_check
        _
      $region38: #{residual_block.1} parent=5 // pred_check_branch
        %248 = sbr.rel (%p245) target = $region40
      $region39: #{residual_block.1} parent=5 // pred_region
        %s249 = ssub.s32 %s19, 1
        %s250 = sand.u32 %s32, 1
        %s251 = scalar_lea.sflag [#allocation4], %s250
        %s252 = sand.u32 %s32, 1
        %s253 = smul.addr %s252, 256
        %s254 = scalar_lea.vmem [#allocation3], %s253
        // Predicated region
        $region41: #{residual_block.1} parent=39 // pred_check
          %p255 = pneg %p45
        $region42: #{residual_block.1} parent=39 // pred_check_branch
          %257 = sbr.rel (%p255) target = $region44
        $region43: #{residual_block.1} parent=39 // pred_region
          %258 = dma.done %s251, 4096
        $region44: #{residual_block.1} parent=39 // pred_fallthru
          _
        // Predicated region
        $region45: #{residual_block.1} parent=39 // pred_check
          %p259 = pneg %p66
        $region46: #{residual_block.1} parent=39 // pred_check_branch
          %261 = sbr.rel (%p259) target = $region48
        $region47: #{residual_block.1} parent=39 // pred_region
          %262 = dma.done [#allocation7], 9216
        $region48: #{residual_block.1} parent=39 // pred_fallthru
          _
        // Predicated region
        $region49: #{residual_block.1} parent=39 // pred_check
          %p263 = pneg %p87
        $region50: #{residual_block.1} parent=39 // pred_check_branch
          %265 = sbr.rel (%p263) target = $region52
        $region51: #{residual_block.1} parent=39 // pred_region
          %266 = dma.done [#allocation7], 16
        $region52: #{residual_block.1} parent=39 // pred_fallthru
          _
        // Predicated region
        $region53: #{residual_block.1} parent=39 // pred_check
          %p267 = pneg %p108
        $region54: #{residual_block.1} parent=39 // pred_check_branch
          %269 = sbr.rel (%p267) target = $region56
        $region55: #{residual_block.1} parent=39 // pred_region
          %270 = dma.done [#allocation10], 9216
        $region56: #{residual_block.1} parent=39 // pred_fallthru
          _
        // Predicated region
        $region57: #{residual_block.1} parent=39 // pred_check
          %p271 = pneg %p129
        $region58: #{residual_block.1} parent=39 // pred_check_branch
          %273 = sbr.rel (%p271) target = $region60
        $region59: #{residual_block.1} parent=39 // pred_region
          %274 = dma.done [#allocation10], 16
        $region60: #{residual_block.1} parent=39 // pred_fallthru
          _
        %s275 = sand.u32 %s32, 1
        %s276 = scalar_lea.sflag [#allocation4], %s275
        %s277 = sand.u32 %s32, 1
        %s278 = smul.addr %s277, 256
        %s279 = scalar_lea.vmem [#allocation3], %s278
        %p280 = pneg %p45
        %p281 = pneg %p42
        %p282 = pneg %p66
        %p283 = pneg %p63
        %p284 = pneg %p87
        %p285 = pneg %p84
        %p286 = pneg %p108
        %p287 = pneg %p105
        %p288 = pneg %p129
        %p289 = pneg %p126
        %p290 = pneg %p155
        %p291 = pneg %p152
        %s292 = sand.u32 %s142, 1
        %s293 = scalar_lea.sflag [#allocation5], %s292
        %s294 = sand.u32 %s142, 1
        %s295 = smul.addr %s294, 256
        %s296 = scalar_lea.vmem [#allocation12], %s295
        %v298 = vld [vmem:[%s254] sm:$0xff]
        %v299 = vld [vmem:[%s254 + $0x8] sm:$0xff]
        %v300 = vld [vmem:[%s254 + $0x10] sm:$0xff]
        %v301 = vld [vmem:[%s254 + $0x18] sm:$0xff]
        %v302 = vld [vmem:[%s254 + $0x20] sm:$0xff]
        %v303 = vld [vmem:[%s254 + $0x28] sm:$0xff]
        %v304 = vld [vmem:[%s254 + $0x30] sm:$0xff]
        %v305 = vld [vmem:[%s254 + $0x38] sm:$0xff]
        %v306 = vld [vmem:[%s254 + $0x40] sm:$0xff]
        %v307 = vld [vmem:[%s254 + $0x48] sm:$0xff]
        %v308 = vld [vmem:[%s254 + $0x50] sm:$0xff]
        %v309 = vld [vmem:[%s254 + $0x58] sm:$0xff]
        %v310 = vld [vmem:[%s254 + $0x60] sm:$0xff]
        %v311 = vld [vmem:[%s254 + $0x68] sm:$0xff]
        %v312 = vld [vmem:[%s254 + $0x70] sm:$0xff]
        %v313 = vld [vmem:[%s254 + $0x78] sm:$0xff]
        %v314 = vld [vmem:[%s254 + $0x80] sm:$0xff]
        %v315 = vld [vmem:[%s254 + $0x88] sm:$0xff]
        %v316 = vld [vmem:[%s254 + $0x90] sm:$0xff]
        %v317 = vld [vmem:[%s254 + $0x98] sm:$0xff]
        %v318 = vld [vmem:[%s254 + $0xa0] sm:$0xff]
        %v319 = vld [vmem:[%s254 + $0xa8] sm:$0xff]
        %v320 = vld [vmem:[%s254 + $0xb0] sm:$0xff]
        %v321 = vld [vmem:[%s254 + $0xb8] sm:$0xff]
        %v322 = vld [vmem:[%s254 + $0xc0] sm:$0xff]
        %v323 = vld [vmem:[%s254 + $0xc8] sm:$0xff]
        %v324 = vld [vmem:[%s254 + $0xd0] sm:$0xff]
        %v325 = vld [vmem:[%s254 + $0xd8] sm:$0xff]
        %v326 = vld [vmem:[%s254 + $0xe0] sm:$0xff]
        %v327 = vld [vmem:[%s254 + $0xe8] sm:$0xff]
        %v328 = vld [vmem:[%s254 + $0xf0] sm:$0xff]
        %v329 = vld [vmem:[%s254 + $0xf8] sm:$0xff]
        %v330 = vpack.c.bf16 %v299, %v298
        %v331 = vpack.c.bf16 %v301, %v300
        %v332 = vpack.c.bf16 %v303, %v302
        %v333 = vpack.c.bf16 %v305, %v304
        %v334 = vpack.c.bf16 %v307, %v306
        %v335 = vpack.c.bf16 %v309, %v308
        %v336 = vpack.c.bf16 %v311, %v310
        %v337 = vpack.c.bf16 %v313, %v312
        %v338 = vpack.c.bf16 %v315, %v314
        %v339 = vpack.c.bf16 %v317, %v316
        %v340 = vpack.c.bf16 %v319, %v318
        %v341 = vpack.c.bf16 %v321, %v320
        %v342 = vpack.c.bf16 %v323, %v322
        %v343 = vpack.c.bf16 %v325, %v324
        %v344 = vpack.c.bf16 %v327, %v326
        %v345 = vpack.c.bf16 %v329, %v328
        %v347 = vshrl.u32 %v331, 16
        %v350 = vshrl.u32 %v330, 16
        %v353 = vshrl.u32 %v332, 16
        %v356 = vshrl.u32 %v333, 16
        %v359 = vshrl.u32 %v334, 16
        %v362 = vshrl.u32 %v335, 16
        %v365 = vshrl.u32 %v336, 16
        %v368 = vshrl.u32 %v337, 16
        %v371 = vshrl.u32 %v338, 16
        %v374 = vshrl.u32 %v339, 16
        %v377 = vshrl.u32 %v340, 16
        %v380 = vshrl.u32 %v341, 16
        %v383 = vshrl.u32 %v342, 16
        %v386 = vshrl.u32 %v343, 16
        %v389 = vshrl.u32 %v344, 16
        %v392 = vshrl.u32 %v345, 16
        %v410 = vrot.slane %v347, 7
        %v411 = vshll.u32 %v331, 16
        %v413 = vor.u32 %v410, %v411
        %v414 = vrot.slane %v350, 7
        %v415 = vshll.u32 %v330, 16
        %v417 = vor.u32 %v414, %v415
        %v418 = vrot.slane %v353, 7
        %v419 = vshll.u32 %v332, 16
        %v421 = vor.u32 %v418, %v419
        %v422 = vrot.slane %v356, 7
        %v423 = vshll.u32 %v333, 16
        %v425 = vor.u32 %v422, %v423
        %v426 = vrot.slane %v359, 7
        %v427 = vshll.u32 %v334, 16
        %v429 = vor.u32 %v426, %v427
        %v430 = vrot.slane %v362, 7
        %v431 = vshll.u32 %v335, 16
        %v433 = vor.u32 %v430, %v431
        %v434 = vrot.slane %v365, 7
        %v435 = vshll.u32 %v336, 16
        %v437 = vor.u32 %v434, %v435
        %v438 = vrot.slane %v368, 7
        %v439 = vshll.u32 %v337, 16
        %v441 = vor.u32 %v438, %v439
        %v442 = vrot.slane %v371, 7
        %v443 = vshll.u32 %v338, 16
        %v445 = vor.u32 %v442, %v443
        %v446 = vrot.slane %v374, 7
        %v447 = vshll.u32 %v339, 16
        %v449 = vor.u32 %v446, %v447
        %v450 = vrot.slane %v377, 7
        %v451 = vshll.u32 %v340, 16
        %v453 = vor.u32 %v450, %v451
        %v454 = vrot.slane %v380, 7
        %v455 = vshll.u32 %v341, 16
        %v457 = vor.u32 %v454, %v455
        %v458 = vrot.slane %v383, 7
        %v459 = vshll.u32 %v342, 16
        %v461 = vor.u32 %v458, %v459
        %v462 = vrot.slane %v386, 7
        %v463 = vshll.u32 %v343, 16
        %v465 = vor.u32 %v462, %v463
        %v466 = vrot.slane %v389, 7
        %v467 = vshll.u32 %v344, 16
        %v469 = vor.u32 %v466, %v467
        %v470 = vrot.slane %v392, 7
        %v471 = vshll.u32 %v345, 16
        %v473 = vor.u32 %v470, %v471
        %v506 = vrot.slane %v411, 7
        %v507 = vrot.slane %v415, 7
        %v508 = vrot.slane %v419, 7
        %v509 = vrot.slane %v423, 7
        %v510 = vrot.slane %v427, 7
        %v511 = vrot.slane %v431, 7
        %v512 = vrot.slane %v435, 7
        %v513 = vrot.slane %v439, 7
        %v514 = vrot.slane %v443, 7
        %v515 = vrot.slane %v447, 7
        %v516 = vrot.slane %v451, 7
        %v517 = vrot.slane %v455, 7
        %v518 = vrot.slane %v459, 7
        %v519 = vrot.slane %v463, 7
        %v520 = vrot.slane %v467, 7
        %v521 = vrot.slane %v471, 7
        %vm538 = vcmask 1040384
        %vm539 = vsmask.f32 256
        %vm540 = vmand %vm538, %vm539
        %v541 = vsel %vm540, %v347, %v413
        %v542 = vsel %vm540, %v350, %v417
        %v543 = vsel %vm540, %v353, %v421
        %v544 = vsel %vm540, %v356, %v425
        %v545 = vsel %vm540, %v359, %v429
        %v546 = vsel %vm540, %v362, %v433
        %v547 = vsel %vm540, %v365, %v437
        %v548 = vsel %vm540, %v368, %v441
        %v549 = vsel %vm540, %v371, %v445
        %v550 = vsel %vm540, %v374, %v449
        %v551 = vsel %vm540, %v377, %v453
        %v552 = vsel %vm540, %v380, %v457
        %v553 = vsel %vm540, %v383, %v461
        %v554 = vsel %vm540, %v386, %v465
        %v555 = vsel %vm540, %v389, %v469
        %v556 = vsel %vm540, %v392, %v473
        %v557 = vsel %vm540, %v410, %v506
        %v558 = vsel %vm540, %v414, %v507
        %v559 = vsel %vm540, %v418, %v508
        %v560 = vsel %vm540, %v422, %v509
        %v561 = vsel %vm540, %v426, %v510
        %v562 = vsel %vm540, %v430, %v511
        %v563 = vsel %vm540, %v434, %v512
        %v564 = vsel %vm540, %v438, %v513
        %v565 = vsel %vm540, %v442, %v514
        %v566 = vsel %vm540, %v446, %v515
        %v567 = vsel %vm540, %v450, %v516
        %v568 = vsel %vm540, %v454, %v517
        %v569 = vsel %vm540, %v458, %v518
        %v570 = vsel %vm540, %v462, %v519
        %v571 = vsel %vm540, %v466, %v520
        %v572 = vsel %vm540, %v470, %v521
        %vm573 = vcmask 1040384
        %v576 = vsel %vm573, %v557, 0
        %v578 = vsel %vm573, %v558, 0
        %v580 = vsel %vm573, %v559, 0
        %v582 = vsel %vm573, %v560, 0
        %v584 = vsel %vm573, %v561, 0
        %v586 = vsel %vm573, %v562, 0
        %v588 = vsel %vm573, %v563, 0
        %v590 = vsel %vm573, %v564, 0
        %v592 = vsel %vm573, %v565, 0
        %v594 = vsel %vm573, %v566, 0
        %v596 = vsel %vm573, %v567, 0
        %v598 = vsel %vm573, %v568, 0
        %v600 = vsel %vm573, %v569, 0
        %v602 = vsel %vm573, %v570, 0
        %v604 = vsel %vm573, %v571, 0
        %v606 = vsel %vm573, %v572, 0
        %v639 = vunpack.c.l.b16 %v541
        %v640 = vunpack.c.h.b16 %v541
        %v641 = vunpack.c.l.b16 %v576
        %v642 = vunpack.c.l.b16 %v542
        %v643 = vunpack.c.h.b16 %v542
        %v644 = vunpack.c.l.b16 %v578
        %v645 = vunpack.c.l.b16 %v543
        %v646 = vunpack.c.h.b16 %v543
        %v647 = vunpack.c.l.b16 %v580
        %v648 = vunpack.c.l.b16 %v544
        %v649 = vunpack.c.h.b16 %v544
        %v650 = vunpack.c.l.b16 %v582
        %v651 = vunpack.c.l.b16 %v545
        %v652 = vunpack.c.h.b16 %v545
        %v653 = vunpack.c.l.b16 %v584
        %v654 = vunpack.c.l.b16 %v546
        %v655 = vunpack.c.h.b16 %v546
        %v656 = vunpack.c.l.b16 %v586
        %v657 = vunpack.c.l.b16 %v547
        %v658 = vunpack.c.h.b16 %v547
        %v659 = vunpack.c.l.b16 %v588
        %v660 = vunpack.c.l.b16 %v548
        %v661 = vunpack.c.h.b16 %v548
        %v662 = vunpack.c.l.b16 %v590
        %v663 = vunpack.c.l.b16 %v549
        %v664 = vunpack.c.h.b16 %v549
        %v665 = vunpack.c.l.b16 %v592
        %v666 = vunpack.c.l.b16 %v550
        %v667 = vunpack.c.h.b16 %v550
        %v668 = vunpack.c.l.b16 %v594
        %v669 = vunpack.c.l.b16 %v551
        %v670 = vunpack.c.h.b16 %v551
        %v671 = vunpack.c.l.b16 %v596
        %v672 = vunpack.c.l.b16 %v552
        %v673 = vunpack.c.h.b16 %v552
        %v674 = vunpack.c.l.b16 %v598
        %v675 = vunpack.c.l.b16 %v553
        %v676 = vunpack.c.h.b16 %v553
        %v677 = vunpack.c.l.b16 %v600
        %v678 = vunpack.c.l.b16 %v554
        %v679 = vunpack.c.h.b16 %v554
        %v680 = vunpack.c.l.b16 %v602
        %v681 = vunpack.c.l.b16 %v555
        %v682 = vunpack.c.h.b16 %v555
        %v683 = vunpack.c.l.b16 %v604
        %v684 = vunpack.c.l.b16 %v556
        %v685 = vunpack.c.h.b16 %v556
        %v686 = vunpack.c.l.b16 %v606
        %v687 = vpack.c.b16 %v639, %v639
        %v688 = vpack.c.b16 %v640, %v640
        %v689 = vpack.c.b16 %v641, %v641
        %v690 = vpack.c.b16 %v642, %v642
        %v691 = vpack.c.b16 %v643, %v643
        %v692 = vpack.c.b16 %v644, %v644
        %v693 = vpack.c.b16 %v645, %v645
        %v694 = vpack.c.b16 %v646, %v646
        %v695 = vpack.c.b16 %v647, %v647
        %v696 = vpack.c.b16 %v648, %v648
        %v697 = vpack.c.b16 %v649, %v649
        %v698 = vpack.c.b16 %v650, %v650
        %v699 = vpack.c.b16 %v651, %v651
        %v700 = vpack.c.b16 %v652, %v652
        %v701 = vpack.c.b16 %v653, %v653
        %v702 = vpack.c.b16 %v654, %v654
        %v703 = vpack.c.b16 %v655, %v655
        %v704 = vpack.c.b16 %v656, %v656
        %v705 = vpack.c.b16 %v657, %v657
        %v706 = vpack.c.b16 %v658, %v658
        %v707 = vpack.c.b16 %v659, %v659
        %v708 = vpack.c.b16 %v660, %v660
        %v709 = vpack.c.b16 %v661, %v661
        %v710 = vpack.c.b16 %v662, %v662
        %v711 = vpack.c.b16 %v663, %v663
        %v712 = vpack.c.b16 %v664, %v664
        %v713 = vpack.c.b16 %v665, %v665
        %v714 = vpack.c.b16 %v666, %v666
        %v715 = vpack.c.b16 %v667, %v667
        %v716 = vpack.c.b16 %v668, %v668
        %v717 = vpack.c.b16 %v669, %v669
        %v718 = vpack.c.b16 %v670, %v670
        %v719 = vpack.c.b16 %v671, %v671
        %v720 = vpack.c.b16 %v672, %v672
        %v721 = vpack.c.b16 %v673, %v673
        %v722 = vpack.c.b16 %v674, %v674
        %v723 = vpack.c.b16 %v675, %v675
        %v724 = vpack.c.b16 %v676, %v676
        %v725 = vpack.c.b16 %v677, %v677
        %v726 = vpack.c.b16 %v678, %v678
        %v727 = vpack.c.b16 %v679, %v679
        %v728 = vpack.c.b16 %v680, %v680
        %v729 = vpack.c.b16 %v681, %v681
        %v730 = vpack.c.b16 %v682, %v682
        %v731 = vpack.c.b16 %v683, %v683
        %v732 = vpack.c.b16 %v684, %v684
        %v733 = vpack.c.b16 %v685, %v685
        %v734 = vpack.c.b16 %v686, %v686
        %783 = vst [vmem:[#allocation2] sm:$0xf] %v687
        %784 = vst [vmem:[#allocation2 + $0x4] sm:$0xf] %v688
        %785 = vst [vmem:[#allocation2 + $0x8] sm:$0xf] %v689
        %786 = vst [vmem:[#allocation2 + $0xc] sm:$0xf] %v690
        %787 = vst [vmem:[#allocation2 + $0x10] sm:$0xf] %v691
        %788 = vst [vmem:[#allocation2 + $0x14] sm:$0xf] %v692
        %789 = vst [vmem:[#allocation2 + $0x18] sm:$0xf] %v687
        %790 = vst [vmem:[#allocation2 + $0x1c] sm:$0xf] %v688
        %791 = vst [vmem:[#allocation2 + $0x20] sm:$0xf] %v689
        %792 = vst [vmem:[#allocation2 + $0x24] sm:$0xf] %v693
        %793 = vst [vmem:[#allocation2 + $0x28] sm:$0xf] %v694
        %794 = vst [vmem:[#allocation2 + $0x2c] sm:$0xf] %v695
        %795 = vst [vmem:[#allocation2 + $0x30] sm:$0xf] %v696
        %796 = vst [vmem:[#allocation2 + $0x34] sm:$0xf] %v697
        %797 = vst [vmem:[#allocation2 + $0x38] sm:$0xf] %v698
        %798 = vst [vmem:[#allocation2 + $0x3c] sm:$0xf] %v699
        %799 = vst [vmem:[#allocation2 + $0x40] sm:$0xf] %v700
        %800 = vst [vmem:[#allocation2 + $0x44] sm:$0xf] %v701
        %801 = vst [vmem:[#allocation2 + $0x48] sm:$0xf] %v702
        %802 = vst [vmem:[#allocation2 + $0x4c] sm:$0xf] %v703
        %803 = vst [vmem:[#allocation2 + $0x50] sm:$0xf] %v704
        %804 = vst [vmem:[#allocation2 + $0x54] sm:$0xf] %v705
        %805 = vst [vmem:[#allocation2 + $0x58] sm:$0xf] %v706
        %806 = vst [vmem:[#allocation2 + $0x5c] sm:$0xf] %v707
        %807 = vst [vmem:[#allocation2 + $0x60] sm:$0xf] %v708
        %808 = vst [vmem:[#allocation2 + $0x64] sm:$0xf] %v709
        %809 = vst [vmem:[#allocation2 + $0x68] sm:$0xf] %v710
        %810 = vst [vmem:[#allocation2 + $0x6c] sm:$0xf] %v711
        %811 = vst [vmem:[#allocation2 + $0x70] sm:$0xf] %v712
        %812 = vst [vmem:[#allocation2 + $0x74] sm:$0xf] %v713
        %813 = vst [vmem:[#allocation2 + $0x78] sm:$0xf] %v714
        %814 = vst [vmem:[#allocation2 + $0x7c] sm:$0xf] %v715
        %815 = vst [vmem:[#allocation2 + $0x80] sm:$0xf] %v716
        %816 = vst [vmem:[#allocation2 + $0x84] sm:$0xf] %v717
        %817 = vst [vmem:[#allocation2 + $0x88] sm:$0xf] %v718
        %818 = vst [vmem:[#allocation2 + $0x8c] sm:$0xf] %v719
        %819 = vst [vmem:[#allocation2 + $0x90] sm:$0xf] %v720
        %820 = vst [vmem:[#allocation2 + $0x94] sm:$0xf] %v721
        %821 = vst [vmem:[#allocation2 + $0x98] sm:$0xf] %v722
        %822 = vst [vmem:[#allocation2 + $0x9c] sm:$0xf] %v723
        %823 = vst [vmem:[#allocation2 + $0xa0] sm:$0xf] %v724
        %824 = vst [vmem:[#allocation2 + $0xa4] sm:$0xf] %v725
        %825 = vst [vmem:[#allocation2 + $0xa8] sm:$0xf] %v726
        %826 = vst [vmem:[#allocation2 + $0xac] sm:$0xf] %v727
        %827 = vst [vmem:[#allocation2 + $0xb0] sm:$0xf] %v728
        %828 = vst [vmem:[#allocation2 + $0xb4] sm:$0xf] %v729
        %829 = vst [vmem:[#allocation2 + $0xb8] sm:$0xf] %v730
        %830 = vst [vmem:[#allocation2 + $0xbc] sm:$0xf] %v731
        %831 = vst [vmem:[#allocation2 + $0xc0] sm:$0xf] %v732
        %832 = vst [vmem:[#allocation2 + $0xc4] sm:$0xf] %v733
        %833 = vst [vmem:[#allocation2 + $0xc8] sm:$0xf] %v734
        %834 = vst [vmem:[#allocation2 + $0xcc] sm:$0xf] %v729
        %835 = vst [vmem:[#allocation2 + $0xd0] sm:$0xf] %v730
        %836 = vst [vmem:[#allocation2 + $0xd4] sm:$0xf] %v731
        %v837 = vld [vmem:[#allocation2] sm:$0xf]
        %v838 = vld [vmem:[#allocation2 + $0x4] sm:$0xf]
        %v839 = vld [vmem:[#allocation2 + $0xc] sm:$0xf]
        %v840 = vld [vmem:[#allocation2 + $0x10] sm:$0xf]
        %v841 = vld [vmem:[#allocation2 + $0x18] sm:$0xf]
        %v842 = vld [vmem:[#allocation2 + $0x1c] sm:$0xf]
        %v843 = vld [vmem:[#allocation2 + $0x24] sm:$0xf]
        %v844 = vld [vmem:[#allocation2 + $0x28] sm:$0xf]
        %v845 = vld [vmem:[#allocation2 + $0x30] sm:$0xf]
        %v846 = vld [vmem:[#allocation2 + $0x34] sm:$0xf]
        %v847 = vld [vmem:[#allocation2 + $0x3c] sm:$0xf]
        %v848 = vld [vmem:[#allocation2 + $0x40] sm:$0xf]
        %v849 = vld [vmem:[#allocation2 + $0x48] sm:$0xf]
        %v850 = vld [vmem:[#allocation2 + $0x4c] sm:$0xf]
        %v851 = vld [vmem:[#allocation2 + $0x54] sm:$0xf]
        %v852 = vld [vmem:[#allocation2 + $0x58] sm:$0xf]
        %v853 = vld [vmem:[#allocation2 + $0x60] sm:$0xf]
        %v854 = vld [vmem:[#allocation2 + $0x64] sm:$0xf]
        %v855 = vld [vmem:[#allocation2 + $0x6c] sm:$0xf]
        %v856 = vld [vmem:[#allocation2 + $0x70] sm:$0xf]
        %v857 = vld [vmem:[#allocation2 + $0x78] sm:$0xf]
        %v858 = vld [vmem:[#allocation2 + $0x7c] sm:$0xf]
        %v859 = vld [vmem:[#allocation2 + $0x84] sm:$0xf]
        %v860 = vld [vmem:[#allocation2 + $0x88] sm:$0xf]
        %v861 = vld [vmem:[#allocation2 + $0x90] sm:$0xf]
        %v862 = vld [vmem:[#allocation2 + $0x94] sm:$0xf]
        %v863 = vld [vmem:[#allocation2 + $0x9c] sm:$0xf]
        %v864 = vld [vmem:[#allocation2 + $0xa0] sm:$0xf]
        %v865 = vld [vmem:[#allocation2 + $0xa8] sm:$0xf]
        %v866 = vld [vmem:[#allocation2 + $0xac] sm:$0xf]
        %v867 = vld [vmem:[#allocation2 + $0xb4] sm:$0xf]
        %v868 = vld [vmem:[#allocation2 + $0xb8] sm:$0xf]
        %v869 = vld [vmem:[#allocation2 + $0x8] sm:$0x1]
        %v870 = vld [vmem:[#allocation2 + $0x14] sm:$0x1]
        %v871 = vld [vmem:[#allocation2 + $0x20] sm:$0x1]
        %v872 = vld [vmem:[#allocation2 + $0x2c] sm:$0x1]
        %v873 = vld [vmem:[#allocation2 + $0x38] sm:$0x1]
        %v874 = vld [vmem:[#allocation2 + $0x44] sm:$0x1]
        %v875 = vld [vmem:[#allocation2 + $0x50] sm:$0x1]
        %v876 = vld [vmem:[#allocation2 + $0x5c] sm:$0x1]
        %v877 = vld [vmem:[#allocation2 + $0x68] sm:$0x1]
        %v878 = vld [vmem:[#allocation2 + $0x74] sm:$0x1]
        %v879 = vld [vmem:[#allocation2 + $0x80] sm:$0x1]
        %v880 = vld [vmem:[#allocation2 + $0x8c] sm:$0x1]
        %v881 = vld [vmem:[#allocation2 + $0x98] sm:$0x1]
        %v882 = vld [vmem:[#allocation2 + $0xa4] sm:$0x1]
        %v883 = vld [vmem:[#allocation2 + $0xb0] sm:$0x1]
        %v884 = vld [vmem:[#allocation2 + $0xbc] sm:$0x1]
        %v885 = vld [vmem:[#allocation2] sm:$0xe]
        %v886 = vld [vmem:[#allocation2 + $0xc] sm:$0xe]
        %v887 = vld [vmem:[#allocation2 + $0x18] sm:$0xe]
        %v888 = vld [vmem:[#allocation2 + $0x24] sm:$0xe]
        %v889 = vld [vmem:[#allocation2 + $0x30] sm:$0xe]
        %v890 = vld [vmem:[#allocation2 + $0x3c] sm:$0xe]
        %v891 = vld [vmem:[#allocation2 + $0x48] sm:$0xe]
        %v892 = vld [vmem:[#allocation2 + $0x54] sm:$0xe]
        %v893 = vld [vmem:[#allocation2 + $0x60] sm:$0xe]
        %v894 = vld [vmem:[#allocation2 + $0x6c] sm:$0xe]
        %v895 = vld [vmem:[#allocation2 + $0x78] sm:$0xe]
        %v896 = vld [vmem:[#allocation2 + $0x84] sm:$0xe]
        %v897 = vld [vmem:[#allocation2 + $0x90] sm:$0xe]
        %v898 = vld [vmem:[#allocation2 + $0x9c] sm:$0xe]
        %v899 = vld [vmem:[#allocation2 + $0xa8] sm:$0xe]
        %v900 = vld [vmem:[#allocation2 + $0xb4] sm:$0xe]
        %v933 = vunpack.c.l.b16 %v837
        %v934 = vunpack.c.l.b16 %v838
        %v935 = vunpack.c.l.b16 %v839
        %v936 = vunpack.c.l.b16 %v840
        %v937 = vunpack.c.l.b16 %v841
        %v938 = vunpack.c.l.b16 %v842
        %v939 = vunpack.c.l.b16 %v843
        %v940 = vunpack.c.l.b16 %v844
        %v941 = vunpack.c.l.b16 %v845
        %v942 = vunpack.c.l.b16 %v846
        %v943 = vunpack.c.l.b16 %v847
        %v944 = vunpack.c.l.b16 %v848
        %v945 = vunpack.c.l.b16 %v849
        %v946 = vunpack.c.l.b16 %v850
        %v947 = vunpack.c.l.b16 %v851
        %v948 = vunpack.c.l.b16 %v852
        %v949 = vunpack.c.l.b16 %v853
        %v950 = vunpack.c.l.b16 %v854
        %v951 = vunpack.c.l.b16 %v855
        %v952 = vunpack.c.l.b16 %v856
        %v953 = vunpack.c.l.b16 %v857
        %v954 = vunpack.c.l.b16 %v858
        %v955 = vunpack.c.l.b16 %v859
        %v956 = vunpack.c.l.b16 %v860
        %v957 = vunpack.c.l.b16 %v861
        %v958 = vunpack.c.l.b16 %v862
        %v959 = vunpack.c.l.b16 %v863
        %v960 = vunpack.c.l.b16 %v864
        %v961 = vunpack.c.l.b16 %v865
        %v962 = vunpack.c.l.b16 %v866
        %v963 = vunpack.c.l.b16 %v867
        %v964 = vunpack.c.l.b16 %v868
        %v965 = vpack.c.b16 %v934, %v933
        %v966 = vpack.c.b16 %v936, %v935
        %v967 = vpack.c.b16 %v938, %v937
        %v968 = vpack.c.b16 %v940, %v939
        %v969 = vpack.c.b16 %v942, %v941
        %v970 = vpack.c.b16 %v944, %v943
        %v971 = vpack.c.b16 %v946, %v945
        %v972 = vpack.c.b16 %v948, %v947
        %v973 = vpack.c.b16 %v950, %v949
        %v974 = vpack.c.b16 %v952, %v951
        %v975 = vpack.c.b16 %v954, %v953
        %v976 = vpack.c.b16 %v956, %v955
        %v977 = vpack.c.b16 %v958, %v957
        %v978 = vpack.c.b16 %v960, %v959
        %v979 = vpack.c.b16 %v962, %v961
        %v980 = vpack.c.b16 %v964, %v963
        %v1013 = vunpack.c.l.b16 %v869
        %v1014 = vunpack.c.l.b16 %v870
        %v1015 = vunpack.c.l.b16 %v871
        %v1016 = vunpack.c.l.b16 %v872
        %v1017 = vunpack.c.l.b16 %v873
        %v1018 = vunpack.c.l.b16 %v874
        %v1019 = vunpack.c.l.b16 %v875
        %v1020 = vunpack.c.l.b16 %v876
        %v1021 = vunpack.c.l.b16 %v877
        %v1022 = vunpack.c.l.b16 %v878
        %v1023 = vunpack.c.l.b16 %v879
        %v1024 = vunpack.c.l.b16 %v880
        %v1025 = vunpack.c.l.b16 %v881
        %v1026 = vunpack.c.l.b16 %v882
        %v1027 = vunpack.c.l.b16 %v883
        %v1028 = vunpack.c.l.b16 %v884
        %v1029 = vpack.c.b16 %v1013, %v1013
        %v1030 = vpack.c.b16 %v1014, %v1014
        %v1031 = vpack.c.b16 %v1015, %v1015
        %v1032 = vpack.c.b16 %v1016, %v1016
        %v1033 = vpack.c.b16 %v1017, %v1017
        %v1034 = vpack.c.b16 %v1018, %v1018
        %v1035 = vpack.c.b16 %v1019, %v1019
        %v1036 = vpack.c.b16 %v1020, %v1020
        %v1037 = vpack.c.b16 %v1021, %v1021
        %v1038 = vpack.c.b16 %v1022, %v1022
        %v1039 = vpack.c.b16 %v1023, %v1023
        %v1040 = vpack.c.b16 %v1024, %v1024
        %v1041 = vpack.c.b16 %v1025, %v1025
        %v1042 = vpack.c.b16 %v1026, %v1026
        %v1043 = vpack.c.b16 %v1027, %v1027
        %v1044 = vpack.c.b16 %v1028, %v1028
        %vm1045 = vsmask.f32 7424
        %v1047 = vshrl.u32 %v965, 16
        %v1049 = vshll.u32 %v965, 16
        %v1051 = vrot.slane %v1049, 1
        %v1052 = vor.u32 %v1047, %v1051
        %v1054 = vshll.u32 %v1029, 16
        %v1056 = vrot.slane %v1054, 1
        %v1057 = vsel %vm1045, %v1052, %v1056
        %v1059 = vshrl.u32 %v966, 16
        %v1061 = vshll.u32 %v966, 16
        %v1063 = vrot.slane %v1061, 1
        %v1064 = vor.u32 %v1059, %v1063
        %v1066 = vshll.u32 %v1030, 16
        %v1068 = vrot.slane %v1066, 1
        %v1069 = vsel %vm1045, %v1064, %v1068
        %v1071 = vshrl.u32 %v967, 16
        %v1073 = vshll.u32 %v967, 16
        %v1075 = vrot.slane %v1073, 1
        %v1076 = vor.u32 %v1071, %v1075
        %v1078 = vshll.u32 %v1031, 16
        %v1080 = vrot.slane %v1078, 1
        %v1081 = vsel %vm1045, %v1076, %v1080
        %v1083 = vshrl.u32 %v968, 16
        %v1085 = vshll.u32 %v968, 16
        %v1087 = vrot.slane %v1085, 1
        %v1088 = vor.u32 %v1083, %v1087
        %v1090 = vshll.u32 %v1032, 16
        %v1092 = vrot.slane %v1090, 1
        %v1093 = vsel %vm1045, %v1088, %v1092
        %v1095 = vshrl.u32 %v969, 16
        %v1097 = vshll.u32 %v969, 16
        %v1099 = vrot.slane %v1097, 1
        %v1100 = vor.u32 %v1095, %v1099
        %v1102 = vshll.u32 %v1033, 16
        %v1104 = vrot.slane %v1102, 1
        %v1105 = vsel %vm1045, %v1100, %v1104
        %v1107 = vshrl.u32 %v970, 16
        %v1109 = vshll.u32 %v970, 16
        %v1111 = vrot.slane %v1109, 1
        %v1112 = vor.u32 %v1107, %v1111
        %v1114 = vshll.u32 %v1034, 16
        %v1116 = vrot.slane %v1114, 1
        %v1117 = vsel %vm1045, %v1112, %v1116
        %v1119 = vshrl.u32 %v971, 16
        %v1121 = vshll.u32 %v971, 16
        %v1123 = vrot.slane %v1121, 1
        %v1124 = vor.u32 %v1119, %v1123
        %v1126 = vshll.u32 %v1035, 16
        %v1128 = vrot.slane %v1126, 1
        %v1129 = vsel %vm1045, %v1124, %v1128
        %v1131 = vshrl.u32 %v972, 16
        %v1133 = vshll.u32 %v972, 16
        %v1135 = vrot.slane %v1133, 1
        %v1136 = vor.u32 %v1131, %v1135
        %v1138 = vshll.u32 %v1036, 16
        %v1140 = vrot.slane %v1138, 1
        %v1141 = vsel %vm1045, %v1136, %v1140
        %v1143 = vshrl.u32 %v973, 16
        %v1145 = vshll.u32 %v973, 16
        %v1147 = vrot.slane %v1145, 1
        %v1148 = vor.u32 %v1143, %v1147
        %v1150 = vshll.u32 %v1037, 16
        %v1152 = vrot.slane %v1150, 1
        %v1153 = vsel %vm1045, %v1148, %v1152
        %v1155 = vshrl.u32 %v974, 16
        %v1157 = vshll.u32 %v974, 16
        %v1159 = vrot.slane %v1157, 1
        %v1160 = vor.u32 %v1155, %v1159
        %v1162 = vshll.u32 %v1038, 16
        %v1164 = vrot.slane %v1162, 1
        %v1165 = vsel %vm1045, %v1160, %v1164
        %v1167 = vshrl.u32 %v975, 16
        %v1169 = vshll.u32 %v975, 16
        %v1171 = vrot.slane %v1169, 1
        %v1172 = vor.u32 %v1167, %v1171
        %v1174 = vshll.u32 %v1039, 16
        %v1176 = vrot.slane %v1174, 1
        %v1177 = vsel %vm1045, %v1172, %v1176
        %v1179 = vshrl.u32 %v976, 16
        %v1181 = vshll.u32 %v976, 16
        %v1183 = vrot.slane %v1181, 1
        %v1184 = vor.u32 %v1179, %v1183
        %v1186 = vshll.u32 %v1040, 16
        %v1188 = vrot.slane %v1186, 1
        %v1189 = vsel %vm1045, %v1184, %v1188
        %v1191 = vshrl.u32 %v977, 16
        %v1193 = vshll.u32 %v977, 16
        %v1195 = vrot.slane %v1193, 1
        %v1196 = vor.u32 %v1191, %v1195
        %v1198 = vshll.u32 %v1041, 16
        %v1200 = vrot.slane %v1198, 1
        %v1201 = vsel %vm1045, %v1196, %v1200
        %v1203 = vshrl.u32 %v978, 16
        %v1205 = vshll.u32 %v978, 16
        %v1207 = vrot.slane %v1205, 1
        %v1208 = vor.u32 %v1203, %v1207
        %v1210 = vshll.u32 %v1042, 16
        %v1212 = vrot.slane %v1210, 1
        %v1213 = vsel %vm1045, %v1208, %v1212
        %v1215 = vshrl.u32 %v979, 16
        %v1217 = vshll.u32 %v979, 16
        %v1219 = vrot.slane %v1217, 1
        %v1220 = vor.u32 %v1215, %v1219
        %v1222 = vshll.u32 %v1043, 16
        %v1224 = vrot.slane %v1222, 1
        %v1225 = vsel %vm1045, %v1220, %v1224
        %v1227 = vshrl.u32 %v980, 16
        %v1229 = vshll.u32 %v980, 16
        %v1231 = vrot.slane %v1229, 1
        %v1232 = vor.u32 %v1227, %v1231
        %v1234 = vshll.u32 %v1044, 16
        %v1236 = vrot.slane %v1234, 1
        %v1237 = vsel %vm1045, %v1232, %v1236
        %v1270 = vunpack.c.l.b16 %v885
        %v1271 = vunpack.c.l.b16 %v886
        %v1272 = vunpack.c.l.b16 %v887
        %v1273 = vunpack.c.l.b16 %v888
        %v1274 = vunpack.c.l.b16 %v889
        %v1275 = vunpack.c.l.b16 %v890
        %v1276 = vunpack.c.l.b16 %v891
        %v1277 = vunpack.c.l.b16 %v892
        %v1278 = vunpack.c.l.b16 %v893
        %v1279 = vunpack.c.l.b16 %v894
        %v1280 = vunpack.c.l.b16 %v895
        %v1281 = vunpack.c.l.b16 %v896
        %v1282 = vunpack.c.l.b16 %v897
        %v1283 = vunpack.c.l.b16 %v898
        %v1284 = vunpack.c.l.b16 %v899
        %v1285 = vunpack.c.l.b16 %v900
        %v1286 = vpack.c.b16 %v934, %v1270
        %v1287 = vpack.c.b16 %v936, %v1271
        %v1288 = vpack.c.b16 %v938, %v1272
        %v1289 = vpack.c.b16 %v940, %v1273
        %v1290 = vpack.c.b16 %v942, %v1274
        %v1291 = vpack.c.b16 %v944, %v1275
        %v1292 = vpack.c.b16 %v946, %v1276
        %v1293 = vpack.c.b16 %v948, %v1277
        %v1294 = vpack.c.b16 %v950, %v1278
        %v1295 = vpack.c.b16 %v952, %v1279
        %v1296 = vpack.c.b16 %v954, %v1280
        %v1297 = vpack.c.b16 %v956, %v1281
        %v1298 = vpack.c.b16 %v958, %v1282
        %v1299 = vpack.c.b16 %v960, %v1283
        %v1300 = vpack.c.b16 %v962, %v1284
        %v1301 = vpack.c.b16 %v964, %v1285
        %vm1302 = vcmask 1046528
        %v1303 = vrot.slane %v1286, 1
        %v1304 = vrot.slane %v1029, 1
        %v1305 = vsel %vm1302, %v1303, %v1304
        %v1306 = vrot.slane %v1287, 1
        %v1307 = vrot.slane %v1030, 1
        %v1308 = vsel %vm1302, %v1306, %v1307
        %v1309 = vrot.slane %v1288, 1
        %v1310 = vrot.slane %v1031, 1
        %v1311 = vsel %vm1302, %v1309, %v1310
        %v1312 = vrot.slane %v1289, 1
        %v1313 = vrot.slane %v1032, 1
        %v1314 = vsel %vm1302, %v1312, %v1313
        %v1315 = vrot.slane %v1290, 1
        %v1316 = vrot.slane %v1033, 1
        %v1317 = vsel %vm1302, %v1315, %v1316
        %v1318 = vrot.slane %v1291, 1
        %v1319 = vrot.slane %v1034, 1
        %v1320 = vsel %vm1302, %v1318, %v1319
        %v1321 = vrot.slane %v1292, 1
        %v1322 = vrot.slane %v1035, 1
        %v1323 = vsel %vm1302, %v1321, %v1322
        %v1324 = vrot.slane %v1293, 1
        %v1325 = vrot.slane %v1036, 1
        %v1326 = vsel %vm1302, %v1324, %v1325
        %v1327 = vrot.slane %v1294, 1
        %v1328 = vrot.slane %v1037, 1
        %v1329 = vsel %vm1302, %v1327, %v1328
        %v1330 = vrot.slane %v1295, 1
        %v1331 = vrot.slane %v1038, 1
        %v1332 = vsel %vm1302, %v1330, %v1331
        %v1333 = vrot.slane %v1296, 1
        %v1334 = vrot.slane %v1039, 1
        %v1335 = vsel %vm1302, %v1333, %v1334
        %v1336 = vrot.slane %v1297, 1
        %v1337 = vrot.slane %v1040, 1
        %v1338 = vsel %vm1302, %v1336, %v1337
        %v1339 = vrot.slane %v1298, 1
        %v1340 = vrot.slane %v1041, 1
        %v1341 = vsel %vm1302, %v1339, %v1340
        %v1342 = vrot.slane %v1299, 1
        %v1343 = vrot.slane %v1042, 1
        %v1344 = vsel %vm1302, %v1342, %v1343
        %v1345 = vrot.slane %v1300, 1
        %v1346 = vrot.slane %v1043, 1
        %v1347 = vsel %vm1302, %v1345, %v1346
        %v1348 = vrot.slane %v1301, 1
        %v1349 = vrot.slane %v1044, 1
        %v1350 = vsel %vm1302, %v1348, %v1349
        %v1367 = vld [vmem:[#allocation6] sm:$0xf]
        %v1368 = vld [vmem:[#allocation6 + $0x4] sm:$0xf]
        %v1369 = vld [vmem:[#allocation6 + $0x8] sm:$0xf]
        %v1370 = vld [vmem:[#allocation6 + $0xc] sm:$0xf]
        %v1371 = vld [vmem:[#allocation6 + $0x10] sm:$0xf]
        %v1372 = vld [vmem:[#allocation6 + $0x14] sm:$0xf]
        %v1373 = vld [vmem:[#allocation6 + $0x18] sm:$0xf]
        %v1374 = vld [vmem:[#allocation6 + $0x1c] sm:$0xf]
        %v1375 = vld [vmem:[#allocation6 + $0x20] sm:$0xf]
        %v1376 = vld [vmem:[#allocation6 + $0x24] sm:$0xf]
        %v1377 = vld [vmem:[#allocation6 + $0x28] sm:$0xf]
        %v1378 = vld [vmem:[#allocation6 + $0x2c] sm:$0xf]
        %v1379 = vld [vmem:[#allocation6 + $0x30] sm:$0xf]
        %v1380 = vld [vmem:[#allocation6 + $0x34] sm:$0xf]
        %v1381 = vld [vmem:[#allocation6 + $0x38] sm:$0xf]
        %v1382 = vld [vmem:[#allocation6 + $0x3c] sm:$0xf]
        %v1383 = vld [vmem:[#allocation6 + $0x40] sm:$0xf]
        %v1384 = vld [vmem:[#allocation6 + $0x44] sm:$0xf]
        %v1385 = vld [vmem:[#allocation6 + $0x48] sm:$0xf]
        %v1386 = vld [vmem:[#allocation6 + $0x4c] sm:$0xf]
        %v1387 = vld [vmem:[#allocation6 + $0x50] sm:$0xf]
        %v1388 = vld [vmem:[#allocation6 + $0x54] sm:$0xf]
        %v1389 = vld [vmem:[#allocation6 + $0x58] sm:$0xf]
        %v1390 = vld [vmem:[#allocation6 + $0x5c] sm:$0xf]
        %v1391 = vld [vmem:[#allocation6 + $0x60] sm:$0xf]
        %v1392 = vld [vmem:[#allocation6 + $0x64] sm:$0xf]
        %v1393 = vld [vmem:[#allocation6 + $0x68] sm:$0xf]
        %v1394 = vld [vmem:[#allocation6 + $0x6c] sm:$0xf]
        %v1395 = vld [vmem:[#allocation6 + $0x70] sm:$0xf]
        %v1396 = vld [vmem:[#allocation6 + $0x74] sm:$0xf]
        %v1397 = vld [vmem:[#allocation6 + $0x78] sm:$0xf]
        %v1398 = vld [vmem:[#allocation6 + $0x7c] sm:$0xf]
        %v1399 = vld [vmem:[#allocation6 + $0x80] sm:$0xf]
        %v1400 = vld [vmem:[#allocation6 + $0x84] sm:$0xf]
        %v1401 = vld [vmem:[#allocation6 + $0x88] sm:$0xf]
        %v1402 = vld [vmem:[#allocation6 + $0x8c] sm:$0xf]
        %v1403 = vld [vmem:[#allocation6 + $0x90] sm:$0xf]
        %v1404 = vld [vmem:[#allocation6 + $0x94] sm:$0xf]
        %v1405 = vld [vmem:[#allocation6 + $0x98] sm:$0xf]
        %v1406 = vld [vmem:[#allocation6 + $0x9c] sm:$0xf]
        %v1407 = vld [vmem:[#allocation6 + $0xa0] sm:$0xf]
        %v1408 = vld [vmem:[#allocation6 + $0xa4] sm:$0xf]
        %v1409 = vld [vmem:[#allocation6 + $0xa8] sm:$0xf]
        %v1410 = vld [vmem:[#allocation6 + $0xac] sm:$0xf]
        %v1411 = vld [vmem:[#allocation6 + $0xb0] sm:$0xf]
        %v1412 = vld [vmem:[#allocation6 + $0xb4] sm:$0xf]
        %v1413 = vld [vmem:[#allocation6 + $0xb8] sm:$0xf]
        %v1414 = vld [vmem:[#allocation6 + $0xbc] sm:$0xf]
        %s1415 = scalar_lea.vmem [#allocation2], 12
        %v1416 = vld [vmem:[%s1415] sm:$0xf]
        %v1417 = vld [vmem:[%s1415 + $0x4] sm:$0xf]
        %v1418 = vld [vmem:[%s1415 + $0xc] sm:$0xf]
        %v1419 = vld [vmem:[%s1415 + $0x10] sm:$0xf]
        %v1420 = vld [vmem:[%s1415 + $0x18] sm:$0xf]
        %v1421 = vld [vmem:[%s1415 + $0x1c] sm:$0xf]
        %v1422 = vld [vmem:[%s1415 + $0x24] sm:$0xf]
        %v1423 = vld [vmem:[%s1415 + $0x28] sm:$0xf]
        %v1424 = vld [vmem:[%s1415 + $0x30] sm:$0xf]
        %v1425 = vld [vmem:[%s1415 + $0x34] sm:$0xf]
        %v1426 = vld [vmem:[%s1415 + $0x3c] sm:$0xf]
        %v1427 = vld [vmem:[%s1415 + $0x40] sm:$0xf]
        %v1428 = vld [vmem:[%s1415 + $0x48] sm:$0xf]
        %v1429 = vld [vmem:[%s1415 + $0x4c] sm:$0xf]
        %v1430 = vld [vmem:[%s1415 + $0x54] sm:$0xf]
        %v1431 = vld [vmem:[%s1415 + $0x58] sm:$0xf]
        %v1432 = vld [vmem:[%s1415 + $0x60] sm:$0xf]
        %v1433 = vld [vmem:[%s1415 + $0x64] sm:$0xf]
        %v1434 = vld [vmem:[%s1415 + $0x6c] sm:$0xf]
        %v1435 = vld [vmem:[%s1415 + $0x70] sm:$0xf]
        %v1436 = vld [vmem:[%s1415 + $0x78] sm:$0xf]
        %v1437 = vld [vmem:[%s1415 + $0x7c] sm:$0xf]
        %v1438 = vld [vmem:[%s1415 + $0x84] sm:$0xf]
        %v1439 = vld [vmem:[%s1415 + $0x88] sm:$0xf]
        %v1440 = vld [vmem:[%s1415 + $0x90] sm:$0xf]
        %v1441 = vld [vmem:[%s1415 + $0x94] sm:$0xf]
        %v1442 = vld [vmem:[%s1415 + $0x9c] sm:$0xf]
        %v1443 = vld [vmem:[%s1415 + $0xa0] sm:$0xf]
        %v1444 = vld [vmem:[%s1415 + $0xa8] sm:$0xf]
        %v1445 = vld [vmem:[%s1415 + $0xac] sm:$0xf]
        %v1446 = vld [vmem:[%s1415 + $0xb4] sm:$0xf]
        %v1447 = vld [vmem:[%s1415 + $0xb8] sm:$0xf]
        %v1448 = vld [vmem:[%s1415 + $0x8] sm:$0x1]
        %v1449 = vld [vmem:[%s1415 + $0x14] sm:$0x1]
        %v1450 = vld [vmem:[%s1415 + $0x20] sm:$0x1]
        %v1451 = vld [vmem:[%s1415 + $0x2c] sm:$0x1]
        %v1452 = vld [vmem:[%s1415 + $0x38] sm:$0x1]
        %v1453 = vld [vmem:[%s1415 + $0x44] sm:$0x1]
        %v1454 = vld [vmem:[%s1415 + $0x50] sm:$0x1]
        %v1455 = vld [vmem:[%s1415 + $0x5c] sm:$0x1]
        %v1456 = vld [vmem:[%s1415 + $0x68] sm:$0x1]
        %v1457 = vld [vmem:[%s1415 + $0x74] sm:$0x1]
        %v1458 = vld [vmem:[%s1415 + $0x80] sm:$0x1]
        %v1459 = vld [vmem:[%s1415 + $0x8c] sm:$0x1]
        %v1460 = vld [vmem:[%s1415 + $0x98] sm:$0x1]
        %v1461 = vld [vmem:[%s1415 + $0xa4] sm:$0x1]
        %v1462 = vld [vmem:[%s1415 + $0xb0] sm:$0x1]
        %v1463 = vld [vmem:[%s1415 + $0xbc] sm:$0x1]
        %v1464 = vld [vmem:[%s1415] sm:$0xe]
        %v1465 = vld [vmem:[%s1415 + $0xc] sm:$0xe]
        %v1466 = vld [vmem:[%s1415 + $0x18] sm:$0xe]
        %v1467 = vld [vmem:[%s1415 + $0x24] sm:$0xe]
        %v1468 = vld [vmem:[%s1415 + $0x30] sm:$0xe]
        %v1469 = vld [vmem:[%s1415 + $0x3c] sm:$0xe]
        %v1470 = vld [vmem:[%s1415 + $0x48] sm:$0xe]
        %v1471 = vld [vmem:[%s1415 + $0x54] sm:$0xe]
        %v1472 = vld [vmem:[%s1415 + $0x60] sm:$0xe]
        %v1473 = vld [vmem:[%s1415 + $0x6c] sm:$0xe]
        %v1474 = vld [vmem:[%s1415 + $0x78] sm:$0xe]
        %v1475 = vld [vmem:[%s1415 + $0x84] sm:$0xe]
        %v1476 = vld [vmem:[%s1415 + $0x90] sm:$0xe]
        %v1477 = vld [vmem:[%s1415 + $0x9c] sm:$0xe]
        %v1478 = vld [vmem:[%s1415 + $0xa8] sm:$0xe]
        %v1479 = vld [vmem:[%s1415 + $0xb4] sm:$0xe]
        %v1512 = vunpack.c.l.b16 %v1416
        %v1513 = vunpack.c.l.b16 %v1417
        %v1514 = vunpack.c.l.b16 %v1418
        %v1515 = vunpack.c.l.b16 %v1419
        %v1516 = vunpack.c.l.b16 %v1420
        %v1517 = vunpack.c.l.b16 %v1421
        %v1518 = vunpack.c.l.b16 %v1422
        %v1519 = vunpack.c.l.b16 %v1423
        %v1520 = vunpack.c.l.b16 %v1424
        %v1521 = vunpack.c.l.b16 %v1425
        %v1522 = vunpack.c.l.b16 %v1426
        %v1523 = vunpack.c.l.b16 %v1427
        %v1524 = vunpack.c.l.b16 %v1428
        %v1525 = vunpack.c.l.b16 %v1429
        %v1526 = vunpack.c.l.b16 %v1430
        %v1527 = vunpack.c.l.b16 %v1431
        %v1528 = vunpack.c.l.b16 %v1432
        %v1529 = vunpack.c.l.b16 %v1433
        %v1530 = vunpack.c.l.b16 %v1434
        %v1531 = vunpack.c.l.b16 %v1435
        %v1532 = vunpack.c.l.b16 %v1436
        %v1533 = vunpack.c.l.b16 %v1437
        %v1534 = vunpack.c.l.b16 %v1438
        %v1535 = vunpack.c.l.b16 %v1439
        %v1536 = vunpack.c.l.b16 %v1440
        %v1537 = vunpack.c.l.b16 %v1441
        %v1538 = vunpack.c.l.b16 %v1442
        %v1539 = vunpack.c.l.b16 %v1443
        %v1540 = vunpack.c.l.b16 %v1444
        %v1541 = vunpack.c.l.b16 %v1445
        %v1542 = vunpack.c.l.b16 %v1446
        %v1543 = vunpack.c.l.b16 %v1447
        %v1544 = vpack.c.b16 %v1513, %v1512
        %v1545 = vpack.c.b16 %v1515, %v1514
        %v1546 = vpack.c.b16 %v1517, %v1516
        %v1547 = vpack.c.b16 %v1519, %v1518
        %v1548 = vpack.c.b16 %v1521, %v1520
        %v1549 = vpack.c.b16 %v1523, %v1522
        %v1550 = vpack.c.b16 %v1525, %v1524
        %v1551 = vpack.c.b16 %v1527, %v1526
        %v1552 = vpack.c.b16 %v1529, %v1528
        %v1553 = vpack.c.b16 %v1531, %v1530
        %v1554 = vpack.c.b16 %v1533, %v1532
        %v1555 = vpack.c.b16 %v1535, %v1534
        %v1556 = vpack.c.b16 %v1537, %v1536
        %v1557 = vpack.c.b16 %v1539, %v1538
        %v1558 = vpack.c.b16 %v1541, %v1540
        %v1559 = vpack.c.b16 %v1543, %v1542
        %v1592 = vunpack.c.l.b16 %v1448
        %v1593 = vunpack.c.l.b16 %v1449
        %v1594 = vunpack.c.l.b16 %v1450
        %v1595 = vunpack.c.l.b16 %v1451
        %v1596 = vunpack.c.l.b16 %v1452
        %v1597 = vunpack.c.l.b16 %v1453
        %v1598 = vunpack.c.l.b16 %v1454
        %v1599 = vunpack.c.l.b16 %v1455
        %v1600 = vunpack.c.l.b16 %v1456
        %v1601 = vunpack.c.l.b16 %v1457
        %v1602 = vunpack.c.l.b16 %v1458
        %v1603 = vunpack.c.l.b16 %v1459
        %v1604 = vunpack.c.l.b16 %v1460
        %v1605 = vunpack.c.l.b16 %v1461
        %v1606 = vunpack.c.l.b16 %v1462
        %v1607 = vunpack.c.l.b16 %v1463
        %v1608 = vpack.c.b16 %v1592, %v1592
        %v1609 = vpack.c.b16 %v1593, %v1593
        %v1610 = vpack.c.b16 %v1594, %v1594
        %v1611 = vpack.c.b16 %v1595, %v1595
        %v1612 = vpack.c.b16 %v1596, %v1596
        %v1613 = vpack.c.b16 %v1597, %v1597
        %v1614 = vpack.c.b16 %v1598, %v1598
        %v1615 = vpack.c.b16 %v1599, %v1599
        %v1616 = vpack.c.b16 %v1600, %v1600
        %v1617 = vpack.c.b16 %v1601, %v1601
        %v1618 = vpack.c.b16 %v1602, %v1602
        %v1619 = vpack.c.b16 %v1603, %v1603
        %v1620 = vpack.c.b16 %v1604, %v1604
        %v1621 = vpack.c.b16 %v1605, %v1605
        %v1622 = vpack.c.b16 %v1606, %v1606
        %v1623 = vpack.c.b16 %v1607, %v1607
        %v1625 = vshrl.u32 %v1544, 16
        %v1627 = vshll.u32 %v1544, 16
        %v1629 = vrot.slane %v1627, 1
        %v1630 = vor.u32 %v1625, %v1629
        %v1632 = vshll.u32 %v1608, 16
        %v1634 = vrot.slane %v1632, 1
        %v1635 = vsel %vm1045, %v1630, %v1634
        %v1637 = vshrl.u32 %v1545, 16
        %v1639 = vshll.u32 %v1545, 16
        %v1641 = vrot.slane %v1639, 1
        %v1642 = vor.u32 %v1637, %v1641
        %v1644 = vshll.u32 %v1609, 16
        %v1646 = vrot.slane %v1644, 1
        %v1647 = vsel %vm1045, %v1642, %v1646
        %v1649 = vshrl.u32 %v1546, 16
        %v1651 = vshll.u32 %v1546, 16
        %v1653 = vrot.slane %v1651, 1
        %v1654 = vor.u32 %v1649, %v1653
        %v1656 = vshll.u32 %v1610, 16
        %v1658 = vrot.slane %v1656, 1
        %v1659 = vsel %vm1045, %v1654, %v1658
        %v1661 = vshrl.u32 %v1547, 16
        %v1663 = vshll.u32 %v1547, 16
        %v1665 = vrot.slane %v1663, 1
        %v1666 = vor.u32 %v1661, %v1665
        %v1668 = vshll.u32 %v1611, 16
        %v1670 = vrot.slane %v1668, 1
        %v1671 = vsel %vm1045, %v1666, %v1670
        %v1673 = vshrl.u32 %v1548, 16
        %v1675 = vshll.u32 %v1548, 16
        %v1677 = vrot.slane %v1675, 1
        %v1678 = vor.u32 %v1673, %v1677
        %v1680 = vshll.u32 %v1612, 16
        %v1682 = vrot.slane %v1680, 1
        %v1683 = vsel %vm1045, %v1678, %v1682
        %v1685 = vshrl.u32 %v1549, 16
        %v1687 = vshll.u32 %v1549, 16
        %v1689 = vrot.slane %v1687, 1
        %v1690 = vor.u32 %v1685, %v1689
        %v1692 = vshll.u32 %v1613, 16
        %v1694 = vrot.slane %v1692, 1
        %v1695 = vsel %vm1045, %v1690, %v1694
        %v1697 = vshrl.u32 %v1550, 16
        %v1699 = vshll.u32 %v1550, 16
        %v1701 = vrot.slane %v1699, 1
        %v1702 = vor.u32 %v1697, %v1701
        %v1704 = vshll.u32 %v1614, 16
        %v1706 = vrot.slane %v1704, 1
        %v1707 = vsel %vm1045, %v1702, %v1706
        %v1709 = vshrl.u32 %v1551, 16
        %v1711 = vshll.u32 %v1551, 16
        %v1713 = vrot.slane %v1711, 1
        %v1714 = vor.u32 %v1709, %v1713
        %v1716 = vshll.u32 %v1615, 16
        %v1718 = vrot.slane %v1716, 1
        %v1719 = vsel %vm1045, %v1714, %v1718
        %v1721 = vshrl.u32 %v1552, 16
        %v1723 = vshll.u32 %v1552, 16
        %v1725 = vrot.slane %v1723, 1
        %v1726 = vor.u32 %v1721, %v1725
        %v1728 = vshll.u32 %v1616, 16
        %v1730 = vrot.slane %v1728, 1
        %v1731 = vsel %vm1045, %v1726, %v1730
        %v1733 = vshrl.u32 %v1553, 16
        %v1735 = vshll.u32 %v1553, 16
        %v1737 = vrot.slane %v1735, 1
        %v1738 = vor.u32 %v1733, %v1737
        %v1740 = vshll.u32 %v1617, 16
        %v1742 = vrot.slane %v1740, 1
        %v1743 = vsel %vm1045, %v1738, %v1742
        %v1745 = vshrl.u32 %v1554, 16
        %v1747 = vshll.u32 %v1554, 16
        %v1749 = vrot.slane %v1747, 1
        %v1750 = vor.u32 %v1745, %v1749
        %v1752 = vshll.u32 %v1618, 16
        %v1754 = vrot.slane %v1752, 1
        %v1755 = vsel %vm1045, %v1750, %v1754
        %v1757 = vshrl.u32 %v1555, 16
        %v1759 = vshll.u32 %v1555, 16
        %v1761 = vrot.slane %v1759, 1
        %v1762 = vor.u32 %v1757, %v1761
        %v1764 = vshll.u32 %v1619, 16
        %v1766 = vrot.slane %v1764, 1
        %v1767 = vsel %vm1045, %v1762, %v1766
        %v1769 = vshrl.u32 %v1556, 16
        %v1771 = vshll.u32 %v1556, 16
        %v1773 = vrot.slane %v1771, 1
        %v1774 = vor.u32 %v1769, %v1773
        %v1776 = vshll.u32 %v1620, 16
        %v1778 = vrot.slane %v1776, 1
        %v1779 = vsel %vm1045, %v1774, %v1778
        %v1781 = vshrl.u32 %v1557, 16
        %v1783 = vshll.u32 %v1557, 16
        %v1785 = vrot.slane %v1783, 1
        %v1786 = vor.u32 %v1781, %v1785
        %v1788 = vshll.u32 %v1621, 16
        %v1790 = vrot.slane %v1788, 1
        %v1791 = vsel %vm1045, %v1786, %v1790
        %v1793 = vshrl.u32 %v1558, 16
        %v1795 = vshll.u32 %v1558, 16
        %v1797 = vrot.slane %v1795, 1
        %v1798 = vor.u32 %v1793, %v1797
        %v1800 = vshll.u32 %v1622, 16
        %v1802 = vrot.slane %v1800, 1
        %v1803 = vsel %vm1045, %v1798, %v1802
        %v1805 = vshrl.u32 %v1559, 16
        %v1807 = vshll.u32 %v1559, 16
        %v1809 = vrot.slane %v1807, 1
        %v1810 = vor.u32 %v1805, %v1809
        %v1812 = vshll.u32 %v1623, 16
        %v1814 = vrot.slane %v1812, 1
        %v1815 = vsel %vm1045, %v1810, %v1814
        %v1848 = vunpack.c.l.b16 %v1464
        %v1849 = vunpack.c.l.b16 %v1465
        %v1850 = vunpack.c.l.b16 %v1466
        %v1851 = vunpack.c.l.b16 %v1467
        %v1852 = vunpack.c.l.b16 %v1468
        %v1853 = vunpack.c.l.b16 %v1469
        %v1854 = vunpack.c.l.b16 %v1470
        %v1855 = vunpack.c.l.b16 %v1471
        %v1856 = vunpack.c.l.b16 %v1472
        %v1857 = vunpack.c.l.b16 %v1473
        %v1858 = vunpack.c.l.b16 %v1474
        %v1859 = vunpack.c.l.b16 %v1475
        %v1860 = vunpack.c.l.b16 %v1476
        %v1861 = vunpack.c.l.b16 %v1477
        %v1862 = vunpack.c.l.b16 %v1478
        %v1863 = vunpack.c.l.b16 %v1479
        %v1864 = vpack.c.b16 %v1513, %v1848
        %v1865 = vpack.c.b16 %v1515, %v1849
        %v1866 = vpack.c.b16 %v1517, %v1850
        %v1867 = vpack.c.b16 %v1519, %v1851
        %v1868 = vpack.c.b16 %v1521, %v1852
        %v1869 = vpack.c.b16 %v1523, %v1853
        %v1870 = vpack.c.b16 %v1525, %v1854
        %v1871 = vpack.c.b16 %v1527, %v1855
        %v1872 = vpack.c.b16 %v1529, %v1856
        %v1873 = vpack.c.b16 %v1531, %v1857
        %v1874 = vpack.c.b16 %v1533, %v1858
        %v1875 = vpack.c.b16 %v1535, %v1859
        %v1876 = vpack.c.b16 %v1537, %v1860
        %v1877 = vpack.c.b16 %v1539, %v1861
        %v1878 = vpack.c.b16 %v1541, %v1862
        %v1879 = vpack.c.b16 %v1543, %v1863
        %v1880 = vrot.slane %v1864, 1
        %v1881 = vrot.slane %v1608, 1
        %v1882 = vsel %vm1302, %v1880, %v1881
        %v1883 = vrot.slane %v1865, 1
        %v1884 = vrot.slane %v1609, 1
        %v1885 = vsel %vm1302, %v1883, %v1884
        %v1886 = vrot.slane %v1866, 1
        %v1887 = vrot.slane %v1610, 1
        %v1888 = vsel %vm1302, %v1886, %v1887
        %v1889 = vrot.slane %v1867, 1
        %v1890 = vrot.slane %v1611, 1
        %v1891 = vsel %vm1302, %v1889, %v1890
        %v1892 = vrot.slane %v1868, 1
        %v1893 = vrot.slane %v1612, 1
        %v1894 = vsel %vm1302, %v1892, %v1893
        %v1895 = vrot.slane %v1869, 1
        %v1896 = vrot.slane %v1613, 1
        %v1897 = vsel %vm1302, %v1895, %v1896
        %v1898 = vrot.slane %v1870, 1
        %v1899 = vrot.slane %v1614, 1
        %v1900 = vsel %vm1302, %v1898, %v1899
        %v1901 = vrot.slane %v1871, 1
        %v1902 = vrot.slane %v1615, 1
        %v1903 = vsel %vm1302, %v1901, %v1902
        %v1904 = vrot.slane %v1872, 1
        %v1905 = vrot.slane %v1616, 1
        %v1906 = vsel %vm1302, %v1904, %v1905
        %v1907 = vrot.slane %v1873, 1
        %v1908 = vrot.slane %v1617, 1
        %v1909 = vsel %vm1302, %v1907, %v1908
        %v1910 = vrot.slane %v1874, 1
        %v1911 = vrot.slane %v1618, 1
        %v1912 = vsel %vm1302, %v1910, %v1911
        %v1913 = vrot.slane %v1875, 1
        %v1914 = vrot.slane %v1619, 1
        %v1915 = vsel %vm1302, %v1913, %v1914
        %v1916 = vrot.slane %v1876, 1
        %v1917 = vrot.slane %v1620, 1
        %v1918 = vsel %vm1302, %v1916, %v1917
        %v1919 = vrot.slane %v1877, 1
        %v1920 = vrot.slane %v1621, 1
        %v1921 = vsel %vm1302, %v1919, %v1920
        %v1922 = vrot.slane %v1878, 1
        %v1923 = vrot.slane %v1622, 1
        %v1924 = vsel %vm1302, %v1922, %v1923
        %v1925 = vrot.slane %v1879, 1
        %v1926 = vrot.slane %v1623, 1
        %v1927 = vsel %vm1302, %v1925, %v1926
        %s1944 = scalar_lea.vmem [#allocation6], 192
        %v1945 = vld [vmem:[%s1944] sm:$0xf]
        %v1946 = vld [vmem:[%s1944 + $0x4] sm:$0xf]
        %v1947 = vld [vmem:[%s1944 + $0x8] sm:$0xf]
        %v1948 = vld [vmem:[%s1944 + $0xc] sm:$0xf]
        %v1949 = vld [vmem:[%s1944 + $0x10] sm:$0xf]
        %v1950 = vld [vmem:[%s1944 + $0x14] sm:$0xf]
        %v1951 = vld [vmem:[%s1944 + $0x18] sm:$0xf]
        %v1952 = vld [vmem:[%s1944 + $0x1c] sm:$0xf]
        %v1953 = vld [vmem:[%s1944 + $0x20] sm:$0xf]
        %v1954 = vld [vmem:[%s1944 + $0x24] sm:$0xf]
        %v1955 = vld [vmem:[%s1944 + $0x28] sm:$0xf]
        %v1956 = vld [vmem:[%s1944 + $0x2c] sm:$0xf]
        %v1957 = vld [vmem:[%s1944 + $0x30] sm:$0xf]
        %v1958 = vld [vmem:[%s1944 + $0x34] sm:$0xf]
        %v1959 = vld [vmem:[%s1944 + $0x38] sm:$0xf]
        %v1960 = vld [vmem:[%s1944 + $0x3c] sm:$0xf]
        %v1961 = vld [vmem:[%s1944 + $0x40] sm:$0xf]
        %v1962 = vld [vmem:[%s1944 + $0x44] sm:$0xf]
        %v1963 = vld [vmem:[%s1944 + $0x48] sm:$0xf]
        %v1964 = vld [vmem:[%s1944 + $0x4c] sm:$0xf]
        %v1965 = vld [vmem:[%s1944 + $0x50] sm:$0xf]
        %v1966 = vld [vmem:[%s1944 + $0x54] sm:$0xf]
        %v1967 = vld [vmem:[%s1944 + $0x58] sm:$0xf]
        %v1968 = vld [vmem:[%s1944 + $0x5c] sm:$0xf]
        %v1969 = vld [vmem:[%s1944 + $0x60] sm:$0xf]
        %v1970 = vld [vmem:[%s1944 + $0x64] sm:$0xf]
        %v1971 = vld [vmem:[%s1944 + $0x68] sm:$0xf]
        %v1972 = vld [vmem:[%s1944 + $0x6c] sm:$0xf]
        %v1973 = vld [vmem:[%s1944 + $0x70] sm:$0xf]
        %v1974 = vld [vmem:[%s1944 + $0x74] sm:$0xf]
        %v1975 = vld [vmem:[%s1944 + $0x78] sm:$0xf]
        %v1976 = vld [vmem:[%s1944 + $0x7c] sm:$0xf]
        %v1977 = vld [vmem:[%s1944 + $0x80] sm:$0xf]
        %v1978 = vld [vmem:[%s1944 + $0x84] sm:$0xf]
        %v1979 = vld [vmem:[%s1944 + $0x88] sm:$0xf]
        %v1980 = vld [vmem:[%s1944 + $0x8c] sm:$0xf]
        %v1981 = vld [vmem:[%s1944 + $0x90] sm:$0xf]
        %v1982 = vld [vmem:[%s1944 + $0x94] sm:$0xf]
        %v1983 = vld [vmem:[%s1944 + $0x98] sm:$0xf]
        %v1984 = vld [vmem:[%s1944 + $0x9c] sm:$0xf]
        %v1985 = vld [vmem:[%s1944 + $0xa0] sm:$0xf]
        %v1986 = vld [vmem:[%s1944 + $0xa4] sm:$0xf]
        %v1987 = vld [vmem:[%s1944 + $0xa8] sm:$0xf]
        %v1988 = vld [vmem:[%s1944 + $0xac] sm:$0xf]
        %v1989 = vld [vmem:[%s1944 + $0xb0] sm:$0xf]
        %v1990 = vld [vmem:[%s1944 + $0xb4] sm:$0xf]
        %v1991 = vld [vmem:[%s1944 + $0xb8] sm:$0xf]
        %v1992 = vld [vmem:[%s1944 + $0xbc] sm:$0xf]
        %v2041 = vunpack.c.l.b16 %v1945
        %v2042 = vunpack.c.l.b16 %v1946
        %v2043 = vunpack.c.l.b16 %v1947
        %v2044 = vunpack.c.l.b16 %v1948
        %v2045 = vunpack.c.l.b16 %v1949
        %v2046 = vunpack.c.l.b16 %v1950
        %v2047 = vunpack.c.l.b16 %v1951
        %v2048 = vunpack.c.l.b16 %v1952
        %v2049 = vunpack.c.l.b16 %v1953
        %v2050 = vunpack.c.l.b16 %v1954
        %v2051 = vunpack.c.l.b16 %v1955
        %v2052 = vunpack.c.l.b16 %v1956
        %v2053 = vunpack.c.l.b16 %v1957
        %v2054 = vunpack.c.l.b16 %v1958
        %v2055 = vunpack.c.l.b16 %v1959
        %v2056 = vunpack.c.l.b16 %v1960
        %v2057 = vunpack.c.l.b16 %v1961
        %v2058 = vunpack.c.l.b16 %v1962
        %v2059 = vunpack.c.l.b16 %v1963
        %v2060 = vunpack.c.l.b16 %v1964
        %v2061 = vunpack.c.l.b16 %v1965
        %v2062 = vunpack.c.l.b16 %v1966
        %v2063 = vunpack.c.l.b16 %v1967
        %v2064 = vunpack.c.l.b16 %v1968
        %v2065 = vunpack.c.l.b16 %v1969
        %v2066 = vunpack.c.l.b16 %v1970
        %v2067 = vunpack.c.l.b16 %v1971
        %v2068 = vunpack.c.l.b16 %v1972
        %v2069 = vunpack.c.l.b16 %v1973
        %v2070 = vunpack.c.l.b16 %v1974
        %v2071 = vunpack.c.l.b16 %v1975
        %v2072 = vunpack.c.l.b16 %v1976
        %v2073 = vunpack.c.l.b16 %v1977
        %v2074 = vunpack.c.l.b16 %v1978
        %v2075 = vunpack.c.l.b16 %v1979
        %v2076 = vunpack.c.l.b16 %v1980
        %v2077 = vunpack.c.l.b16 %v1981
        %v2078 = vunpack.c.l.b16 %v1982
        %v2079 = vunpack.c.l.b16 %v1983
        %v2080 = vunpack.c.l.b16 %v1984
        %v2081 = vunpack.c.l.b16 %v1985
        %v2082 = vunpack.c.l.b16 %v1986
        %v2083 = vunpack.c.l.b16 %v1987
        %v2084 = vunpack.c.l.b16 %v1988
        %v2085 = vunpack.c.l.b16 %v1989
        %v2086 = vunpack.c.l.b16 %v1990
        %v2087 = vunpack.c.l.b16 %v1991
        %v2088 = vunpack.c.l.b16 %v1992
        %v2089 = vpack.c.b16 %v2042, %v2041
        %v2090 = vpack.c.b16 %v2044, %v2043
        %v2091 = vpack.c.b16 %v2046, %v2045
        %v2092 = vpack.c.b16 %v2048, %v2047
        %v2093 = vpack.c.b16 %v2050, %v2049
        %v2094 = vpack.c.b16 %v2052, %v2051
        %v2095 = vpack.c.b16 %v2054, %v2053
        %v2096 = vpack.c.b16 %v2056, %v2055
        %v2097 = vpack.c.b16 %v2058, %v2057
        %v2098 = vpack.c.b16 %v2060, %v2059
        %v2099 = vpack.c.b16 %v2062, %v2061
        %v2100 = vpack.c.b16 %v2064, %v2063
        %v2101 = vpack.c.b16 %v2066, %v2065
        %v2102 = vpack.c.b16 %v2068, %v2067
        %v2103 = vpack.c.b16 %v2070, %v2069
        %v2104 = vpack.c.b16 %v2072, %v2071
        %v2105 = vpack.c.b16 %v2074, %v2073
        %v2106 = vpack.c.b16 %v2076, %v2075
        %v2107 = vpack.c.b16 %v2078, %v2077
        %v2108 = vpack.c.b16 %v2080, %v2079
        %v2109 = vpack.c.b16 %v2082, %v2081
        %v2110 = vpack.c.b16 %v2084, %v2083
        %v2111 = vpack.c.b16 %v2086, %v2085
        %v2112 = vpack.c.b16 %v2088, %v2087
        %2137 = vmatprep.subr.bf16.mxu0 0
        %2138 = vmatpush1.bf16.msra.mxu0 %v2089
        %2139 = vmatprep.subr.bf16.mxu0 0
        %2140 = vmatpush1.bf16.msra.mxu0 %v2090
        %2141 = vmatprep.subr.bf16.mxu0 0
        %2142 = vmatpush1.bf16.msra.mxu0 %v2091
        %2143 = vmatprep.subr.bf16.mxu0 0
        %2144 = vmatpush1.bf16.msra.mxu0 %v2092
        %2145 = vmatprep.subr.bf16.mxu0 0
        %2146 = vmatpush1.bf16.msra.mxu0 %v2093
        %2147 = vmatprep.subr.bf16.mxu0 0
        %2148 = vmatpush1.bf16.msra.mxu0 %v2094
        %2149 = vmatprep.subr.bf16.mxu0 0
        %2150 = vmatpush1.bf16.msra.mxu0 %v2095
        %2151 = vmatprep.subr.bf16.mxu0 0
        %2152 = vmatpush1.bf16.msra.mxu0 %v2096
        %2153 = vmatprep.subr.bf16.mxu0 0
        %2154 = vmatpush1.bf16.msra.mxu0 %v2097
        %2155 = vmatprep.subr.bf16.mxu0 0
        %2156 = vmatpush1.bf16.msra.mxu0 %v2098
        %2157 = vmatprep.subr.bf16.mxu0 0
        %2158 = vmatpush1.bf16.msra.mxu0 %v2099
        %2159 = vmatprep.subr.bf16.mxu0 0
        %2160 = vmatpush1.bf16.msra.mxu0 %v2100
        %2161 = vmatprep.subr.bf16.mxu0 0
        %2162 = vmatpush1.bf16.msra.mxu0 %v2101
        %2163 = vmatprep.subr.bf16.mxu0 0
        %2164 = vmatpush1.bf16.msra.mxu0 %v2102
        %2165 = vmatprep.subr.bf16.mxu0 0
        %2166 = vmatpush1.bf16.msra.mxu0 %v2103
        %2167 = vmatprep.subr.bf16.mxu0 0
        %2168 = vmatpush1.bf16.msra.mxu0 %v2104
        %2169 = vmatprep.mubr.bf16.mxu0 %v1635
        %2170 = vmatmul.mubr.bf16.gmra.mrb[0].mxu0 %v1544
        %v2171 = vpop.f32.mrb[0].mxu0
        %v2172 = vadd.f32 0.0, %v2171
        %v2173 = vpop.f32.mrb[0].mxu0
        %v2174 = vpop.f32.mrb[0].mxu0
        %v2175 = vadd.f32 0.0, %v2174
        %v2176 = vpop.f32.mrb[0].mxu0
        %2177 = vmatprep.mubr.bf16.mxu0 %v1647
        %2178 = vmatmul.mubr.bf16.gmra.mrb[0].mxu0 %v1545
        %v2179 = vpop.f32.mrb[0].mxu0
        %v2180 = vadd.f32 0.0, %v2179
        %v2181 = vpop.f32.mrb[0].mxu0
        %v2182 = vpop.f32.mrb[0].mxu0
        %v2183 = vadd.f32 0.0, %v2182
        %v2184 = vpop.f32.mrb[0].mxu0
        %2185 = vmatprep.mubr.bf16.mxu0 %v1659
        %2186 = vmatmul.mubr.bf16.gmra.mrb[0].mxu0 %v1546
        %v2187 = vpop.f32.mrb[0].mxu0
        %v2188 = vadd.f32 0.0, %v2187
        %v2189 = vpop.f32.mrb[0].mxu0
        %v2190 = vpop.f32.mrb[0].mxu0
        %v2191 = vadd.f32 0.0, %v2190
        %v2192 = vpop.f32.mrb[0].mxu0
        %2193 = vmatprep.mubr.bf16.mxu0 %v1671
        %2194 = vmatmul.mubr.bf16.gmra.mrb[0].mxu0 %v1547
        %v2195 = vpop.f32.mrb[0].mxu0
        %v2196 = vadd.f32 0.0, %v2195
        %v2197 = vpop.f32.mrb[0].mxu0
        %v2198 = vpop.f32.mrb[0].mxu0
        %v2199 = vadd.f32 0.0, %v2198
        %v2200 = vpop.f32.mrb[0].mxu0
        %2201 = vmatprep.mubr.bf16.mxu0 %v1683
        %2202 = vmatmul.mubr.bf16.gmra.mrb[0].mxu0 %v1548
        %v2203 = vpop.f32.mrb[0].mxu0
        %v2204 = vadd.f32 0.0, %v2203
        %v2205 = vpop.f32.mrb[0].mxu0
        %v2206 = vpop.f32.mrb[0].mxu0
        %v2207 = vadd.f32 0.0, %v2206
        %v2208 = vpop.f32.mrb[0].mxu0
        %2209 = vmatprep.mubr.bf16.mxu0 %v1695
        %2210 = vmatmul.mubr.bf16.gmra.mrb[0].mxu0 %v1549
        %v2211 = vpop.f32.mrb[0].mxu0
        %v2212 = vadd.f32 0.0, %v2211
        %v2213 = vpop.f32.mrb[0].mxu0
        %v2214 = vpop.f32.mrb[0].mxu0
        %v2215 = vadd.f32 0.0, %v2214
        %v2216 = vpop.f32.mrb[0].mxu0
        %2217 = vmatprep.mubr.bf16.mxu0 %v1707
        %2218 = vmatmul.mubr.bf16.gmra.mrb[0].mxu0 %v1550
        %v2219 = vpop.f32.mrb[0].mxu0
        %v2220 = vadd.f32 0.0, %v2219
        %v2221 = vpop.f32.mrb[0].mxu0
        %v2222 = vpop.f32.mrb[0].mxu0
        %v2223 = vadd.f32 0.0, %v2222
        %v2224 = vpop.f32.mrb[0].mxu0
        %2225 = vmatprep.mubr.bf16.mxu0 %v1719
        %2226 = vmatmul.mubr.bf16.gmra.mrb[0].mxu0 %v1551
        %v2227 = vpop.f32.mrb[0].mxu0
        %v2228 = vadd.f32 0.0, %v2227
        %v2229 = vpop.f32.mrb[0].mxu0
        %v2230 = vpop.f32.mrb[0].mxu0
        %v2231 = vadd.f32 0.0, %v2230
        %v2232 = vpop.f32.mrb[0].mxu0
        %2233 = vmatprep.mubr.bf16.mxu0 %v1731
        %2234 = vmatmul.mubr.bf16.gmra.mrb[0].mxu0 %v1552
        %v2235 = vpop.f32.mrb[0].mxu0
        %v2236 = vadd.f32 0.0, %v2235
        %v2237 = vpop.f32.mrb[0].mxu0
        %v2238 = vpop.f32.mrb[0].mxu0
        %v2239 = vadd.f32 0.0, %v2238
        %v2240 = vpop.f32.mrb[0].mxu0
        %2241 = vmatprep.mubr.bf16.mxu0 %v1743
        %2242 = vmatmul.mubr.bf16.gmra.mrb[0].mxu0 %v1553
        %v2243 = vpop.f32.mrb[0].mxu0
        %v2244 = vadd.f32 0.0, %v2243
        %v2245 = vpop.f32.mrb[0].mxu0
        %v2246 = vpop.f32.mrb[0].mxu0
        %v2247 = vadd.f32 0.0, %v2246
        %v2248 = vpop.f32.mrb[0].mxu0
        %2249 = vmatprep.mubr.bf16.mxu0 %v1755
        %2250 = vmatmul.mubr.bf16.gmra.mrb[0].mxu0 %v1554
        %v2251 = vpop.f32.mrb[0].mxu0
        %v2252 = vadd.f32 0.0, %v2251
        %v2253 = vpop.f32.mrb[0].mxu0
        %v2254 = vpop.f32.mrb[0].mxu0
        %v2255 = vadd.f32 0.0, %v2254
        %v2256 = vpop.f32.mrb[0].mxu0
        %2257 = vmatprep.mubr.bf16.mxu0 %v1767
        %2258 = vmatmul.mubr.bf16.gmra.mrb[0].mxu0 %v1555
        %v2259 = vpop.f32.mrb[0].mxu0
        %v2260 = vadd.f32 0.0, %v2259
        %v2261 = vpop.f32.mrb[0].mxu0
        %v2262 = vpop.f32.mrb[0].mxu0
        %v2263 = vadd.f32 0.0, %v2262
        %v2264 = vpop.f32.mrb[0].mxu0
        %2265 = vmatprep.mubr.bf16.mxu0 %v1779
        %2266 = vmatmul.mubr.bf16.gmra.mrb[0].mxu0 %v1556
        %v2267 = vpop.f32.mrb[0].mxu0
        %v2268 = vadd.f32 0.0, %v2267
        %v2269 = vpop.f32.mrb[0].mxu0
        %v2270 = vpop.f32.mrb[0].mxu0
        %v2271 = vadd.f32 0.0, %v2270
        %v2272 = vpop.f32.mrb[0].mxu0
        %2273 = vmatprep.mubr.bf16.mxu0 %v1791
        %2274 = vmatmul.mubr.bf16.gmra.mrb[0].mxu0 %v1557
        %v2275 = vpop.f32.mrb[0].mxu0
        %v2276 = vadd.f32 0.0, %v2275
        %v2277 = vpop.f32.mrb[0].mxu0
        %v2278 = vpop.f32.mrb[0].mxu0
        %v2279 = vadd.f32 0.0, %v2278
        %v2280 = vpop.f32.mrb[0].mxu0
        %2281 = vmatprep.mubr.bf16.mxu0 %v1803
        %2282 = vmatmul.mubr.bf16.gmra.mrb[0].mxu0 %v1558
        %v2283 = vpop.f32.mrb[0].mxu0
        %v2284 = vadd.f32 0.0, %v2283
        %v2285 = vpop.f32.mrb[0].mxu0
        %v2286 = vpop.f32.mrb[0].mxu0
        %v2287 = vadd.f32 0.0, %v2286
        %v2288 = vpop.f32.mrb[0].mxu0
        %2289 = vmatprep.mubr.bf16.mxu0 %v1815
        %2290 = vmatmul.mubr.bf16.gmra.mrb[0].mxu0 %v1559
        %v2291 = vpop.f32.mrb[0].mxu0
        %v2292 = vadd.f32 0.0, %v2291
        %v2293 = vpop.f32.mrb[0].mxu0
        %v2294 = vpop.f32.mrb[0].mxu0
        %v2295 = vadd.f32 0.0, %v2294
        %v2296 = vpop.f32.mrb[0].mxu0
        %2297 = vdwg.mxu0
        %2298 = vmatprep.subr.bf16.mxu0 0
        %2299 = vmatpush1.bf16.msra.mxu0 %v2105
        %2300 = vmatprep.subr.bf16.mxu0 0
        %2301 = vmatpush1.bf16.msra.mxu0 %v2106
        %2302 = vmatprep.subr.bf16.mxu0 0
        %2303 = vmatpush1.bf16.msra.mxu0 %v2107
        %2304 = vmatprep.subr.bf16.mxu0 0
        %2305 = vmatpush1.bf16.msra.mxu0 %v2108
        %2306 = vmatprep.subr.bf16.mxu0 0
        %2307 = vmatpush1.bf16.msra.mxu0 %v2109
        %2308 = vmatprep.subr.bf16.mxu0 0
        %2309 = vmatpush1.bf16.msra.mxu0 %v2110
        %2310 = vmatprep.subr.bf16.mxu0 0
        %2311 = vmatpush1.bf16.msra.mxu0 %v2111
        %2312 = vmatprep.subr.bf16.mxu0 0
        %2313 = vmatpush1.bf16.msra.mxu0 %v2112
        %2314 = vmatprep.subr.bf16.mxu0 0
        %2315 = vmatpush1.bf16.msra.mxu0 0
        %2316 = vmatprep.subr.bf16.mxu0 0
        %2317 = vmatpush1.bf16.msra.mxu0 0
        %2318 = vmatprep.subr.bf16.mxu0 0
        %2319 = vmatpush1.bf16.msra.mxu0 0
        %2320 = vmatprep.subr.bf16.mxu0 0
        %2321 = vmatpush1.bf16.msra.mxu0 0
        %2322 = vmatprep.subr.bf16.mxu0 0
        %2323 = vmatpush1.bf16.msra.mxu0 0
        %2324 = vmatprep.subr.bf16.mxu0 0
        %2325 = vmatpush1.bf16.msra.mxu0 0
        %2326 = vmatprep.subr.bf16.mxu0 0
        %2327 = vmatpush1.bf16.msra.mxu0 0
        %2328 = vmatprep.subr.bf16.mxu0 0
        %2329 = vmatpush1.bf16.msra.mxu0 0
        %2330 = vmatprep.mubr.bf16.mxu0 0
        %2331 = vmatmul.mubr.bf16.gmra.mrb[0].mxu0 %v1882
        %v2332 = vpop.f32.mrb[0].mxu0
        %v2333 = vadd.f32 %v2172, %v2332
        %v2334 = vpop.f32.mrb[0].mxu0
        %v2335 = vpop.f32.mrb[0].mxu0
        %v2336 = vadd.f32 %v2175, %v2335
        %v2337 = vpop.f32.mrb[0].mxu0
        %2338 = vmatprep.mubr.bf16.mxu0 0
        %2339 = vmatmul.mubr.bf16.gmra.mrb[0].mxu0 %v1885
        %v2340 = vpop.f32.mrb[0].mxu0
        %v2341 = vadd.f32 %v2180, %v2340
        %v2342 = vpop.f32.mrb[0].mxu0
        %v2343 = vpop.f32.mrb[0].mxu0
        %v2344 = vadd.f32 %v2183, %v2343
        %v2345 = vpop.f32.mrb[0].mxu0
        %2346 = vmatprep.mubr.bf16.mxu0 0
        %2347 = vmatmul.mubr.bf16.gmra.mrb[0].mxu0 %v1888
        %v2348 = vpop.f32.mrb[0].mxu0
        %v2349 = vadd.f32 %v2188, %v2348
        %v2350 = vpop.f32.mrb[0].mxu0
        %v2351 = vpop.f32.mrb[0].mxu0
        %v2352 = vadd.f32 %v2191, %v2351
        %v2353 = vpop.f32.mrb[0].mxu0
        %2354 = vmatprep.mubr.bf16.mxu0 0
        %2355 = vmatmul.mubr.bf16.gmra.mrb[0].mxu0 %v1891
        %v2356 = vpop.f32.mrb[0].mxu0
        %v2357 = vadd.f32 %v2196, %v2356
        %v2358 = vpop.f32.mrb[0].mxu0
        %v2359 = vpop.f32.mrb[0].mxu0
        %v2360 = vadd.f32 %v2199, %v2359
        %v2361 = vpop.f32.mrb[0].mxu0
        %2362 = vmatprep.mubr.bf16.mxu0 0
        %2363 = vmatmul.mubr.bf16.gmra.mrb[0].mxu0 %v1894
        %v2364 = vpop.f32.mrb[0].mxu0
        %v2365 = vadd.f32 %v2204, %v2364
        %v2366 = vpop.f32.mrb[0].mxu0
        %v2367 = vpop.f32.mrb[0].mxu0
        %v2368 = vadd.f32 %v2207, %v2367
        %v2369 = vpop.f32.mrb[0].mxu0
        %2370 = vmatprep.mubr.bf16.mxu0 0
        %2371 = vmatmul.mubr.bf16.gmra.mrb[0].mxu0 %v1897
        %v2372 = vpop.f32.mrb[0].mxu0
        %v2373 = vadd.f32 %v2212, %v2372
        %v2374 = vpop.f32.mrb[0].mxu0
        %v2375 = vpop.f32.mrb[0].mxu0
        %v2376 = vadd.f32 %v2215, %v2375
        %v2377 = vpop.f32.mrb[0].mxu0
        %2378 = vmatprep.mubr.bf16.mxu0 0
        %2379 = vmatmul.mubr.bf16.gmra.mrb[0].mxu0 %v1900
        %v2380 = vpop.f32.mrb[0].mxu0
        %v2381 = vadd.f32 %v2220, %v2380
        %v2382 = vpop.f32.mrb[0].mxu0
        %v2383 = vpop.f32.mrb[0].mxu0
        %v2384 = vadd.f32 %v2223, %v2383
        %v2385 = vpop.f32.mrb[0].mxu0
        %2386 = vmatprep.mubr.bf16.mxu0 0
        %2387 = vmatmul.mubr.bf16.gmra.mrb[0].mxu0 %v1903
        %v2388 = vpop.f32.mrb[0].mxu0
        %v2389 = vadd.f32 %v2228, %v2388
        %v2390 = vpop.f32.mrb[0].mxu0
        %v2391 = vpop.f32.mrb[0].mxu0
        %v2392 = vadd.f32 %v2231, %v2391
        %v2393 = vpop.f32.mrb[0].mxu0
        %2394 = vmatprep.mubr.bf16.mxu0 0
        %2395 = vmatmul.mubr.bf16.gmra.mrb[0].mxu0 %v1906
        %v2396 = vpop.f32.mrb[0].mxu0
        %v2397 = vadd.f32 %v2236, %v2396
        %v2398 = vpop.f32.mrb[0].mxu0
        %v2399 = vpop.f32.mrb[0].mxu0
        %v2400 = vadd.f32 %v2239, %v2399
        %v2401 = vpop.f32.mrb[0].mxu0
        %2402 = vmatprep.mubr.bf16.mxu0 0
        %2403 = vmatmul.mubr.bf16.gmra.mrb[0].mxu0 %v1909
        %v2404 = vpop.f32.mrb[0].mxu0
        %v2405 = vadd.f32 %v2244, %v2404
        %v2406 = vpop.f32.mrb[0].mxu0
        %v2407 = vpop.f32.mrb[0].mxu0
        %v2408 = vadd.f32 %v2247, %v2407
        %v2409 = vpop.f32.mrb[0].mxu0
        %2410 = vmatprep.mubr.bf16.mxu0 0
        %2411 = vmatmul.mubr.bf16.gmra.mrb[0].mxu0 %v1912
        %v2412 = vpop.f32.mrb[0].mxu0
        %v2413 = vadd.f32 %v2252, %v2412
        %v2414 = vpop.f32.mrb[0].mxu0
        %v2415 = vpop.f32.mrb[0].mxu0
        %v2416 = vadd.f32 %v2255, %v2415
        %v2417 = vpop.f32.mrb[0].mxu0
        %2418 = vmatprep.mubr.bf16.mxu0 0
        %2419 = vmatmul.mubr.bf16.gmra.mrb[0].mxu0 %v1915
        %v2420 = vpop.f32.mrb[0].mxu0
        %v2421 = vadd.f32 %v2260, %v2420
        %v2422 = vpop.f32.mrb[0].mxu0
        %v2423 = vpop.f32.mrb[0].mxu0
        %v2424 = vadd.f32 %v2263, %v2423
        %v2425 = vpop.f32.mrb[0].mxu0
        %2426 = vmatprep.mubr.bf16.mxu0 0
        %2427 = vmatmul.mubr.bf16.gmra.mrb[0].mxu0 %v1918
        %v2428 = vpop.f32.mrb[0].mxu0
        %v2429 = vadd.f32 %v2268, %v2428
        %v2430 = vpop.f32.mrb[0].mxu0
        %v2431 = vpop.f32.mrb[0].mxu0
        %v2432 = vadd.f32 %v2271, %v2431
        %v2433 = vpop.f32.mrb[0].mxu0
        %2434 = vmatprep.mubr.bf16.mxu0 0
        %2435 = vmatmul.mubr.bf16.gmra.mrb[0].mxu0 %v1921
        %v2436 = vpop.f32.mrb[0].mxu0
        %v2437 = vadd.f32 %v2276, %v2436
        %v2438 = vpop.f32.mrb[0].mxu0
        %v2439 = vpop.f32.mrb[0].mxu0
        %v2440 = vadd.f32 %v2279, %v2439
        %v2441 = vpop.f32.mrb[0].mxu0
        %2442 = vmatprep.mubr.bf16.mxu0 0
        %2443 = vmatmul.mubr.bf16.gmra.mrb[0].mxu0 %v1924
        %v2444 = vpop.f32.mrb[0].mxu0
        %v2445 = vadd.f32 %v2284, %v2444
        %v2446 = vpop.f32.mrb[0].mxu0
        %v2447 = vpop.f32.mrb[0].mxu0
        %v2448 = vadd.f32 %v2287, %v2447
        %v2449 = vpop.f32.mrb[0].mxu0
        %2450 = vmatprep.mubr.bf16.mxu0 0
        %2451 = vmatmul.mubr.bf16.gmra.mrb[0].mxu0 %v1927
        %v2452 = vpop.f32.mrb[0].mxu0
        %v2453 = vadd.f32 %v2292, %v2452
        %v2454 = vpop.f32.mrb[0].mxu0
        %v2455 = vpop.f32.mrb[0].mxu0
        %v2456 = vadd.f32 %v2295, %v2455
        %v2457 = vpop.f32.mrb[0].mxu0
        %2458 = vdwg.mxu0
        %v2507 = vunpack.c.l.b16 %v1367
        %v2508 = vunpack.c.l.b16 %v1368
        %v2509 = vunpack.c.l.b16 %v1369
        %v2510 = vunpack.c.l.b16 %v1370
        %v2511 = vunpack.c.l.b16 %v1371
        %v2512 = vunpack.c.l.b16 %v1372
        %v2513 = vunpack.c.l.b16 %v1373
        %v2514 = vunpack.c.l.b16 %v1374
        %v2515 = vunpack.c.l.b16 %v1375
        %v2516 = vunpack.c.l.b16 %v1376
        %v2517 = vunpack.c.l.b16 %v1377
        %v2518 = vunpack.c.l.b16 %v1378
        %v2519 = vunpack.c.l.b16 %v1379
        %v2520 = vunpack.c.l.b16 %v1380
        %v2521 = vunpack.c.l.b16 %v1381
        %v2522 = vunpack.c.l.b16 %v1382
        %v2523 = vunpack.c.l.b16 %v1383
        %v2524 = vunpack.c.l.b16 %v1384
        %v2525 = vunpack.c.l.b16 %v1385
        %v2526 = vunpack.c.l.b16 %v1386
        %v2527 = vunpack.c.l.b16 %v1387
        %v2528 = vunpack.c.l.b16 %v1388
        %v2529 = vunpack.c.l.b16 %v1389
        %v2530 = vunpack.c.l.b16 %v1390
        %v2531 = vunpack.c.l.b16 %v1391
        %v2532 = vunpack.c.l.b16 %v1392
        %v2533 = vunpack.c.l.b16 %v1393
        %v2534 = vunpack.c.l.b16 %v1394
        %v2535 = vunpack.c.l.b16 %v1395
        %v2536 = vunpack.c.l.b16 %v1396
        %v2537 = vunpack.c.l.b16 %v1397
        %v2538 = vunpack.c.l.b16 %v1398
        %v2539 = vunpack.c.l.b16 %v1399
        %v2540 = vunpack.c.l.b16 %v1400
        %v2541 = vunpack.c.l.b16 %v1401
        %v2542 = vunpack.c.l.b16 %v1402
        %v2543 = vunpack.c.l.b16 %v1403
        %v2544 = vunpack.c.l.b16 %v1404
        %v2545 = vunpack.c.l.b16 %v1405
        %v2546 = vunpack.c.l.b16 %v1406
        %v2547 = vunpack.c.l.b16 %v1407
        %v2548 = vunpack.c.l.b16 %v1408
        %v2549 = vunpack.c.l.b16 %v1409
        %v2550 = vunpack.c.l.b16 %v1410
        %v2551 = vunpack.c.l.b16 %v1411
        %v2552 = vunpack.c.l.b16 %v1412
        %v2553 = vunpack.c.l.b16 %v1413
        %v2554 = vunpack.c.l.b16 %v1414
        %v2555 = vpack.c.b16 %v2508, %v2507
        %v2556 = vpack.c.b16 %v2510, %v2509
        %v2557 = vpack.c.b16 %v2512, %v2511
        %v2558 = vpack.c.b16 %v2514, %v2513
        %v2559 = vpack.c.b16 %v2516, %v2515
        %v2560 = vpack.c.b16 %v2518, %v2517
        %v2561 = vpack.c.b16 %v2520, %v2519
        %v2562 = vpack.c.b16 %v2522, %v2521
        %v2563 = vpack.c.b16 %v2524, %v2523
        %v2564 = vpack.c.b16 %v2526, %v2525
        %v2565 = vpack.c.b16 %v2528, %v2527
        %v2566 = vpack.c.b16 %v2530, %v2529
        %v2567 = vpack.c.b16 %v2532, %v2531
        %v2568 = vpack.c.b16 %v2534, %v2533
        %v2569 = vpack.c.b16 %v2536, %v2535
        %v2570 = vpack.c.b16 %v2538, %v2537
        %v2571 = vpack.c.b16 %v2540, %v2539
        %v2572 = vpack.c.b16 %v2542, %v2541
        %v2573 = vpack.c.b16 %v2544, %v2543
        %v2574 = vpack.c.b16 %v2546, %v2545
        %v2575 = vpack.c.b16 %v2548, %v2547
        %v2576 = vpack.c.b16 %v2550, %v2549
        %v2577 = vpack.c.b16 %v2552, %v2551
        %v2578 = vpack.c.b16 %v2554, %v2553
        %2603 = vmatprep.subr.bf16.mxu0 0
        %2604 = vmatpush1.bf16.msra.mxu0 %v2555
        %2605 = vmatprep.subr.bf16.mxu0 0
        %2606 = vmatpush1.bf16.msra.mxu0 %v2556
        %2607 = vmatprep.subr.bf16.mxu0 0
        %2608 = vmatpush1.bf16.msra.mxu0 %v2557
        %2609 = vmatprep.subr.bf16.mxu0 0
        %2610 = vmatpush1.bf16.msra.mxu0 %v2558
        %2611 = vmatprep.subr.bf16.mxu0 0
        %2612 = vmatpush1.bf16.msra.mxu0 %v2559
        %2613 = vmatprep.subr.bf16.mxu0 0
        %2614 = vmatpush1.bf16.msra.mxu0 %v2560
        %2615 = vmatprep.subr.bf16.mxu0 0
        %2616 = vmatpush1.bf16.msra.mxu0 %v2561
        %2617 = vmatprep.subr.bf16.mxu0 0
        %2618 = vmatpush1.bf16.msra.mxu0 %v2562
        %2619 = vmatprep.subr.bf16.mxu0 0
        %2620 = vmatpush1.bf16.msra.mxu0 %v2563
        %2621 = vmatprep.subr.bf16.mxu0 0
        %2622 = vmatpush1.bf16.msra.mxu0 %v2564
        %2623 = vmatprep.subr.bf16.mxu0 0
        %2624 = vmatpush1.bf16.msra.mxu0 %v2565
        %2625 = vmatprep.subr.bf16.mxu0 0
        %2626 = vmatpush1.bf16.msra.mxu0 %v2566
        %2627 = vmatprep.subr.bf16.mxu0 0
        %2628 = vmatpush1.bf16.msra.mxu0 %v2567
        %2629 = vmatprep.subr.bf16.mxu0 0
        %2630 = vmatpush1.bf16.msra.mxu0 %v2568
        %2631 = vmatprep.subr.bf16.mxu0 0
        %2632 = vmatpush1.bf16.msra.mxu0 %v2569
        %2633 = vmatprep.subr.bf16.mxu0 0
        %2634 = vmatpush1.bf16.msra.mxu0 %v2570
        %2635 = vmatprep.mubr.bf16.mxu0 %v1057
        %2636 = vmatmul.mubr.bf16.gmra.mrb[0].mxu0 %v965
        %v2637 = vpop.f32.mrb[0].mxu0
        %v2638 = vadd.f32 %v2333, %v2637
        %v2639 = vpop.f32.mrb[0].mxu0
        %v2640 = vpop.f32.mrb[0].mxu0
        %v2641 = vadd.f32 %v2336, %v2640
        %v2642 = vpop.f32.mrb[0].mxu0
        %2643 = vmatprep.mubr.bf16.mxu0 %v1069
        %2644 = vmatmul.mubr.bf16.gmra.mrb[0].mxu0 %v966
        %v2645 = vpop.f32.mrb[0].mxu0
        %v2646 = vadd.f32 %v2341, %v2645
        %v2647 = vpop.f32.mrb[0].mxu0
        %v2648 = vpop.f32.mrb[0].mxu0
        %v2649 = vadd.f32 %v2344, %v2648
        %v2650 = vpop.f32.mrb[0].mxu0
        %2651 = vmatprep.mubr.bf16.mxu0 %v1081
        %2652 = vmatmul.mubr.bf16.gmra.mrb[0].mxu0 %v967
        %v2653 = vpop.f32.mrb[0].mxu0
        %v2654 = vadd.f32 %v2349, %v2653
        %v2655 = vpop.f32.mrb[0].mxu0
        %v2656 = vpop.f32.mrb[0].mxu0
        %v2657 = vadd.f32 %v2352, %v2656
        %v2658 = vpop.f32.mrb[0].mxu0
        %2659 = vmatprep.mubr.bf16.mxu0 %v1093
        %2660 = vmatmul.mubr.bf16.gmra.mrb[0].mxu0 %v968
        %v2661 = vpop.f32.mrb[0].mxu0
        %v2662 = vadd.f32 %v2357, %v2661
        %v2663 = vpop.f32.mrb[0].mxu0
        %v2664 = vpop.f32.mrb[0].mxu0
        %v2665 = vadd.f32 %v2360, %v2664
        %v2666 = vpop.f32.mrb[0].mxu0
        %2667 = vmatprep.mubr.bf16.mxu0 %v1105
        %2668 = vmatmul.mubr.bf16.gmra.mrb[0].mxu0 %v969
        %v2669 = vpop.f32.mrb[0].mxu0
        %v2670 = vadd.f32 %v2365, %v2669
        %v2671 = vpop.f32.mrb[0].mxu0
        %v2672 = vpop.f32.mrb[0].mxu0
        %v2673 = vadd.f32 %v2368, %v2672
        %v2674 = vpop.f32.mrb[0].mxu0
        %2675 = vmatprep.mubr.bf16.mxu0 %v1117
        %2676 = vmatmul.mubr.bf16.gmra.mrb[0].mxu0 %v970
        %v2677 = vpop.f32.mrb[0].mxu0
        %v2678 = vadd.f32 %v2373, %v2677
        %v2679 = vpop.f32.mrb[0].mxu0
        %v2680 = vpop.f32.mrb[0].mxu0
        %v2681 = vadd.f32 %v2376, %v2680
        %v2682 = vpop.f32.mrb[0].mxu0
        %2683 = vmatprep.mubr.bf16.mxu0 %v1129
        %2684 = vmatmul.mubr.bf16.gmra.mrb[0].mxu0 %v971
        %v2685 = vpop.f32.mrb[0].mxu0
        %v2686 = vadd.f32 %v2381, %v2685
        %v2687 = vpop.f32.mrb[0].mxu0
        %v2688 = vpop.f32.mrb[0].mxu0
        %v2689 = vadd.f32 %v2384, %v2688
        %v2690 = vpop.f32.mrb[0].mxu0
        %2691 = vmatprep.mubr.bf16.mxu0 %v1141
        %2692 = vmatmul.mubr.bf16.gmra.mrb[0].mxu0 %v972
        %v2693 = vpop.f32.mrb[0].mxu0
        %v2694 = vadd.f32 %v2389, %v2693
        %v2695 = vpop.f32.mrb[0].mxu0
        %v2696 = vpop.f32.mrb[0].mxu0
        %v2697 = vadd.f32 %v2392, %v2696
        %v2698 = vpop.f32.mrb[0].mxu0
        %2699 = vmatprep.mubr.bf16.mxu0 %v1153
        %2700 = vmatmul.mubr.bf16.gmra.mrb[0].mxu0 %v973
        %v2701 = vpop.f32.mrb[0].mxu0
        %v2702 = vadd.f32 %v2397, %v2701
        %v2703 = vpop.f32.mrb[0].mxu0
        %v2704 = vpop.f32.mrb[0].mxu0
        %v2705 = vadd.f32 %v2400, %v2704
        %v2706 = vpop.f32.mrb[0].mxu0
        %2707 = vmatprep.mubr.bf16.mxu0 %v1165
        %2708 = vmatmul.mubr.bf16.gmra.mrb[0].mxu0 %v974
        %v2709 = vpop.f32.mrb[0].mxu0
        %v2710 = vadd.f32 %v2405, %v2709
        %v2711 = vpop.f32.mrb[0].mxu0
        %v2712 = vpop.f32.mrb[0].mxu0
        %v2713 = vadd.f32 %v2408, %v2712
        %v2714 = vpop.f32.mrb[0].mxu0
        %2715 = vmatprep.mubr.bf16.mxu0 %v1177
        %2716 = vmatmul.mubr.bf16.gmra.mrb[0].mxu0 %v975
        %v2717 = vpop.f32.mrb[0].mxu0
        %v2718 = vadd.f32 %v2413, %v2717
        %v2719 = vpop.f32.mrb[0].mxu0
        %v2720 = vpop.f32.mrb[0].mxu0
        %v2721 = vadd.f32 %v2416, %v2720
        %v2722 = vpop.f32.mrb[0].mxu0
        %2723 = vmatprep.mubr.bf16.mxu0 %v1189
        %2724 = vmatmul.mubr.bf16.gmra.mrb[0].mxu0 %v976
        %v2725 = vpop.f32.mrb[0].mxu0
        %v2726 = vadd.f32 %v2421, %v2725
        %v2727 = vpop.f32.mrb[0].mxu0
        %v2728 = vpop.f32.mrb[0].mxu0
        %v2729 = vadd.f32 %v2424, %v2728
        %v2730 = vpop.f32.mrb[0].mxu0
        %2731 = vmatprep.mubr.bf16.mxu0 %v1201
        %2732 = vmatmul.mubr.bf16.gmra.mrb[0].mxu0 %v977
        %v2733 = vpop.f32.mrb[0].mxu0
        %v2734 = vadd.f32 %v2429, %v2733
        %v2735 = vpop.f32.mrb[0].mxu0
        %v2736 = vpop.f32.mrb[0].mxu0
        %v2737 = vadd.f32 %v2432, %v2736
        %v2738 = vpop.f32.mrb[0].mxu0
        %2739 = vmatprep.mubr.bf16.mxu0 %v1213
        %2740 = vmatmul.mubr.bf16.gmra.mrb[0].mxu0 %v978
        %v2741 = vpop.f32.mrb[0].mxu0
        %v2742 = vadd.f32 %v2437, %v2741
        %v2743 = vpop.f32.mrb[0].mxu0
        %v2744 = vpop.f32.mrb[0].mxu0
        %v2745 = vadd.f32 %v2440, %v2744
        %v2746 = vpop.f32.mrb[0].mxu0
        %2747 = vmatprep.mubr.bf16.mxu0 %v1225
        %2748 = vmatmul.mubr.bf16.gmra.mrb[0].mxu0 %v979
        %v2749 = vpop.f32.mrb[0].mxu0
        %v2750 = vadd.f32 %v2445, %v2749
        %v2751 = vpop.f32.mrb[0].mxu0
        %v2752 = vpop.f32.mrb[0].mxu0
        %v2753 = vadd.f32 %v2448, %v2752
        %v2754 = vpop.f32.mrb[0].mxu0
        %2755 = vmatprep.mubr.bf16.mxu0 %v1237
        %2756 = vmatmul.mubr.bf16.gmra.mrb[0].mxu0 %v980
        %v2757 = vpop.f32.mrb[0].mxu0
        %v2758 = vadd.f32 %v2453, %v2757
        %v2759 = vpop.f32.mrb[0].mxu0
        %v2760 = vpop.f32.mrb[0].mxu0
        %v2761 = vadd.f32 %v2456, %v2760
        %v2762 = vpop.f32.mrb[0].mxu0
        %2763 = vdwg.mxu0
        %2764 = vmatprep.subr.bf16.mxu0 0
        %2765 = vmatpush1.bf16.msra.mxu0 %v2571
        %2766 = vmatprep.subr.bf16.mxu0 0
        %2767 = vmatpush1.bf16.msra.mxu0 %v2572
        %2768 = vmatprep.subr.bf16.mxu0 0
        %2769 = vmatpush1.bf16.msra.mxu0 %v2573
        %2770 = vmatprep.subr.bf16.mxu0 0
        %2771 = vmatpush1.bf16.msra.mxu0 %v2574
        %2772 = vmatprep.subr.bf16.mxu0 0
        %2773 = vmatpush1.bf16.msra.mxu0 %v2575
        %2774 = vmatprep.subr.bf16.mxu0 0
        %2775 = vmatpush1.bf16.msra.mxu0 %v2576
        %2776 = vmatprep.subr.bf16.mxu0 0
        %2777 = vmatpush1.bf16.msra.mxu0 %v2577
        %2778 = vmatprep.subr.bf16.mxu0 0
        %2779 = vmatpush1.bf16.msra.mxu0 %v2578
        %2780 = vmatprep.subr.bf16.mxu0 0
        %2781 = vmatpush1.bf16.msra.mxu0 0
        %2782 = vmatprep.subr.bf16.mxu0 0
        %2783 = vmatpush1.bf16.msra.mxu0 0
        %2784 = vmatprep.subr.bf16.mxu0 0
        %2785 = vmatpush1.bf16.msra.mxu0 0
        %2786 = vmatprep.subr.bf16.mxu0 0
        %2787 = vmatpush1.bf16.msra.mxu0 0
        %2788 = vmatprep.subr.bf16.mxu0 0
        %2789 = vmatpush1.bf16.msra.mxu0 0
        %2790 = vmatprep.subr.bf16.mxu0 0
        %2791 = vmatpush1.bf16.msra.mxu0 0
        %2792 = vmatprep.subr.bf16.mxu0 0
        %2793 = vmatpush1.bf16.msra.mxu0 0
        %2794 = vmatprep.subr.bf16.mxu0 0
        %2795 = vmatpush1.bf16.msra.mxu0 0
        %2796 = vmatprep.mubr.bf16.mxu0 0
        %2797 = vmatmul.mubr.bf16.gmra.mrb[0].mxu0 %v1305
        %v2798 = vpop.f32.mrb[0].mxu0
        %v2799 = vadd.f32 %v2638, %v2798
        %v2800 = vpop.f32.mrb[0].mxu0
        %v2801 = vpop.f32.mrb[0].mxu0
        %v2802 = vadd.f32 %v2641, %v2801
        %v2803 = vpop.f32.mrb[0].mxu0
        %2804 = vmatprep.mubr.bf16.mxu0 0
        %2805 = vmatmul.mubr.bf16.gmra.mrb[0].mxu0 %v1308
        %v2806 = vpop.f32.mrb[0].mxu0
        %v2807 = vadd.f32 %v2646, %v2806
        %v2808 = vpop.f32.mrb[0].mxu0
        %v2809 = vpop.f32.mrb[0].mxu0
        %v2810 = vadd.f32 %v2649, %v2809
        %v2811 = vpop.f32.mrb[0].mxu0
        %2812 = vmatprep.mubr.bf16.mxu0 0
        %2813 = vmatmul.mubr.bf16.gmra.mrb[0].mxu0 %v1311
        %v2814 = vpop.f32.mrb[0].mxu0
        %v2815 = vadd.f32 %v2654, %v2814
        %v2816 = vpop.f32.mrb[0].mxu0
        %v2817 = vpop.f32.mrb[0].mxu0
        %v2818 = vadd.f32 %v2657, %v2817
        %v2819 = vpop.f32.mrb[0].mxu0
        %2820 = vmatprep.mubr.bf16.mxu0 0
        %2821 = vmatmul.mubr.bf16.gmra.mrb[0].mxu0 %v1314
        %v2822 = vpop.f32.mrb[0].mxu0
        %v2823 = vadd.f32 %v2662, %v2822
        %v2824 = vpop.f32.mrb[0].mxu0
        %v2825 = vpop.f32.mrb[0].mxu0
        %v2826 = vadd.f32 %v2665, %v2825
        %v2827 = vpop.f32.mrb[0].mxu0
        %2828 = vmatprep.mubr.bf16.mxu0 0
        %2829 = vmatmul.mubr.bf16.gmra.mrb[0].mxu0 %v1317
        %v2830 = vpop.f32.mrb[0].mxu0
        %v2831 = vadd.f32 %v2670, %v2830
        %v2832 = vpop.f32.mrb[0].mxu0
        %v2833 = vpop.f32.mrb[0].mxu0
        %v2834 = vadd.f32 %v2673, %v2833
        %v2835 = vpop.f32.mrb[0].mxu0
        %2836 = vmatprep.mubr.bf16.mxu0 0
        %2837 = vmatmul.mubr.bf16.gmra.mrb[0].mxu0 %v1320
        %v2838 = vpop.f32.mrb[0].mxu0
        %v2839 = vadd.f32 %v2678, %v2838
        %v2840 = vpop.f32.mrb[0].mxu0
        %v2841 = vpop.f32.mrb[0].mxu0
        %v2842 = vadd.f32 %v2681, %v2841
        %v2843 = vpop.f32.mrb[0].mxu0
        %2844 = vmatprep.mubr.bf16.mxu0 0
        %2845 = vmatmul.mubr.bf16.gmra.mrb[0].mxu0 %v1323
        %v2846 = vpop.f32.mrb[0].mxu0
        %v2847 = vadd.f32 %v2686, %v2846
        %v2848 = vpop.f32.mrb[0].mxu0
        %v2849 = vpop.f32.mrb[0].mxu0
        %v2850 = vadd.f32 %v2689, %v2849
        %v2851 = vpop.f32.mrb[0].mxu0
        %2852 = vmatprep.mubr.bf16.mxu0 0
        %2853 = vmatmul.mubr.bf16.gmra.mrb[0].mxu0 %v1326
        %v2854 = vpop.f32.mrb[0].mxu0
        %v2855 = vadd.f32 %v2694, %v2854
        %v2856 = vpop.f32.mrb[0].mxu0
        %v2857 = vpop.f32.mrb[0].mxu0
        %v2858 = vadd.f32 %v2697, %v2857
        %v2859 = vpop.f32.mrb[0].mxu0
        %2860 = vmatprep.mubr.bf16.mxu0 0
        %2861 = vmatmul.mubr.bf16.gmra.mrb[0].mxu0 %v1329
        %v2862 = vpop.f32.mrb[0].mxu0
        %v2863 = vadd.f32 %v2702, %v2862
        %v2864 = vpop.f32.mrb[0].mxu0
        %v2865 = vpop.f32.mrb[0].mxu0
        %v2866 = vadd.f32 %v2705, %v2865
        %v2867 = vpop.f32.mrb[0].mxu0
        %2868 = vmatprep.mubr.bf16.mxu0 0
        %2869 = vmatmul.mubr.bf16.gmra.mrb[0].mxu0 %v1332
        %v2870 = vpop.f32.mrb[0].mxu0
        %v2871 = vadd.f32 %v2710, %v2870
        %v2872 = vpop.f32.mrb[0].mxu0
        %v2873 = vpop.f32.mrb[0].mxu0
        %v2874 = vadd.f32 %v2713, %v2873
        %v2875 = vpop.f32.mrb[0].mxu0
        %2876 = vmatprep.mubr.bf16.mxu0 0
        %2877 = vmatmul.mubr.bf16.gmra.mrb[0].mxu0 %v1335
        %v2878 = vpop.f32.mrb[0].mxu0
        %v2879 = vadd.f32 %v2718, %v2878
        %v2880 = vpop.f32.mrb[0].mxu0
        %v2881 = vpop.f32.mrb[0].mxu0
        %v2882 = vadd.f32 %v2721, %v2881
        %v2883 = vpop.f32.mrb[0].mxu0
        %2884 = vmatprep.mubr.bf16.mxu0 0
        %2885 = vmatmul.mubr.bf16.gmra.mrb[0].mxu0 %v1338
        %v2886 = vpop.f32.mrb[0].mxu0
        %v2887 = vadd.f32 %v2726, %v2886
        %v2888 = vpop.f32.mrb[0].mxu0
        %v2889 = vpop.f32.mrb[0].mxu0
        %v2890 = vadd.f32 %v2729, %v2889
        %v2891 = vpop.f32.mrb[0].mxu0
        %2892 = vmatprep.mubr.bf16.mxu0 0
        %2893 = vmatmul.mubr.bf16.gmra.mrb[0].mxu0 %v1341
        %v2894 = vpop.f32.mrb[0].mxu0
        %v2895 = vadd.f32 %v2734, %v2894
        %v2896 = vpop.f32.mrb[0].mxu0
        %v2897 = vpop.f32.mrb[0].mxu0
        %v2898 = vadd.f32 %v2737, %v2897
        %v2899 = vpop.f32.mrb[0].mxu0
        %2900 = vmatprep.mubr.bf16.mxu0 0
        %2901 = vmatmul.mubr.bf16.gmra.mrb[0].mxu0 %v1344
        %v2902 = vpop.f32.mrb[0].mxu0
        %v2903 = vadd.f32 %v2742, %v2902
        %v2904 = vpop.f32.mrb[0].mxu0
        %v2905 = vpop.f32.mrb[0].mxu0
        %v2906 = vadd.f32 %v2745, %v2905
        %v2907 = vpop.f32.mrb[0].mxu0
        %2908 = vmatprep.mubr.bf16.mxu0 0
        %2909 = vmatmul.mubr.bf16.gmra.mrb[0].mxu0 %v1347
        %v2910 = vpop.f32.mrb[0].mxu0
        %v2911 = vadd.f32 %v2750, %v2910
        %v2912 = vpop.f32.mrb[0].mxu0
        %v2913 = vpop.f32.mrb[0].mxu0
        %v2914 = vadd.f32 %v2753, %v2913
        %v2915 = vpop.f32.mrb[0].mxu0
        %2916 = vmatprep.mubr.bf16.mxu0 0
        %2917 = vmatmul.mubr.bf16.gmra.mrb[0].mxu0 %v1350
        %v2918 = vpop.f32.mrb[0].mxu0
        %v2919 = vadd.f32 %v2758, %v2918
        %v2920 = vpop.f32.mrb[0].mxu0
        %v2921 = vpop.f32.mrb[0].mxu0
        %v2922 = vadd.f32 %v2761, %v2921
        %v2923 = vpop.f32.mrb[0].mxu0
        %2924 = vdwg.mxu0
        %s2925 = scalar_lea.vmem [#allocation2], 24
        %v2926 = vld [vmem:[%s2925] sm:$0xf]
        %v2927 = vld [vmem:[%s2925 + $0x4] sm:$0xf]
        %v2928 = vld [vmem:[%s2925 + $0xc] sm:$0xf]
        %v2929 = vld [vmem:[%s2925 + $0x10] sm:$0xf]
        %v2930 = vld [vmem:[%s2925 + $0x18] sm:$0xf]
        %v2931 = vld [vmem:[%s2925 + $0x1c] sm:$0xf]
        %v2932 = vld [vmem:[%s2925 + $0x24] sm:$0xf]
        %v2933 = vld [vmem:[%s2925 + $0x28] sm:$0xf]
        %v2934 = vld [vmem:[%s2925 + $0x30] sm:$0xf]
        %v2935 = vld [vmem:[%s2925 + $0x34] sm:$0xf]
        %v2936 = vld [vmem:[%s2925 + $0x3c] sm:$0xf]
        %v2937 = vld [vmem:[%s2925 + $0x40] sm:$0xf]
        %v2938 = vld [vmem:[%s2925 + $0x48] sm:$0xf]
        %v2939 = vld [vmem:[%s2925 + $0x4c] sm:$0xf]
        %v2940 = vld [vmem:[%s2925 + $0x54] sm:$0xf]
        %v2941 = vld [vmem:[%s2925 + $0x58] sm:$0xf]
        %v2942 = vld [vmem:[%s2925 + $0x60] sm:$0xf]
        %v2943 = vld [vmem:[%s2925 + $0x64] sm:$0xf]
        %v2944 = vld [vmem:[%s2925 + $0x6c] sm:$0xf]
        %v2945 = vld [vmem:[%s2925 + $0x70] sm:$0xf]
        %v2946 = vld [vmem:[%s2925 + $0x78] sm:$0xf]
        %v2947 = vld [vmem:[%s2925 + $0x7c] sm:$0xf]
        %v2948 = vld [vmem:[%s2925 + $0x84] sm:$0xf]
        %v2949 = vld [vmem:[%s2925 + $0x88] sm:$0xf]
        %v2950 = vld [vmem:[%s2925 + $0x90] sm:$0xf]
        %v2951 = vld [vmem:[%s2925 + $0x94] sm:$0xf]
        %v2952 = vld [vmem:[%s2925 + $0x9c] sm:$0xf]
        %v2953 = vld [vmem:[%s2925 + $0xa0] sm:$0xf]
        %v2954 = vld [vmem:[%s2925 + $0xa8] sm:$0xf]
        %v2955 = vld [vmem:[%s2925 + $0xac] sm:$0xf]
        %v2956 = vld [vmem:[%s2925 + $0xb4] sm:$0xf]
        %v2957 = vld [vmem:[%s2925 + $0xb8] sm:$0xf]
        %v2958 = vld [vmem:[%s2925 + $0x8] sm:$0x1]
        %v2959 = vld [vmem:[%s2925 + $0x14] sm:$0x1]
        %v2960 = vld [vmem:[%s2925 + $0x20] sm:$0x1]
        %v2961 = vld [vmem:[%s2925 + $0x2c] sm:$0x1]
        %v2962 = vld [vmem:[%s2925 + $0x38] sm:$0x1]
        %v2963 = vld [vmem:[%s2925 + $0x44] sm:$0x1]
        %v2964 = vld [vmem:[%s2925 + $0x50] sm:$0x1]
        %v2965 = vld [vmem:[%s2925 + $0x5c] sm:$0x1]
        %v2966 = vld [vmem:[%s2925 + $0x68] sm:$0x1]
        %v2967 = vld [vmem:[%s2925 + $0x74] sm:$0x1]
        %v2968 = vld [vmem:[%s2925 + $0x80] sm:$0x1]
        %v2969 = vld [vmem:[%s2925 + $0x8c] sm:$0x1]
        %v2970 = vld [vmem:[%s2925 + $0x98] sm:$0x1]
        %v2971 = vld [vmem:[%s2925 + $0xa4] sm:$0x1]
        %v2972 = vld [vmem:[%s2925 + $0xb0] sm:$0x1]
        %v2973 = vld [vmem:[%s2925 + $0xbc] sm:$0x1]
        %v2974 = vld [vmem:[%s2925] sm:$0xe]
        %v2975 = vld [vmem:[%s2925 + $0xc] sm:$0xe]
        %v2976 = vld [vmem:[%s2925 + $0x18] sm:$0xe]
        %v2977 = vld [vmem:[%s2925 + $0x24] sm:$0xe]
        %v2978 = vld [vmem:[%s2925 + $0x30] sm:$0xe]
        %v2979 = vld [vmem:[%s2925 + $0x3c] sm:$0xe]
        %v2980 = vld [vmem:[%s2925 + $0x48] sm:$0xe]
        %v2981 = vld [vmem:[%s2925 + $0x54] sm:$0xe]
        %v2982 = vld [vmem:[%s2925 + $0x60] sm:$0xe]
        %v2983 = vld [vmem:[%s2925 + $0x6c] sm:$0xe]
        %v2984 = vld [vmem:[%s2925 + $0x78] sm:$0xe]
        %v2985 = vld [vmem:[%s2925 + $0x84] sm:$0xe]
        %v2986 = vld [vmem:[%s2925 + $0x90] sm:$0xe]
        %v2987 = vld [vmem:[%s2925 + $0x9c] sm:$0xe]
        %v2988 = vld [vmem:[%s2925 + $0xa8] sm:$0xe]
        %v2989 = vld [vmem:[%s2925 + $0xb4] sm:$0xe]
        %v3022 = vunpack.c.l.b16 %v2926
        %v3023 = vunpack.c.l.b16 %v2927
        %v3024 = vunpack.c.l.b16 %v2928
        %v3025 = vunpack.c.l.b16 %v2929
        %v3026 = vunpack.c.l.b16 %v2930
        %v3027 = vunpack.c.l.b16 %v2931
        %v3028 = vunpack.c.l.b16 %v2932
        %v3029 = vunpack.c.l.b16 %v2933
        %v3030 = vunpack.c.l.b16 %v2934
        %v3031 = vunpack.c.l.b16 %v2935
        %v3032 = vunpack.c.l.b16 %v2936
        %v3033 = vunpack.c.l.b16 %v2937
        %v3034 = vunpack.c.l.b16 %v2938
        %v3035 = vunpack.c.l.b16 %v2939
        %v3036 = vunpack.c.l.b16 %v2940
        %v3037 = vunpack.c.l.b16 %v2941
        %v3038 = vunpack.c.l.b16 %v2942
        %v3039 = vunpack.c.l.b16 %v2943
        %v3040 = vunpack.c.l.b16 %v2944
        %v3041 = vunpack.c.l.b16 %v2945
        %v3042 = vunpack.c.l.b16 %v2946
        %v3043 = vunpack.c.l.b16 %v2947
        %v3044 = vunpack.c.l.b16 %v2948
        %v3045 = vunpack.c.l.b16 %v2949
        %v3046 = vunpack.c.l.b16 %v2950
        %v3047 = vunpack.c.l.b16 %v2951
        %v3048 = vunpack.c.l.b16 %v2952
        %v3049 = vunpack.c.l.b16 %v2953
        %v3050 = vunpack.c.l.b16 %v2954
        %v3051 = vunpack.c.l.b16 %v2955
        %v3052 = vunpack.c.l.b16 %v2956
        %v3053 = vunpack.c.l.b16 %v2957
        %v3054 = vpack.c.b16 %v3023, %v3022
        %v3055 = vpack.c.b16 %v3025, %v3024
        %v3056 = vpack.c.b16 %v3027, %v3026
        %v3057 = vpack.c.b16 %v3029, %v3028
        %v3058 = vpack.c.b16 %v3031, %v3030
        %v3059 = vpack.c.b16 %v3033, %v3032
        %v3060 = vpack.c.b16 %v3035, %v3034
        %v3061 = vpack.c.b16 %v3037, %v3036
        %v3062 = vpack.c.b16 %v3039, %v3038
        %v3063 = vpack.c.b16 %v3041, %v3040
        %v3064 = vpack.c.b16 %v3043, %v3042
        %v3065 = vpack.c.b16 %v3045, %v3044
        %v3066 = vpack.c.b16 %v3047, %v3046
        %v3067 = vpack.c.b16 %v3049, %v3048
        %v3068 = vpack.c.b16 %v3051, %v3050
        %v3069 = vpack.c.b16 %v3053, %v3052
        %v3102 = vunpack.c.l.b16 %v2958
        %v3103 = vunpack.c.l.b16 %v2959
        %v3104 = vunpack.c.l.b16 %v2960
        %v3105 = vunpack.c.l.b16 %v2961
        %v3106 = vunpack.c.l.b16 %v2962
        %v3107 = vunpack.c.l.b16 %v2963
        %v3108 = vunpack.c.l.b16 %v2964
        %v3109 = vunpack.c.l.b16 %v2965
        %v3110 = vunpack.c.l.b16 %v2966
        %v3111 = vunpack.c.l.b16 %v2967
        %v3112 = vunpack.c.l.b16 %v2968
        %v3113 = vunpack.c.l.b16 %v2969
        %v3114 = vunpack.c.l.b16 %v2970
        %v3115 = vunpack.c.l.b16 %v2971
        %v3116 = vunpack.c.l.b16 %v2972
        %v3117 = vunpack.c.l.b16 %v2973
        %v3118 = vpack.c.b16 %v3102, %v3102
        %v3119 = vpack.c.b16 %v3103, %v3103
        %v3120 = vpack.c.b16 %v3104, %v3104
        %v3121 = vpack.c.b16 %v3105, %v3105
        %v3122 = vpack.c.b16 %v3106, %v3106
        %v3123 = vpack.c.b16 %v3107, %v3107
        %v3124 = vpack.c.b16 %v3108, %v3108
        %v3125 = vpack.c.b16 %v3109, %v3109
        %v3126 = vpack.c.b16 %v3110, %v3110
        %v3127 = vpack.c.b16 %v3111, %v3111
        %v3128 = vpack.c.b16 %v3112, %v3112
        %v3129 = vpack.c.b16 %v3113, %v3113
        %v3130 = vpack.c.b16 %v3114, %v3114
        %v3131 = vpack.c.b16 %v3115, %v3115
        %v3132 = vpack.c.b16 %v3116, %v3116
        %v3133 = vpack.c.b16 %v3117, %v3117
        %v3135 = vshrl.u32 %v3054, 16
        %v3137 = vshll.u32 %v3054, 16
        %v3139 = vrot.slane %v3137, 1
        %v3140 = vor.u32 %v3135, %v3139
        %v3142 = vshll.u32 %v3118, 16
        %v3144 = vrot.slane %v3142, 1
        %v3145 = vsel %vm1045, %v3140, %v3144
        %v3147 = vshrl.u32 %v3055, 16
        %v3149 = vshll.u32 %v3055, 16
        %v3151 = vrot.slane %v3149, 1
        %v3152 = vor.u32 %v3147, %v3151
        %v3154 = vshll.u32 %v3119, 16
        %v3156 = vrot.slane %v3154, 1
        %v3157 = vsel %vm1045, %v3152, %v3156
        %v3159 = vshrl.u32 %v3056, 16
        %v3161 = vshll.u32 %v3056, 16
        %v3163 = vrot.slane %v3161, 1
        %v3164 = vor.u32 %v3159, %v3163
        %v3166 = vshll.u32 %v3120, 16
        %v3168 = vrot.slane %v3166, 1
        %v3169 = vsel %vm1045, %v3164, %v3168
        %v3171 = vshrl.u32 %v3057, 16
        %v3173 = vshll.u32 %v3057, 16
        %v3175 = vrot.slane %v3173, 1
        %v3176 = vor.u32 %v3171, %v3175
        %v3178 = vshll.u32 %v3121, 16
        %v3180 = vrot.slane %v3178, 1
        %v3181 = vsel %vm1045, %v3176, %v3180
        %v3183 = vshrl.u32 %v3058, 16
        %v3185 = vshll.u32 %v3058, 16
        %v3187 = vrot.slane %v3185, 1
        %v3188 = vor.u32 %v3183, %v3187
        %v3190 = vshll.u32 %v3122, 16
        %v3192 = vrot.slane %v3190, 1
        %v3193 = vsel %vm1045, %v3188, %v3192
        %v3195 = vshrl.u32 %v3059, 16
        %v3197 = vshll.u32 %v3059, 16
        %v3199 = vrot.slane %v3197, 1
        %v3200 = vor.u32 %v3195, %v3199
        %v3202 = vshll.u32 %v3123, 16
        %v3204 = vrot.slane %v3202, 1
        %v3205 = vsel %vm1045, %v3200, %v3204
        %v3207 = vshrl.u32 %v3060, 16
        %v3209 = vshll.u32 %v3060, 16
        %v3211 = vrot.slane %v3209, 1
        %v3212 = vor.u32 %v3207, %v3211
        %v3214 = vshll.u32 %v3124, 16
        %v3216 = vrot.slane %v3214, 1
        %v3217 = vsel %vm1045, %v3212, %v3216
        %v3219 = vshrl.u32 %v3061, 16
        %v3221 = vshll.u32 %v3061, 16
        %v3223 = vrot.slane %v3221, 1
        %v3224 = vor.u32 %v3219, %v3223
        %v3226 = vshll.u32 %v3125, 16
        %v3228 = vrot.slane %v3226, 1
        %v3229 = vsel %vm1045, %v3224, %v3228
        %v3231 = vshrl.u32 %v3062, 16
        %v3233 = vshll.u32 %v3062, 16
        %v3235 = vrot.slane %v3233, 1
        %v3236 = vor.u32 %v3231, %v3235
        %v3238 = vshll.u32 %v3126, 16
        %v3240 = vrot.slane %v3238, 1
        %v3241 = vsel %vm1045, %v3236, %v3240
        %v3243 = vshrl.u32 %v3063, 16
        %v3245 = vshll.u32 %v3063, 16
        %v3247 = vrot.slane %v3245, 1
        %v3248 = vor.u32 %v3243, %v3247
        %v3250 = vshll.u32 %v3127, 16
        %v3252 = vrot.slane %v3250, 1
        %v3253 = vsel %vm1045, %v3248, %v3252
        %v3255 = vshrl.u32 %v3064, 16
        %v3257 = vshll.u32 %v3064, 16
        %v3259 = vrot.slane %v3257, 1
        %v3260 = vor.u32 %v3255, %v3259
        %v3262 = vshll.u32 %v3128, 16
        %v3264 = vrot.slane %v3262, 1
        %v3265 = vsel %vm1045, %v3260, %v3264
        %v3267 = vshrl.u32 %v3065, 16
        %v3269 = vshll.u32 %v3065, 16
        %v3271 = vrot.slane %v3269, 1
        %v3272 = vor.u32 %v3267, %v3271
        %v3274 = vshll.u32 %v3129, 16
        %v3276 = vrot.slane %v3274, 1
        %v3277 = vsel %vm1045, %v3272, %v3276
        %v3279 = vshrl.u32 %v3066, 16
        %v3281 = vshll.u32 %v3066, 16
        %v3283 = vrot.slane %v3281, 1
        %v3284 = vor.u32 %v3279, %v3283
        %v3286 = vshll.u32 %v3130, 16
        %v3288 = vrot.slane %v3286, 1
        %v3289 = vsel %vm1045, %v3284, %v3288
        %v3291 = vshrl.u32 %v3067, 16
        %v3293 = vshll.u32 %v3067, 16
        %v3295 = vrot.slane %v3293, 1
        %v3296 = vor.u32 %v3291, %v3295
        %v3298 = vshll.u32 %v3131, 16
        %v3300 = vrot.slane %v3298, 1
        %v3301 = vsel %vm1045, %v3296, %v3300
        %v3303 = vshrl.u32 %v3068, 16
        %v3305 = vshll.u32 %v3068, 16
        %v3307 = vrot.slane %v3305, 1
        %v3308 = vor.u32 %v3303, %v3307
        %v3310 = vshll.u32 %v3132, 16
        %v3312 = vrot.slane %v3310, 1
        %v3313 = vsel %vm1045, %v3308, %v3312
        %v3315 = vshrl.u32 %v3069, 16
        %v3317 = vshll.u32 %v3069, 16
        %v3319 = vrot.slane %v3317, 1
        %v3320 = vor.u32 %v3315, %v3319
        %v3322 = vshll.u32 %v3133, 16
        %v3324 = vrot.slane %v3322, 1
        %v3325 = vsel %vm1045, %v3320, %v3324
        %v3358 = vunpack.c.l.b16 %v2974
        %v3359 = vunpack.c.l.b16 %v2975
        %v3360 = vunpack.c.l.b16 %v2976
        %v3361 = vunpack.c.l.b16 %v2977
        %v3362 = vunpack.c.l.b16 %v2978
        %v3363 = vunpack.c.l.b16 %v2979
        %v3364 = vunpack.c.l.b16 %v2980
        %v3365 = vunpack.c.l.b16 %v2981
        %v3366 = vunpack.c.l.b16 %v2982
        %v3367 = vunpack.c.l.b16 %v2983
        %v3368 = vunpack.c.l.b16 %v2984
        %v3369 = vunpack.c.l.b16 %v2985
        %v3370 = vunpack.c.l.b16 %v2986
        %v3371 = vunpack.c.l.b16 %v2987
        %v3372 = vunpack.c.l.b16 %v2988
        %v3373 = vunpack.c.l.b16 %v2989
        %v3374 = vpack.c.b16 %v3023, %v3358
        %v3375 = vpack.c.b16 %v3025, %v3359
        %v3376 = vpack.c.b16 %v3027, %v3360
        %v3377 = vpack.c.b16 %v3029, %v3361
        %v3378 = vpack.c.b16 %v3031, %v3362
        %v3379 = vpack.c.b16 %v3033, %v3363
        %v3380 = vpack.c.b16 %v3035, %v3364
        %v3381 = vpack.c.b16 %v3037, %v3365
        %v3382 = vpack.c.b16 %v3039, %v3366
        %v3383 = vpack.c.b16 %v3041, %v3367
        %v3384 = vpack.c.b16 %v3043, %v3368
        %v3385 = vpack.c.b16 %v3045, %v3369
        %v3386 = vpack.c.b16 %v3047, %v3370
        %v3387 = vpack.c.b16 %v3049, %v3371
        %v3388 = vpack.c.b16 %v3051, %v3372
        %v3389 = vpack.c.b16 %v3053, %v3373
        %v3390 = vrot.slane %v3374, 1
        %v3391 = vrot.slane %v3118, 1
        %v3392 = vsel %vm1302, %v3390, %v3391
        %v3393 = vrot.slane %v3375, 1
        %v3394 = vrot.slane %v3119, 1
        %v3395 = vsel %vm1302, %v3393, %v3394
        %v3396 = vrot.slane %v3376, 1
        %v3397 = vrot.slane %v3120, 1
        %v3398 = vsel %vm1302, %v3396, %v3397
        %v3399 = vrot.slane %v3377, 1
        %v3400 = vrot.slane %v3121, 1
        %v3401 = vsel %vm1302, %v3399, %v3400
        %v3402 = vrot.slane %v3378, 1
        %v3403 = vrot.slane %v3122, 1
        %v3404 = vsel %vm1302, %v3402, %v3403
        %v3405 = vrot.slane %v3379, 1
        %v3406 = vrot.slane %v3123, 1
        %v3407 = vsel %vm1302, %v3405, %v3406
        %v3408 = vrot.slane %v3380, 1
        %v3409 = vrot.slane %v3124, 1
        %v3410 = vsel %vm1302, %v3408, %v3409
        %v3411 = vrot.slane %v3381, 1
        %v3412 = vrot.slane %v3125, 1
        %v3413 = vsel %vm1302, %v3411, %v3412
        %v3414 = vrot.slane %v3382, 1
        %v3415 = vrot.slane %v3126, 1
        %v3416 = vsel %vm1302, %v3414, %v3415
        %v3417 = vrot.slane %v3383, 1
        %v3418 = vrot.slane %v3127, 1
        %v3419 = vsel %vm1302, %v3417, %v3418
        %v3420 = vrot.slane %v3384, 1
        %v3421 = vrot.slane %v3128, 1
        %v3422 = vsel %vm1302, %v3420, %v3421
        %v3423 = vrot.slane %v3385, 1
        %v3424 = vrot.slane %v3129, 1
        %v3425 = vsel %vm1302, %v3423, %v3424
        %v3426 = vrot.slane %v3386, 1
        %v3427 = vrot.slane %v3130, 1
        %v3428 = vsel %vm1302, %v3426, %v3427
        %v3429 = vrot.slane %v3387, 1
        %v3430 = vrot.slane %v3131, 1
        %v3431 = vsel %vm1302, %v3429, %v3430
        %v3432 = vrot.slane %v3388, 1
        %v3433 = vrot.slane %v3132, 1
        %v3434 = vsel %vm1302, %v3432, %v3433
        %v3435 = vrot.slane %v3389, 1
        %v3436 = vrot.slane %v3133, 1
        %v3437 = vsel %vm1302, %v3435, %v3436
        %s3454 = scalar_lea.vmem [#allocation6], 384
        %v3455 = vld [vmem:[%s3454] sm:$0xf]
        %v3456 = vld [vmem:[%s3454 + $0x4] sm:$0xf]
        %v3457 = vld [vmem:[%s3454 + $0x8] sm:$0xf]
        %v3458 = vld [vmem:[%s3454 + $0xc] sm:$0xf]
        %v3459 = vld [vmem:[%s3454 + $0x10] sm:$0xf]
        %v3460 = vld [vmem:[%s3454 + $0x14] sm:$0xf]
        %v3461 = vld [vmem:[%s3454 + $0x18] sm:$0xf]
        %v3462 = vld [vmem:[%s3454 + $0x1c] sm:$0xf]
        %v3463 = vld [vmem:[%s3454 + $0x20] sm:$0xf]
        %v3464 = vld [vmem:[%s3454 + $0x24] sm:$0xf]
        %v3465 = vld [vmem:[%s3454 + $0x28] sm:$0xf]
        %v3466 = vld [vmem:[%s3454 + $0x2c] sm:$0xf]
        %v3467 = vld [vmem:[%s3454 + $0x30] sm:$0xf]
        %v3468 = vld [vmem:[%s3454 + $0x34] sm:$0xf]
        %v3469 = vld [vmem:[%s3454 + $0x38] sm:$0xf]
        %v3470 = vld [vmem:[%s3454 + $0x3c] sm:$0xf]
        %v3471 = vld [vmem:[%s3454 + $0x40] sm:$0xf]
        %v3472 = vld [vmem:[%s3454 + $0x44] sm:$0xf]
        %v3473 = vld [vmem:[%s3454 + $0x48] sm:$0xf]
        %v3474 = vld [vmem:[%s3454 + $0x4c] sm:$0xf]
        %v3475 = vld [vmem:[%s3454 + $0x50] sm:$0xf]
        %v3476 = vld [vmem:[%s3454 + $0x54] sm:$0xf]
        %v3477 = vld [vmem:[%s3454 + $0x58] sm:$0xf]
        %v3478 = vld [vmem:[%s3454 + $0x5c] sm:$0xf]
        %v3479 = vld [vmem:[%s3454 + $0x60] sm:$0xf]
        %v3480 = vld [vmem:[%s3454 + $0x64] sm:$0xf]
        %v3481 = vld [vmem:[%s3454 + $0x68] sm:$0xf]
        %v3482 = vld [vmem:[%s3454 + $0x6c] sm:$0xf]
        %v3483 = vld [vmem:[%s3454 + $0x70] sm:$0xf]
        %v3484 = vld [vmem:[%s3454 + $0x74] sm:$0xf]
        %v3485 = vld [vmem:[%s3454 + $0x78] sm:$0xf]
        %v3486 = vld [vmem:[%s3454 + $0x7c] sm:$0xf]
        %v3487 = vld [vmem:[%s3454 + $0x80] sm:$0xf]
        %v3488 = vld [vmem:[%s3454 + $0x84] sm:$0xf]
        %v3489 = vld [vmem:[%s3454 + $0x88] sm:$0xf]
        %v3490 = vld [vmem:[%s3454 + $0x8c] sm:$0xf]
        %v3491 = vld [vmem:[%s3454 + $0x90] sm:$0xf]
        %v3492 = vld [vmem:[%s3454 + $0x94] sm:$0xf]
        %v3493 = vld [vmem:[%s3454 + $0x98] sm:$0xf]
        %v3494 = vld [vmem:[%s3454 + $0x9c] sm:$0xf]
        %v3495 = vld [vmem:[%s3454 + $0xa0] sm:$0xf]
        %v3496 = vld [vmem:[%s3454 + $0xa4] sm:$0xf]
        %v3497 = vld [vmem:[%s3454 + $0xa8] sm:$0xf]
        %v3498 = vld [vmem:[%s3454 + $0xac] sm:$0xf]
        %v3499 = vld [vmem:[%s3454 + $0xb0] sm:$0xf]
        %v3500 = vld [vmem:[%s3454 + $0xb4] sm:$0xf]
        %v3501 = vld [vmem:[%s3454 + $0xb8] sm:$0xf]
        %v3502 = vld [vmem:[%s3454 + $0xbc] sm:$0xf]
        %v3551 = vunpack.c.l.b16 %v3455
        %v3552 = vunpack.c.l.b16 %v3456
        %v3553 = vunpack.c.l.b16 %v3457
        %v3554 = vunpack.c.l.b16 %v3458
        %v3555 = vunpack.c.l.b16 %v3459
        %v3556 = vunpack.c.l.b16 %v3460
        %v3557 = vunpack.c.l.b16 %v3461
        %v3558 = vunpack.c.l.b16 %v3462
        %v3559 = vunpack.c.l.b16 %v3463
        %v3560 = vunpack.c.l.b16 %v3464
        %v3561 = vunpack.c.l.b16 %v3465
        %v3562 = vunpack.c.l.b16 %v3466
        %v3563 = vunpack.c.l.b16 %v3467
        %v3564 = vunpack.c.l.b16 %v3468
        %v3565 = vunpack.c.l.b16 %v3469
        %v3566 = vunpack.c.l.b16 %v3470
        %v3567 = vunpack.c.l.b16 %v3471
        %v3568 = vunpack.c.l.b16 %v3472
        %v3569 = vunpack.c.l.b16 %v3473
        %v3570 = vunpack.c.l.b16 %v3474
        %v3571 = vunpack.c.l.b16 %v3475
        %v3572 = vunpack.c.l.b16 %v3476
        %v3573 = vunpack.c.l.b16 %v3477
        %v3574 = vunpack.c.l.b16 %v3478
        %v3575 = vunpack.c.l.b16 %v3479
        %v3576 = vunpack.c.l.b16 %v3480
        %v3577 = vunpack.c.l.b16 %v3481
        %v3578 = vunpack.c.l.b16 %v3482
        %v3579 = vunpack.c.l.b16 %v3483
        %v3580 = vunpack.c.l.b16 %v3484
        %v3581 = vunpack.c.l.b16 %v3485
        %v3582 = vunpack.c.l.b16 %v3486
        %v3583 = vunpack.c.l.b16 %v3487
        %v3584 = vunpack.c.l.b16 %v3488
        %v3585 = vunpack.c.l.b16 %v3489
        %v3586 = vunpack.c.l.b16 %v3490
        %v3587 = vunpack.c.l.b16 %v3491
        %v3588 = vunpack.c.l.b16 %v3492
        %v3589 = vunpack.c.l.b16 %v3493
        %v3590 = vunpack.c.l.b16 %v3494
        %v3591 = vunpack.c.l.b16 %v3495
        %v3592 = vunpack.c.l.b16 %v3496
        %v3593 = vunpack.c.l.b16 %v3497
        %v3594 = vunpack.c.l.b16 %v3498
        %v3595 = vunpack.c.l.b16 %v3499
        %v3596 = vunpack.c.l.b16 %v3500
        %v3597 = vunpack.c.l.b16 %v3501
        %v3598 = vunpack.c.l.b16 %v3502
        %v3599 = vpack.c.b16 %v3552, %v3551
        %v3600 = vpack.c.b16 %v3554, %v3553
        %v3601 = vpack.c.b16 %v3556, %v3555
        %v3602 = vpack.c.b16 %v3558, %v3557
        %v3603 = vpack.c.b16 %v3560, %v3559
        %v3604 = vpack.c.b16 %v3562, %v3561
        %v3605 = vpack.c.b16 %v3564, %v3563
        %v3606 = vpack.c.b16 %v3566, %v3565
        %v3607 = vpack.c.b16 %v3568, %v3567
        %v3608 = vpack.c.b16 %v3570, %v3569
        %v3609 = vpack.c.b16 %v3572, %v3571
        %v3610 = vpack.c.b16 %v3574, %v3573
        %v3611 = vpack.c.b16 %v3576, %v3575
        %v3612 = vpack.c.b16 %v3578, %v3577
        %v3613 = vpack.c.b16 %v3580, %v3579
        %v3614 = vpack.c.b16 %v3582, %v3581
        %v3615 = vpack.c.b16 %v3584, %v3583
        %v3616 = vpack.c.b16 %v3586, %v3585
        %v3617 = vpack.c.b16 %v3588, %v3587
        %v3618 = vpack.c.b16 %v3590, %v3589
        %v3619 = vpack.c.b16 %v3592, %v3591
        %v3620 = vpack.c.b16 %v3594, %v3593
        %v3621 = vpack.c.b16 %v3596, %v3595
        %v3622 = vpack.c.b16 %v3598, %v3597
        %3647 = vmatprep.subr.bf16.mxu0 0
        %3648 = vmatpush1.bf16.msra.mxu0 %v3599
        %3649 = vmatprep.subr.bf16.mxu0 0
        %3650 = vmatpush1.bf16.msra.mxu0 %v3600
        %3651 = vmatprep.subr.bf16.mxu0 0
        %3652 = vmatpush1.bf16.msra.mxu0 %v3601
        %3653 = vmatprep.subr.bf16.mxu0 0
        %3654 = vmatpush1.bf16.msra.mxu0 %v3602
        %3655 = vmatprep.subr.bf16.mxu0 0
        %3656 = vmatpush1.bf16.msra.mxu0 %v3603
        %3657 = vmatprep.subr.bf16.mxu0 0
        %3658 = vmatpush1.bf16.msra.mxu0 %v3604
        %3659 = vmatprep.subr.bf16.mxu0 0
        %3660 = vmatpush1.bf16.msra.mxu0 %v3605
        %3661 = vmatprep.subr.bf16.mxu0 0
        %3662 = vmatpush1.bf16.msra.mxu0 %v3606
        %3663 = vmatprep.subr.bf16.mxu0 0
        %3664 = vmatpush1.bf16.msra.mxu0 %v3607
        %3665 = vmatprep.subr.bf16.mxu0 0
        %3666 = vmatpush1.bf16.msra.mxu0 %v3608
        %3667 = vmatprep.subr.bf16.mxu0 0
        %3668 = vmatpush1.bf16.msra.mxu0 %v3609
        %3669 = vmatprep.subr.bf16.mxu0 0
        %3670 = vmatpush1.bf16.msra.mxu0 %v3610
        %3671 = vmatprep.subr.bf16.mxu0 0
        %3672 = vmatpush1.bf16.msra.mxu0 %v3611
        %3673 = vmatprep.subr.bf16.mxu0 0
        %3674 = vmatpush1.bf16.msra.mxu0 %v3612
        %3675 = vmatprep.subr.bf16.mxu0 0
        %3676 = vmatpush1.bf16.msra.mxu0 %v3613
        %3677 = vmatprep.subr.bf16.mxu0 0
        %3678 = vmatpush1.bf16.msra.mxu0 %v3614
        %3679 = vmatprep.mubr.bf16.mxu0 %v3145
        %3680 = vmatmul.mubr.bf16.gmra.mrb[0].mxu0 %v3054
        %v3681 = vpop.f32.mrb[0].mxu0
        %v3682 = vadd.f32 0.0, %v3681
        %v3683 = vpop.f32.mrb[0].mxu0
        %v3684 = vpop.f32.mrb[0].mxu0
        %v3685 = vadd.f32 0.0, %v3684
        %v3686 = vpop.f32.mrb[0].mxu0
        %3687 = vmatprep.mubr.bf16.mxu0 %v3157
        %3688 = vmatmul.mubr.bf16.gmra.mrb[0].mxu0 %v3055
        %v3689 = vpop.f32.mrb[0].mxu0
        %v3690 = vadd.f32 0.0, %v3689
        %v3691 = vpop.f32.mrb[0].mxu0
        %v3692 = vpop.f32.mrb[0].mxu0
        %v3693 = vadd.f32 0.0, %v3692
        %v3694 = vpop.f32.mrb[0].mxu0
        %3695 = vmatprep.mubr.bf16.mxu0 %v3169
        %3696 = vmatmul.mubr.bf16.gmra.mrb[0].mxu0 %v3056
        %v3697 = vpop.f32.mrb[0].mxu0
        %v3698 = vadd.f32 0.0, %v3697
        %v3699 = vpop.f32.mrb[0].mxu0
        %v3700 = vpop.f32.mrb[0].mxu0
        %v3701 = vadd.f32 0.0, %v3700
        %v3702 = vpop.f32.mrb[0].mxu0
        %3703 = vmatprep.mubr.bf16.mxu0 %v3181
        %3704 = vmatmul.mubr.bf16.gmra.mrb[0].mxu0 %v3057
        %v3705 = vpop.f32.mrb[0].mxu0
        %v3706 = vadd.f32 0.0, %v3705
        %v3707 = vpop.f32.mrb[0].mxu0
        %v3708 = vpop.f32.mrb[0].mxu0
        %v3709 = vadd.f32 0.0, %v3708
        %v3710 = vpop.f32.mrb[0].mxu0
        %3711 = vmatprep.mubr.bf16.mxu0 %v3193
        %3712 = vmatmul.mubr.bf16.gmra.mrb[0].mxu0 %v3058
        %v3713 = vpop.f32.mrb[0].mxu0
        %v3714 = vadd.f32 0.0, %v3713
        %v3715 = vpop.f32.mrb[0].mxu0
        %v3716 = vpop.f32.mrb[0].mxu0
        %v3717 = vadd.f32 0.0, %v3716
        %v3718 = vpop.f32.mrb[0].mxu0
        %3719 = vmatprep.mubr.bf16.mxu0 %v3205
        %3720 = vmatmul.mubr.bf16.gmra.mrb[0].mxu0 %v3059
        %v3721 = vpop.f32.mrb[0].mxu0
        %v3722 = vadd.f32 0.0, %v3721
        %v3723 = vpop.f32.mrb[0].mxu0
        %v3724 = vpop.f32.mrb[0].mxu0
        %v3725 = vadd.f32 0.0, %v3724
        %v3726 = vpop.f32.mrb[0].mxu0
        %3727 = vmatprep.mubr.bf16.mxu0 %v3217
        %3728 = vmatmul.mubr.bf16.gmra.mrb[0].mxu0 %v3060
        %v3729 = vpop.f32.mrb[0].mxu0
        %v3730 = vadd.f32 0.0, %v3729
        %v3731 = vpop.f32.mrb[0].mxu0
        %v3732 = vpop.f32.mrb[0].mxu0
        %v3733 = vadd.f32 0.0, %v3732
        %v3734 = vpop.f32.mrb[0].mxu0
        %3735 = vmatprep.mubr.bf16.mxu0 %v3229
        %3736 = vmatmul.mubr.bf16.gmra.mrb[0].mxu0 %v3061
        %v3737 = vpop.f32.mrb[0].mxu0
        %v3738 = vadd.f32 0.0, %v3737
        %v3739 = vpop.f32.mrb[0].mxu0
        %v3740 = vpop.f32.mrb[0].mxu0
        %v3741 = vadd.f32 0.0, %v3740
        %v3742 = vpop.f32.mrb[0].mxu0
        %3743 = vmatprep.mubr.bf16.mxu0 %v3241
        %3744 = vmatmul.mubr.bf16.gmra.mrb[0].mxu0 %v3062
        %v3745 = vpop.f32.mrb[0].mxu0
        %v3746 = vadd.f32 0.0, %v3745
        %v3747 = vpop.f32.mrb[0].mxu0
        %v3748 = vpop.f32.mrb[0].mxu0
        %v3749 = vadd.f32 0.0, %v3748
        %v3750 = vpop.f32.mrb[0].mxu0
        %3751 = vmatprep.mubr.bf16.mxu0 %v3253
        %3752 = vmatmul.mubr.bf16.gmra.mrb[0].mxu0 %v3063
        %v3753 = vpop.f32.mrb[0].mxu0
        %v3754 = vadd.f32 0.0, %v3753
        %v3755 = vpop.f32.mrb[0].mxu0
        %v3756 = vpop.f32.mrb[0].mxu0
        %v3757 = vadd.f32 0.0, %v3756
        %v3758 = vpop.f32.mrb[0].mxu0
        %3759 = vmatprep.mubr.bf16.mxu0 %v3265
        %3760 = vmatmul.mubr.bf16.gmra.mrb[0].mxu0 %v3064
        %v3761 = vpop.f32.mrb[0].mxu0
        %v3762 = vadd.f32 0.0, %v3761
        %v3763 = vpop.f32.mrb[0].mxu0
        %v3764 = vpop.f32.mrb[0].mxu0
        %v3765 = vadd.f32 0.0, %v3764
        %v3766 = vpop.f32.mrb[0].mxu0
        %3767 = vmatprep.mubr.bf16.mxu0 %v3277
        %3768 = vmatmul.mubr.bf16.gmra.mrb[0].mxu0 %v3065
        %v3769 = vpop.f32.mrb[0].mxu0
        %v3770 = vadd.f32 0.0, %v3769
        %v3771 = vpop.f32.mrb[0].mxu0
        %v3772 = vpop.f32.mrb[0].mxu0
        %v3773 = vadd.f32 0.0, %v3772
        %v3774 = vpop.f32.mrb[0].mxu0
        %3775 = vmatprep.mubr.bf16.mxu0 %v3289
        %3776 = vmatmul.mubr.bf16.gmra.mrb[0].mxu0 %v3066
        %v3777 = vpop.f32.mrb[0].mxu0
        %v3778 = vadd.f32 0.0, %v3777
        %v3779 = vpop.f32.mrb[0].mxu0
        %v3780 = vpop.f32.mrb[0].mxu0
        %v3781 = vadd.f32 0.0, %v3780
        %v3782 = vpop.f32.mrb[0].mxu0
        %3783 = vmatprep.mubr.bf16.mxu0 %v3301
        %3784 = vmatmul.mubr.bf16.gmra.mrb[0].mxu0 %v3067
        %v3785 = vpop.f32.mrb[0].mxu0
        %v3786 = vadd.f32 0.0, %v3785
        %v3787 = vpop.f32.mrb[0].mxu0
        %v3788 = vpop.f32.mrb[0].mxu0
        %v3789 = vadd.f32 0.0, %v3788
        %v3790 = vpop.f32.mrb[0].mxu0
        %3791 = vmatprep.mubr.bf16.mxu0 %v3313
        %3792 = vmatmul.mubr.bf16.gmra.mrb[0].mxu0 %v3068
        %v3793 = vpop.f32.mrb[0].mxu0
        %v3794 = vadd.f32 0.0, %v3793
        %v3795 = vpop.f32.mrb[0].mxu0
        %v3796 = vpop.f32.mrb[0].mxu0
        %v3797 = vadd.f32 0.0, %v3796
        %v3798 = vpop.f32.mrb[0].mxu0
        %3799 = vmatprep.mubr.bf16.mxu0 %v3325
        %3800 = vmatmul.mubr.bf16.gmra.mrb[0].mxu0 %v3069
        %v3801 = vpop.f32.mrb[0].mxu0
        %v3802 = vadd.f32 0.0, %v3801
        %v3803 = vpop.f32.mrb[0].mxu0
        %v3804 = vpop.f32.mrb[0].mxu0
        %v3805 = vadd.f32 0.0, %v3804
        %v3806 = vpop.f32.mrb[0].mxu0
        %3807 = vdwg.mxu0
        %3808 = vmatprep.subr.bf16.mxu0 0
        %3809 = vmatpush1.bf16.msra.mxu0 %v3615
        %3810 = vmatprep.subr.bf16.mxu0 0
        %3811 = vmatpush1.bf16.msra.mxu0 %v3616
        %3812 = vmatprep.subr.bf16.mxu0 0
        %3813 = vmatpush1.bf16.msra.mxu0 %v3617
        %3814 = vmatprep.subr.bf16.mxu0 0
        %3815 = vmatpush1.bf16.msra.mxu0 %v3618
        %3816 = vmatprep.subr.bf16.mxu0 0
        %3817 = vmatpush1.bf16.msra.mxu0 %v3619
        %3818 = vmatprep.subr.bf16.mxu0 0
        %3819 = vmatpush1.bf16.msra.mxu0 %v3620
        %3820 = vmatprep.subr.bf16.mxu0 0
        %3821 = vmatpush1.bf16.msra.mxu0 %v3621
        %3822 = vmatprep.subr.bf16.mxu0 0
        %3823 = vmatpush1.bf16.msra.mxu0 %v3622
        %3824 = vmatprep.subr.bf16.mxu0 0
        %3825 = vmatpush1.bf16.msra.mxu0 0
        %3826 = vmatprep.subr.bf16.mxu0 0
        %3827 = vmatpush1.bf16.msra.mxu0 0
        %3828 = vmatprep.subr.bf16.mxu0 0
        %3829 = vmatpush1.bf16.msra.mxu0 0
        %3830 = vmatprep.subr.bf16.mxu0 0
        %3831 = vmatpush1.bf16.msra.mxu0 0
        %3832 = vmatprep.subr.bf16.mxu0 0
        %3833 = vmatpush1.bf16.msra.mxu0 0
        %3834 = vmatprep.subr.bf16.mxu0 0
        %3835 = vmatpush1.bf16.msra.mxu0 0
        %3836 = vmatprep.subr.bf16.mxu0 0
        %3837 = vmatpush1.bf16.msra.mxu0 0
        %3838 = vmatprep.subr.bf16.mxu0 0
        %3839 = vmatpush1.bf16.msra.mxu0 0
        %3840 = vmatprep.mubr.bf16.mxu0 0
        %3841 = vmatmul.mubr.bf16.gmra.mrb[0].mxu0 %v3392
        %v3842 = vpop.f32.mrb[0].mxu0
        %v3843 = vadd.f32 %v3682, %v3842
        %v3844 = vpop.f32.mrb[0].mxu0
        %v3845 = vpop.f32.mrb[0].mxu0
        %v3846 = vadd.f32 %v3685, %v3845
        %v3847 = vpop.f32.mrb[0].mxu0
        %3848 = vmatprep.mubr.bf16.mxu0 0
        %3849 = vmatmul.mubr.bf16.gmra.mrb[0].mxu0 %v3395
        %v3850 = vpop.f32.mrb[0].mxu0
        %v3851 = vadd.f32 %v3690, %v3850
        %v3852 = vpop.f32.mrb[0].mxu0
        %v3853 = vpop.f32.mrb[0].mxu0
        %v3854 = vadd.f32 %v3693, %v3853
        %v3855 = vpop.f32.mrb[0].mxu0
        %3856 = vmatprep.mubr.bf16.mxu0 0
        %3857 = vmatmul.mubr.bf16.gmra.mrb[0].mxu0 %v3398
        %v3858 = vpop.f32.mrb[0].mxu0
        %v3859 = vadd.f32 %v3698, %v3858
        %v3860 = vpop.f32.mrb[0].mxu0
        %v3861 = vpop.f32.mrb[0].mxu0
        %v3862 = vadd.f32 %v3701, %v3861
        %v3863 = vpop.f32.mrb[0].mxu0
        %3864 = vmatprep.mubr.bf16.mxu0 0
        %3865 = vmatmul.mubr.bf16.gmra.mrb[0].mxu0 %v3401
        %v3866 = vpop.f32.mrb[0].mxu0
        %v3867 = vadd.f32 %v3706, %v3866
        %v3868 = vpop.f32.mrb[0].mxu0
        %v3869 = vpop.f32.mrb[0].mxu0
        %v3870 = vadd.f32 %v3709, %v3869
        %v3871 = vpop.f32.mrb[0].mxu0
        %3872 = vmatprep.mubr.bf16.mxu0 0
        %3873 = vmatmul.mubr.bf16.gmra.mrb[0].mxu0 %v3404
        %v3874 = vpop.f32.mrb[0].mxu0
        %v3875 = vadd.f32 %v3714, %v3874
        %v3876 = vpop.f32.mrb[0].mxu0
        %v3877 = vpop.f32.mrb[0].mxu0
        %v3878 = vadd.f32 %v3717, %v3877
        %v3879 = vpop.f32.mrb[0].mxu0
        %3880 = vmatprep.mubr.bf16.mxu0 0
        %3881 = vmatmul.mubr.bf16.gmra.mrb[0].mxu0 %v3407
        %v3882 = vpop.f32.mrb[0].mxu0
        %v3883 = vadd.f32 %v3722, %v3882
        %v3884 = vpop.f32.mrb[0].mxu0
        %v3885 = vpop.f32.mrb[0].mxu0
        %v3886 = vadd.f32 %v3725, %v3885
        %v3887 = vpop.f32.mrb[0].mxu0
        %3888 = vmatprep.mubr.bf16.mxu0 0
        %3889 = vmatmul.mubr.bf16.gmra.mrb[0].mxu0 %v3410
        %v3890 = vpop.f32.mrb[0].mxu0
        %v3891 = vadd.f32 %v3730, %v3890
        %v3892 = vpop.f32.mrb[0].mxu0
        %v3893 = vpop.f32.mrb[0].mxu0
        %v3894 = vadd.f32 %v3733, %v3893
        %v3895 = vpop.f32.mrb[0].mxu0
        %3896 = vmatprep.mubr.bf16.mxu0 0
        %3897 = vmatmul.mubr.bf16.gmra.mrb[0].mxu0 %v3413
        %v3898 = vpop.f32.mrb[0].mxu0
        %v3899 = vadd.f32 %v3738, %v3898
        %v3900 = vpop.f32.mrb[0].mxu0
        %v3901 = vpop.f32.mrb[0].mxu0
        %v3902 = vadd.f32 %v3741, %v3901
        %v3903 = vpop.f32.mrb[0].mxu0
        %3904 = vmatprep.mubr.bf16.mxu0 0
        %3905 = vmatmul.mubr.bf16.gmra.mrb[0].mxu0 %v3416
        %v3906 = vpop.f32.mrb[0].mxu0
        %v3907 = vadd.f32 %v3746, %v3906
        %v3908 = vpop.f32.mrb[0].mxu0
        %v3909 = vpop.f32.mrb[0].mxu0
        %v3910 = vadd.f32 %v3749, %v3909
        %v3911 = vpop.f32.mrb[0].mxu0
        %3912 = vmatprep.mubr.bf16.mxu0 0
        %3913 = vmatmul.mubr.bf16.gmra.mrb[0].mxu0 %v3419
        %v3914 = vpop.f32.mrb[0].mxu0
        %v3915 = vadd.f32 %v3754, %v3914
        %v3916 = vpop.f32.mrb[0].mxu0
        %v3917 = vpop.f32.mrb[0].mxu0
        %v3918 = vadd.f32 %v3757, %v3917
        %v3919 = vpop.f32.mrb[0].mxu0
        %3920 = vmatprep.mubr.bf16.mxu0 0
        %3921 = vmatmul.mubr.bf16.gmra.mrb[0].mxu0 %v3422
        %v3922 = vpop.f32.mrb[0].mxu0
        %v3923 = vadd.f32 %v3762, %v3922
        %v3924 = vpop.f32.mrb[0].mxu0
        %v3925 = vpop.f32.mrb[0].mxu0
        %v3926 = vadd.f32 %v3765, %v3925
        %v3927 = vpop.f32.mrb[0].mxu0
        %3928 = vmatprep.mubr.bf16.mxu0 0
        %3929 = vmatmul.mubr.bf16.gmra.mrb[0].mxu0 %v3425
        %v3930 = vpop.f32.mrb[0].mxu0
        %v3931 = vadd.f32 %v3770, %v3930
        %v3932 = vpop.f32.mrb[0].mxu0
        %v3933 = vpop.f32.mrb[0].mxu0
        %v3934 = vadd.f32 %v3773, %v3933
        %v3935 = vpop.f32.mrb[0].mxu0
        %3936 = vmatprep.mubr.bf16.mxu0 0
        %3937 = vmatmul.mubr.bf16.gmra.mrb[0].mxu0 %v3428
        %v3938 = vpop.f32.mrb[0].mxu0
        %v3939 = vadd.f32 %v3778, %v3938
        %v3940 = vpop.f32.mrb[0].mxu0
        %v3941 = vpop.f32.mrb[0].mxu0
        %v3942 = vadd.f32 %v3781, %v3941
        %v3943 = vpop.f32.mrb[0].mxu0
        %3944 = vmatprep.mubr.bf16.mxu0 0
        %3945 = vmatmul.mubr.bf16.gmra.mrb[0].mxu0 %v3431
        %v3946 = vpop.f32.mrb[0].mxu0
        %v3947 = vadd.f32 %v3786, %v3946
        %v3948 = vpop.f32.mrb[0].mxu0
        %v3949 = vpop.f32.mrb[0].mxu0
        %v3950 = vadd.f32 %v3789, %v3949
        %v3951 = vpop.f32.mrb[0].mxu0
        %3952 = vmatprep.mubr.bf16.mxu0 0
        %3953 = vmatmul.mubr.bf16.gmra.mrb[0].mxu0 %v3434
        %v3954 = vpop.f32.mrb[0].mxu0
        %v3955 = vadd.f32 %v3794, %v3954
        %v3956 = vpop.f32.mrb[0].mxu0
        %v3957 = vpop.f32.mrb[0].mxu0
        %v3958 = vadd.f32 %v3797, %v3957
        %v3959 = vpop.f32.mrb[0].mxu0
        %3960 = vmatprep.mubr.bf16.mxu0 0
        %3961 = vmatmul.mubr.bf16.gmra.mrb[0].mxu0 %v3437
        %v3962 = vpop.f32.mrb[0].mxu0
        %v3963 = vadd.f32 %v3802, %v3962
        %v3964 = vpop.f32.mrb[0].mxu0
        %v3965 = vpop.f32.mrb[0].mxu0
        %v3966 = vadd.f32 %v3805, %v3965
        %v3967 = vpop.f32.mrb[0].mxu0
        %3968 = vdwg.mxu0
        %v3969 = vadd.f32 %v2799, %v3843
        %v3970 = vadd.f32 %v2802, %v3846
        %v3971 = vadd.f32 %v2807, %v3851
        %v3972 = vadd.f32 %v2810, %v3854
        %v3973 = vadd.f32 %v2815, %v3859
        %v3974 = vadd.f32 %v2818, %v3862
        %v3975 = vadd.f32 %v2823, %v3867
        %v3976 = vadd.f32 %v2826, %v3870
        %v3977 = vadd.f32 %v2831, %v3875
        %v3978 = vadd.f32 %v2834, %v3878
        %v3979 = vadd.f32 %v2839, %v3883
        %v3980 = vadd.f32 %v2842, %v3886
        %v3981 = vadd.f32 %v2847, %v3891
        %v3982 = vadd.f32 %v2850, %v3894
        %v3983 = vadd.f32 %v2855, %v3899
        %v3984 = vadd.f32 %v2858, %v3902
        %v3985 = vadd.f32 %v2863, %v3907
        %v3986 = vadd.f32 %v2866, %v3910
        %v3987 = vadd.f32 %v2871, %v3915
        %v3988 = vadd.f32 %v2874, %v3918
        %v3989 = vadd.f32 %v2879, %v3923
        %v3990 = vadd.f32 %v2882, %v3926
        %v3991 = vadd.f32 %v2887, %v3931
        %v3992 = vadd.f32 %v2890, %v3934
        %v3993 = vadd.f32 %v2895, %v3939
        %v3994 = vadd.f32 %v2898, %v3942
        %v3995 = vadd.f32 %v2903, %v3947
        %v3996 = vadd.f32 %v2906, %v3950
        %v3997 = vadd.f32 %v2911, %v3955
        %v3998 = vadd.f32 %v2914, %v3958
        %v3999 = vadd.f32 %v2919, %v3963
        %v4000 = vadd.f32 %v2922, %v3966
        %v4001 = vld [vmem:[#allocation8] sm:$0x1]
        %v4003 = vlaneseq
        %v4004 = vshrl.u32 %v4003, 7
        %v4005 = vsub.s32 0, %v4004
        %v4006 = vrot.slane %v4001, %v4005
        %v4008 = vadd.f32 %v3969, %v4006
        %v4009 = vadd.f32 %v3970, %v4006
        %v4010 = vadd.f32 %v3971, %v4006
        %v4011 = vadd.f32 %v3972, %v4006
        %v4012 = vadd.f32 %v3973, %v4006
        %v4013 = vadd.f32 %v3974, %v4006
        %v4014 = vadd.f32 %v3975, %v4006
        %v4015 = vadd.f32 %v3976, %v4006
        %v4016 = vadd.f32 %v3977, %v4006
        %v4017 = vadd.f32 %v3978, %v4006
        %v4018 = vadd.f32 %v3979, %v4006
        %v4019 = vadd.f32 %v3980, %v4006
        %v4020 = vadd.f32 %v3981, %v4006
        %v4021 = vadd.f32 %v3982, %v4006
        %v4022 = vadd.f32 %v3983, %v4006
        %v4023 = vadd.f32 %v3984, %v4006
        %v4024 = vadd.f32 %v3985, %v4006
        %v4025 = vadd.f32 %v3986, %v4006
        %v4026 = vadd.f32 %v3987, %v4006
        %v4027 = vadd.f32 %v3988, %v4006
        %v4028 = vadd.f32 %v3989, %v4006
        %v4029 = vadd.f32 %v3990, %v4006
        %v4030 = vadd.f32 %v3991, %v4006
        %v4031 = vadd.f32 %v3992, %v4006
        %v4032 = vadd.f32 %v3993, %v4006
        %v4033 = vadd.f32 %v3994, %v4006
        %v4034 = vadd.f32 %v3995, %v4006
        %v4035 = vadd.f32 %v3996, %v4006
        %v4036 = vadd.f32 %v3997, %v4006
        %v4037 = vadd.f32 %v3998, %v4006
        %v4038 = vadd.f32 %v3999, %v4006
        %v4039 = vadd.f32 %v4000, %v4006
        %v4040 = vadd.f32 %v4008, %v4009
        %v4041 = vadd.f32 %v4040, %v4010
        %v4042 = vadd.f32 %v4041, %v4011
        %v4043 = vadd.f32 %v4042, %v4012
        %v4044 = vadd.f32 %v4043, %v4013
        %v4045 = vadd.f32 %v4044, %v4014
        %v4046 = vadd.f32 %v4045, %v4015
        %v4047 = vadd.f32 %v4046, %v4016
        %v4048 = vadd.f32 %v4047, %v4017
        %v4049 = vadd.f32 %v4048, %v4018
        %v4050 = vadd.f32 %v4049, %v4019
        %v4051 = vadd.f32 %v4050, %v4020
        %v4052 = vadd.f32 %v4051, %v4021
        %v4053 = vadd.f32 %v4052, %v4022
        %v4054 = vadd.f32 %v4053, %v4023
        %v4055 = vadd.f32 %v4054, %v4024
        %v4056 = vadd.f32 %v4055, %v4025
        %v4057 = vadd.f32 %v4056, %v4026
        %v4058 = vadd.f32 %v4057, %v4027
        %v4059 = vadd.f32 %v4058, %v4028
        %v4060 = vadd.f32 %v4059, %v4029
        %v4061 = vadd.f32 %v4060, %v4030
        %v4062 = vadd.f32 %v4061, %v4031
        %v4063 = vadd.f32 %v4062, %v4032
        %v4064 = vadd.f32 %v4063, %v4033
        %v4065 = vadd.f32 %v4064, %v4034
        %v4066 = vadd.f32 %v4065, %v4035
        %v4067 = vadd.f32 %v4066, %v4036
        %v4068 = vadd.f32 %v4067, %v4037
        %v4069 = vadd.f32 %v4068, %v4038
        %v4070 = vadd.f32 %v4069, %v4039
        %v4071 = vrot.slane %v4070, 4
        %v4072 = vadd.f32 %v4070, %v4071
        %v4073 = vrot.slane %v4072, 2
        %v4074 = vadd.f32 %v4072, %v4073
        %v4075 = vrot.slane %v4074, 1
        %v4076 = vadd.f32 %v4074, %v4075
        %v4077 = vmul.f32 %v4008, %v4008
        %v4078 = vmul.f32 %v4009, %v4009
        %v4079 = vmul.f32 %v4010, %v4010
        %v4080 = vmul.f32 %v4011, %v4011
        %v4081 = vmul.f32 %v4012, %v4012
        %v4082 = vmul.f32 %v4013, %v4013
        %v4083 = vmul.f32 %v4014, %v4014
        %v4084 = vmul.f32 %v4015, %v4015
        %v4085 = vmul.f32 %v4016, %v4016
        %v4086 = vmul.f32 %v4017, %v4017
        %v4087 = vmul.f32 %v4018, %v4018
        %v4088 = vmul.f32 %v4019, %v4019
        %v4089 = vmul.f32 %v4020, %v4020
        %v4090 = vmul.f32 %v4021, %v4021
        %v4091 = vmul.f32 %v4022, %v4022
        %v4092 = vmul.f32 %v4023, %v4023
        %v4093 = vmul.f32 %v4024, %v4024
        %v4094 = vmul.f32 %v4025, %v4025
        %v4095 = vmul.f32 %v4026, %v4026
        %v4096 = vmul.f32 %v4027, %v4027
        %v4097 = vmul.f32 %v4028, %v4028
        %v4098 = vmul.f32 %v4029, %v4029
        %v4099 = vmul.f32 %v4030, %v4030
        %v4100 = vmul.f32 %v4031, %v4031
        %v4101 = vmul.f32 %v4032, %v4032
        %v4102 = vmul.f32 %v4033, %v4033
        %v4103 = vmul.f32 %v4034, %v4034
        %v4104 = vmul.f32 %v4035, %v4035
        %v4105 = vmul.f32 %v4036, %v4036
        %v4106 = vmul.f32 %v4037, %v4037
        %v4107 = vmul.f32 %v4038, %v4038
        %v4108 = vmul.f32 %v4039, %v4039
        %v4109 = vadd.f32 %v4077, %v4078
        %v4110 = vadd.f32 %v4109, %v4079
        %v4111 = vadd.f32 %v4110, %v4080
        %v4112 = vadd.f32 %v4111, %v4081
        %v4113 = vadd.f32 %v4112, %v4082
        %v4114 = vadd.f32 %v4113, %v4083
        %v4115 = vadd.f32 %v4114, %v4084
        %v4116 = vadd.f32 %v4115, %v4085
        %v4117 = vadd.f32 %v4116, %v4086
        %v4118 = vadd.f32 %v4117, %v4087
        %v4119 = vadd.f32 %v4118, %v4088
        %v4120 = vadd.f32 %v4119, %v4089
        %v4121 = vadd.f32 %v4120, %v4090
        %v4122 = vadd.f32 %v4121, %v4091
        %v4123 = vadd.f32 %v4122, %v4092
        %v4124 = vadd.f32 %v4123, %v4093
        %v4125 = vadd.f32 %v4124, %v4094
        %v4126 = vadd.f32 %v4125, %v4095
        %v4127 = vadd.f32 %v4126, %v4096
        %v4128 = vadd.f32 %v4127, %v4097
        %v4129 = vadd.f32 %v4128, %v4098
        %v4130 = vadd.f32 %v4129, %v4099
        %v4131 = vadd.f32 %v4130, %v4100
        %v4132 = vadd.f32 %v4131, %v4101
        %v4133 = vadd.f32 %v4132, %v4102
        %v4134 = vadd.f32 %v4133, %v4103
        %v4135 = vadd.f32 %v4134, %v4104
        %v4136 = vadd.f32 %v4135, %v4105
        %v4137 = vadd.f32 %v4136, %v4106
        %v4138 = vadd.f32 %v4137, %v4107
        %v4139 = vadd.f32 %v4138, %v4108
        %v4140 = vrot.slane %v4139, 4
        %v4141 = vadd.f32 %v4139, %v4140
        %v4142 = vrot.slane %v4141, 2
        %v4143 = vadd.f32 %v4141, %v4142
        %v4144 = vrot.slane %v4143, 1
        %v4145 = vadd.f32 %v4143, %v4144
        %v4146 = vmul.f32 %v4076, 0.00390625
        %v4147 = vmul.f32 %v4145, 0.00390625
        %v4148 = vmul.f32 %v4146, %v4146
        %v4149 = vsub.f32 %v4147, %v4148
        %v4150 = vmax.f32 %v4149, 0.0
        %v4151 = vsub.f32 %v4008, %v4146
        %v4152 = vsub.f32 %v4009, %v4146
        %v4153 = vsub.f32 %v4010, %v4146
        %v4154 = vsub.f32 %v4011, %v4146
        %v4155 = vsub.f32 %v4012, %v4146
        %v4156 = vsub.f32 %v4013, %v4146
        %v4157 = vsub.f32 %v4014, %v4146
        %v4158 = vsub.f32 %v4015, %v4146
        %v4159 = vsub.f32 %v4016, %v4146
        %v4160 = vsub.f32 %v4017, %v4146
        %v4161 = vsub.f32 %v4018, %v4146
        %v4162 = vsub.f32 %v4019, %v4146
        %v4163 = vsub.f32 %v4020, %v4146
        %v4164 = vsub.f32 %v4021, %v4146
        %v4165 = vsub.f32 %v4022, %v4146
        %v4166 = vsub.f32 %v4023, %v4146
        %v4167 = vsub.f32 %v4024, %v4146
        %v4168 = vsub.f32 %v4025, %v4146
        %v4169 = vsub.f32 %v4026, %v4146
        %v4170 = vsub.f32 %v4027, %v4146
        %v4171 = vsub.f32 %v4028, %v4146
        %v4172 = vsub.f32 %v4029, %v4146
        %v4173 = vsub.f32 %v4030, %v4146
        %v4174 = vsub.f32 %v4031, %v4146
        %v4175 = vsub.f32 %v4032, %v4146
        %v4176 = vsub.f32 %v4033, %v4146
        %v4177 = vsub.f32 %v4034, %v4146
        %v4178 = vsub.f32 %v4035, %v4146
        %v4179 = vsub.f32 %v4036, %v4146
        %v4180 = vsub.f32 %v4037, %v4146
        %v4181 = vsub.f32 %v4038, %v4146
        %v4182 = vsub.f32 %v4039, %v4146
        %v4183 = vadd.f32 %v4150, 1e-05
        %v4184 = vrsqrt.pop %v4183
        %v4185 = vmul.f32 %v4151, %v4184
        %v4186 = vmul.f32 %v4152, %v4184
        %v4187 = vmul.f32 %v4153, %v4184
        %v4188 = vmul.f32 %v4154, %v4184
        %v4189 = vmul.f32 %v4155, %v4184
        %v4190 = vmul.f32 %v4156, %v4184
        %v4191 = vmul.f32 %v4157, %v4184
        %v4192 = vmul.f32 %v4158, %v4184
        %v4193 = vmul.f32 %v4159, %v4184
        %v4194 = vmul.f32 %v4160, %v4184
        %v4195 = vmul.f32 %v4161, %v4184
        %v4196 = vmul.f32 %v4162, %v4184
        %v4197 = vmul.f32 %v4163, %v4184
        %v4198 = vmul.f32 %v4164, %v4184
        %v4199 = vmul.f32 %v4165, %v4184
        %v4200 = vmul.f32 %v4166, %v4184
        %v4201 = vmul.f32 %v4167, %v4184
        %v4202 = vmul.f32 %v4168, %v4184
        %v4203 = vmul.f32 %v4169, %v4184
        %v4204 = vmul.f32 %v4170, %v4184
        %v4205 = vmul.f32 %v4171, %v4184
        %v4206 = vmul.f32 %v4172, %v4184
        %v4207 = vmul.f32 %v4173, %v4184
        %v4208 = vmul.f32 %v4174, %v4184
        %v4209 = vmul.f32 %v4175, %v4184
        %v4210 = vmul.f32 %v4176, %v4184
        %v4211 = vmul.f32 %v4177, %v4184
        %v4212 = vmul.f32 %v4178, %v4184
        %v4213 = vmul.f32 %v4179, %v4184
        %v4214 = vmul.f32 %v4180, %v4184
        %v4215 = vmul.f32 %v4181, %v4184
        %v4216 = vmul.f32 %v4182, %v4184
        %v4217 = vmax.f32 %v4185, 0.0
        %v4218 = vmax.f32 %v4186, 0.0
        %v4219 = vmax.f32 %v4187, 0.0
        %v4220 = vmax.f32 %v4188, 0.0
        %v4221 = vmax.f32 %v4189, 0.0
        %v4222 = vmax.f32 %v4190, 0.0
        %v4223 = vmax.f32 %v4191, 0.0
        %v4224 = vmax.f32 %v4192, 0.0
        %v4225 = vmax.f32 %v4193, 0.0
        %v4226 = vmax.f32 %v4194, 0.0
        %v4227 = vmax.f32 %v4195, 0.0
        %v4228 = vmax.f32 %v4196, 0.0
        %v4229 = vmax.f32 %v4197, 0.0
        %v4230 = vmax.f32 %v4198, 0.0
        %v4231 = vmax.f32 %v4199, 0.0
        %v4232 = vmax.f32 %v4200, 0.0
        %v4233 = vmax.f32 %v4201, 0.0
        %v4234 = vmax.f32 %v4202, 0.0
        %v4235 = vmax.f32 %v4203, 0.0
        %v4236 = vmax.f32 %v4204, 0.0
        %v4237 = vmax.f32 %v4205, 0.0
        %v4238 = vmax.f32 %v4206, 0.0
        %v4239 = vmax.f32 %v4207, 0.0
        %v4240 = vmax.f32 %v4208, 0.0
        %v4241 = vmax.f32 %v4209, 0.0
        %v4242 = vmax.f32 %v4210, 0.0
        %v4243 = vmax.f32 %v4211, 0.0
        %v4244 = vmax.f32 %v4212, 0.0
        %v4245 = vmax.f32 %v4213, 0.0
        %v4246 = vmax.f32 %v4214, 0.0
        %v4247 = vmax.f32 %v4215, 0.0
        %v4248 = vmax.f32 %v4216, 0.0
        %v4249 = vpack.c.bf16 %v4218, %v4217
        %v4250 = vpack.c.bf16 %v4220, %v4219
        %v4251 = vpack.c.bf16 %v4222, %v4221
        %v4252 = vpack.c.bf16 %v4224, %v4223
        %v4253 = vpack.c.bf16 %v4226, %v4225
        %v4254 = vpack.c.bf16 %v4228, %v4227
        %v4255 = vpack.c.bf16 %v4230, %v4229
        %v4256 = vpack.c.bf16 %v4232, %v4231
        %v4257 = vpack.c.bf16 %v4234, %v4233
        %v4258 = vpack.c.bf16 %v4236, %v4235
        %v4259 = vpack.c.bf16 %v4238, %v4237
        %v4260 = vpack.c.bf16 %v4240, %v4239
        %v4261 = vpack.c.bf16 %v4242, %v4241
        %v4262 = vpack.c.bf16 %v4244, %v4243
        %v4263 = vpack.c.bf16 %v4246, %v4245
        %v4264 = vpack.c.bf16 %v4248, %v4247
        %v4266 = vshrl.u32 %v4250, 16
        %v4269 = vshrl.u32 %v4249, 16
        %v4272 = vshrl.u32 %v4251, 16
        %v4275 = vshrl.u32 %v4252, 16
        %v4278 = vshrl.u32 %v4253, 16
        %v4281 = vshrl.u32 %v4254, 16
        %v4284 = vshrl.u32 %v4255, 16
        %v4287 = vshrl.u32 %v4256, 16
        %v4290 = vshrl.u32 %v4257, 16
        %v4293 = vshrl.u32 %v4258, 16
        %v4296 = vshrl.u32 %v4259, 16
        %v4299 = vshrl.u32 %v4260, 16
        %v4302 = vshrl.u32 %v4261, 16
        %v4305 = vshrl.u32 %v4262, 16
        %v4308 = vshrl.u32 %v4263, 16
        %v4311 = vshrl.u32 %v4264, 16
        %v4329 = vrot.slane %v4266, 7
        %v4330 = vshll.u32 %v4250, 16
        %v4332 = vor.u32 %v4329, %v4330
        %v4333 = vrot.slane %v4269, 7
        %v4334 = vshll.u32 %v4249, 16
        %v4336 = vor.u32 %v4333, %v4334
        %v4337 = vrot.slane %v4272, 7
        %v4338 = vshll.u32 %v4251, 16
        %v4340 = vor.u32 %v4337, %v4338
        %v4341 = vrot.slane %v4275, 7
        %v4342 = vshll.u32 %v4252, 16
        %v4344 = vor.u32 %v4341, %v4342
        %v4345 = vrot.slane %v4278, 7
        %v4346 = vshll.u32 %v4253, 16
        %v4348 = vor.u32 %v4345, %v4346
        %v4349 = vrot.slane %v4281, 7
        %v4350 = vshll.u32 %v4254, 16
        %v4352 = vor.u32 %v4349, %v4350
        %v4353 = vrot.slane %v4284, 7
        %v4354 = vshll.u32 %v4255, 16
        %v4356 = vor.u32 %v4353, %v4354
        %v4357 = vrot.slane %v4287, 7
        %v4358 = vshll.u32 %v4256, 16
        %v4360 = vor.u32 %v4357, %v4358
        %v4361 = vrot.slane %v4290, 7
        %v4362 = vshll.u32 %v4257, 16
        %v4364 = vor.u32 %v4361, %v4362
        %v4365 = vrot.slane %v4293, 7
        %v4366 = vshll.u32 %v4258, 16
        %v4368 = vor.u32 %v4365, %v4366
        %v4369 = vrot.slane %v4296, 7
        %v4370 = vshll.u32 %v4259, 16
        %v4372 = vor.u32 %v4369, %v4370
        %v4373 = vrot.slane %v4299, 7
        %v4374 = vshll.u32 %v4260, 16
        %v4376 = vor.u32 %v4373, %v4374
        %v4377 = vrot.slane %v4302, 7
        %v4378 = vshll.u32 %v4261, 16
        %v4380 = vor.u32 %v4377, %v4378
        %v4381 = vrot.slane %v4305, 7
        %v4382 = vshll.u32 %v4262, 16
        %v4384 = vor.u32 %v4381, %v4382
        %v4385 = vrot.slane %v4308, 7
        %v4386 = vshll.u32 %v4263, 16
        %v4388 = vor.u32 %v4385, %v4386
        %v4389 = vrot.slane %v4311, 7
        %v4390 = vshll.u32 %v4264, 16
        %v4392 = vor.u32 %v4389, %v4390
        %v4425 = vrot.slane %v4330, 7
        %v4426 = vrot.slane %v4334, 7
        %v4427 = vrot.slane %v4338, 7
        %v4428 = vrot.slane %v4342, 7
        %v4429 = vrot.slane %v4346, 7
        %v4430 = vrot.slane %v4350, 7
        %v4431 = vrot.slane %v4354, 7
        %v4432 = vrot.slane %v4358, 7
        %v4433 = vrot.slane %v4362, 7
        %v4434 = vrot.slane %v4366, 7
        %v4435 = vrot.slane %v4370, 7
        %v4436 = vrot.slane %v4374, 7
        %v4437 = vrot.slane %v4378, 7
        %v4438 = vrot.slane %v4382, 7
        %v4439 = vrot.slane %v4386, 7
        %v4440 = vrot.slane %v4390, 7
        %v4457 = vsel %vm540, %v4266, %v4332
        %v4458 = vsel %vm540, %v4269, %v4336
        %v4459 = vsel %vm540, %v4272, %v4340
        %v4460 = vsel %vm540, %v4275, %v4344
        %v4461 = vsel %vm540, %v4278, %v4348
        %v4462 = vsel %vm540, %v4281, %v4352
        %v4463 = vsel %vm540, %v4284, %v4356
        %v4464 = vsel %vm540, %v4287, %v4360
        %v4465 = vsel %vm540, %v4290, %v4364
        %v4466 = vsel %vm540, %v4293, %v4368
        %v4467 = vsel %vm540, %v4296, %v4372
        %v4468 = vsel %vm540, %v4299, %v4376
        %v4469 = vsel %vm540, %v4302, %v4380
        %v4470 = vsel %vm540, %v4305, %v4384
        %v4471 = vsel %vm540, %v4308, %v4388
        %v4472 = vsel %vm540, %v4311, %v4392
        %v4473 = vsel %vm540, %v4329, %v4425
        %v4474 = vsel %vm540, %v4333, %v4426
        %v4475 = vsel %vm540, %v4337, %v4427
        %v4476 = vsel %vm540, %v4341, %v4428
        %v4477 = vsel %vm540, %v4345, %v4429
        %v4478 = vsel %vm540, %v4349, %v4430
        %v4479 = vsel %vm540, %v4353, %v4431
        %v4480 = vsel %vm540, %v4357, %v4432
        %v4481 = vsel %vm540, %v4361, %v4433
        %v4482 = vsel %vm540, %v4365, %v4434
        %v4483 = vsel %vm540, %v4369, %v4435
        %v4484 = vsel %vm540, %v4373, %v4436
        %v4485 = vsel %vm540, %v4377, %v4437
        %v4486 = vsel %vm540, %v4381, %v4438
        %v4487 = vsel %vm540, %v4385, %v4439
        %v4488 = vsel %vm540, %v4389, %v4440
        %v4490 = vsel %vm573, %v4473, 0
        %v4492 = vsel %vm573, %v4474, 0
        %v4494 = vsel %vm573, %v4475, 0
        %v4496 = vsel %vm573, %v4476, 0
        %v4498 = vsel %vm573, %v4477, 0
        %v4500 = vsel %vm573, %v4478, 0
        %v4502 = vsel %vm573, %v4479, 0
        %v4504 = vsel %vm573, %v4480, 0
        %v4506 = vsel %vm573, %v4481, 0
        %v4508 = vsel %vm573, %v4482, 0
        %v4510 = vsel %vm573, %v4483, 0
        %v4512 = vsel %vm573, %v4484, 0
        %v4514 = vsel %vm573, %v4485, 0
        %v4516 = vsel %vm573, %v4486, 0
        %v4518 = vsel %vm573, %v4487, 0
        %v4520 = vsel %vm573, %v4488, 0
        %v4553 = vunpack.c.l.b16 %v4457
        %v4554 = vunpack.c.h.b16 %v4457
        %v4555 = vunpack.c.l.b16 %v4490
        %v4556 = vunpack.c.l.b16 %v4458
        %v4557 = vunpack.c.h.b16 %v4458
        %v4558 = vunpack.c.l.b16 %v4492
        %v4559 = vunpack.c.l.b16 %v4459
        %v4560 = vunpack.c.h.b16 %v4459
        %v4561 = vunpack.c.l.b16 %v4494
        %v4562 = vunpack.c.l.b16 %v4460
        %v4563 = vunpack.c.h.b16 %v4460
        %v4564 = vunpack.c.l.b16 %v4496
        %v4565 = vunpack.c.l.b16 %v4461
        %v4566 = vunpack.c.h.b16 %v4461
        %v4567 = vunpack.c.l.b16 %v4498
        %v4568 = vunpack.c.l.b16 %v4462
        %v4569 = vunpack.c.h.b16 %v4462
        %v4570 = vunpack.c.l.b16 %v4500
        %v4571 = vunpack.c.l.b16 %v4463
        %v4572 = vunpack.c.h.b16 %v4463
        %v4573 = vunpack.c.l.b16 %v4502
        %v4574 = vunpack.c.l.b16 %v4464
        %v4575 = vunpack.c.h.b16 %v4464
        %v4576 = vunpack.c.l.b16 %v4504
        %v4577 = vunpack.c.l.b16 %v4465
        %v4578 = vunpack.c.h.b16 %v4465
        %v4579 = vunpack.c.l.b16 %v4506
        %v4580 = vunpack.c.l.b16 %v4466
        %v4581 = vunpack.c.h.b16 %v4466
        %v4582 = vunpack.c.l.b16 %v4508
        %v4583 = vunpack.c.l.b16 %v4467
        %v4584 = vunpack.c.h.b16 %v4467
        %v4585 = vunpack.c.l.b16 %v4510
        %v4586 = vunpack.c.l.b16 %v4468
        %v4587 = vunpack.c.h.b16 %v4468
        %v4588 = vunpack.c.l.b16 %v4512
        %v4589 = vunpack.c.l.b16 %v4469
        %v4590 = vunpack.c.h.b16 %v4469
        %v4591 = vunpack.c.l.b16 %v4514
        %v4592 = vunpack.c.l.b16 %v4470
        %v4593 = vunpack.c.h.b16 %v4470
        %v4594 = vunpack.c.l.b16 %v4516
        %v4595 = vunpack.c.l.b16 %v4471
        %v4596 = vunpack.c.h.b16 %v4471
        %v4597 = vunpack.c.l.b16 %v4518
        %v4598 = vunpack.c.l.b16 %v4472
        %v4599 = vunpack.c.h.b16 %v4472
        %v4600 = vunpack.c.l.b16 %v4520
        %v4601 = vpack.c.b16 %v4553, %v4553
        %v4602 = vpack.c.b16 %v4554, %v4554
        %v4603 = vpack.c.b16 %v4555, %v4555
        %v4604 = vpack.c.b16 %v4556, %v4556
        %v4605 = vpack.c.b16 %v4557, %v4557
        %v4606 = vpack.c.b16 %v4558, %v4558
        %v4607 = vpack.c.b16 %v4559, %v4559
        %v4608 = vpack.c.b16 %v4560, %v4560
        %v4609 = vpack.c.b16 %v4561, %v4561
        %v4610 = vpack.c.b16 %v4562, %v4562
        %v4611 = vpack.c.b16 %v4563, %v4563
        %v4612 = vpack.c.b16 %v4564, %v4564
        %v4613 = vpack.c.b16 %v4565, %v4565
        %v4614 = vpack.c.b16 %v4566, %v4566
        %v4615 = vpack.c.b16 %v4567, %v4567
        %v4616 = vpack.c.b16 %v4568, %v4568
        %v4617 = vpack.c.b16 %v4569, %v4569
        %v4618 = vpack.c.b16 %v4570, %v4570
        %v4619 = vpack.c.b16 %v4571, %v4571
        %v4620 = vpack.c.b16 %v4572, %v4572
        %v4621 = vpack.c.b16 %v4573, %v4573
        %v4622 = vpack.c.b16 %v4574, %v4574
        %v4623 = vpack.c.b16 %v4575, %v4575
        %v4624 = vpack.c.b16 %v4576, %v4576
        %v4625 = vpack.c.b16 %v4577, %v4577
        %v4626 = vpack.c.b16 %v4578, %v4578
        %v4627 = vpack.c.b16 %v4579, %v4579
        %v4628 = vpack.c.b16 %v4580, %v4580
        %v4629 = vpack.c.b16 %v4581, %v4581
        %v4630 = vpack.c.b16 %v4582, %v4582
        %v4631 = vpack.c.b16 %v4583, %v4583
        %v4632 = vpack.c.b16 %v4584, %v4584
        %v4633 = vpack.c.b16 %v4585, %v4585
        %v4634 = vpack.c.b16 %v4586, %v4586
        %v4635 = vpack.c.b16 %v4587, %v4587
        %v4636 = vpack.c.b16 %v4588, %v4588
        %v4637 = vpack.c.b16 %v4589, %v4589
        %v4638 = vpack.c.b16 %v4590, %v4590
        %v4639 = vpack.c.b16 %v4591, %v4591
        %v4640 = vpack.c.b16 %v4592, %v4592
        %v4641 = vpack.c.b16 %v4593, %v4593
        %v4642 = vpack.c.b16 %v4594, %v4594
        %v4643 = vpack.c.b16 %v4595, %v4595
        %v4644 = vpack.c.b16 %v4596, %v4596
        %v4645 = vpack.c.b16 %v4597, %v4597
        %v4646 = vpack.c.b16 %v4598, %v4598
        %v4647 = vpack.c.b16 %v4599, %v4599
        %v4648 = vpack.c.b16 %v4600, %v4600
        %4697 = vst [vmem:[#allocation2] sm:$0xf] %v4601
        %4698 = vst [vmem:[#allocation2 + $0x4] sm:$0xf] %v4602
        %4699 = vst [vmem:[#allocation2 + $0x8] sm:$0xf] %v4603
        %4700 = vst [vmem:[#allocation2 + $0xc] sm:$0xf] %v4604
        %4701 = vst [vmem:[#allocation2 + $0x10] sm:$0xf] %v4605
        %4702 = vst [vmem:[#allocation2 + $0x14] sm:$0xf] %v4606
        %4703 = vst [vmem:[#allocation2 + $0x18] sm:$0xf] %v4601
        %4704 = vst [vmem:[#allocation2 + $0x1c] sm:$0xf] %v4602
        %4705 = vst [vmem:[#allocation2 + $0x20] sm:$0xf] %v4603
        %4706 = vst [vmem:[#allocation2 + $0x24] sm:$0xf] %v4607
        %4707 = vst [vmem:[#allocation2 + $0x28] sm:$0xf] %v4608
        %4708 = vst [vmem:[#allocation2 + $0x2c] sm:$0xf] %v4609
        %4709 = vst [vmem:[#allocation2 + $0x30] sm:$0xf] %v4610
        %4710 = vst [vmem:[#allocation2 + $0x34] sm:$0xf] %v4611
        %4711 = vst [vmem:[#allocation2 + $0x38] sm:$0xf] %v4612
        %4712 = vst [vmem:[#allocation2 + $0x3c] sm:$0xf] %v4613
        %4713 = vst [vmem:[#allocation2 + $0x40] sm:$0xf] %v4614
        %4714 = vst [vmem:[#allocation2 + $0x44] sm:$0xf] %v4615
        %4715 = vst [vmem:[#allocation2 + $0x48] sm:$0xf] %v4616
        %4716 = vst [vmem:[#allocation2 + $0x4c] sm:$0xf] %v4617
        %4717 = vst [vmem:[#allocation2 + $0x50] sm:$0xf] %v4618
        %4718 = vst [vmem:[#allocation2 + $0x54] sm:$0xf] %v4619
        %4719 = vst [vmem:[#allocation2 + $0x58] sm:$0xf] %v4620
        %4720 = vst [vmem:[#allocation2 + $0x5c] sm:$0xf] %v4621
        %4721 = vst [vmem:[#allocation2 + $0x60] sm:$0xf] %v4622
        %4722 = vst [vmem:[#allocation2 + $0x64] sm:$0xf] %v4623
        %4723 = vst [vmem:[#allocation2 + $0x68] sm:$0xf] %v4624
        %4724 = vst [vmem:[#allocation2 + $0x6c] sm:$0xf] %v4625
        %4725 = vst [vmem:[#allocation2 + $0x70] sm:$0xf] %v4626
        %4726 = vst [vmem:[#allocation2 + $0x74] sm:$0xf] %v4627
        %4727 = vst [vmem:[#allocation2 + $0x78] sm:$0xf] %v4628
        %4728 = vst [vmem:[#allocation2 + $0x7c] sm:$0xf] %v4629
        %4729 = vst [vmem:[#allocation2 + $0x80] sm:$0xf] %v4630
        %4730 = vst [vmem:[#allocation2 + $0x84] sm:$0xf] %v4631
        %4731 = vst [vmem:[#allocation2 + $0x88] sm:$0xf] %v4632
        %4732 = vst [vmem:[#allocation2 + $0x8c] sm:$0xf] %v4633
        %4733 = vst [vmem:[#allocation2 + $0x90] sm:$0xf] %v4634
        %4734 = vst [vmem:[#allocation2 + $0x94] sm:$0xf] %v4635
        %4735 = vst [vmem:[#allocation2 + $0x98] sm:$0xf] %v4636
        %4736 = vst [vmem:[#allocation2 + $0x9c] sm:$0xf] %v4637
        %4737 = vst [vmem:[#allocation2 + $0xa0] sm:$0xf] %v4638
        %4738 = vst [vmem:[#allocation2 + $0xa4] sm:$0xf] %v4639
        %4739 = vst [vmem:[#allocation2 + $0xa8] sm:$0xf] %v4640
        %4740 = vst [vmem:[#allocation2 + $0xac] sm:$0xf] %v4641
        %4741 = vst [vmem:[#allocation2 + $0xb0] sm:$0xf] %v4642
        %4742 = vst [vmem:[#allocation2 + $0xb4] sm:$0xf] %v4643
        %4743 = vst [vmem:[#allocation2 + $0xb8] sm:$0xf] %v4644
        %4744 = vst [vmem:[#allocation2 + $0xbc] sm:$0xf] %v4645
        %4745 = vst [vmem:[#allocation2 + $0xc0] sm:$0xf] %v4646
        %4746 = vst [vmem:[#allocation2 + $0xc4] sm:$0xf] %v4647
        %4747 = vst [vmem:[#allocation2 + $0xc8] sm:$0xf] %v4648
        %4748 = vst [vmem:[#allocation2 + $0xcc] sm:$0xf] %v4643
        %4749 = vst [vmem:[#allocation2 + $0xd0] sm:$0xf] %v4644
        %4750 = vst [vmem:[#allocation2 + $0xd4] sm:$0xf] %v4645
        %v4751 = vld [vmem:[#allocation2] sm:$0xf]
        %v4752 = vld [vmem:[#allocation2 + $0x4] sm:$0xf]
        %v4753 = vld [vmem:[#allocation2 + $0xc] sm:$0xf]
        %v4754 = vld [vmem:[#allocation2 + $0x10] sm:$0xf]
        %v4755 = vld [vmem:[#allocation2 + $0x18] sm:$0xf]
        %v4756 = vld [vmem:[#allocation2 + $0x1c] sm:$0xf]
        %v4757 = vld [vmem:[#allocation2 + $0x24] sm:$0xf]
        %v4758 = vld [vmem:[#allocation2 + $0x28] sm:$0xf]
        %v4759 = vld [vmem:[#allocation2 + $0x30] sm:$0xf]
        %v4760 = vld [vmem:[#allocation2 + $0x34] sm:$0xf]
        %v4761 = vld [vmem:[#allocation2 + $0x3c] sm:$0xf]
        %v4762 = vld [vmem:[#allocation2 + $0x40] sm:$0xf]
        %v4763 = vld [vmem:[#allocation2 + $0x48] sm:$0xf]
        %v4764 = vld [vmem:[#allocation2 + $0x4c] sm:$0xf]
        %v4765 = vld [vmem:[#allocation2 + $0x54] sm:$0xf]
        %v4766 = vld [vmem:[#allocation2 + $0x58] sm:$0xf]
        %v4767 = vld [vmem:[#allocation2 + $0x60] sm:$0xf]
        %v4768 = vld [vmem:[#allocation2 + $0x64] sm:$0xf]
        %v4769 = vld [vmem:[#allocation2 + $0x6c] sm:$0xf]
        %v4770 = vld [vmem:[#allocation2 + $0x70] sm:$0xf]
        %v4771 = vld [vmem:[#allocation2 + $0x78] sm:$0xf]
        %v4772 = vld [vmem:[#allocation2 + $0x7c] sm:$0xf]
        %v4773 = vld [vmem:[#allocation2 + $0x84] sm:$0xf]
        %v4774 = vld [vmem:[#allocation2 + $0x88] sm:$0xf]
        %v4775 = vld [vmem:[#allocation2 + $0x90] sm:$0xf]
        %v4776 = vld [vmem:[#allocation2 + $0x94] sm:$0xf]
        %v4777 = vld [vmem:[#allocation2 + $0x9c] sm:$0xf]
        %v4778 = vld [vmem:[#allocation2 + $0xa0] sm:$0xf]
        %v4779 = vld [vmem:[#allocation2 + $0xa8] sm:$0xf]
        %v4780 = vld [vmem:[#allocation2 + $0xac] sm:$0xf]
        %v4781 = vld [vmem:[#allocation2 + $0xb4] sm:$0xf]
        %v4782 = vld [vmem:[#allocation2 + $0xb8] sm:$0xf]
        %v4783 = vld [vmem:[#allocation2 + $0x8] sm:$0x1]
        %v4784 = vld [vmem:[#allocation2 + $0x14] sm:$0x1]
        %v4785 = vld [vmem:[#allocation2 + $0x20] sm:$0x1]
        %v4786 = vld [vmem:[#allocation2 + $0x2c] sm:$0x1]
        %v4787 = vld [vmem:[#allocation2 + $0x38] sm:$0x1]
        %v4788 = vld [vmem:[#allocation2 + $0x44] sm:$0x1]
        %v4789 = vld [vmem:[#allocation2 + $0x50] sm:$0x1]
        %v4790 = vld [vmem:[#allocation2 + $0x5c] sm:$0x1]
        %v4791 = vld [vmem:[#allocation2 + $0x68] sm:$0x1]
        %v4792 = vld [vmem:[#allocation2 + $0x74] sm:$0x1]
        %v4793 = vld [vmem:[#allocation2 + $0x80] sm:$0x1]
        %v4794 = vld [vmem:[#allocation2 + $0x8c] sm:$0x1]
        %v4795 = vld [vmem:[#allocation2 + $0x98] sm:$0x1]
        %v4796 = vld [vmem:[#allocation2 + $0xa4] sm:$0x1]
        %v4797 = vld [vmem:[#allocation2 + $0xb0] sm:$0x1]
        %v4798 = vld [vmem:[#allocation2 + $0xbc] sm:$0x1]
        %v4799 = vld [vmem:[#allocation2] sm:$0xe]
        %v4800 = vld [vmem:[#allocation2 + $0xc] sm:$0xe]
        %v4801 = vld [vmem:[#allocation2 + $0x18] sm:$0xe]
        %v4802 = vld [vmem:[#allocation2 + $0x24] sm:$0xe]
        %v4803 = vld [vmem:[#allocation2 + $0x30] sm:$0xe]
        %v4804 = vld [vmem:[#allocation2 + $0x3c] sm:$0xe]
        %v4805 = vld [vmem:[#allocation2 + $0x48] sm:$0xe]
        %v4806 = vld [vmem:[#allocation2 + $0x54] sm:$0xe]
        %v4807 = vld [vmem:[#allocation2 + $0x60] sm:$0xe]
        %v4808 = vld [vmem:[#allocation2 + $0x6c] sm:$0xe]
        %v4809 = vld [vmem:[#allocation2 + $0x78] sm:$0xe]
        %v4810 = vld [vmem:[#allocation2 + $0x84] sm:$0xe]
        %v4811 = vld [vmem:[#allocation2 + $0x90] sm:$0xe]
        %v4812 = vld [vmem:[#allocation2 + $0x9c] sm:$0xe]
        %v4813 = vld [vmem:[#allocation2 + $0xa8] sm:$0xe]
        %v4814 = vld [vmem:[#allocation2 + $0xb4] sm:$0xe]
        %v4847 = vunpack.c.l.b16 %v4751
        %v4848 = vunpack.c.l.b16 %v4752
        %v4849 = vunpack.c.l.b16 %v4753
        %v4850 = vunpack.c.l.b16 %v4754
        %v4851 = vunpack.c.l.b16 %v4755
        %v4852 = vunpack.c.l.b16 %v4756
        %v4853 = vunpack.c.l.b16 %v4757
        %v4854 = vunpack.c.l.b16 %v4758
        %v4855 = vunpack.c.l.b16 %v4759
        %v4856 = vunpack.c.l.b16 %v4760
        %v4857 = vunpack.c.l.b16 %v4761
        %v4858 = vunpack.c.l.b16 %v4762
        %v4859 = vunpack.c.l.b16 %v4763
        %v4860 = vunpack.c.l.b16 %v4764
        %v4861 = vunpack.c.l.b16 %v4765
        %v4862 = vunpack.c.l.b16 %v4766
        %v4863 = vunpack.c.l.b16 %v4767
        %v4864 = vunpack.c.l.b16 %v4768
        %v4865 = vunpack.c.l.b16 %v4769
        %v4866 = vunpack.c.l.b16 %v4770
        %v4867 = vunpack.c.l.b16 %v4771
        %v4868 = vunpack.c.l.b16 %v4772
        %v4869 = vunpack.c.l.b16 %v4773
        %v4870 = vunpack.c.l.b16 %v4774
        %v4871 = vunpack.c.l.b16 %v4775
        %v4872 = vunpack.c.l.b16 %v4776
        %v4873 = vunpack.c.l.b16 %v4777
        %v4874 = vunpack.c.l.b16 %v4778
        %v4875 = vunpack.c.l.b16 %v4779
        %v4876 = vunpack.c.l.b16 %v4780
        %v4877 = vunpack.c.l.b16 %v4781
        %v4878 = vunpack.c.l.b16 %v4782
        %v4879 = vpack.c.b16 %v4848, %v4847
        %v4880 = vpack.c.b16 %v4850, %v4849
        %v4881 = vpack.c.b16 %v4852, %v4851
        %v4882 = vpack.c.b16 %v4854, %v4853
        %v4883 = vpack.c.b16 %v4856, %v4855
        %v4884 = vpack.c.b16 %v4858, %v4857
        %v4885 = vpack.c.b16 %v4860, %v4859
        %v4886 = vpack.c.b16 %v4862, %v4861
        %v4887 = vpack.c.b16 %v4864, %v4863
        %v4888 = vpack.c.b16 %v4866, %v4865
        %v4889 = vpack.c.b16 %v4868, %v4867
        %v4890 = vpack.c.b16 %v4870, %v4869
        %v4891 = vpack.c.b16 %v4872, %v4871
        %v4892 = vpack.c.b16 %v4874, %v4873
        %v4893 = vpack.c.b16 %v4876, %v4875
        %v4894 = vpack.c.b16 %v4878, %v4877
        %v4927 = vunpack.c.l.b16 %v4783
        %v4928 = vunpack.c.l.b16 %v4784
        %v4929 = vunpack.c.l.b16 %v4785
        %v4930 = vunpack.c.l.b16 %v4786
        %v4931 = vunpack.c.l.b16 %v4787
        %v4932 = vunpack.c.l.b16 %v4788
        %v4933 = vunpack.c.l.b16 %v4789
        %v4934 = vunpack.c.l.b16 %v4790
        %v4935 = vunpack.c.l.b16 %v4791
        %v4936 = vunpack.c.l.b16 %v4792
        %v4937 = vunpack.c.l.b16 %v4793
        %v4938 = vunpack.c.l.b16 %v4794
        %v4939 = vunpack.c.l.b16 %v4795
        %v4940 = vunpack.c.l.b16 %v4796
        %v4941 = vunpack.c.l.b16 %v4797
        %v4942 = vunpack.c.l.b16 %v4798
        %v4943 = vpack.c.b16 %v4927, %v4927
        %v4944 = vpack.c.b16 %v4928, %v4928
        %v4945 = vpack.c.b16 %v4929, %v4929
        %v4946 = vpack.c.b16 %v4930, %v4930
        %v4947 = vpack.c.b16 %v4931, %v4931
        %v4948 = vpack.c.b16 %v4932, %v4932
        %v4949 = vpack.c.b16 %v4933, %v4933
        %v4950 = vpack.c.b16 %v4934, %v4934
        %v4951 = vpack.c.b16 %v4935, %v4935
        %v4952 = vpack.c.b16 %v4936, %v4936
        %v4953 = vpack.c.b16 %v4937, %v4937
        %v4954 = vpack.c.b16 %v4938, %v4938
        %v4955 = vpack.c.b16 %v4939, %v4939
        %v4956 = vpack.c.b16 %v4940, %v4940
        %v4957 = vpack.c.b16 %v4941, %v4941
        %v4958 = vpack.c.b16 %v4942, %v4942
        %v4960 = vshrl.u32 %v4879, 16
        %v4962 = vshll.u32 %v4879, 16
        %v4964 = vrot.slane %v4962, 1
        %v4965 = vor.u32 %v4960, %v4964
        %v4967 = vshll.u32 %v4943, 16
        %v4969 = vrot.slane %v4967, 1
        %v4970 = vsel %vm1045, %v4965, %v4969
        %v4972 = vshrl.u32 %v4880, 16
        %v4974 = vshll.u32 %v4880, 16
        %v4976 = vrot.slane %v4974, 1
        %v4977 = vor.u32 %v4972, %v4976
        %v4979 = vshll.u32 %v4944, 16
        %v4981 = vrot.slane %v4979, 1
        %v4982 = vsel %vm1045, %v4977, %v4981
        %v4984 = vshrl.u32 %v4881, 16
        %v4986 = vshll.u32 %v4881, 16
        %v4988 = vrot.slane %v4986, 1
        %v4989 = vor.u32 %v4984, %v4988
        %v4991 = vshll.u32 %v4945, 16
        %v4993 = vrot.slane %v4991, 1
        %v4994 = vsel %vm1045, %v4989, %v4993
        %v4996 = vshrl.u32 %v4882, 16
        %v4998 = vshll.u32 %v4882, 16
        %v5000 = vrot.slane %v4998, 1
        %v5001 = vor.u32 %v4996, %v5000
        %v5003 = vshll.u32 %v4946, 16
        %v5005 = vrot.slane %v5003, 1
        %v5006 = vsel %vm1045, %v5001, %v5005
        %v5008 = vshrl.u32 %v4883, 16
        %v5010 = vshll.u32 %v4883, 16
        %v5012 = vrot.slane %v5010, 1
        %v5013 = vor.u32 %v5008, %v5012
        %v5015 = vshll.u32 %v4947, 16
        %v5017 = vrot.slane %v5015, 1
        %v5018 = vsel %vm1045, %v5013, %v5017
        %v5020 = vshrl.u32 %v4884, 16
        %v5022 = vshll.u32 %v4884, 16
        %v5024 = vrot.slane %v5022, 1
        %v5025 = vor.u32 %v5020, %v5024
        %v5027 = vshll.u32 %v4948, 16
        %v5029 = vrot.slane %v5027, 1
        %v5030 = vsel %vm1045, %v5025, %v5029
        %v5032 = vshrl.u32 %v4885, 16
        %v5034 = vshll.u32 %v4885, 16
        %v5036 = vrot.slane %v5034, 1
        %v5037 = vor.u32 %v5032, %v5036
        %v5039 = vshll.u32 %v4949, 16
        %v5041 = vrot.slane %v5039, 1
        %v5042 = vsel %vm1045, %v5037, %v5041
        %v5044 = vshrl.u32 %v4886, 16
        %v5046 = vshll.u32 %v4886, 16
        %v5048 = vrot.slane %v5046, 1
        %v5049 = vor.u32 %v5044, %v5048
        %v5051 = vshll.u32 %v4950, 16
        %v5053 = vrot.slane %v5051, 1
        %v5054 = vsel %vm1045, %v5049, %v5053
        %v5056 = vshrl.u32 %v4887, 16
        %v5058 = vshll.u32 %v4887, 16
        %v5060 = vrot.slane %v5058, 1
        %v5061 = vor.u32 %v5056, %v5060
        %v5063 = vshll.u32 %v4951, 16
        %v5065 = vrot.slane %v5063, 1
        %v5066 = vsel %vm1045, %v5061, %v5065
        %v5068 = vshrl.u32 %v4888, 16
        %v5070 = vshll.u32 %v4888, 16
        %v5072 = vrot.slane %v5070, 1
        %v5073 = vor.u32 %v5068, %v5072
        %v5075 = vshll.u32 %v4952, 16
        %v5077 = vrot.slane %v5075, 1
        %v5078 = vsel %vm1045, %v5073, %v5077
        %v5080 = vshrl.u32 %v4889, 16
        %v5082 = vshll.u32 %v4889, 16
        %v5084 = vrot.slane %v5082, 1
        %v5085 = vor.u32 %v5080, %v5084
        %v5087 = vshll.u32 %v4953, 16
        %v5089 = vrot.slane %v5087, 1
        %v5090 = vsel %vm1045, %v5085, %v5089
        %v5092 = vshrl.u32 %v4890, 16
        %v5094 = vshll.u32 %v4890, 16
        %v5096 = vrot.slane %v5094, 1
        %v5097 = vor.u32 %v5092, %v5096
        %v5099 = vshll.u32 %v4954, 16
        %v5101 = vrot.slane %v5099, 1
        %v5102 = vsel %vm1045, %v5097, %v5101
        %v5104 = vshrl.u32 %v4891, 16
        %v5106 = vshll.u32 %v4891, 16
        %v5108 = vrot.slane %v5106, 1
        %v5109 = vor.u32 %v5104, %v5108
        %v5111 = vshll.u32 %v4955, 16
        %v5113 = vrot.slane %v5111, 1
        %v5114 = vsel %vm1045, %v5109, %v5113
        %v5116 = vshrl.u32 %v4892, 16
        %v5118 = vshll.u32 %v4892, 16
        %v5120 = vrot.slane %v5118, 1
        %v5121 = vor.u32 %v5116, %v5120
        %v5123 = vshll.u32 %v4956, 16
        %v5125 = vrot.slane %v5123, 1
        %v5126 = vsel %vm1045, %v5121, %v5125
        %v5128 = vshrl.u32 %v4893, 16
        %v5130 = vshll.u32 %v4893, 16
        %v5132 = vrot.slane %v5130, 1
        %v5133 = vor.u32 %v5128, %v5132
        %v5135 = vshll.u32 %v4957, 16
        %v5137 = vrot.slane %v5135, 1
        %v5138 = vsel %vm1045, %v5133, %v5137
        %v5140 = vshrl.u32 %v4894, 16
        %v5142 = vshll.u32 %v4894, 16
        %v5144 = vrot.slane %v5142, 1
        %v5145 = vor.u32 %v5140, %v5144
        %v5147 = vshll.u32 %v4958, 16
        %v5149 = vrot.slane %v5147, 1
        %v5150 = vsel %vm1045, %v5145, %v5149
        %v5183 = vunpack.c.l.b16 %v4799
        %v5184 = vunpack.c.l.b16 %v4800
        %v5185 = vunpack.c.l.b16 %v4801
        %v5186 = vunpack.c.l.b16 %v4802
        %v5187 = vunpack.c.l.b16 %v4803
        %v5188 = vunpack.c.l.b16 %v4804
        %v5189 = vunpack.c.l.b16 %v4805
        %v5190 = vunpack.c.l.b16 %v4806
        %v5191 = vunpack.c.l.b16 %v4807
        %v5192 = vunpack.c.l.b16 %v4808
        %v5193 = vunpack.c.l.b16 %v4809
        %v5194 = vunpack.c.l.b16 %v4810
        %v5195 = vunpack.c.l.b16 %v4811
        %v5196 = vunpack.c.l.b16 %v4812
        %v5197 = vunpack.c.l.b16 %v4813
        %v5198 = vunpack.c.l.b16 %v4814
        %v5199 = vpack.c.b16 %v4848, %v5183
        %v5200 = vpack.c.b16 %v4850, %v5184
        %v5201 = vpack.c.b16 %v4852, %v5185
        %v5202 = vpack.c.b16 %v4854, %v5186
        %v5203 = vpack.c.b16 %v4856, %v5187
        %v5204 = vpack.c.b16 %v4858, %v5188
        %v5205 = vpack.c.b16 %v4860, %v5189
        %v5206 = vpack.c.b16 %v4862, %v5190
        %v5207 = vpack.c.b16 %v4864, %v5191
        %v5208 = vpack.c.b16 %v4866, %v5192
        %v5209 = vpack.c.b16 %v4868, %v5193
        %v5210 = vpack.c.b16 %v4870, %v5194
        %v5211 = vpack.c.b16 %v4872, %v5195
        %v5212 = vpack.c.b16 %v4874, %v5196
        %v5213 = vpack.c.b16 %v4876, %v5197
        %v5214 = vpack.c.b16 %v4878, %v5198
        %v5215 = vrot.slane %v5199, 1
        %v5216 = vrot.slane %v4943, 1
        %v5217 = vsel %vm1302, %v5215, %v5216
        %v5218 = vrot.slane %v5200, 1
        %v5219 = vrot.slane %v4944, 1
        %v5220 = vsel %vm1302, %v5218, %v5219
        %v5221 = vrot.slane %v5201, 1
        %v5222 = vrot.slane %v4945, 1
        %v5223 = vsel %vm1302, %v5221, %v5222
        %v5224 = vrot.slane %v5202, 1
        %v5225 = vrot.slane %v4946, 1
        %v5226 = vsel %vm1302, %v5224, %v5225
        %v5227 = vrot.slane %v5203, 1
        %v5228 = vrot.slane %v4947, 1
        %v5229 = vsel %vm1302, %v5227, %v5228
        %v5230 = vrot.slane %v5204, 1
        %v5231 = vrot.slane %v4948, 1
        %v5232 = vsel %vm1302, %v5230, %v5231
        %v5233 = vrot.slane %v5205, 1
        %v5234 = vrot.slane %v4949, 1
        %v5235 = vsel %vm1302, %v5233, %v5234
        %v5236 = vrot.slane %v5206, 1
        %v5237 = vrot.slane %v4950, 1
        %v5238 = vsel %vm1302, %v5236, %v5237
        %v5239 = vrot.slane %v5207, 1
        %v5240 = vrot.slane %v4951, 1
        %v5241 = vsel %vm1302, %v5239, %v5240
        %v5242 = vrot.slane %v5208, 1
        %v5243 = vrot.slane %v4952, 1
        %v5244 = vsel %vm1302, %v5242, %v5243
        %v5245 = vrot.slane %v5209, 1
        %v5246 = vrot.slane %v4953, 1
        %v5247 = vsel %vm1302, %v5245, %v5246
        %v5248 = vrot.slane %v5210, 1
        %v5249 = vrot.slane %v4954, 1
        %v5250 = vsel %vm1302, %v5248, %v5249
        %v5251 = vrot.slane %v5211, 1
        %v5252 = vrot.slane %v4955, 1
        %v5253 = vsel %vm1302, %v5251, %v5252
        %v5254 = vrot.slane %v5212, 1
        %v5255 = vrot.slane %v4956, 1
        %v5256 = vsel %vm1302, %v5254, %v5255
        %v5257 = vrot.slane %v5213, 1
        %v5258 = vrot.slane %v4957, 1
        %v5259 = vsel %vm1302, %v5257, %v5258
        %v5260 = vrot.slane %v5214, 1
        %v5261 = vrot.slane %v4958, 1
        %v5262 = vsel %vm1302, %v5260, %v5261
        %v5279 = vld [vmem:[#allocation9] sm:$0xf]
        %v5280 = vld [vmem:[#allocation9 + $0x4] sm:$0xf]
        %v5281 = vld [vmem:[#allocation9 + $0x8] sm:$0xf]
        %v5282 = vld [vmem:[#allocation9 + $0xc] sm:$0xf]
        %v5283 = vld [vmem:[#allocation9 + $0x10] sm:$0xf]
        %v5284 = vld [vmem:[#allocation9 + $0x14] sm:$0xf]
        %v5285 = vld [vmem:[#allocation9 + $0x18] sm:$0xf]
        %v5286 = vld [vmem:[#allocation9 + $0x1c] sm:$0xf]
        %v5287 = vld [vmem:[#allocation9 + $0x20] sm:$0xf]
        %v5288 = vld [vmem:[#allocation9 + $0x24] sm:$0xf]
        %v5289 = vld [vmem:[#allocation9 + $0x28] sm:$0xf]
        %v5290 = vld [vmem:[#allocation9 + $0x2c] sm:$0xf]
        %v5291 = vld [vmem:[#allocation9 + $0x30] sm:$0xf]
        %v5292 = vld [vmem:[#allocation9 + $0x34] sm:$0xf]
        %v5293 = vld [vmem:[#allocation9 + $0x38] sm:$0xf]
        %v5294 = vld [vmem:[#allocation9 + $0x3c] sm:$0xf]
        %v5295 = vld [vmem:[#allocation9 + $0x40] sm:$0xf]
        %v5296 = vld [vmem:[#allocation9 + $0x44] sm:$0xf]
        %v5297 = vld [vmem:[#allocation9 + $0x48] sm:$0xf]
        %v5298 = vld [vmem:[#allocation9 + $0x4c] sm:$0xf]
        %v5299 = vld [vmem:[#allocation9 + $0x50] sm:$0xf]
        %v5300 = vld [vmem:[#allocation9 + $0x54] sm:$0xf]
        %v5301 = vld [vmem:[#allocation9 + $0x58] sm:$0xf]
        %v5302 = vld [vmem:[#allocation9 + $0x5c] sm:$0xf]
        %v5303 = vld [vmem:[#allocation9 + $0x60] sm:$0xf]
        %v5304 = vld [vmem:[#allocation9 + $0x64] sm:$0xf]
        %v5305 = vld [vmem:[#allocation9 + $0x68] sm:$0xf]
        %v5306 = vld [vmem:[#allocation9 + $0x6c] sm:$0xf]
        %v5307 = vld [vmem:[#allocation9 + $0x70] sm:$0xf]
        %v5308 = vld [vmem:[#allocation9 + $0x74] sm:$0xf]
        %v5309 = vld [vmem:[#allocation9 + $0x78] sm:$0xf]
        %v5310 = vld [vmem:[#allocation9 + $0x7c] sm:$0xf]
        %v5311 = vld [vmem:[#allocation9 + $0x80] sm:$0xf]
        %v5312 = vld [vmem:[#allocation9 + $0x84] sm:$0xf]
        %v5313 = vld [vmem:[#allocation9 + $0x88] sm:$0xf]
        %v5314 = vld [vmem:[#allocation9 + $0x8c] sm:$0xf]
        %v5315 = vld [vmem:[#allocation9 + $0x90] sm:$0xf]
        %v5316 = vld [vmem:[#allocation9 + $0x94] sm:$0xf]
        %v5317 = vld [vmem:[#allocation9 + $0x98] sm:$0xf]
        %v5318 = vld [vmem:[#allocation9 + $0x9c] sm:$0xf]
        %v5319 = vld [vmem:[#allocation9 + $0xa0] sm:$0xf]
        %v5320 = vld [vmem:[#allocation9 + $0xa4] sm:$0xf]
        %v5321 = vld [vmem:[#allocation9 + $0xa8] sm:$0xf]
        %v5322 = vld [vmem:[#allocation9 + $0xac] sm:$0xf]
        %v5323 = vld [vmem:[#allocation9 + $0xb0] sm:$0xf]
        %v5324 = vld [vmem:[#allocation9 + $0xb4] sm:$0xf]
        %v5325 = vld [vmem:[#allocation9 + $0xb8] sm:$0xf]
        %v5326 = vld [vmem:[#allocation9 + $0xbc] sm:$0xf]
        %v5327 = vld [vmem:[%s1415] sm:$0xf]
        %v5328 = vld [vmem:[%s1415 + $0x4] sm:$0xf]
        %v5329 = vld [vmem:[%s1415 + $0xc] sm:$0xf]
        %v5330 = vld [vmem:[%s1415 + $0x10] sm:$0xf]
        %v5331 = vld [vmem:[%s1415 + $0x18] sm:$0xf]
        %v5332 = vld [vmem:[%s1415 + $0x1c] sm:$0xf]
        %v5333 = vld [vmem:[%s1415 + $0x24] sm:$0xf]
        %v5334 = vld [vmem:[%s1415 + $0x28] sm:$0xf]
        %v5335 = vld [vmem:[%s1415 + $0x30] sm:$0xf]
        %v5336 = vld [vmem:[%s1415 + $0x34] sm:$0xf]
        %v5337 = vld [vmem:[%s1415 + $0x3c] sm:$0xf]
        %v5338 = vld [vmem:[%s1415 + $0x40] sm:$0xf]
        %v5339 = vld [vmem:[%s1415 + $0x48] sm:$0xf]
        %v5340 = vld [vmem:[%s1415 + $0x4c] sm:$0xf]
        %v5341 = vld [vmem:[%s1415 + $0x54] sm:$0xf]
        %v5342 = vld [vmem:[%s1415 + $0x58] sm:$0xf]
        %v5343 = vld [vmem:[%s1415 + $0x60] sm:$0xf]
        %v5344 = vld [vmem:[%s1415 + $0x64] sm:$0xf]
        %v5345 = vld [vmem:[%s1415 + $0x6c] sm:$0xf]
        %v5346 = vld [vmem:[%s1415 + $0x70] sm:$0xf]
        %v5347 = vld [vmem:[%s1415 + $0x78] sm:$0xf]
        %v5348 = vld [vmem:[%s1415 + $0x7c] sm:$0xf]
        %v5349 = vld [vmem:[%s1415 + $0x84] sm:$0xf]
        %v5350 = vld [vmem:[%s1415 + $0x88] sm:$0xf]
        %v5351 = vld [vmem:[%s1415 + $0x90] sm:$0xf]
        %v5352 = vld [vmem:[%s1415 + $0x94] sm:$0xf]
        %v5353 = vld [vmem:[%s1415 + $0x9c] sm:$0xf]
        %v5354 = vld [vmem:[%s1415 + $0xa0] sm:$0xf]
        %v5355 = vld [vmem:[%s1415 + $0xa8] sm:$0xf]
        %v5356 = vld [vmem:[%s1415 + $0xac] sm:$0xf]
        %v5357 = vld [vmem:[%s1415 + $0xb4] sm:$0xf]
        %v5358 = vld [vmem:[%s1415 + $0xb8] sm:$0xf]
        %v5359 = vld [vmem:[%s1415 + $0x8] sm:$0x1]
        %v5360 = vld [vmem:[%s1415 + $0x14] sm:$0x1]
        %v5361 = vld [vmem:[%s1415 + $0x20] sm:$0x1]
        %v5362 = vld [vmem:[%s1415 + $0x2c] sm:$0x1]
        %v5363 = vld [vmem:[%s1415 + $0x38] sm:$0x1]
        %v5364 = vld [vmem:[%s1415 + $0x44] sm:$0x1]
        %v5365 = vld [vmem:[%s1415 + $0x50] sm:$0x1]
        %v5366 = vld [vmem:[%s1415 + $0x5c] sm:$0x1]
        %v5367 = vld [vmem:[%s1415 + $0x68] sm:$0x1]
        %v5368 = vld [vmem:[%s1415 + $0x74] sm:$0x1]
        %v5369 = vld [vmem:[%s1415 + $0x80] sm:$0x1]
        %v5370 = vld [vmem:[%s1415 + $0x8c] sm:$0x1]
        %v5371 = vld [vmem:[%s1415 + $0x98] sm:$0x1]
        %v5372 = vld [vmem:[%s1415 + $0xa4] sm:$0x1]
        %v5373 = vld [vmem:[%s1415 + $0xb0] sm:$0x1]
        %v5374 = vld [vmem:[%s1415 + $0xbc] sm:$0x1]
        %v5375 = vld [vmem:[%s1415] sm:$0xe]
        %v5376 = vld [vmem:[%s1415 + $0xc] sm:$0xe]
        %v5377 = vld [vmem:[%s1415 + $0x18] sm:$0xe]
        %v5378 = vld [vmem:[%s1415 + $0x24] sm:$0xe]
        %v5379 = vld [vmem:[%s1415 + $0x30] sm:$0xe]
        %v5380 = vld [vmem:[%s1415 + $0x3c] sm:$0xe]
        %v5381 = vld [vmem:[%s1415 + $0x48] sm:$0xe]
        %v5382 = vld [vmem:[%s1415 + $0x54] sm:$0xe]
        %v5383 = vld [vmem:[%s1415 + $0x60] sm:$0xe]
        %v5384 = vld [vmem:[%s1415 + $0x6c] sm:$0xe]
        %v5385 = vld [vmem:[%s1415 + $0x78] sm:$0xe]
        %v5386 = vld [vmem:[%s1415 + $0x84] sm:$0xe]
        %v5387 = vld [vmem:[%s1415 + $0x90] sm:$0xe]
        %v5388 = vld [vmem:[%s1415 + $0x9c] sm:$0xe]
        %v5389 = vld [vmem:[%s1415 + $0xa8] sm:$0xe]
        %v5390 = vld [vmem:[%s1415 + $0xb4] sm:$0xe]
        %v5423 = vunpack.c.l.b16 %v5327
        %v5424 = vunpack.c.l.b16 %v5328
        %v5425 = vunpack.c.l.b16 %v5329
        %v5426 = vunpack.c.l.b16 %v5330
        %v5427 = vunpack.c.l.b16 %v5331
        %v5428 = vunpack.c.l.b16 %v5332
        %v5429 = vunpack.c.l.b16 %v5333
        %v5430 = vunpack.c.l.b16 %v5334
        %v5431 = vunpack.c.l.b16 %v5335
        %v5432 = vunpack.c.l.b16 %v5336
        %v5433 = vunpack.c.l.b16 %v5337
        %v5434 = vunpack.c.l.b16 %v5338
        %v5435 = vunpack.c.l.b16 %v5339
        %v5436 = vunpack.c.l.b16 %v5340
        %v5437 = vunpack.c.l.b16 %v5341
        %v5438 = vunpack.c.l.b16 %v5342
        %v5439 = vunpack.c.l.b16 %v5343
        %v5440 = vunpack.c.l.b16 %v5344
        %v5441 = vunpack.c.l.b16 %v5345
        %v5442 = vunpack.c.l.b16 %v5346
        %v5443 = vunpack.c.l.b16 %v5347
        %v5444 = vunpack.c.l.b16 %v5348
        %v5445 = vunpack.c.l.b16 %v5349
        %v5446 = vunpack.c.l.b16 %v5350
        %v5447 = vunpack.c.l.b16 %v5351
        %v5448 = vunpack.c.l.b16 %v5352
        %v5449 = vunpack.c.l.b16 %v5353
        %v5450 = vunpack.c.l.b16 %v5354
        %v5451 = vunpack.c.l.b16 %v5355
        %v5452 = vunpack.c.l.b16 %v5356
        %v5453 = vunpack.c.l.b16 %v5357
        %v5454 = vunpack.c.l.b16 %v5358
        %v5455 = vpack.c.b16 %v5424, %v5423
        %v5456 = vpack.c.b16 %v5426, %v5425
        %v5457 = vpack.c.b16 %v5428, %v5427
        %v5458 = vpack.c.b16 %v5430, %v5429
        %v5459 = vpack.c.b16 %v5432, %v5431
        %v5460 = vpack.c.b16 %v5434, %v5433
        %v5461 = vpack.c.b16 %v5436, %v5435
        %v5462 = vpack.c.b16 %v5438, %v5437
        %v5463 = vpack.c.b16 %v5440, %v5439
        %v5464 = vpack.c.b16 %v5442, %v5441
        %v5465 = vpack.c.b16 %v5444, %v5443
        %v5466 = vpack.c.b16 %v5446, %v5445
        %v5467 = vpack.c.b16 %v5448, %v5447
        %v5468 = vpack.c.b16 %v5450, %v5449
        %v5469 = vpack.c.b16 %v5452, %v5451
        %v5470 = vpack.c.b16 %v5454, %v5453
        %v5503 = vunpack.c.l.b16 %v5359
        %v5504 = vunpack.c.l.b16 %v5360
        %v5505 = vunpack.c.l.b16 %v5361
        %v5506 = vunpack.c.l.b16 %v5362
        %v5507 = vunpack.c.l.b16 %v5363
        %v5508 = vunpack.c.l.b16 %v5364
        %v5509 = vunpack.c.l.b16 %v5365
        %v5510 = vunpack.c.l.b16 %v5366
        %v5511 = vunpack.c.l.b16 %v5367
        %v5512 = vunpack.c.l.b16 %v5368
        %v5513 = vunpack.c.l.b16 %v5369
        %v5514 = vunpack.c.l.b16 %v5370
        %v5515 = vunpack.c.l.b16 %v5371
        %v5516 = vunpack.c.l.b16 %v5372
        %v5517 = vunpack.c.l.b16 %v5373
        %v5518 = vunpack.c.l.b16 %v5374
        %v5519 = vpack.c.b16 %v5503, %v5503
        %v5520 = vpack.c.b16 %v5504, %v5504
        %v5521 = vpack.c.b16 %v5505, %v5505
        %v5522 = vpack.c.b16 %v5506, %v5506
        %v5523 = vpack.c.b16 %v5507, %v5507
        %v5524 = vpack.c.b16 %v5508, %v5508
        %v5525 = vpack.c.b16 %v5509, %v5509
        %v5526 = vpack.c.b16 %v5510, %v5510
        %v5527 = vpack.c.b16 %v5511, %v5511
        %v5528 = vpack.c.b16 %v5512, %v5512
        %v5529 = vpack.c.b16 %v5513, %v5513
        %v5530 = vpack.c.b16 %v5514, %v5514
        %v5531 = vpack.c.b16 %v5515, %v5515
        %v5532 = vpack.c.b16 %v5516, %v5516
        %v5533 = vpack.c.b16 %v5517, %v5517
        %v5534 = vpack.c.b16 %v5518, %v5518
        %v5536 = vshrl.u32 %v5455, 16
        %v5538 = vshll.u32 %v5455, 16
        %v5540 = vrot.slane %v5538, 1
        %v5541 = vor.u32 %v5536, %v5540
        %v5543 = vshll.u32 %v5519, 16
        %v5545 = vrot.slane %v5543, 1
        %v5546 = vsel %vm1045, %v5541, %v5545
        %v5548 = vshrl.u32 %v5456, 16
        %v5550 = vshll.u32 %v5456, 16
        %v5552 = vrot.slane %v5550, 1
        %v5553 = vor.u32 %v5548, %v5552
        %v5555 = vshll.u32 %v5520, 16
        %v5557 = vrot.slane %v5555, 1
        %v5558 = vsel %vm1045, %v5553, %v5557
        %v5560 = vshrl.u32 %v5457, 16
        %v5562 = vshll.u32 %v5457, 16
        %v5564 = vrot.slane %v5562, 1
        %v5565 = vor.u32 %v5560, %v5564
        %v5567 = vshll.u32 %v5521, 16
        %v5569 = vrot.slane %v5567, 1
        %v5570 = vsel %vm1045, %v5565, %v5569
        %v5572 = vshrl.u32 %v5458, 16
        %v5574 = vshll.u32 %v5458, 16
        %v5576 = vrot.slane %v5574, 1
        %v5577 = vor.u32 %v5572, %v5576
        %v5579 = vshll.u32 %v5522, 16
        %v5581 = vrot.slane %v5579, 1
        %v5582 = vsel %vm1045, %v5577, %v5581
        %v5584 = vshrl.u32 %v5459, 16
        %v5586 = vshll.u32 %v5459, 16
        %v5588 = vrot.slane %v5586, 1
        %v5589 = vor.u32 %v5584, %v5588
        %v5591 = vshll.u32 %v5523, 16
        %v5593 = vrot.slane %v5591, 1
        %v5594 = vsel %vm1045, %v5589, %v5593
        %v5596 = vshrl.u32 %v5460, 16
        %v5598 = vshll.u32 %v5460, 16
        %v5600 = vrot.slane %v5598, 1
        %v5601 = vor.u32 %v5596, %v5600
        %v5603 = vshll.u32 %v5524, 16
        %v5605 = vrot.slane %v5603, 1
        %v5606 = vsel %vm1045, %v5601, %v5605
        %v5608 = vshrl.u32 %v5461, 16
        %v5610 = vshll.u32 %v5461, 16
        %v5612 = vrot.slane %v5610, 1
        %v5613 = vor.u32 %v5608, %v5612
        %v5615 = vshll.u32 %v5525, 16
        %v5617 = vrot.slane %v5615, 1
        %v5618 = vsel %vm1045, %v5613, %v5617
        %v5620 = vshrl.u32 %v5462, 16
        %v5622 = vshll.u32 %v5462, 16
        %v5624 = vrot.slane %v5622, 1
        %v5625 = vor.u32 %v5620, %v5624
        %v5627 = vshll.u32 %v5526, 16
        %v5629 = vrot.slane %v5627, 1
        %v5630 = vsel %vm1045, %v5625, %v5629
        %v5632 = vshrl.u32 %v5463, 16
        %v5634 = vshll.u32 %v5463, 16
        %v5636 = vrot.slane %v5634, 1
        %v5637 = vor.u32 %v5632, %v5636
        %v5639 = vshll.u32 %v5527, 16
        %v5641 = vrot.slane %v5639, 1
        %v5642 = vsel %vm1045, %v5637, %v5641
        %v5644 = vshrl.u32 %v5464, 16
        %v5646 = vshll.u32 %v5464, 16
        %v5648 = vrot.slane %v5646, 1
        %v5649 = vor.u32 %v5644, %v5648
        %v5651 = vshll.u32 %v5528, 16
        %v5653 = vrot.slane %v5651, 1
        %v5654 = vsel %vm1045, %v5649, %v5653
        %v5656 = vshrl.u32 %v5465, 16
        %v5658 = vshll.u32 %v5465, 16
        %v5660 = vrot.slane %v5658, 1
        %v5661 = vor.u32 %v5656, %v5660
        %v5663 = vshll.u32 %v5529, 16
        %v5665 = vrot.slane %v5663, 1
        %v5666 = vsel %vm1045, %v5661, %v5665
        %v5668 = vshrl.u32 %v5466, 16
        %v5670 = vshll.u32 %v5466, 16
        %v5672 = vrot.slane %v5670, 1
        %v5673 = vor.u32 %v5668, %v5672
        %v5675 = vshll.u32 %v5530, 16
        %v5677 = vrot.slane %v5675, 1
        %v5678 = vsel %vm1045, %v5673, %v5677
        %v5680 = vshrl.u32 %v5467, 16
        %v5682 = vshll.u32 %v5467, 16
        %v5684 = vrot.slane %v5682, 1
        %v5685 = vor.u32 %v5680, %v5684
        %v5687 = vshll.u32 %v5531, 16
        %v5689 = vrot.slane %v5687, 1
        %v5690 = vsel %vm1045, %v5685, %v5689
        %v5692 = vshrl.u32 %v5468, 16
        %v5694 = vshll.u32 %v5468, 16
        %v5696 = vrot.slane %v5694, 1
        %v5697 = vor.u32 %v5692, %v5696
        %v5699 = vshll.u32 %v5532, 16
        %v5701 = vrot.slane %v5699, 1
        %v5702 = vsel %vm1045, %v5697, %v5701
        %v5704 = vshrl.u32 %v5469, 16
        %v5706 = vshll.u32 %v5469, 16
        %v5708 = vrot.slane %v5706, 1
        %v5709 = vor.u32 %v5704, %v5708
        %v5711 = vshll.u32 %v5533, 16
        %v5713 = vrot.slane %v5711, 1
        %v5714 = vsel %vm1045, %v5709, %v5713
        %v5716 = vshrl.u32 %v5470, 16
        %v5718 = vshll.u32 %v5470, 16
        %v5720 = vrot.slane %v5718, 1
        %v5721 = vor.u32 %v5716, %v5720
        %v5723 = vshll.u32 %v5534, 16
        %v5725 = vrot.slane %v5723, 1
        %v5726 = vsel %vm1045, %v5721, %v5725
        %v5759 = vunpack.c.l.b16 %v5375
        %v5760 = vunpack.c.l.b16 %v5376
        %v5761 = vunpack.c.l.b16 %v5377
        %v5762 = vunpack.c.l.b16 %v5378
        %v5763 = vunpack.c.l.b16 %v5379
        %v5764 = vunpack.c.l.b16 %v5380
        %v5765 = vunpack.c.l.b16 %v5381
        %v5766 = vunpack.c.l.b16 %v5382
        %v5767 = vunpack.c.l.b16 %v5383
        %v5768 = vunpack.c.l.b16 %v5384
        %v5769 = vunpack.c.l.b16 %v5385
        %v5770 = vunpack.c.l.b16 %v5386
        %v5771 = vunpack.c.l.b16 %v5387
        %v5772 = vunpack.c.l.b16 %v5388
        %v5773 = vunpack.c.l.b16 %v5389
        %v5774 = vunpack.c.l.b16 %v5390
        %v5775 = vpack.c.b16 %v5424, %v5759
        %v5776 = vpack.c.b16 %v5426, %v5760
        %v5777 = vpack.c.b16 %v5428, %v5761
        %v5778 = vpack.c.b16 %v5430, %v5762
        %v5779 = vpack.c.b16 %v5432, %v5763
        %v5780 = vpack.c.b16 %v5434, %v5764
        %v5781 = vpack.c.b16 %v5436, %v5765
        %v5782 = vpack.c.b16 %v5438, %v5766
        %v5783 = vpack.c.b16 %v5440, %v5767
        %v5784 = vpack.c.b16 %v5442, %v5768
        %v5785 = vpack.c.b16 %v5444, %v5769
        %v5786 = vpack.c.b16 %v5446, %v5770
        %v5787 = vpack.c.b16 %v5448, %v5771
        %v5788 = vpack.c.b16 %v5450, %v5772
        %v5789 = vpack.c.b16 %v5452, %v5773
        %v5790 = vpack.c.b16 %v5454, %v5774
        %v5791 = vrot.slane %v5775, 1
        %v5792 = vrot.slane %v5519, 1
        %v5793 = vsel %vm1302, %v5791, %v5792
        %v5794 = vrot.slane %v5776, 1
        %v5795 = vrot.slane %v5520, 1
        %v5796 = vsel %vm1302, %v5794, %v5795
        %v5797 = vrot.slane %v5777, 1
        %v5798 = vrot.slane %v5521, 1
        %v5799 = vsel %vm1302, %v5797, %v5798
        %v5800 = vrot.slane %v5778, 1
        %v5801 = vrot.slane %v5522, 1
        %v5802 = vsel %vm1302, %v5800, %v5801
        %v5803 = vrot.slane %v5779, 1
        %v5804 = vrot.slane %v5523, 1
        %v5805 = vsel %vm1302, %v5803, %v5804
        %v5806 = vrot.slane %v5780, 1
        %v5807 = vrot.slane %v5524, 1
        %v5808 = vsel %vm1302, %v5806, %v5807
        %v5809 = vrot.slane %v5781, 1
        %v5810 = vrot.slane %v5525, 1
        %v5811 = vsel %vm1302, %v5809, %v5810
        %v5812 = vrot.slane %v5782, 1
        %v5813 = vrot.slane %v5526, 1
        %v5814 = vsel %vm1302, %v5812, %v5813
        %v5815 = vrot.slane %v5783, 1
        %v5816 = vrot.slane %v5527, 1
        %v5817 = vsel %vm1302, %v5815, %v5816
        %v5818 = vrot.slane %v5784, 1
        %v5819 = vrot.slane %v5528, 1
        %v5820 = vsel %vm1302, %v5818, %v5819
        %v5821 = vrot.slane %v5785, 1
        %v5822 = vrot.slane %v5529, 1
        %v5823 = vsel %vm1302, %v5821, %v5822
        %v5824 = vrot.slane %v5786, 1
        %v5825 = vrot.slane %v5530, 1
        %v5826 = vsel %vm1302, %v5824, %v5825
        %v5827 = vrot.slane %v5787, 1
        %v5828 = vrot.slane %v5531, 1
        %v5829 = vsel %vm1302, %v5827, %v5828
        %v5830 = vrot.slane %v5788, 1
        %v5831 = vrot.slane %v5532, 1
        %v5832 = vsel %vm1302, %v5830, %v5831
        %v5833 = vrot.slane %v5789, 1
        %v5834 = vrot.slane %v5533, 1
        %v5835 = vsel %vm1302, %v5833, %v5834
        %v5836 = vrot.slane %v5790, 1
        %v5837 = vrot.slane %v5534, 1
        %v5838 = vsel %vm1302, %v5836, %v5837
        %s5855 = scalar_lea.vmem [#allocation9], 192
        %v5856 = vld [vmem:[%s5855] sm:$0xf]
        %v5857 = vld [vmem:[%s5855 + $0x4] sm:$0xf]
        %v5858 = vld [vmem:[%s5855 + $0x8] sm:$0xf]
        %v5859 = vld [vmem:[%s5855 + $0xc] sm:$0xf]
        %v5860 = vld [vmem:[%s5855 + $0x10] sm:$0xf]
        %v5861 = vld [vmem:[%s5855 + $0x14] sm:$0xf]
        %v5862 = vld [vmem:[%s5855 + $0x18] sm:$0xf]
        %v5863 = vld [vmem:[%s5855 + $0x1c] sm:$0xf]
        %v5864 = vld [vmem:[%s5855 + $0x20] sm:$0xf]
        %v5865 = vld [vmem:[%s5855 + $0x24] sm:$0xf]
        %v5866 = vld [vmem:[%s5855 + $0x28] sm:$0xf]
        %v5867 = vld [vmem:[%s5855 + $0x2c] sm:$0xf]
        %v5868 = vld [vmem:[%s5855 + $0x30] sm:$0xf]
        %v5869 = vld [vmem:[%s5855 + $0x34] sm:$0xf]
        %v5870 = vld [vmem:[%s5855 + $0x38] sm:$0xf]
        %v5871 = vld [vmem:[%s5855 + $0x3c] sm:$0xf]
        %v5872 = vld [vmem:[%s5855 + $0x40] sm:$0xf]
        %v5873 = vld [vmem:[%s5855 + $0x44] sm:$0xf]
        %v5874 = vld [vmem:[%s5855 + $0x48] sm:$0xf]
        %v5875 = vld [vmem:[%s5855 + $0x4c] sm:$0xf]
        %v5876 = vld [vmem:[%s5855 + $0x50] sm:$0xf]
        %v5877 = vld [vmem:[%s5855 + $0x54] sm:$0xf]
        %v5878 = vld [vmem:[%s5855 + $0x58] sm:$0xf]
        %v5879 = vld [vmem:[%s5855 + $0x5c] sm:$0xf]
        %v5880 = vld [vmem:[%s5855 + $0x60] sm:$0xf]
        %v5881 = vld [vmem:[%s5855 + $0x64] sm:$0xf]
        %v5882 = vld [vmem:[%s5855 + $0x68] sm:$0xf]
        %v5883 = vld [vmem:[%s5855 + $0x6c] sm:$0xf]
        %v5884 = vld [vmem:[%s5855 + $0x70] sm:$0xf]
        %v5885 = vld [vmem:[%s5855 + $0x74] sm:$0xf]
        %v5886 = vld [vmem:[%s5855 + $0x78] sm:$0xf]
        %v5887 = vld [vmem:[%s5855 + $0x7c] sm:$0xf]
        %v5888 = vld [vmem:[%s5855 + $0x80] sm:$0xf]
        %v5889 = vld [vmem:[%s5855 + $0x84] sm:$0xf]
        %v5890 = vld [vmem:[%s5855 + $0x88] sm:$0xf]
        %v5891 = vld [vmem:[%s5855 + $0x8c] sm:$0xf]
        %v5892 = vld [vmem:[%s5855 + $0x90] sm:$0xf]
        %v5893 = vld [vmem:[%s5855 + $0x94] sm:$0xf]
        %v5894 = vld [vmem:[%s5855 + $0x98] sm:$0xf]
        %v5895 = vld [vmem:[%s5855 + $0x9c] sm:$0xf]
        %v5896 = vld [vmem:[%s5855 + $0xa0] sm:$0xf]
        %v5897 = vld [vmem:[%s5855 + $0xa4] sm:$0xf]
        %v5898 = vld [vmem:[%s5855 + $0xa8] sm:$0xf]
        %v5899 = vld [vmem:[%s5855 + $0xac] sm:$0xf]
        %v5900 = vld [vmem:[%s5855 + $0xb0] sm:$0xf]
        %v5901 = vld [vmem:[%s5855 + $0xb4] sm:$0xf]
        %v5902 = vld [vmem:[%s5855 + $0xb8] sm:$0xf]
        %v5903 = vld [vmem:[%s5855 + $0xbc] sm:$0xf]
        %v5952 = vunpack.c.l.b16 %v5856
        %v5953 = vunpack.c.l.b16 %v5857
        %v5954 = vunpack.c.l.b16 %v5858
        %v5955 = vunpack.c.l.b16 %v5859
        %v5956 = vunpack.c.l.b16 %v5860
        %v5957 = vunpack.c.l.b16 %v5861
        %v5958 = vunpack.c.l.b16 %v5862
        %v5959 = vunpack.c.l.b16 %v5863
        %v5960 = vunpack.c.l.b16 %v5864
        %v5961 = vunpack.c.l.b16 %v5865
        %v5962 = vunpack.c.l.b16 %v5866
        %v5963 = vunpack.c.l.b16 %v5867
        %v5964 = vunpack.c.l.b16 %v5868
        %v5965 = vunpack.c.l.b16 %v5869
        %v5966 = vunpack.c.l.b16 %v5870
        %v5967 = vunpack.c.l.b16 %v5871
        %v5968 = vunpack.c.l.b16 %v5872
        %v5969 = vunpack.c.l.b16 %v5873
        %v5970 = vunpack.c.l.b16 %v5874
        %v5971 = vunpack.c.l.b16 %v5875
        %v5972 = vunpack.c.l.b16 %v5876
        %v5973 = vunpack.c.l.b16 %v5877
        %v5974 = vunpack.c.l.b16 %v5878
        %v5975 = vunpack.c.l.b16 %v5879
        %v5976 = vunpack.c.l.b16 %v5880
        %v5977 = vunpack.c.l.b16 %v5881
        %v5978 = vunpack.c.l.b16 %v5882
        %v5979 = vunpack.c.l.b16 %v5883
        %v5980 = vunpack.c.l.b16 %v5884
        %v5981 = vunpack.c.l.b16 %v5885
        %v5982 = vunpack.c.l.b16 %v5886
        %v5983 = vunpack.c.l.b16 %v5887
        %v5984 = vunpack.c.l.b16 %v5888
        %v5985 = vunpack.c.l.b16 %v5889
        %v5986 = vunpack.c.l.b16 %v5890
        %v5987 = vunpack.c.l.b16 %v5891
        %v5988 = vunpack.c.l.b16 %v5892
        %v5989 = vunpack.c.l.b16 %v5893
        %v5990 = vunpack.c.l.b16 %v5894
        %v5991 = vunpack.c.l.b16 %v5895
        %v5992 = vunpack.c.l.b16 %v5896
        %v5993 = vunpack.c.l.b16 %v5897
        %v5994 = vunpack.c.l.b16 %v5898
        %v5995 = vunpack.c.l.b16 %v5899
        %v5996 = vunpack.c.l.b16 %v5900
        %v5997 = vunpack.c.l.b16 %v5901
        %v5998 = vunpack.c.l.b16 %v5902
        %v5999 = vunpack.c.l.b16 %v5903
        %v6000 = vpack.c.b16 %v5953, %v5952
        %v6001 = vpack.c.b16 %v5955, %v5954
        %v6002 = vpack.c.b16 %v5957, %v5956
        %v6003 = vpack.c.b16 %v5959, %v5958
        %v6004 = vpack.c.b16 %v5961, %v5960
        %v6005 = vpack.c.b16 %v5963, %v5962
        %v6006 = vpack.c.b16 %v5965, %v5964
        %v6007 = vpack.c.b16 %v5967, %v5966
        %v6008 = vpack.c.b16 %v5969, %v5968
        %v6009 = vpack.c.b16 %v5971, %v5970
        %v6010 = vpack.c.b16 %v5973, %v5972
        %v6011 = vpack.c.b16 %v5975, %v5974
        %v6012 = vpack.c.b16 %v5977, %v5976
        %v6013 = vpack.c.b16 %v5979, %v5978
        %v6014 = vpack.c.b16 %v5981, %v5980
        %v6015 = vpack.c.b16 %v5983, %v5982
        %v6016 = vpack.c.b16 %v5985, %v5984
        %v6017 = vpack.c.b16 %v5987, %v5986
        %v6018 = vpack.c.b16 %v5989, %v5988
        %v6019 = vpack.c.b16 %v5991, %v5990
        %v6020 = vpack.c.b16 %v5993, %v5992
        %v6021 = vpack.c.b16 %v5995, %v5994
        %v6022 = vpack.c.b16 %v5997, %v5996
        %v6023 = vpack.c.b16 %v5999, %v5998
        %6048 = vmatprep.subr.bf16.mxu0 0
        %6049 = vmatpush1.bf16.msra.mxu0 %v6000
        %6050 = vmatprep.subr.bf16.mxu0 0
        %6051 = vmatpush1.bf16.msra.mxu0 %v6001
        %6052 = vmatprep.subr.bf16.mxu0 0
        %6053 = vmatpush1.bf16.msra.mxu0 %v6002
        %6054 = vmatprep.subr.bf16.mxu0 0
        %6055 = vmatpush1.bf16.msra.mxu0 %v6003
        %6056 = vmatprep.subr.bf16.mxu0 0
        %6057 = vmatpush1.bf16.msra.mxu0 %v6004
        %6058 = vmatprep.subr.bf16.mxu0 0
        %6059 = vmatpush1.bf16.msra.mxu0 %v6005
        %6060 = vmatprep.subr.bf16.mxu0 0
        %6061 = vmatpush1.bf16.msra.mxu0 %v6006
        %6062 = vmatprep.subr.bf16.mxu0 0
        %6063 = vmatpush1.bf16.msra.mxu0 %v6007
        %6064 = vmatprep.subr.bf16.mxu0 0
        %6065 = vmatpush1.bf16.msra.mxu0 %v6008
        %6066 = vmatprep.subr.bf16.mxu0 0
        %6067 = vmatpush1.bf16.msra.mxu0 %v6009
        %6068 = vmatprep.subr.bf16.mxu0 0
        %6069 = vmatpush1.bf16.msra.mxu0 %v6010
        %6070 = vmatprep.subr.bf16.mxu0 0
        %6071 = vmatpush1.bf16.msra.mxu0 %v6011
        %6072 = vmatprep.subr.bf16.mxu0 0
        %6073 = vmatpush1.bf16.msra.mxu0 %v6012
        %6074 = vmatprep.subr.bf16.mxu0 0
        %6075 = vmatpush1.bf16.msra.mxu0 %v6013
        %6076 = vmatprep.subr.bf16.mxu0 0
        %6077 = vmatpush1.bf16.msra.mxu0 %v6014
        %6078 = vmatprep.subr.bf16.mxu0 0
        %6079 = vmatpush1.bf16.msra.mxu0 %v6015
        %6080 = vmatprep.mubr.bf16.mxu0 %v5546
        %6081 = vmatmul.mubr.bf16.gmra.mrb[0].mxu0 %v5455
        %v6082 = vpop.f32.mrb[0].mxu0
        %v6083 = vadd.f32 0.0, %v6082
        %v6084 = vpop.f32.mrb[0].mxu0
        %v6085 = vpop.f32.mrb[0].mxu0
        %v6086 = vadd.f32 0.0, %v6085
        %v6087 = vpop.f32.mrb[0].mxu0
        %6088 = vmatprep.mubr.bf16.mxu0 %v5558
        %6089 = vmatmul.mubr.bf16.gmra.mrb[0].mxu0 %v5456
        %v6090 = vpop.f32.mrb[0].mxu0
        %v6091 = vadd.f32 0.0, %v6090
        %v6092 = vpop.f32.mrb[0].mxu0
        %v6093 = vpop.f32.mrb[0].mxu0
        %v6094 = vadd.f32 0.0, %v6093
        %v6095 = vpop.f32.mrb[0].mxu0
        %6096 = vmatprep.mubr.bf16.mxu0 %v5570
        %6097 = vmatmul.mubr.bf16.gmra.mrb[0].mxu0 %v5457
        %v6098 = vpop.f32.mrb[0].mxu0
        %v6099 = vadd.f32 0.0, %v6098
        %v6100 = vpop.f32.mrb[0].mxu0
        %v6101 = vpop.f32.mrb[0].mxu0
        %v6102 = vadd.f32 0.0, %v6101
        %v6103 = vpop.f32.mrb[0].mxu0
        %6104 = vmatprep.mubr.bf16.mxu0 %v5582
        %6105 = vmatmul.mubr.bf16.gmra.mrb[0].mxu0 %v5458
        %v6106 = vpop.f32.mrb[0].mxu0
        %v6107 = vadd.f32 0.0, %v6106
        %v6108 = vpop.f32.mrb[0].mxu0
        %v6109 = vpop.f32.mrb[0].mxu0
        %v6110 = vadd.f32 0.0, %v6109
        %v6111 = vpop.f32.mrb[0].mxu0
        %6112 = vmatprep.mubr.bf16.mxu0 %v5594
        %6113 = vmatmul.mubr.bf16.gmra.mrb[0].mxu0 %v5459
        %v6114 = vpop.f32.mrb[0].mxu0
        %v6115 = vadd.f32 0.0, %v6114
        %v6116 = vpop.f32.mrb[0].mxu0
        %v6117 = vpop.f32.mrb[0].mxu0
        %v6118 = vadd.f32 0.0, %v6117
        %v6119 = vpop.f32.mrb[0].mxu0
        %6120 = vmatprep.mubr.bf16.mxu0 %v5606
        %6121 = vmatmul.mubr.bf16.gmra.mrb[0].mxu0 %v5460
        %v6122 = vpop.f32.mrb[0].mxu0
        %v6123 = vadd.f32 0.0, %v6122
        %v6124 = vpop.f32.mrb[0].mxu0
        %v6125 = vpop.f32.mrb[0].mxu0
        %v6126 = vadd.f32 0.0, %v6125
        %v6127 = vpop.f32.mrb[0].mxu0
        %6128 = vmatprep.mubr.bf16.mxu0 %v5618
        %6129 = vmatmul.mubr.bf16.gmra.mrb[0].mxu0 %v5461
        %v6130 = vpop.f32.mrb[0].mxu0
        %v6131 = vadd.f32 0.0, %v6130
        %v6132 = vpop.f32.mrb[0].mxu0
        %v6133 = vpop.f32.mrb[0].mxu0
        %v6134 = vadd.f32 0.0, %v6133
        %v6135 = vpop.f32.mrb[0].mxu0
        %6136 = vmatprep.mubr.bf16.mxu0 %v5630
        %6137 = vmatmul.mubr.bf16.gmra.mrb[0].mxu0 %v5462
        %v6138 = vpop.f32.mrb[0].mxu0
        %v6139 = vadd.f32 0.0, %v6138
        %v6140 = vpop.f32.mrb[0].mxu0
        %v6141 = vpop.f32.mrb[0].mxu0
        %v6142 = vadd.f32 0.0, %v6141
        %v6143 = vpop.f32.mrb[0].mxu0
        %6144 = vmatprep.mubr.bf16.mxu0 %v5642
        %6145 = vmatmul.mubr.bf16.gmra.mrb[0].mxu0 %v5463
        %v6146 = vpop.f32.mrb[0].mxu0
        %v6147 = vadd.f32 0.0, %v6146
        %v6148 = vpop.f32.mrb[0].mxu0
        %v6149 = vpop.f32.mrb[0].mxu0
        %v6150 = vadd.f32 0.0, %v6149
        %v6151 = vpop.f32.mrb[0].mxu0
        %6152 = vmatprep.mubr.bf16.mxu0 %v5654
        %6153 = vmatmul.mubr.bf16.gmra.mrb[0].mxu0 %v5464
        %v6154 = vpop.f32.mrb[0].mxu0
        %v6155 = vadd.f32 0.0, %v6154
        %v6156 = vpop.f32.mrb[0].mxu0
        %v6157 = vpop.f32.mrb[0].mxu0
        %v6158 = vadd.f32 0.0, %v6157
        %v6159 = vpop.f32.mrb[0].mxu0
        %6160 = vmatprep.mubr.bf16.mxu0 %v5666
        %6161 = vmatmul.mubr.bf16.gmra.mrb[0].mxu0 %v5465
        %v6162 = vpop.f32.mrb[0].mxu0
        %v6163 = vadd.f32 0.0, %v6162
        %v6164 = vpop.f32.mrb[0].mxu0
        %v6165 = vpop.f32.mrb[0].mxu0
        %v6166 = vadd.f32 0.0, %v6165
        %v6167 = vpop.f32.mrb[0].mxu0
        %6168 = vmatprep.mubr.bf16.mxu0 %v5678
        %6169 = vmatmul.mubr.bf16.gmra.mrb[0].mxu0 %v5466
        %v6170 = vpop.f32.mrb[0].mxu0
        %v6171 = vadd.f32 0.0, %v6170
        %v6172 = vpop.f32.mrb[0].mxu0
        %v6173 = vpop.f32.mrb[0].mxu0
        %v6174 = vadd.f32 0.0, %v6173
        %v6175 = vpop.f32.mrb[0].mxu0
        %6176 = vmatprep.mubr.bf16.mxu0 %v5690
        %6177 = vmatmul.mubr.bf16.gmra.mrb[0].mxu0 %v5467
        %v6178 = vpop.f32.mrb[0].mxu0
        %v6179 = vadd.f32 0.0, %v6178
        %v6180 = vpop.f32.mrb[0].mxu0
        %v6181 = vpop.f32.mrb[0].mxu0
        %v6182 = vadd.f32 0.0, %v6181
        %v6183 = vpop.f32.mrb[0].mxu0
        %6184 = vmatprep.mubr.bf16.mxu0 %v5702
        %6185 = vmatmul.mubr.bf16.gmra.mrb[0].mxu0 %v5468
        %v6186 = vpop.f32.mrb[0].mxu0
        %v6187 = vadd.f32 0.0, %v6186
        %v6188 = vpop.f32.mrb[0].mxu0
        %v6189 = vpop.f32.mrb[0].mxu0
        %v6190 = vadd.f32 0.0, %v6189
        %v6191 = vpop.f32.mrb[0].mxu0
        %6192 = vmatprep.mubr.bf16.mxu0 %v5714
        %6193 = vmatmul.mubr.bf16.gmra.mrb[0].mxu0 %v5469
        %v6194 = vpop.f32.mrb[0].mxu0
        %v6195 = vadd.f32 0.0, %v6194
        %v6196 = vpop.f32.mrb[0].mxu0
        %v6197 = vpop.f32.mrb[0].mxu0
        %v6198 = vadd.f32 0.0, %v6197
        %v6199 = vpop.f32.mrb[0].mxu0
        %6200 = vmatprep.mubr.bf16.mxu0 %v5726
        %6201 = vmatmul.mubr.bf16.gmra.mrb[0].mxu0 %v5470
        %v6202 = vpop.f32.mrb[0].mxu0
        %v6203 = vadd.f32 0.0, %v6202
        %v6204 = vpop.f32.mrb[0].mxu0
        %v6205 = vpop.f32.mrb[0].mxu0
        %v6206 = vadd.f32 0.0, %v6205
        %v6207 = vpop.f32.mrb[0].mxu0
        %6208 = vdwg.mxu0
        %6209 = vmatprep.subr.bf16.mxu0 0
        %6210 = vmatpush1.bf16.msra.mxu0 %v6016
        %6211 = vmatprep.subr.bf16.mxu0 0
        %6212 = vmatpush1.bf16.msra.mxu0 %v6017
        %6213 = vmatprep.subr.bf16.mxu0 0
        %6214 = vmatpush1.bf16.msra.mxu0 %v6018
        %6215 = vmatprep.subr.bf16.mxu0 0
        %6216 = vmatpush1.bf16.msra.mxu0 %v6019
        %6217 = vmatprep.subr.bf16.mxu0 0
        %6218 = vmatpush1.bf16.msra.mxu0 %v6020
        %6219 = vmatprep.subr.bf16.mxu0 0
        %6220 = vmatpush1.bf16.msra.mxu0 %v6021
        %6221 = vmatprep.subr.bf16.mxu0 0
        %6222 = vmatpush1.bf16.msra.mxu0 %v6022
        %6223 = vmatprep.subr.bf16.mxu0 0
        %6224 = vmatpush1.bf16.msra.mxu0 %v6023
        %6225 = vmatprep.subr.bf16.mxu0 0
        %6226 = vmatpush1.bf16.msra.mxu0 0
        %6227 = vmatprep.subr.bf16.mxu0 0
        %6228 = vmatpush1.bf16.msra.mxu0 0
        %6229 = vmatprep.subr.bf16.mxu0 0
        %6230 = vmatpush1.bf16.msra.mxu0 0
        %6231 = vmatprep.subr.bf16.mxu0 0
        %6232 = vmatpush1.bf16.msra.mxu0 0
        %6233 = vmatprep.subr.bf16.mxu0 0
        %6234 = vmatpush1.bf16.msra.mxu0 0
        %6235 = vmatprep.subr.bf16.mxu0 0
        %6236 = vmatpush1.bf16.msra.mxu0 0
        %6237 = vmatprep.subr.bf16.mxu0 0
        %6238 = vmatpush1.bf16.msra.mxu0 0
        %6239 = vmatprep.subr.bf16.mxu0 0
        %6240 = vmatpush1.bf16.msra.mxu0 0
        %6241 = vmatprep.mubr.bf16.mxu0 0
        %6242 = vmatmul.mubr.bf16.gmra.mrb[0].mxu0 %v5793
        %v6243 = vpop.f32.mrb[0].mxu0
        %v6244 = vadd.f32 %v6083, %v6243
        %v6245 = vpop.f32.mrb[0].mxu0
        %v6246 = vpop.f32.mrb[0].mxu0
        %v6247 = vadd.f32 %v6086, %v6246
        %v6248 = vpop.f32.mrb[0].mxu0
        %6249 = vmatprep.mubr.bf16.mxu0 0
        %6250 = vmatmul.mubr.bf16.gmra.mrb[0].mxu0 %v5796
        %v6251 = vpop.f32.mrb[0].mxu0
        %v6252 = vadd.f32 %v6091, %v6251
        %v6253 = vpop.f32.mrb[0].mxu0
        %v6254 = vpop.f32.mrb[0].mxu0
        %v6255 = vadd.f32 %v6094, %v6254
        %v6256 = vpop.f32.mrb[0].mxu0
        %6257 = vmatprep.mubr.bf16.mxu0 0
        %6258 = vmatmul.mubr.bf16.gmra.mrb[0].mxu0 %v5799
        %v6259 = vpop.f32.mrb[0].mxu0
        %v6260 = vadd.f32 %v6099, %v6259
        %v6261 = vpop.f32.mrb[0].mxu0
        %v6262 = vpop.f32.mrb[0].mxu0
        %v6263 = vadd.f32 %v6102, %v6262
        %v6264 = vpop.f32.mrb[0].mxu0
        %6265 = vmatprep.mubr.bf16.mxu0 0
        %6266 = vmatmul.mubr.bf16.gmra.mrb[0].mxu0 %v5802
        %v6267 = vpop.f32.mrb[0].mxu0
        %v6268 = vadd.f32 %v6107, %v6267
        %v6269 = vpop.f32.mrb[0].mxu0
        %v6270 = vpop.f32.mrb[0].mxu0
        %v6271 = vadd.f32 %v6110, %v6270
        %v6272 = vpop.f32.mrb[0].mxu0
        %6273 = vmatprep.mubr.bf16.mxu0 0
        %6274 = vmatmul.mubr.bf16.gmra.mrb[0].mxu0 %v5805
        %v6275 = vpop.f32.mrb[0].mxu0
        %v6276 = vadd.f32 %v6115, %v6275
        %v6277 = vpop.f32.mrb[0].mxu0
        %v6278 = vpop.f32.mrb[0].mxu0
        %v6279 = vadd.f32 %v6118, %v6278
        %v6280 = vpop.f32.mrb[0].mxu0
        %6281 = vmatprep.mubr.bf16.mxu0 0
        %6282 = vmatmul.mubr.bf16.gmra.mrb[0].mxu0 %v5808
        %v6283 = vpop.f32.mrb[0].mxu0
        %v6284 = vadd.f32 %v6123, %v6283
        %v6285 = vpop.f32.mrb[0].mxu0
        %v6286 = vpop.f32.mrb[0].mxu0
        %v6287 = vadd.f32 %v6126, %v6286
        %v6288 = vpop.f32.mrb[0].mxu0
        %6289 = vmatprep.mubr.bf16.mxu0 0
        %6290 = vmatmul.mubr.bf16.gmra.mrb[0].mxu0 %v5811
        %v6291 = vpop.f32.mrb[0].mxu0
        %v6292 = vadd.f32 %v6131, %v6291
        %v6293 = vpop.f32.mrb[0].mxu0
        %v6294 = vpop.f32.mrb[0].mxu0
        %v6295 = vadd.f32 %v6134, %v6294
        %v6296 = vpop.f32.mrb[0].mxu0
        %6297 = vmatprep.mubr.bf16.mxu0 0
        %6298 = vmatmul.mubr.bf16.gmra.mrb[0].mxu0 %v5814
        %v6299 = vpop.f32.mrb[0].mxu0
        %v6300 = vadd.f32 %v6139, %v6299
        %v6301 = vpop.f32.mrb[0].mxu0
        %v6302 = vpop.f32.mrb[0].mxu0
        %v6303 = vadd.f32 %v6142, %v6302
        %v6304 = vpop.f32.mrb[0].mxu0
        %6305 = vmatprep.mubr.bf16.mxu0 0
        %6306 = vmatmul.mubr.bf16.gmra.mrb[0].mxu0 %v5817
        %v6307 = vpop.f32.mrb[0].mxu0
        %v6308 = vadd.f32 %v6147, %v6307
        %v6309 = vpop.f32.mrb[0].mxu0
        %v6310 = vpop.f32.mrb[0].mxu0
        %v6311 = vadd.f32 %v6150, %v6310
        %v6312 = vpop.f32.mrb[0].mxu0
        %6313 = vmatprep.mubr.bf16.mxu0 0
        %6314 = vmatmul.mubr.bf16.gmra.mrb[0].mxu0 %v5820
        %v6315 = vpop.f32.mrb[0].mxu0
        %v6316 = vadd.f32 %v6155, %v6315
        %v6317 = vpop.f32.mrb[0].mxu0
        %v6318 = vpop.f32.mrb[0].mxu0
        %v6319 = vadd.f32 %v6158, %v6318
        %v6320 = vpop.f32.mrb[0].mxu0
        %6321 = vmatprep.mubr.bf16.mxu0 0
        %6322 = vmatmul.mubr.bf16.gmra.mrb[0].mxu0 %v5823
        %v6323 = vpop.f32.mrb[0].mxu0
        %v6324 = vadd.f32 %v6163, %v6323
        %v6325 = vpop.f32.mrb[0].mxu0
        %v6326 = vpop.f32.mrb[0].mxu0
        %v6327 = vadd.f32 %v6166, %v6326
        %v6328 = vpop.f32.mrb[0].mxu0
        %6329 = vmatprep.mubr.bf16.mxu0 0
        %6330 = vmatmul.mubr.bf16.gmra.mrb[0].mxu0 %v5826
        %v6331 = vpop.f32.mrb[0].mxu0
        %v6332 = vadd.f32 %v6171, %v6331
        %v6333 = vpop.f32.mrb[0].mxu0
        %v6334 = vpop.f32.mrb[0].mxu0
        %v6335 = vadd.f32 %v6174, %v6334
        %v6336 = vpop.f32.mrb[0].mxu0
        %6337 = vmatprep.mubr.bf16.mxu0 0
        %6338 = vmatmul.mubr.bf16.gmra.mrb[0].mxu0 %v5829
        %v6339 = vpop.f32.mrb[0].mxu0
        %v6340 = vadd.f32 %v6179, %v6339
        %v6341 = vpop.f32.mrb[0].mxu0
        %v6342 = vpop.f32.mrb[0].mxu0
        %v6343 = vadd.f32 %v6182, %v6342
        %v6344 = vpop.f32.mrb[0].mxu0
        %6345 = vmatprep.mubr.bf16.mxu0 0
        %6346 = vmatmul.mubr.bf16.gmra.mrb[0].mxu0 %v5832
        %v6347 = vpop.f32.mrb[0].mxu0
        %v6348 = vadd.f32 %v6187, %v6347
        %v6349 = vpop.f32.mrb[0].mxu0
        %v6350 = vpop.f32.mrb[0].mxu0
        %v6351 = vadd.f32 %v6190, %v6350
        %v6352 = vpop.f32.mrb[0].mxu0
        %6353 = vmatprep.mubr.bf16.mxu0 0
        %6354 = vmatmul.mubr.bf16.gmra.mrb[0].mxu0 %v5835
        %v6355 = vpop.f32.mrb[0].mxu0
        %v6356 = vadd.f32 %v6195, %v6355
        %v6357 = vpop.f32.mrb[0].mxu0
        %v6358 = vpop.f32.mrb[0].mxu0
        %v6359 = vadd.f32 %v6198, %v6358
        %v6360 = vpop.f32.mrb[0].mxu0
        %6361 = vmatprep.mubr.bf16.mxu0 0
        %6362 = vmatmul.mubr.bf16.gmra.mrb[0].mxu0 %v5838
        %v6363 = vpop.f32.mrb[0].mxu0
        %v6364 = vadd.f32 %v6203, %v6363
        %v6365 = vpop.f32.mrb[0].mxu0
        %v6366 = vpop.f32.mrb[0].mxu0
        %v6367 = vadd.f32 %v6206, %v6366
        %v6368 = vpop.f32.mrb[0].mxu0
        %6369 = vdwg.mxu0
        %v6418 = vunpack.c.l.b16 %v5279
        %v6419 = vunpack.c.l.b16 %v5280
        %v6420 = vunpack.c.l.b16 %v5281
        %v6421 = vunpack.c.l.b16 %v5282
        %v6422 = vunpack.c.l.b16 %v5283
        %v6423 = vunpack.c.l.b16 %v5284
        %v6424 = vunpack.c.l.b16 %v5285
        %v6425 = vunpack.c.l.b16 %v5286
        %v6426 = vunpack.c.l.b16 %v5287
        %v6427 = vunpack.c.l.b16 %v5288
        %v6428 = vunpack.c.l.b16 %v5289
        %v6429 = vunpack.c.l.b16 %v5290
        %v6430 = vunpack.c.l.b16 %v5291
        %v6431 = vunpack.c.l.b16 %v5292
        %v6432 = vunpack.c.l.b16 %v5293
        %v6433 = vunpack.c.l.b16 %v5294
        %v6434 = vunpack.c.l.b16 %v5295
        %v6435 = vunpack.c.l.b16 %v5296
        %v6436 = vunpack.c.l.b16 %v5297
        %v6437 = vunpack.c.l.b16 %v5298
        %v6438 = vunpack.c.l.b16 %v5299
        %v6439 = vunpack.c.l.b16 %v5300
        %v6440 = vunpack.c.l.b16 %v5301
        %v6441 = vunpack.c.l.b16 %v5302
        %v6442 = vunpack.c.l.b16 %v5303
        %v6443 = vunpack.c.l.b16 %v5304
        %v6444 = vunpack.c.l.b16 %v5305
        %v6445 = vunpack.c.l.b16 %v5306
        %v6446 = vunpack.c.l.b16 %v5307
        %v6447 = vunpack.c.l.b16 %v5308
        %v6448 = vunpack.c.l.b16 %v5309
        %v6449 = vunpack.c.l.b16 %v5310
        %v6450 = vunpack.c.l.b16 %v5311
        %v6451 = vunpack.c.l.b16 %v5312
        %v6452 = vunpack.c.l.b16 %v5313
        %v6453 = vunpack.c.l.b16 %v5314
        %v6454 = vunpack.c.l.b16 %v5315
        %v6455 = vunpack.c.l.b16 %v5316
        %v6456 = vunpack.c.l.b16 %v5317
        %v6457 = vunpack.c.l.b16 %v5318
        %v6458 = vunpack.c.l.b16 %v5319
        %v6459 = vunpack.c.l.b16 %v5320
        %v6460 = vunpack.c.l.b16 %v5321
        %v6461 = vunpack.c.l.b16 %v5322
        %v6462 = vunpack.c.l.b16 %v5323
        %v6463 = vunpack.c.l.b16 %v5324
        %v6464 = vunpack.c.l.b16 %v5325
        %v6465 = vunpack.c.l.b16 %v5326
        %v6466 = vpack.c.b16 %v6419, %v6418
        %v6467 = vpack.c.b16 %v6421, %v6420
        %v6468 = vpack.c.b16 %v6423, %v6422
        %v6469 = vpack.c.b16 %v6425, %v6424
        %v6470 = vpack.c.b16 %v6427, %v6426
        %v6471 = vpack.c.b16 %v6429, %v6428
        %v6472 = vpack.c.b16 %v6431, %v6430
        %v6473 = vpack.c.b16 %v6433, %v6432
        %v6474 = vpack.c.b16 %v6435, %v6434
        %v6475 = vpack.c.b16 %v6437, %v6436
        %v6476 = vpack.c.b16 %v6439, %v6438
        %v6477 = vpack.c.b16 %v6441, %v6440
        %v6478 = vpack.c.b16 %v6443, %v6442
        %v6479 = vpack.c.b16 %v6445, %v6444
        %v6480 = vpack.c.b16 %v6447, %v6446
        %v6481 = vpack.c.b16 %v6449, %v6448
        %v6482 = vpack.c.b16 %v6451, %v6450
        %v6483 = vpack.c.b16 %v6453, %v6452
        %v6484 = vpack.c.b16 %v6455, %v6454
        %v6485 = vpack.c.b16 %v6457, %v6456
        %v6486 = vpack.c.b16 %v6459, %v6458
        %v6487 = vpack.c.b16 %v6461, %v6460
        %v6488 = vpack.c.b16 %v6463, %v6462
        %v6489 = vpack.c.b16 %v6465, %v6464
        %6514 = vmatprep.subr.bf16.mxu0 0
        %6515 = vmatpush1.bf16.msra.mxu0 %v6466
        %6516 = vmatprep.subr.bf16.mxu0 0
        %6517 = vmatpush1.bf16.msra.mxu0 %v6467
        %6518 = vmatprep.subr.bf16.mxu0 0
        %6519 = vmatpush1.bf16.msra.mxu0 %v6468
        %6520 = vmatprep.subr.bf16.mxu0 0
        %6521 = vmatpush1.bf16.msra.mxu0 %v6469
        %6522 = vmatprep.subr.bf16.mxu0 0
        %6523 = vmatpush1.bf16.msra.mxu0 %v6470
        %6524 = vmatprep.subr.bf16.mxu0 0
        %6525 = vmatpush1.bf16.msra.mxu0 %v6471
        %6526 = vmatprep.subr.bf16.mxu0 0
        %6527 = vmatpush1.bf16.msra.mxu0 %v6472
        %6528 = vmatprep.subr.bf16.mxu0 0
        %6529 = vmatpush1.bf16.msra.mxu0 %v6473
        %6530 = vmatprep.subr.bf16.mxu0 0
        %6531 = vmatpush1.bf16.msra.mxu0 %v6474
        %6532 = vmatprep.subr.bf16.mxu0 0
        %6533 = vmatpush1.bf16.msra.mxu0 %v6475
        %6534 = vmatprep.subr.bf16.mxu0 0
        %6535 = vmatpush1.bf16.msra.mxu0 %v6476
        %6536 = vmatprep.subr.bf16.mxu0 0
        %6537 = vmatpush1.bf16.msra.mxu0 %v6477
        %6538 = vmatprep.subr.bf16.mxu0 0
        %6539 = vmatpush1.bf16.msra.mxu0 %v6478
        %6540 = vmatprep.subr.bf16.mxu0 0
        %6541 = vmatpush1.bf16.msra.mxu0 %v6479
        %6542 = vmatprep.subr.bf16.mxu0 0
        %6543 = vmatpush1.bf16.msra.mxu0 %v6480
        %6544 = vmatprep.subr.bf16.mxu0 0
        %6545 = vmatpush1.bf16.msra.mxu0 %v6481
        %6546 = vmatprep.mubr.bf16.mxu0 %v4970
        %6547 = vmatmul.mubr.bf16.gmra.mrb[0].mxu0 %v4879
        %v6548 = vpop.f32.mrb[0].mxu0
        %v6549 = vadd.f32 %v6244, %v6548
        %v6550 = vpop.f32.mrb[0].mxu0
        %v6551 = vpop.f32.mrb[0].mxu0
        %v6552 = vadd.f32 %v6247, %v6551
        %v6553 = vpop.f32.mrb[0].mxu0
        %6554 = vmatprep.mubr.bf16.mxu0 %v4982
        %6555 = vmatmul.mubr.bf16.gmra.mrb[0].mxu0 %v4880
        %v6556 = vpop.f32.mrb[0].mxu0
        %v6557 = vadd.f32 %v6252, %v6556
        %v6558 = vpop.f32.mrb[0].mxu0
        %v6559 = vpop.f32.mrb[0].mxu0
        %v6560 = vadd.f32 %v6255, %v6559
        %v6561 = vpop.f32.mrb[0].mxu0
        %6562 = vmatprep.mubr.bf16.mxu0 %v4994
        %6563 = vmatmul.mubr.bf16.gmra.mrb[0].mxu0 %v4881
        %v6564 = vpop.f32.mrb[0].mxu0
        %v6565 = vadd.f32 %v6260, %v6564
        %v6566 = vpop.f32.mrb[0].mxu0
        %v6567 = vpop.f32.mrb[0].mxu0
        %v6568 = vadd.f32 %v6263, %v6567
        %v6569 = vpop.f32.mrb[0].mxu0
        %6570 = vmatprep.mubr.bf16.mxu0 %v5006
        %6571 = vmatmul.mubr.bf16.gmra.mrb[0].mxu0 %v4882
        %v6572 = vpop.f32.mrb[0].mxu0
        %v6573 = vadd.f32 %v6268, %v6572
        %v6574 = vpop.f32.mrb[0].mxu0
        %v6575 = vpop.f32.mrb[0].mxu0
        %v6576 = vadd.f32 %v6271, %v6575
        %v6577 = vpop.f32.mrb[0].mxu0
        %6578 = vmatprep.mubr.bf16.mxu0 %v5018
        %6579 = vmatmul.mubr.bf16.gmra.mrb[0].mxu0 %v4883
        %v6580 = vpop.f32.mrb[0].mxu0
        %v6581 = vadd.f32 %v6276, %v6580
        %v6582 = vpop.f32.mrb[0].mxu0
        %v6583 = vpop.f32.mrb[0].mxu0
        %v6584 = vadd.f32 %v6279, %v6583
        %v6585 = vpop.f32.mrb[0].mxu0
        %6586 = vmatprep.mubr.bf16.mxu0 %v5030
        %6587 = vmatmul.mubr.bf16.gmra.mrb[0].mxu0 %v4884
        %v6588 = vpop.f32.mrb[0].mxu0
        %v6589 = vadd.f32 %v6284, %v6588
        %v6590 = vpop.f32.mrb[0].mxu0
        %v6591 = vpop.f32.mrb[0].mxu0
        %v6592 = vadd.f32 %v6287, %v6591
        %v6593 = vpop.f32.mrb[0].mxu0
        %6594 = vmatprep.mubr.bf16.mxu0 %v5042
        %6595 = vmatmul.mubr.bf16.gmra.mrb[0].mxu0 %v4885
        %v6596 = vpop.f32.mrb[0].mxu0
        %v6597 = vadd.f32 %v6292, %v6596
        %v6598 = vpop.f32.mrb[0].mxu0
        %v6599 = vpop.f32.mrb[0].mxu0
        %v6600 = vadd.f32 %v6295, %v6599
        %v6601 = vpop.f32.mrb[0].mxu0
        %6602 = vmatprep.mubr.bf16.mxu0 %v5054
        %6603 = vmatmul.mubr.bf16.gmra.mrb[0].mxu0 %v4886
        %v6604 = vpop.f32.mrb[0].mxu0
        %v6605 = vadd.f32 %v6300, %v6604
        %v6606 = vpop.f32.mrb[0].mxu0
        %v6607 = vpop.f32.mrb[0].mxu0
        %v6608 = vadd.f32 %v6303, %v6607
        %v6609 = vpop.f32.mrb[0].mxu0
        %6610 = vmatprep.mubr.bf16.mxu0 %v5066
        %6611 = vmatmul.mubr.bf16.gmra.mrb[0].mxu0 %v4887
        %v6612 = vpop.f32.mrb[0].mxu0
        %v6613 = vadd.f32 %v6308, %v6612
        %v6614 = vpop.f32.mrb[0].mxu0
        %v6615 = vpop.f32.mrb[0].mxu0
        %v6616 = vadd.f32 %v6311, %v6615
        %v6617 = vpop.f32.mrb[0].mxu0
        %6618 = vmatprep.mubr.bf16.mxu0 %v5078
        %6619 = vmatmul.mubr.bf16.gmra.mrb[0].mxu0 %v4888
        %v6620 = vpop.f32.mrb[0].mxu0
        %v6621 = vadd.f32 %v6316, %v6620
        %v6622 = vpop.f32.mrb[0].mxu0
        %v6623 = vpop.f32.mrb[0].mxu0
        %v6624 = vadd.f32 %v6319, %v6623
        %v6625 = vpop.f32.mrb[0].mxu0
        %6626 = vmatprep.mubr.bf16.mxu0 %v5090
        %6627 = vmatmul.mubr.bf16.gmra.mrb[0].mxu0 %v4889
        %v6628 = vpop.f32.mrb[0].mxu0
        %v6629 = vadd.f32 %v6324, %v6628
        %v6630 = vpop.f32.mrb[0].mxu0
        %v6631 = vpop.f32.mrb[0].mxu0
        %v6632 = vadd.f32 %v6327, %v6631
        %v6633 = vpop.f32.mrb[0].mxu0
        %6634 = vmatprep.mubr.bf16.mxu0 %v5102
        %6635 = vmatmul.mubr.bf16.gmra.mrb[0].mxu0 %v4890
        %v6636 = vpop.f32.mrb[0].mxu0
        %v6637 = vadd.f32 %v6332, %v6636
        %v6638 = vpop.f32.mrb[0].mxu0
        %v6639 = vpop.f32.mrb[0].mxu0
        %v6640 = vadd.f32 %v6335, %v6639
        %v6641 = vpop.f32.mrb[0].mxu0
        %6642 = vmatprep.mubr.bf16.mxu0 %v5114
        %6643 = vmatmul.mubr.bf16.gmra.mrb[0].mxu0 %v4891
        %v6644 = vpop.f32.mrb[0].mxu0
        %v6645 = vadd.f32 %v6340, %v6644
        %v6646 = vpop.f32.mrb[0].mxu0
        %v6647 = vpop.f32.mrb[0].mxu0
        %v6648 = vadd.f32 %v6343, %v6647
        %v6649 = vpop.f32.mrb[0].mxu0
        %6650 = vmatprep.mubr.bf16.mxu0 %v5126
        %6651 = vmatmul.mubr.bf16.gmra.mrb[0].mxu0 %v4892
        %v6652 = vpop.f32.mrb[0].mxu0
        %v6653 = vadd.f32 %v6348, %v6652
        %v6654 = vpop.f32.mrb[0].mxu0
        %v6655 = vpop.f32.mrb[0].mxu0
        %v6656 = vadd.f32 %v6351, %v6655
        %v6657 = vpop.f32.mrb[0].mxu0
        %6658 = vmatprep.mubr.bf16.mxu0 %v5138
        %6659 = vmatmul.mubr.bf16.gmra.mrb[0].mxu0 %v4893
        %v6660 = vpop.f32.mrb[0].mxu0
        %v6661 = vadd.f32 %v6356, %v6660
        %v6662 = vpop.f32.mrb[0].mxu0
        %v6663 = vpop.f32.mrb[0].mxu0
        %v6664 = vadd.f32 %v6359, %v6663
        %v6665 = vpop.f32.mrb[0].mxu0
        %6666 = vmatprep.mubr.bf16.mxu0 %v5150
        %6667 = vmatmul.mubr.bf16.gmra.mrb[0].mxu0 %v4894
        %v6668 = vpop.f32.mrb[0].mxu0
        %v6669 = vadd.f32 %v6364, %v6668
        %v6670 = vpop.f32.mrb[0].mxu0
        %v6671 = vpop.f32.mrb[0].mxu0
        %v6672 = vadd.f32 %v6367, %v6671
        %v6673 = vpop.f32.mrb[0].mxu0
        %6674 = vdwg.mxu0
        %6675 = vmatprep.subr.bf16.mxu0 0
        %6676 = vmatpush1.bf16.msra.mxu0 %v6482
        %6677 = vmatprep.subr.bf16.mxu0 0
        %6678 = vmatpush1.bf16.msra.mxu0 %v6483
        %6679 = vmatprep.subr.bf16.mxu0 0
        %6680 = vmatpush1.bf16.msra.mxu0 %v6484
        %6681 = vmatprep.subr.bf16.mxu0 0
        %6682 = vmatpush1.bf16.msra.mxu0 %v6485
        %6683 = vmatprep.subr.bf16.mxu0 0
        %6684 = vmatpush1.bf16.msra.mxu0 %v6486
        %6685 = vmatprep.subr.bf16.mxu0 0
        %6686 = vmatpush1.bf16.msra.mxu0 %v6487
        %6687 = vmatprep.subr.bf16.mxu0 0
        %6688 = vmatpush1.bf16.msra.mxu0 %v6488
        %6689 = vmatprep.subr.bf16.mxu0 0
        %6690 = vmatpush1.bf16.msra.mxu0 %v6489
        %6691 = vmatprep.subr.bf16.mxu0 0
        %6692 = vmatpush1.bf16.msra.mxu0 0
        %6693 = vmatprep.subr.bf16.mxu0 0
        %6694 = vmatpush1.bf16.msra.mxu0 0
        %6695 = vmatprep.subr.bf16.mxu0 0
        %6696 = vmatpush1.bf16.msra.mxu0 0
        %6697 = vmatprep.subr.bf16.mxu0 0
        %6698 = vmatpush1.bf16.msra.mxu0 0
        %6699 = vmatprep.subr.bf16.mxu0 0
        %6700 = vmatpush1.bf16.msra.mxu0 0
        %6701 = vmatprep.subr.bf16.mxu0 0
        %6702 = vmatpush1.bf16.msra.mxu0 0
        %6703 = vmatprep.subr.bf16.mxu0 0
        %6704 = vmatpush1.bf16.msra.mxu0 0
        %6705 = vmatprep.subr.bf16.mxu0 0
        %6706 = vmatpush1.bf16.msra.mxu0 0
        %6707 = vmatprep.mubr.bf16.mxu0 0
        %6708 = vmatmul.mubr.bf16.gmra.mrb[0].mxu0 %v5217
        %v6709 = vpop.f32.mrb[0].mxu0
        %v6710 = vadd.f32 %v6549, %v6709
        %v6711 = vpop.f32.mrb[0].mxu0
        %v6712 = vpop.f32.mrb[0].mxu0
        %v6713 = vadd.f32 %v6552, %v6712
        %v6714 = vpop.f32.mrb[0].mxu0
        %6715 = vmatprep.mubr.bf16.mxu0 0
        %6716 = vmatmul.mubr.bf16.gmra.mrb[0].mxu0 %v5220
        %v6717 = vpop.f32.mrb[0].mxu0
        %v6718 = vadd.f32 %v6557, %v6717
        %v6719 = vpop.f32.mrb[0].mxu0
        %v6720 = vpop.f32.mrb[0].mxu0
        %v6721 = vadd.f32 %v6560, %v6720
        %v6722 = vpop.f32.mrb[0].mxu0
        %6723 = vmatprep.mubr.bf16.mxu0 0
        %6724 = vmatmul.mubr.bf16.gmra.mrb[0].mxu0 %v5223
        %v6725 = vpop.f32.mrb[0].mxu0
        %v6726 = vadd.f32 %v6565, %v6725
        %v6727 = vpop.f32.mrb[0].mxu0
        %v6728 = vpop.f32.mrb[0].mxu0
        %v6729 = vadd.f32 %v6568, %v6728
        %v6730 = vpop.f32.mrb[0].mxu0
        %6731 = vmatprep.mubr.bf16.mxu0 0
        %6732 = vmatmul.mubr.bf16.gmra.mrb[0].mxu0 %v5226
        %v6733 = vpop.f32.mrb[0].mxu0
        %v6734 = vadd.f32 %v6573, %v6733
        %v6735 = vpop.f32.mrb[0].mxu0
        %v6736 = vpop.f32.mrb[0].mxu0
        %v6737 = vadd.f32 %v6576, %v6736
        %v6738 = vpop.f32.mrb[0].mxu0
        %6739 = vmatprep.mubr.bf16.mxu0 0
        %6740 = vmatmul.mubr.bf16.gmra.mrb[0].mxu0 %v5229
        %v6741 = vpop.f32.mrb[0].mxu0
        %v6742 = vadd.f32 %v6581, %v6741
        %v6743 = vpop.f32.mrb[0].mxu0
        %v6744 = vpop.f32.mrb[0].mxu0
        %v6745 = vadd.f32 %v6584, %v6744
        %v6746 = vpop.f32.mrb[0].mxu0
        %6747 = vmatprep.mubr.bf16.mxu0 0
        %6748 = vmatmul.mubr.bf16.gmra.mrb[0].mxu0 %v5232
        %v6749 = vpop.f32.mrb[0].mxu0
        %v6750 = vadd.f32 %v6589, %v6749
        %v6751 = vpop.f32.mrb[0].mxu0
        %v6752 = vpop.f32.mrb[0].mxu0
        %v6753 = vadd.f32 %v6592, %v6752
        %v6754 = vpop.f32.mrb[0].mxu0
        %6755 = vmatprep.mubr.bf16.mxu0 0
        %6756 = vmatmul.mubr.bf16.gmra.mrb[0].mxu0 %v5235
        %v6757 = vpop.f32.mrb[0].mxu0
        %v6758 = vadd.f32 %v6597, %v6757
        %v6759 = vpop.f32.mrb[0].mxu0
        %v6760 = vpop.f32.mrb[0].mxu0
        %v6761 = vadd.f32 %v6600, %v6760
        %v6762 = vpop.f32.mrb[0].mxu0
        %6763 = vmatprep.mubr.bf16.mxu0 0
        %6764 = vmatmul.mubr.bf16.gmra.mrb[0].mxu0 %v5238
        %v6765 = vpop.f32.mrb[0].mxu0
        %v6766 = vadd.f32 %v6605, %v6765
        %v6767 = vpop.f32.mrb[0].mxu0
        %v6768 = vpop.f32.mrb[0].mxu0
        %v6769 = vadd.f32 %v6608, %v6768
        %v6770 = vpop.f32.mrb[0].mxu0
        %6771 = vmatprep.mubr.bf16.mxu0 0
        %6772 = vmatmul.mubr.bf16.gmra.mrb[0].mxu0 %v5241
        %v6773 = vpop.f32.mrb[0].mxu0
        %v6774 = vadd.f32 %v6613, %v6773
        %v6775 = vpop.f32.mrb[0].mxu0
        %v6776 = vpop.f32.mrb[0].mxu0
        %v6777 = vadd.f32 %v6616, %v6776
        %v6778 = vpop.f32.mrb[0].mxu0
        %6779 = vmatprep.mubr.bf16.mxu0 0
        %6780 = vmatmul.mubr.bf16.gmra.mrb[0].mxu0 %v5244
        %v6781 = vpop.f32.mrb[0].mxu0
        %v6782 = vadd.f32 %v6621, %v6781
        %v6783 = vpop.f32.mrb[0].mxu0
        %v6784 = vpop.f32.mrb[0].mxu0
        %v6785 = vadd.f32 %v6624, %v6784
        %v6786 = vpop.f32.mrb[0].mxu0
        %6787 = vmatprep.mubr.bf16.mxu0 0
        %6788 = vmatmul.mubr.bf16.gmra.mrb[0].mxu0 %v5247
        %v6789 = vpop.f32.mrb[0].mxu0
        %v6790 = vadd.f32 %v6629, %v6789
        %v6791 = vpop.f32.mrb[0].mxu0
        %v6792 = vpop.f32.mrb[0].mxu0
        %v6793 = vadd.f32 %v6632, %v6792
        %v6794 = vpop.f32.mrb[0].mxu0
        %6795 = vmatprep.mubr.bf16.mxu0 0
        %6796 = vmatmul.mubr.bf16.gmra.mrb[0].mxu0 %v5250
        %v6797 = vpop.f32.mrb[0].mxu0
        %v6798 = vadd.f32 %v6637, %v6797
        %v6799 = vpop.f32.mrb[0].mxu0
        %v6800 = vpop.f32.mrb[0].mxu0
        %v6801 = vadd.f32 %v6640, %v6800
        %v6802 = vpop.f32.mrb[0].mxu0
        %6803 = vmatprep.mubr.bf16.mxu0 0
        %6804 = vmatmul.mubr.bf16.gmra.mrb[0].mxu0 %v5253
        %v6805 = vpop.f32.mrb[0].mxu0
        %v6806 = vadd.f32 %v6645, %v6805
        %v6807 = vpop.f32.mrb[0].mxu0
        %v6808 = vpop.f32.mrb[0].mxu0
        %v6809 = vadd.f32 %v6648, %v6808
        %v6810 = vpop.f32.mrb[0].mxu0
        %6811 = vmatprep.mubr.bf16.mxu0 0
        %6812 = vmatmul.mubr.bf16.gmra.mrb[0].mxu0 %v5256
        %v6813 = vpop.f32.mrb[0].mxu0
        %v6814 = vadd.f32 %v6653, %v6813
        %v6815 = vpop.f32.mrb[0].mxu0
        %v6816 = vpop.f32.mrb[0].mxu0
        %v6817 = vadd.f32 %v6656, %v6816
        %v6818 = vpop.f32.mrb[0].mxu0
        %6819 = vmatprep.mubr.bf16.mxu0 0
        %6820 = vmatmul.mubr.bf16.gmra.mrb[0].mxu0 %v5259
        %v6821 = vpop.f32.mrb[0].mxu0
        %v6822 = vadd.f32 %v6661, %v6821
        %v6823 = vpop.f32.mrb[0].mxu0
        %v6824 = vpop.f32.mrb[0].mxu0
        %v6825 = vadd.f32 %v6664, %v6824
        %v6826 = vpop.f32.mrb[0].mxu0
        %6827 = vmatprep.mubr.bf16.mxu0 0
        %6828 = vmatmul.mubr.bf16.gmra.mrb[0].mxu0 %v5262
        %v6829 = vpop.f32.mrb[0].mxu0
        %v6830 = vadd.f32 %v6669, %v6829
        %v6831 = vpop.f32.mrb[0].mxu0
        %v6832 = vpop.f32.mrb[0].mxu0
        %v6833 = vadd.f32 %v6672, %v6832
        %v6834 = vpop.f32.mrb[0].mxu0
        %6835 = vdwg.mxu0
        %v6836 = vld [vmem:[%s2925] sm:$0xf]
        %v6837 = vld [vmem:[%s2925 + $0x4] sm:$0xf]
        %v6838 = vld [vmem:[%s2925 + $0xc] sm:$0xf]
        %v6839 = vld [vmem:[%s2925 + $0x10] sm:$0xf]
        %v6840 = vld [vmem:[%s2925 + $0x18] sm:$0xf]
        %v6841 = vld [vmem:[%s2925 + $0x1c] sm:$0xf]
        %v6842 = vld [vmem:[%s2925 + $0x24] sm:$0xf]
        %v6843 = vld [vmem:[%s2925 + $0x28] sm:$0xf]
        %v6844 = vld [vmem:[%s2925 + $0x30] sm:$0xf]
        %v6845 = vld [vmem:[%s2925 + $0x34] sm:$0xf]
        %v6846 = vld [vmem:[%s2925 + $0x3c] sm:$0xf]
        %v6847 = vld [vmem:[%s2925 + $0x40] sm:$0xf]
        %v6848 = vld [vmem:[%s2925 + $0x48] sm:$0xf]
        %v6849 = vld [vmem:[%s2925 + $0x4c] sm:$0xf]
        %v6850 = vld [vmem:[%s2925 + $0x54] sm:$0xf]
        %v6851 = vld [vmem:[%s2925 + $0x58] sm:$0xf]
        %v6852 = vld [vmem:[%s2925 + $0x60] sm:$0xf]
        %v6853 = vld [vmem:[%s2925 + $0x64] sm:$0xf]
        %v6854 = vld [vmem:[%s2925 + $0x6c] sm:$0xf]
        %v6855 = vld [vmem:[%s2925 + $0x70] sm:$0xf]
        %v6856 = vld [vmem:[%s2925 + $0x78] sm:$0xf]
        %v6857 = vld [vmem:[%s2925 + $0x7c] sm:$0xf]
        %v6858 = vld [vmem:[%s2925 + $0x84] sm:$0xf]
        %v6859 = vld [vmem:[%s2925 + $0x88] sm:$0xf]
        %v6860 = vld [vmem:[%s2925 + $0x90] sm:$0xf]
        %v6861 = vld [vmem:[%s2925 + $0x94] sm:$0xf]
        %v6862 = vld [vmem:[%s2925 + $0x9c] sm:$0xf]
        %v6863 = vld [vmem:[%s2925 + $0xa0] sm:$0xf]
        %v6864 = vld [vmem:[%s2925 + $0xa8] sm:$0xf]
        %v6865 = vld [vmem:[%s2925 + $0xac] sm:$0xf]
        %v6866 = vld [vmem:[%s2925 + $0xb4] sm:$0xf]
        %v6867 = vld [vmem:[%s2925 + $0xb8] sm:$0xf]
        %v6868 = vld [vmem:[%s2925 + $0x8] sm:$0x1]
        %v6869 = vld [vmem:[%s2925 + $0x14] sm:$0x1]
        %v6870 = vld [vmem:[%s2925 + $0x20] sm:$0x1]
        %v6871 = vld [vmem:[%s2925 + $0x2c] sm:$0x1]
        %v6872 = vld [vmem:[%s2925 + $0x38] sm:$0x1]
        %v6873 = vld [vmem:[%s2925 + $0x44] sm:$0x1]
        %v6874 = vld [vmem:[%s2925 + $0x50] sm:$0x1]
        %v6875 = vld [vmem:[%s2925 + $0x5c] sm:$0x1]
        %v6876 = vld [vmem:[%s2925 + $0x68] sm:$0x1]
        %v6877 = vld [vmem:[%s2925 + $0x74] sm:$0x1]
        %v6878 = vld [vmem:[%s2925 + $0x80] sm:$0x1]
        %v6879 = vld [vmem:[%s2925 + $0x8c] sm:$0x1]
        %v6880 = vld [vmem:[%s2925 + $0x98] sm:$0x1]
        %v6881 = vld [vmem:[%s2925 + $0xa4] sm:$0x1]
        %v6882 = vld [vmem:[%s2925 + $0xb0] sm:$0x1]
        %v6883 = vld [vmem:[%s2925 + $0xbc] sm:$0x1]
        %v6884 = vld [vmem:[%s2925] sm:$0xe]
        %v6885 = vld [vmem:[%s2925 + $0xc] sm:$0xe]
        %v6886 = vld [vmem:[%s2925 + $0x18] sm:$0xe]
        %v6887 = vld [vmem:[%s2925 + $0x24] sm:$0xe]
        %v6888 = vld [vmem:[%s2925 + $0x30] sm:$0xe]
        %v6889 = vld [vmem:[%s2925 + $0x3c] sm:$0xe]
        %v6890 = vld [vmem:[%s2925 + $0x48] sm:$0xe]
        %v6891 = vld [vmem:[%s2925 + $0x54] sm:$0xe]
        %v6892 = vld [vmem:[%s2925 + $0x60] sm:$0xe]
        %v6893 = vld [vmem:[%s2925 + $0x6c] sm:$0xe]
        %v6894 = vld [vmem:[%s2925 + $0x78] sm:$0xe]
        %v6895 = vld [vmem:[%s2925 + $0x84] sm:$0xe]
        %v6896 = vld [vmem:[%s2925 + $0x90] sm:$0xe]
        %v6897 = vld [vmem:[%s2925 + $0x9c] sm:$0xe]
        %v6898 = vld [vmem:[%s2925 + $0xa8] sm:$0xe]
        %v6899 = vld [vmem:[%s2925 + $0xb4] sm:$0xe]
        %v6932 = vunpack.c.l.b16 %v6836
        %v6933 = vunpack.c.l.b16 %v6837
        %v6934 = vunpack.c.l.b16 %v6838
        %v6935 = vunpack.c.l.b16 %v6839
        %v6936 = vunpack.c.l.b16 %v6840
        %v6937 = vunpack.c.l.b16 %v6841
        %v6938 = vunpack.c.l.b16 %v6842
        %v6939 = vunpack.c.l.b16 %v6843
        %v6940 = vunpack.c.l.b16 %v6844
        %v6941 = vunpack.c.l.b16 %v6845
        %v6942 = vunpack.c.l.b16 %v6846
        %v6943 = vunpack.c.l.b16 %v6847
        %v6944 = vunpack.c.l.b16 %v6848
        %v6945 = vunpack.c.l.b16 %v6849
        %v6946 = vunpack.c.l.b16 %v6850
        %v6947 = vunpack.c.l.b16 %v6851
        %v6948 = vunpack.c.l.b16 %v6852
        %v6949 = vunpack.c.l.b16 %v6853
        %v6950 = vunpack.c.l.b16 %v6854
        %v6951 = vunpack.c.l.b16 %v6855
        %v6952 = vunpack.c.l.b16 %v6856
        %v6953 = vunpack.c.l.b16 %v6857
        %v6954 = vunpack.c.l.b16 %v6858
        %v6955 = vunpack.c.l.b16 %v6859
        %v6956 = vunpack.c.l.b16 %v6860
        %v6957 = vunpack.c.l.b16 %v6861
        %v6958 = vunpack.c.l.b16 %v6862
        %v6959 = vunpack.c.l.b16 %v6863
        %v6960 = vunpack.c.l.b16 %v6864
        %v6961 = vunpack.c.l.b16 %v6865
        %v6962 = vunpack.c.l.b16 %v6866
        %v6963 = vunpack.c.l.b16 %v6867
        %v6964 = vpack.c.b16 %v6933, %v6932
        %v6965 = vpack.c.b16 %v6935, %v6934
        %v6966 = vpack.c.b16 %v6937, %v6936
        %v6967 = vpack.c.b16 %v6939, %v6938
        %v6968 = vpack.c.b16 %v6941, %v6940
        %v6969 = vpack.c.b16 %v6943, %v6942
        %v6970 = vpack.c.b16 %v6945, %v6944
        %v6971 = vpack.c.b16 %v6947, %v6946
        %v6972 = vpack.c.b16 %v6949, %v6948
        %v6973 = vpack.c.b16 %v6951, %v6950
        %v6974 = vpack.c.b16 %v6953, %v6952
        %v6975 = vpack.c.b16 %v6955, %v6954
        %v6976 = vpack.c.b16 %v6957, %v6956
        %v6977 = vpack.c.b16 %v6959, %v6958
        %v6978 = vpack.c.b16 %v6961, %v6960
        %v6979 = vpack.c.b16 %v6963, %v6962
        %v7012 = vunpack.c.l.b16 %v6868
        %v7013 = vunpack.c.l.b16 %v6869
        %v7014 = vunpack.c.l.b16 %v6870
        %v7015 = vunpack.c.l.b16 %v6871
        %v7016 = vunpack.c.l.b16 %v6872
        %v7017 = vunpack.c.l.b16 %v6873
        %v7018 = vunpack.c.l.b16 %v6874
        %v7019 = vunpack.c.l.b16 %v6875
        %v7020 = vunpack.c.l.b16 %v6876
        %v7021 = vunpack.c.l.b16 %v6877
        %v7022 = vunpack.c.l.b16 %v6878
        %v7023 = vunpack.c.l.b16 %v6879
        %v7024 = vunpack.c.l.b16 %v6880
        %v7025 = vunpack.c.l.b16 %v6881
        %v7026 = vunpack.c.l.b16 %v6882
        %v7027 = vunpack.c.l.b16 %v6883
        %v7028 = vpack.c.b16 %v7012, %v7012
        %v7029 = vpack.c.b16 %v7013, %v7013
        %v7030 = vpack.c.b16 %v7014, %v7014
        %v7031 = vpack.c.b16 %v7015, %v7015
        %v7032 = vpack.c.b16 %v7016, %v7016
        %v7033 = vpack.c.b16 %v7017, %v7017
        %v7034 = vpack.c.b16 %v7018, %v7018
        %v7035 = vpack.c.b16 %v7019, %v7019
        %v7036 = vpack.c.b16 %v7020, %v7020
        %v7037 = vpack.c.b16 %v7021, %v7021
        %v7038 = vpack.c.b16 %v7022, %v7022
        %v7039 = vpack.c.b16 %v7023, %v7023
        %v7040 = vpack.c.b16 %v7024, %v7024
        %v7041 = vpack.c.b16 %v7025, %v7025
        %v7042 = vpack.c.b16 %v7026, %v7026
        %v7043 = vpack.c.b16 %v7027, %v7027
        %v7045 = vshrl.u32 %v6964, 16
        %v7047 = vshll.u32 %v6964, 16
        %v7049 = vrot.slane %v7047, 1
        %v7050 = vor.u32 %v7045, %v7049
        %v7052 = vshll.u32 %v7028, 16
        %v7054 = vrot.slane %v7052, 1
        %v7055 = vsel %vm1045, %v7050, %v7054
        %v7057 = vshrl.u32 %v6965, 16
        %v7059 = vshll.u32 %v6965, 16
        %v7061 = vrot.slane %v7059, 1
        %v7062 = vor.u32 %v7057, %v7061
        %v7064 = vshll.u32 %v7029, 16
        %v7066 = vrot.slane %v7064, 1
        %v7067 = vsel %vm1045, %v7062, %v7066
        %v7069 = vshrl.u32 %v6966, 16
        %v7071 = vshll.u32 %v6966, 16
        %v7073 = vrot.slane %v7071, 1
        %v7074 = vor.u32 %v7069, %v7073
        %v7076 = vshll.u32 %v7030, 16
        %v7078 = vrot.slane %v7076, 1
        %v7079 = vsel %vm1045, %v7074, %v7078
        %v7081 = vshrl.u32 %v6967, 16
        %v7083 = vshll.u32 %v6967, 16
        %v7085 = vrot.slane %v7083, 1
        %v7086 = vor.u32 %v7081, %v7085
        %v7088 = vshll.u32 %v7031, 16
        %v7090 = vrot.slane %v7088, 1
        %v7091 = vsel %vm1045, %v7086, %v7090
        %v7093 = vshrl.u32 %v6968, 16
        %v7095 = vshll.u32 %v6968, 16
        %v7097 = vrot.slane %v7095, 1
        %v7098 = vor.u32 %v7093, %v7097
        %v7100 = vshll.u32 %v7032, 16
        %v7102 = vrot.slane %v7100, 1
        %v7103 = vsel %vm1045, %v7098, %v7102
        %v7105 = vshrl.u32 %v6969, 16
        %v7107 = vshll.u32 %v6969, 16
        %v7109 = vrot.slane %v7107, 1
        %v7110 = vor.u32 %v7105, %v7109
        %v7112 = vshll.u32 %v7033, 16
        %v7114 = vrot.slane %v7112, 1
        %v7115 = vsel %vm1045, %v7110, %v7114
        %v7117 = vshrl.u32 %v6970, 16
        %v7119 = vshll.u32 %v6970, 16
        %v7121 = vrot.slane %v7119, 1
        %v7122 = vor.u32 %v7117, %v7121
        %v7124 = vshll.u32 %v7034, 16
        %v7126 = vrot.slane %v7124, 1
        %v7127 = vsel %vm1045, %v7122, %v7126
        %v7129 = vshrl.u32 %v6971, 16
        %v7131 = vshll.u32 %v6971, 16
        %v7133 = vrot.slane %v7131, 1
        %v7134 = vor.u32 %v7129, %v7133
        %v7136 = vshll.u32 %v7035, 16
        %v7138 = vrot.slane %v7136, 1
        %v7139 = vsel %vm1045, %v7134, %v7138
        %v7141 = vshrl.u32 %v6972, 16
        %v7143 = vshll.u32 %v6972, 16
        %v7145 = vrot.slane %v7143, 1
        %v7146 = vor.u32 %v7141, %v7145
        %v7148 = vshll.u32 %v7036, 16
        %v7150 = vrot.slane %v7148, 1
        %v7151 = vsel %vm1045, %v7146, %v7150
        %v7153 = vshrl.u32 %v6973, 16
        %v7155 = vshll.u32 %v6973, 16
        %v7157 = vrot.slane %v7155, 1
        %v7158 = vor.u32 %v7153, %v7157
        %v7160 = vshll.u32 %v7037, 16
        %v7162 = vrot.slane %v7160, 1
        %v7163 = vsel %vm1045, %v7158, %v7162
        %v7165 = vshrl.u32 %v6974, 16
        %v7167 = vshll.u32 %v6974, 16
        %v7169 = vrot.slane %v7167, 1
        %v7170 = vor.u32 %v7165, %v7169
        %v7172 = vshll.u32 %v7038, 16
        %v7174 = vrot.slane %v7172, 1
        %v7175 = vsel %vm1045, %v7170, %v7174
        %v7177 = vshrl.u32 %v6975, 16
        %v7179 = vshll.u32 %v6975, 16
        %v7181 = vrot.slane %v7179, 1
        %v7182 = vor.u32 %v7177, %v7181
        %v7184 = vshll.u32 %v7039, 16
        %v7186 = vrot.slane %v7184, 1
        %v7187 = vsel %vm1045, %v7182, %v7186
        %v7189 = vshrl.u32 %v6976, 16
        %v7191 = vshll.u32 %v6976, 16
        %v7193 = vrot.slane %v7191, 1
        %v7194 = vor.u32 %v7189, %v7193
        %v7196 = vshll.u32 %v7040, 16
        %v7198 = vrot.slane %v7196, 1
        %v7199 = vsel %vm1045, %v7194, %v7198
        %v7201 = vshrl.u32 %v6977, 16
        %v7203 = vshll.u32 %v6977, 16
        %v7205 = vrot.slane %v7203, 1
        %v7206 = vor.u32 %v7201, %v7205
        %v7208 = vshll.u32 %v7041, 16
        %v7210 = vrot.slane %v7208, 1
        %v7211 = vsel %vm1045, %v7206, %v7210
        %v7213 = vshrl.u32 %v6978, 16
        %v7215 = vshll.u32 %v6978, 16
        %v7217 = vrot.slane %v7215, 1
        %v7218 = vor.u32 %v7213, %v7217
        %v7220 = vshll.u32 %v7042, 16
        %v7222 = vrot.slane %v7220, 1
        %v7223 = vsel %vm1045, %v7218, %v7222
        %v7225 = vshrl.u32 %v6979, 16
        %v7227 = vshll.u32 %v6979, 16
        %v7229 = vrot.slane %v7227, 1
        %v7230 = vor.u32 %v7225, %v7229
        %v7232 = vshll.u32 %v7043, 16
        %v7234 = vrot.slane %v7232, 1
        %v7235 = vsel %vm1045, %v7230, %v7234
        %v7268 = vunpack.c.l.b16 %v6884
        %v7269 = vunpack.c.l.b16 %v6885
        %v7270 = vunpack.c.l.b16 %v6886
        %v7271 = vunpack.c.l.b16 %v6887
        %v7272 = vunpack.c.l.b16 %v6888
        %v7273 = vunpack.c.l.b16 %v6889
        %v7274 = vunpack.c.l.b16 %v6890
        %v7275 = vunpack.c.l.b16 %v6891
        %v7276 = vunpack.c.l.b16 %v6892
        %v7277 = vunpack.c.l.b16 %v6893
        %v7278 = vunpack.c.l.b16 %v6894
        %v7279 = vunpack.c.l.b16 %v6895
        %v7280 = vunpack.c.l.b16 %v6896
        %v7281 = vunpack.c.l.b16 %v6897
        %v7282 = vunpack.c.l.b16 %v6898
        %v7283 = vunpack.c.l.b16 %v6899
        %v7284 = vpack.c.b16 %v6933, %v7268
        %v7285 = vpack.c.b16 %v6935, %v7269
        %v7286 = vpack.c.b16 %v6937, %v7270
        %v7287 = vpack.c.b16 %v6939, %v7271
        %v7288 = vpack.c.b16 %v6941, %v7272
        %v7289 = vpack.c.b16 %v6943, %v7273
        %v7290 = vpack.c.b16 %v6945, %v7274
        %v7291 = vpack.c.b16 %v6947, %v7275
        %v7292 = vpack.c.b16 %v6949, %v7276
        %v7293 = vpack.c.b16 %v6951, %v7277
        %v7294 = vpack.c.b16 %v6953, %v7278
        %v7295 = vpack.c.b16 %v6955, %v7279
        %v7296 = vpack.c.b16 %v6957, %v7280
        %v7297 = vpack.c.b16 %v6959, %v7281
        %v7298 = vpack.c.b16 %v6961, %v7282
        %v7299 = vpack.c.b16 %v6963, %v7283
        %v7300 = vrot.slane %v7284, 1
        %v7301 = vrot.slane %v7028, 1
        %v7302 = vsel %vm1302, %v7300, %v7301
        %v7303 = vrot.slane %v7285, 1
        %v7304 = vrot.slane %v7029, 1
        %v7305 = vsel %vm1302, %v7303, %v7304
        %v7306 = vrot.slane %v7286, 1
        %v7307 = vrot.slane %v7030, 1
        %v7308 = vsel %vm1302, %v7306, %v7307
        %v7309 = vrot.slane %v7287, 1
        %v7310 = vrot.slane %v7031, 1
        %v7311 = vsel %vm1302, %v7309, %v7310
        %v7312 = vrot.slane %v7288, 1
        %v7313 = vrot.slane %v7032, 1
        %v7314 = vsel %vm1302, %v7312, %v7313
        %v7315 = vrot.slane %v7289, 1
        %v7316 = vrot.slane %v7033, 1
        %v7317 = vsel %vm1302, %v7315, %v7316
        %v7318 = vrot.slane %v7290, 1
        %v7319 = vrot.slane %v7034, 1
        %v7320 = vsel %vm1302, %v7318, %v7319
        %v7321 = vrot.slane %v7291, 1
        %v7322 = vrot.slane %v7035, 1
        %v7323 = vsel %vm1302, %v7321, %v7322
        %v7324 = vrot.slane %v7292, 1
        %v7325 = vrot.slane %v7036, 1
        %v7326 = vsel %vm1302, %v7324, %v7325
        %v7327 = vrot.slane %v7293, 1
        %v7328 = vrot.slane %v7037, 1
        %v7329 = vsel %vm1302, %v7327, %v7328
        %v7330 = vrot.slane %v7294, 1
        %v7331 = vrot.slane %v7038, 1
        %v7332 = vsel %vm1302, %v7330, %v7331
        %v7333 = vrot.slane %v7295, 1
        %v7334 = vrot.slane %v7039, 1
        %v7335 = vsel %vm1302, %v7333, %v7334
        %v7336 = vrot.slane %v7296, 1
        %v7337 = vrot.slane %v7040, 1
        %v7338 = vsel %vm1302, %v7336, %v7337
        %v7339 = vrot.slane %v7297, 1
        %v7340 = vrot.slane %v7041, 1
        %v7341 = vsel %vm1302, %v7339, %v7340
        %v7342 = vrot.slane %v7298, 1
        %v7343 = vrot.slane %v7042, 1
        %v7344 = vsel %vm1302, %v7342, %v7343
        %v7345 = vrot.slane %v7299, 1
        %v7346 = vrot.slane %v7043, 1
        %v7347 = vsel %vm1302, %v7345, %v7346
        %s7364 = scalar_lea.vmem [#allocation9], 384
        %v7365 = vld [vmem:[%s7364] sm:$0xf]
        %v7366 = vld [vmem:[%s7364 + $0x4] sm:$0xf]
        %v7367 = vld [vmem:[%s7364 + $0x8] sm:$0xf]
        %v7368 = vld [vmem:[%s7364 + $0xc] sm:$0xf]
        %v7369 = vld [vmem:[%s7364 + $0x10] sm:$0xf]
        %v7370 = vld [vmem:[%s7364 + $0x14] sm:$0xf]
        %v7371 = vld [vmem:[%s7364 + $0x18] sm:$0xf]
        %v7372 = vld [vmem:[%s7364 + $0x1c] sm:$0xf]
        %v7373 = vld [vmem:[%s7364 + $0x20] sm:$0xf]
        %v7374 = vld [vmem:[%s7364 + $0x24] sm:$0xf]
        %v7375 = vld [vmem:[%s7364 + $0x28] sm:$0xf]
        %v7376 = vld [vmem:[%s7364 + $0x2c] sm:$0xf]
        %v7377 = vld [vmem:[%s7364 + $0x30] sm:$0xf]
        %v7378 = vld [vmem:[%s7364 + $0x34] sm:$0xf]
        %v7379 = vld [vmem:[%s7364 + $0x38] sm:$0xf]
        %v7380 = vld [vmem:[%s7364 + $0x3c] sm:$0xf]
        %v7381 = vld [vmem:[%s7364 + $0x40] sm:$0xf]
        %v7382 = vld [vmem:[%s7364 + $0x44] sm:$0xf]
        %v7383 = vld [vmem:[%s7364 + $0x48] sm:$0xf]
        %v7384 = vld [vmem:[%s7364 + $0x4c] sm:$0xf]
        %v7385 = vld [vmem:[%s7364 + $0x50] sm:$0xf]
        %v7386 = vld [vmem:[%s7364 + $0x54] sm:$0xf]
        %v7387 = vld [vmem:[%s7364 + $0x58] sm:$0xf]
        %v7388 = vld [vmem:[%s7364 + $0x5c] sm:$0xf]
        %v7389 = vld [vmem:[%s7364 + $0x60] sm:$0xf]
        %v7390 = vld [vmem:[%s7364 + $0x64] sm:$0xf]
        %v7391 = vld [vmem:[%s7364 + $0x68] sm:$0xf]
        %v7392 = vld [vmem:[%s7364 + $0x6c] sm:$0xf]
        %v7393 = vld [vmem:[%s7364 + $0x70] sm:$0xf]
        %v7394 = vld [vmem:[%s7364 + $0x74] sm:$0xf]
        %v7395 = vld [vmem:[%s7364 + $0x78] sm:$0xf]
        %v7396 = vld [vmem:[%s7364 + $0x7c] sm:$0xf]
        %v7397 = vld [vmem:[%s7364 + $0x80] sm:$0xf]
        %v7398 = vld [vmem:[%s7364 + $0x84] sm:$0xf]
        %v7399 = vld [vmem:[%s7364 + $0x88] sm:$0xf]
        %v7400 = vld [vmem:[%s7364 + $0x8c] sm:$0xf]
        %v7401 = vld [vmem:[%s7364 + $0x90] sm:$0xf]
        %v7402 = vld [vmem:[%s7364 + $0x94] sm:$0xf]
        %v7403 = vld [vmem:[%s7364 + $0x98] sm:$0xf]
        %v7404 = vld [vmem:[%s7364 + $0x9c] sm:$0xf]
        %v7405 = vld [vmem:[%s7364 + $0xa0] sm:$0xf]
        %v7406 = vld [vmem:[%s7364 + $0xa4] sm:$0xf]
        %v7407 = vld [vmem:[%s7364 + $0xa8] sm:$0xf]
        %v7408 = vld [vmem:[%s7364 + $0xac] sm:$0xf]
        %v7409 = vld [vmem:[%s7364 + $0xb0] sm:$0xf]
        %v7410 = vld [vmem:[%s7364 + $0xb4] sm:$0xf]
        %v7411 = vld [vmem:[%s7364 + $0xb8] sm:$0xf]
        %v7412 = vld [vmem:[%s7364 + $0xbc] sm:$0xf]
        %v7461 = vunpack.c.l.b16 %v7365
        %v7462 = vunpack.c.l.b16 %v7366
        %v7463 = vunpack.c.l.b16 %v7367
        %v7464 = vunpack.c.l.b16 %v7368
        %v7465 = vunpack.c.l.b16 %v7369
        %v7466 = vunpack.c.l.b16 %v7370
        %v7467 = vunpack.c.l.b16 %v7371
        %v7468 = vunpack.c.l.b16 %v7372
        %v7469 = vunpack.c.l.b16 %v7373
        %v7470 = vunpack.c.l.b16 %v7374
        %v7471 = vunpack.c.l.b16 %v7375
        %v7472 = vunpack.c.l.b16 %v7376
        %v7473 = vunpack.c.l.b16 %v7377
        %v7474 = vunpack.c.l.b16 %v7378
        %v7475 = vunpack.c.l.b16 %v7379
        %v7476 = vunpack.c.l.b16 %v7380
        %v7477 = vunpack.c.l.b16 %v7381
        %v7478 = vunpack.c.l.b16 %v7382
        %v7479 = vunpack.c.l.b16 %v7383
        %v7480 = vunpack.c.l.b16 %v7384
        %v7481 = vunpack.c.l.b16 %v7385
        %v7482 = vunpack.c.l.b16 %v7386
        %v7483 = vunpack.c.l.b16 %v7387
        %v7484 = vunpack.c.l.b16 %v7388
        %v7485 = vunpack.c.l.b16 %v7389
        %v7486 = vunpack.c.l.b16 %v7390
        %v7487 = vunpack.c.l.b16 %v7391
        %v7488 = vunpack.c.l.b16 %v7392
        %v7489 = vunpack.c.l.b16 %v7393
        %v7490 = vunpack.c.l.b16 %v7394
        %v7491 = vunpack.c.l.b16 %v7395
        %v7492 = vunpack.c.l.b16 %v7396
        %v7493 = vunpack.c.l.b16 %v7397
        %v7494 = vunpack.c.l.b16 %v7398
        %v7495 = vunpack.c.l.b16 %v7399
        %v7496 = vunpack.c.l.b16 %v7400
        %v7497 = vunpack.c.l.b16 %v7401
        %v7498 = vunpack.c.l.b16 %v7402
        %v7499 = vunpack.c.l.b16 %v7403
        %v7500 = vunpack.c.l.b16 %v7404
        %v7501 = vunpack.c.l.b16 %v7405
        %v7502 = vunpack.c.l.b16 %v7406
        %v7503 = vunpack.c.l.b16 %v7407
        %v7504 = vunpack.c.l.b16 %v7408
        %v7505 = vunpack.c.l.b16 %v7409
        %v7506 = vunpack.c.l.b16 %v7410
        %v7507 = vunpack.c.l.b16 %v7411
        %v7508 = vunpack.c.l.b16 %v7412
        %v7509 = vpack.c.b16 %v7462, %v7461
        %v7510 = vpack.c.b16 %v7464, %v7463
        %v7511 = vpack.c.b16 %v7466, %v7465
        %v7512 = vpack.c.b16 %v7468, %v7467
        %v7513 = vpack.c.b16 %v7470, %v7469
        %v7514 = vpack.c.b16 %v7472, %v7471
        %v7515 = vpack.c.b16 %v7474, %v7473
        %v7516 = vpack.c.b16 %v7476, %v7475
        %v7517 = vpack.c.b16 %v7478, %v7477
        %v7518 = vpack.c.b16 %v7480, %v7479
        %v7519 = vpack.c.b16 %v7482, %v7481
        %v7520 = vpack.c.b16 %v7484, %v7483
        %v7521 = vpack.c.b16 %v7486, %v7485
        %v7522 = vpack.c.b16 %v7488, %v7487
        %v7523 = vpack.c.b16 %v7490, %v7489
        %v7524 = vpack.c.b16 %v7492, %v7491
        %v7525 = vpack.c.b16 %v7494, %v7493
        %v7526 = vpack.c.b16 %v7496, %v7495
        %v7527 = vpack.c.b16 %v7498, %v7497
        %v7528 = vpack.c.b16 %v7500, %v7499
        %v7529 = vpack.c.b16 %v7502, %v7501
        %v7530 = vpack.c.b16 %v7504, %v7503
        %v7531 = vpack.c.b16 %v7506, %v7505
        %v7532 = vpack.c.b16 %v7508, %v7507
        %7557 = vmatprep.subr.bf16.mxu0 0
        %7558 = vmatpush1.bf16.msra.mxu0 %v7509
        %7559 = vmatprep.subr.bf16.mxu0 0
        %7560 = vmatpush1.bf16.msra.mxu0 %v7510
        %7561 = vmatprep.subr.bf16.mxu0 0
        %7562 = vmatpush1.bf16.msra.mxu0 %v7511
        %7563 = vmatprep.subr.bf16.mxu0 0
        %7564 = vmatpush1.bf16.msra.mxu0 %v7512
        %7565 = vmatprep.subr.bf16.mxu0 0
        %7566 = vmatpush1.bf16.msra.mxu0 %v7513
        %7567 = vmatprep.subr.bf16.mxu0 0
        %7568 = vmatpush1.bf16.msra.mxu0 %v7514
        %7569 = vmatprep.subr.bf16.mxu0 0
        %7570 = vmatpush1.bf16.msra.mxu0 %v7515
        %7571 = vmatprep.subr.bf16.mxu0 0
        %7572 = vmatpush1.bf16.msra.mxu0 %v7516
        %7573 = vmatprep.subr.bf16.mxu0 0
        %7574 = vmatpush1.bf16.msra.mxu0 %v7517
        %7575 = vmatprep.subr.bf16.mxu0 0
        %7576 = vmatpush1.bf16.msra.mxu0 %v7518
        %7577 = vmatprep.subr.bf16.mxu0 0
        %7578 = vmatpush1.bf16.msra.mxu0 %v7519
        %7579 = vmatprep.subr.bf16.mxu0 0
        %7580 = vmatpush1.bf16.msra.mxu0 %v7520
        %7581 = vmatprep.subr.bf16.mxu0 0
        %7582 = vmatpush1.bf16.msra.mxu0 %v7521
        %7583 = vmatprep.subr.bf16.mxu0 0
        %7584 = vmatpush1.bf16.msra.mxu0 %v7522
        %7585 = vmatprep.subr.bf16.mxu0 0
        %7586 = vmatpush1.bf16.msra.mxu0 %v7523
        %7587 = vmatprep.subr.bf16.mxu0 0
        %7588 = vmatpush1.bf16.msra.mxu0 %v7524
        %7589 = vmatprep.mubr.bf16.mxu0 %v7055
        %7590 = vmatmul.mubr.bf16.gmra.mrb[0].mxu0 %v6964
        %v7591 = vpop.f32.mrb[0].mxu0
        %v7592 = vadd.f32 0.0, %v7591
        %v7593 = vpop.f32.mrb[0].mxu0
        %v7594 = vpop.f32.mrb[0].mxu0
        %v7595 = vadd.f32 0.0, %v7594
        %v7596 = vpop.f32.mrb[0].mxu0
        %7597 = vmatprep.mubr.bf16.mxu0 %v7067
        %7598 = vmatmul.mubr.bf16.gmra.mrb[0].mxu0 %v6965
        %v7599 = vpop.f32.mrb[0].mxu0
        %v7600 = vadd.f32 0.0, %v7599
        %v7601 = vpop.f32.mrb[0].mxu0
        %v7602 = vpop.f32.mrb[0].mxu0
        %v7603 = vadd.f32 0.0, %v7602
        %v7604 = vpop.f32.mrb[0].mxu0
        %7605 = vmatprep.mubr.bf16.mxu0 %v7079
        %7606 = vmatmul.mubr.bf16.gmra.mrb[0].mxu0 %v6966
        %v7607 = vpop.f32.mrb[0].mxu0
        %v7608 = vadd.f32 0.0, %v7607
        %v7609 = vpop.f32.mrb[0].mxu0
        %v7610 = vpop.f32.mrb[0].mxu0
        %v7611 = vadd.f32 0.0, %v7610
        %v7612 = vpop.f32.mrb[0].mxu0
        %7613 = vmatprep.mubr.bf16.mxu0 %v7091
        %7614 = vmatmul.mubr.bf16.gmra.mrb[0].mxu0 %v6967
        %v7615 = vpop.f32.mrb[0].mxu0
        %v7616 = vadd.f32 0.0, %v7615
        %v7617 = vpop.f32.mrb[0].mxu0
        %v7618 = vpop.f32.mrb[0].mxu0
        %v7619 = vadd.f32 0.0, %v7618
        %v7620 = vpop.f32.mrb[0].mxu0
        %7621 = vmatprep.mubr.bf16.mxu0 %v7103
        %7622 = vmatmul.mubr.bf16.gmra.mrb[0].mxu0 %v6968
        %v7623 = vpop.f32.mrb[0].mxu0
        %v7624 = vadd.f32 0.0, %v7623
        %v7625 = vpop.f32.mrb[0].mxu0
        %v7626 = vpop.f32.mrb[0].mxu0
        %v7627 = vadd.f32 0.0, %v7626
        %v7628 = vpop.f32.mrb[0].mxu0
        %7629 = vmatprep.mubr.bf16.mxu0 %v7115
        %7630 = vmatmul.mubr.bf16.gmra.mrb[0].mxu0 %v6969
        %v7631 = vpop.f32.mrb[0].mxu0
        %v7632 = vadd.f32 0.0, %v7631
        %v7633 = vpop.f32.mrb[0].mxu0
        %v7634 = vpop.f32.mrb[0].mxu0
        %v7635 = vadd.f32 0.0, %v7634
        %v7636 = vpop.f32.mrb[0].mxu0
        %7637 = vmatprep.mubr.bf16.mxu0 %v7127
        %7638 = vmatmul.mubr.bf16.gmra.mrb[0].mxu0 %v6970
        %v7639 = vpop.f32.mrb[0].mxu0
        %v7640 = vadd.f32 0.0, %v7639
        %v7641 = vpop.f32.mrb[0].mxu0
        %v7642 = vpop.f32.mrb[0].mxu0
        %v7643 = vadd.f32 0.0, %v7642
        %v7644 = vpop.f32.mrb[0].mxu0
        %7645 = vmatprep.mubr.bf16.mxu0 %v7139
        %7646 = vmatmul.mubr.bf16.gmra.mrb[0].mxu0 %v6971
        %v7647 = vpop.f32.mrb[0].mxu0
        %v7648 = vadd.f32 0.0, %v7647
        %v7649 = vpop.f32.mrb[0].mxu0
        %v7650 = vpop.f32.mrb[0].mxu0
        %v7651 = vadd.f32 0.0, %v7650
        %v7652 = vpop.f32.mrb[0].mxu0
        %7653 = vmatprep.mubr.bf16.mxu0 %v7151
        %7654 = vmatmul.mubr.bf16.gmra.mrb[0].mxu0 %v6972
        %v7655 = vpop.f32.mrb[0].mxu0
        %v7656 = vadd.f32 0.0, %v7655
        %v7657 = vpop.f32.mrb[0].mxu0
        %v7658 = vpop.f32.mrb[0].mxu0
        %v7659 = vadd.f32 0.0, %v7658
        %v7660 = vpop.f32.mrb[0].mxu0
        %7661 = vmatprep.mubr.bf16.mxu0 %v7163
        %7662 = vmatmul.mubr.bf16.gmra.mrb[0].mxu0 %v6973
        %v7663 = vpop.f32.mrb[0].mxu0
        %v7664 = vadd.f32 0.0, %v7663
        %v7665 = vpop.f32.mrb[0].mxu0
        %v7666 = vpop.f32.mrb[0].mxu0
        %v7667 = vadd.f32 0.0, %v7666
        %v7668 = vpop.f32.mrb[0].mxu0
        %7669 = vmatprep.mubr.bf16.mxu0 %v7175
        %7670 = vmatmul.mubr.bf16.gmra.mrb[0].mxu0 %v6974
        %v7671 = vpop.f32.mrb[0].mxu0
        %v7672 = vadd.f32 0.0, %v7671
        %v7673 = vpop.f32.mrb[0].mxu0
        %v7674 = vpop.f32.mrb[0].mxu0
        %v7675 = vadd.f32 0.0, %v7674
        %v7676 = vpop.f32.mrb[0].mxu0
        %7677 = vmatprep.mubr.bf16.mxu0 %v7187
        %7678 = vmatmul.mubr.bf16.gmra.mrb[0].mxu0 %v6975
        %v7679 = vpop.f32.mrb[0].mxu0
        %v7680 = vadd.f32 0.0, %v7679
        %v7681 = vpop.f32.mrb[0].mxu0
        %v7682 = vpop.f32.mrb[0].mxu0
        %v7683 = vadd.f32 0.0, %v7682
        %v7684 = vpop.f32.mrb[0].mxu0
        %7685 = vmatprep.mubr.bf16.mxu0 %v7199
        %7686 = vmatmul.mubr.bf16.gmra.mrb[0].mxu0 %v6976
        %v7687 = vpop.f32.mrb[0].mxu0
        %v7688 = vadd.f32 0.0, %v7687
        %v7689 = vpop.f32.mrb[0].mxu0
        %v7690 = vpop.f32.mrb[0].mxu0
        %v7691 = vadd.f32 0.0, %v7690
        %v7692 = vpop.f32.mrb[0].mxu0
        %7693 = vmatprep.mubr.bf16.mxu0 %v7211
        %7694 = vmatmul.mubr.bf16.gmra.mrb[0].mxu0 %v6977
        %v7695 = vpop.f32.mrb[0].mxu0
        %v7696 = vadd.f32 0.0, %v7695
        %v7697 = vpop.f32.mrb[0].mxu0
        %v7698 = vpop.f32.mrb[0].mxu0
        %v7699 = vadd.f32 0.0, %v7698
        %v7700 = vpop.f32.mrb[0].mxu0
        %7701 = vmatprep.mubr.bf16.mxu0 %v7223
        %7702 = vmatmul.mubr.bf16.gmra.mrb[0].mxu0 %v6978
        %v7703 = vpop.f32.mrb[0].mxu0
        %v7704 = vadd.f32 0.0, %v7703
        %v7705 = vpop.f32.mrb[0].mxu0
        %v7706 = vpop.f32.mrb[0].mxu0
        %v7707 = vadd.f32 0.0, %v7706
        %v7708 = vpop.f32.mrb[0].mxu0
        %7709 = vmatprep.mubr.bf16.mxu0 %v7235
        %7710 = vmatmul.mubr.bf16.gmra.mrb[0].mxu0 %v6979
        %v7711 = vpop.f32.mrb[0].mxu0
        %v7712 = vadd.f32 0.0, %v7711
        %v7713 = vpop.f32.mrb[0].mxu0
        %v7714 = vpop.f32.mrb[0].mxu0
        %v7715 = vadd.f32 0.0, %v7714
        %v7716 = vpop.f32.mrb[0].mxu0
        %7717 = vdwg.mxu0
        %7718 = vmatprep.subr.bf16.mxu0 0
        %7719 = vmatpush1.bf16.msra.mxu0 %v7525
        %7720 = vmatprep.subr.bf16.mxu0 0
        %7721 = vmatpush1.bf16.msra.mxu0 %v7526
        %7722 = vmatprep.subr.bf16.mxu0 0
        %7723 = vmatpush1.bf16.msra.mxu0 %v7527
        %7724 = vmatprep.subr.bf16.mxu0 0
        %7725 = vmatpush1.bf16.msra.mxu0 %v7528
        %7726 = vmatprep.subr.bf16.mxu0 0
        %7727 = vmatpush1.bf16.msra.mxu0 %v7529
        %7728 = vmatprep.subr.bf16.mxu0 0
        %7729 = vmatpush1.bf16.msra.mxu0 %v7530
        %7730 = vmatprep.subr.bf16.mxu0 0
        %7731 = vmatpush1.bf16.msra.mxu0 %v7531
        %7732 = vmatprep.subr.bf16.mxu0 0
        %7733 = vmatpush1.bf16.msra.mxu0 %v7532
        %7734 = vmatprep.subr.bf16.mxu0 0
        %7735 = vmatpush1.bf16.msra.mxu0 0
        %7736 = vmatprep.subr.bf16.mxu0 0
        %7737 = vmatpush1.bf16.msra.mxu0 0
        %7738 = vmatprep.subr.bf16.mxu0 0
        %7739 = vmatpush1.bf16.msra.mxu0 0
        %7740 = vmatprep.subr.bf16.mxu0 0
        %7741 = vmatpush1.bf16.msra.mxu0 0
        %7742 = vmatprep.subr.bf16.mxu0 0
        %7743 = vmatpush1.bf16.msra.mxu0 0
        %7744 = vmatprep.subr.bf16.mxu0 0
        %7745 = vmatpush1.bf16.msra.mxu0 0
        %7746 = vmatprep.subr.bf16.mxu0 0
        %7747 = vmatpush1.bf16.msra.mxu0 0
        %7748 = vmatprep.subr.bf16.mxu0 0
        %7749 = vmatpush1.bf16.msra.mxu0 0
        %7750 = vmatprep.mubr.bf16.mxu0 0
        %7751 = vmatmul.mubr.bf16.gmra.mrb[0].mxu0 %v7302
        %v7752 = vpop.f32.mrb[0].mxu0
        %v7753 = vadd.f32 %v7592, %v7752
        %v7754 = vpop.f32.mrb[0].mxu0
        %v7755 = vpop.f32.mrb[0].mxu0
        %v7756 = vadd.f32 %v7595, %v7755
        %v7757 = vpop.f32.mrb[0].mxu0
        %7758 = vmatprep.mubr.bf16.mxu0 0
        %7759 = vmatmul.mubr.bf16.gmra.mrb[0].mxu0 %v7305
        %v7760 = vpop.f32.mrb[0].mxu0
        %v7761 = vadd.f32 %v7600, %v7760
        %v7762 = vpop.f32.mrb[0].mxu0
        %v7763 = vpop.f32.mrb[0].mxu0
        %v7764 = vadd.f32 %v7603, %v7763
        %v7765 = vpop.f32.mrb[0].mxu0
        %7766 = vmatprep.mubr.bf16.mxu0 0
        %7767 = vmatmul.mubr.bf16.gmra.mrb[0].mxu0 %v7308
        %v7768 = vpop.f32.mrb[0].mxu0
        %v7769 = vadd.f32 %v7608, %v7768
        %v7770 = vpop.f32.mrb[0].mxu0
        %v7771 = vpop.f32.mrb[0].mxu0
        %v7772 = vadd.f32 %v7611, %v7771
        %v7773 = vpop.f32.mrb[0].mxu0
        %7774 = vmatprep.mubr.bf16.mxu0 0
        %7775 = vmatmul.mubr.bf16.gmra.mrb[0].mxu0 %v7311
        %v7776 = vpop.f32.mrb[0].mxu0
        %v7777 = vadd.f32 %v7616, %v7776
        %v7778 = vpop.f32.mrb[0].mxu0
        %v7779 = vpop.f32.mrb[0].mxu0
        %v7780 = vadd.f32 %v7619, %v7779
        %v7781 = vpop.f32.mrb[0].mxu0
        %7782 = vmatprep.mubr.bf16.mxu0 0
        %7783 = vmatmul.mubr.bf16.gmra.mrb[0].mxu0 %v7314
        %v7784 = vpop.f32.mrb[0].mxu0
        %v7785 = vadd.f32 %v7624, %v7784
        %v7786 = vpop.f32.mrb[0].mxu0
        %v7787 = vpop.f32.mrb[0].mxu0
        %v7788 = vadd.f32 %v7627, %v7787
        %v7789 = vpop.f32.mrb[0].mxu0
        %7790 = vmatprep.mubr.bf16.mxu0 0
        %7791 = vmatmul.mubr.bf16.gmra.mrb[0].mxu0 %v7317
        %v7792 = vpop.f32.mrb[0].mxu0
        %v7793 = vadd.f32 %v7632, %v7792
        %v7794 = vpop.f32.mrb[0].mxu0
        %v7795 = vpop.f32.mrb[0].mxu0
        %v7796 = vadd.f32 %v7635, %v7795
        %v7797 = vpop.f32.mrb[0].mxu0
        %7798 = vmatprep.mubr.bf16.mxu0 0
        %7799 = vmatmul.mubr.bf16.gmra.mrb[0].mxu0 %v7320
        %v7800 = vpop.f32.mrb[0].mxu0
        %v7801 = vadd.f32 %v7640, %v7800
        %v7802 = vpop.f32.mrb[0].mxu0
        %v7803 = vpop.f32.mrb[0].mxu0
        %v7804 = vadd.f32 %v7643, %v7803
        %v7805 = vpop.f32.mrb[0].mxu0
        %7806 = vmatprep.mubr.bf16.mxu0 0
        %7807 = vmatmul.mubr.bf16.gmra.mrb[0].mxu0 %v7323
        %v7808 = vpop.f32.mrb[0].mxu0
        %v7809 = vadd.f32 %v7648, %v7808
        %v7810 = vpop.f32.mrb[0].mxu0
        %v7811 = vpop.f32.mrb[0].mxu0
        %v7812 = vadd.f32 %v7651, %v7811
        %v7813 = vpop.f32.mrb[0].mxu0
        %7814 = vmatprep.mubr.bf16.mxu0 0
        %7815 = vmatmul.mubr.bf16.gmra.mrb[0].mxu0 %v7326
        %v7816 = vpop.f32.mrb[0].mxu0
        %v7817 = vadd.f32 %v7656, %v7816
        %v7818 = vpop.f32.mrb[0].mxu0
        %v7819 = vpop.f32.mrb[0].mxu0
        %v7820 = vadd.f32 %v7659, %v7819
        %v7821 = vpop.f32.mrb[0].mxu0
        %7822 = vmatprep.mubr.bf16.mxu0 0
        %7823 = vmatmul.mubr.bf16.gmra.mrb[0].mxu0 %v7329
        %v7824 = vpop.f32.mrb[0].mxu0
        %v7825 = vadd.f32 %v7664, %v7824
        %v7826 = vpop.f32.mrb[0].mxu0
        %v7827 = vpop.f32.mrb[0].mxu0
        %v7828 = vadd.f32 %v7667, %v7827
        %v7829 = vpop.f32.mrb[0].mxu0
        %7830 = vmatprep.mubr.bf16.mxu0 0
        %7831 = vmatmul.mubr.bf16.gmra.mrb[0].mxu0 %v7332
        %v7832 = vpop.f32.mrb[0].mxu0
        %v7833 = vadd.f32 %v7672, %v7832
        %v7834 = vpop.f32.mrb[0].mxu0
        %v7835 = vpop.f32.mrb[0].mxu0
        %v7836 = vadd.f32 %v7675, %v7835
        %v7837 = vpop.f32.mrb[0].mxu0
        %7838 = vmatprep.mubr.bf16.mxu0 0
        %7839 = vmatmul.mubr.bf16.gmra.mrb[0].mxu0 %v7335
        %v7840 = vpop.f32.mrb[0].mxu0
        %v7841 = vadd.f32 %v7680, %v7840
        %v7842 = vpop.f32.mrb[0].mxu0
        %v7843 = vpop.f32.mrb[0].mxu0
        %v7844 = vadd.f32 %v7683, %v7843
        %v7845 = vpop.f32.mrb[0].mxu0
        %7846 = vmatprep.mubr.bf16.mxu0 0
        %7847 = vmatmul.mubr.bf16.gmra.mrb[0].mxu0 %v7338
        %v7848 = vpop.f32.mrb[0].mxu0
        %v7849 = vadd.f32 %v7688, %v7848
        %v7850 = vpop.f32.mrb[0].mxu0
        %v7851 = vpop.f32.mrb[0].mxu0
        %v7852 = vadd.f32 %v7691, %v7851
        %v7853 = vpop.f32.mrb[0].mxu0
        %7854 = vmatprep.mubr.bf16.mxu0 0
        %7855 = vmatmul.mubr.bf16.gmra.mrb[0].mxu0 %v7341
        %v7856 = vpop.f32.mrb[0].mxu0
        %v7857 = vadd.f32 %v7696, %v7856
        %v7858 = vpop.f32.mrb[0].mxu0
        %v7859 = vpop.f32.mrb[0].mxu0
        %v7860 = vadd.f32 %v7699, %v7859
        %v7861 = vpop.f32.mrb[0].mxu0
        %7862 = vmatprep.mubr.bf16.mxu0 0
        %7863 = vmatmul.mubr.bf16.gmra.mrb[0].mxu0 %v7344
        %v7864 = vpop.f32.mrb[0].mxu0
        %v7865 = vadd.f32 %v7704, %v7864
        %v7866 = vpop.f32.mrb[0].mxu0
        %v7867 = vpop.f32.mrb[0].mxu0
        %v7868 = vadd.f32 %v7707, %v7867
        %v7869 = vpop.f32.mrb[0].mxu0
        %7870 = vmatprep.mubr.bf16.mxu0 0
        %7871 = vmatmul.mubr.bf16.gmra.mrb[0].mxu0 %v7347
        %v7872 = vpop.f32.mrb[0].mxu0
        %v7873 = vadd.f32 %v7712, %v7872
        %v7874 = vpop.f32.mrb[0].mxu0
        %v7875 = vpop.f32.mrb[0].mxu0
        %v7876 = vadd.f32 %v7715, %v7875
        %v7877 = vpop.f32.mrb[0].mxu0
        %7878 = vdwg.mxu0
        %v7879 = vadd.f32 %v6710, %v7753
        %v7880 = vadd.f32 %v6713, %v7756
        %v7881 = vadd.f32 %v6718, %v7761
        %v7882 = vadd.f32 %v6721, %v7764
        %v7883 = vadd.f32 %v6726, %v7769
        %v7884 = vadd.f32 %v6729, %v7772
        %v7885 = vadd.f32 %v6734, %v7777
        %v7886 = vadd.f32 %v6737, %v7780
        %v7887 = vadd.f32 %v6742, %v7785
        %v7888 = vadd.f32 %v6745, %v7788
        %v7889 = vadd.f32 %v6750, %v7793
        %v7890 = vadd.f32 %v6753, %v7796
        %v7891 = vadd.f32 %v6758, %v7801
        %v7892 = vadd.f32 %v6761, %v7804
        %v7893 = vadd.f32 %v6766, %v7809
        %v7894 = vadd.f32 %v6769, %v7812
        %v7895 = vadd.f32 %v6774, %v7817
        %v7896 = vadd.f32 %v6777, %v7820
        %v7897 = vadd.f32 %v6782, %v7825
        %v7898 = vadd.f32 %v6785, %v7828
        %v7899 = vadd.f32 %v6790, %v7833
        %v7900 = vadd.f32 %v6793, %v7836
        %v7901 = vadd.f32 %v6798, %v7841
        %v7902 = vadd.f32 %v6801, %v7844
        %v7903 = vadd.f32 %v6806, %v7849
        %v7904 = vadd.f32 %v6809, %v7852
        %v7905 = vadd.f32 %v6814, %v7857
        %v7906 = vadd.f32 %v6817, %v7860
        %v7907 = vadd.f32 %v6822, %v7865
        %v7908 = vadd.f32 %v6825, %v7868
        %v7909 = vadd.f32 %v6830, %v7873
        %v7910 = vadd.f32 %v6833, %v7876
        %v7911 = vld [vmem:[#allocation11] sm:$0x1]
        %v7913 = vlaneseq
        %v7914 = vshrl.u32 %v7913, 7
        %v7915 = vsub.s32 0, %v7914
        %v7916 = vrot.slane %v7911, %v7915
        %v7918 = vadd.f32 %v7879, %v7916
        %v7919 = vadd.f32 %v7880, %v7916
        %v7920 = vadd.f32 %v7881, %v7916
        %v7921 = vadd.f32 %v7882, %v7916
        %v7922 = vadd.f32 %v7883, %v7916
        %v7923 = vadd.f32 %v7884, %v7916
        %v7924 = vadd.f32 %v7885, %v7916
        %v7925 = vadd.f32 %v7886, %v7916
        %v7926 = vadd.f32 %v7887, %v7916
        %v7927 = vadd.f32 %v7888, %v7916
        %v7928 = vadd.f32 %v7889, %v7916
        %v7929 = vadd.f32 %v7890, %v7916
        %v7930 = vadd.f32 %v7891, %v7916
        %v7931 = vadd.f32 %v7892, %v7916
        %v7932 = vadd.f32 %v7893, %v7916
        %v7933 = vadd.f32 %v7894, %v7916
        %v7934 = vadd.f32 %v7895, %v7916
        %v7935 = vadd.f32 %v7896, %v7916
        %v7936 = vadd.f32 %v7897, %v7916
        %v7937 = vadd.f32 %v7898, %v7916
        %v7938 = vadd.f32 %v7899, %v7916
        %v7939 = vadd.f32 %v7900, %v7916
        %v7940 = vadd.f32 %v7901, %v7916
        %v7941 = vadd.f32 %v7902, %v7916
        %v7942 = vadd.f32 %v7903, %v7916
        %v7943 = vadd.f32 %v7904, %v7916
        %v7944 = vadd.f32 %v7905, %v7916
        %v7945 = vadd.f32 %v7906, %v7916
        %v7946 = vadd.f32 %v7907, %v7916
        %v7947 = vadd.f32 %v7908, %v7916
        %v7948 = vadd.f32 %v7909, %v7916
        %v7949 = vadd.f32 %v7910, %v7916
        %v7950 = vadd.f32 %v7918, %v7919
        %v7951 = vadd.f32 %v7950, %v7920
        %v7952 = vadd.f32 %v7951, %v7921
        %v7953 = vadd.f32 %v7952, %v7922
        %v7954 = vadd.f32 %v7953, %v7923
        %v7955 = vadd.f32 %v7954, %v7924
        %v7956 = vadd.f32 %v7955, %v7925
        %v7957 = vadd.f32 %v7956, %v7926
        %v7958 = vadd.f32 %v7957, %v7927
        %v7959 = vadd.f32 %v7958, %v7928
        %v7960 = vadd.f32 %v7959, %v7929
        %v7961 = vadd.f32 %v7960, %v7930
        %v7962 = vadd.f32 %v7961, %v7931
        %v7963 = vadd.f32 %v7962, %v7932
        %v7964 = vadd.f32 %v7963, %v7933
        %v7965 = vadd.f32 %v7964, %v7934
        %v7966 = vadd.f32 %v7965, %v7935
        %v7967 = vadd.f32 %v7966, %v7936
        %v7968 = vadd.f32 %v7967, %v7937
        %v7969 = vadd.f32 %v7968, %v7938
        %v7970 = vadd.f32 %v7969, %v7939
        %v7971 = vadd.f32 %v7970, %v7940
        %v7972 = vadd.f32 %v7971, %v7941
        %v7973 = vadd.f32 %v7972, %v7942
        %v7974 = vadd.f32 %v7973, %v7943
        %v7975 = vadd.f32 %v7974, %v7944
        %v7976 = vadd.f32 %v7975, %v7945
        %v7977 = vadd.f32 %v7976, %v7946
        %v7978 = vadd.f32 %v7977, %v7947
        %v7979 = vadd.f32 %v7978, %v7948
        %v7980 = vadd.f32 %v7979, %v7949
        %v7981 = vrot.slane %v7980, 4
        %v7982 = vadd.f32 %v7980, %v7981
        %v7983 = vrot.slane %v7982, 2
        %v7984 = vadd.f32 %v7982, %v7983
        %v7985 = vrot.slane %v7984, 1
        %v7986 = vadd.f32 %v7984, %v7985
        %v7987 = vmul.f32 %v7918, %v7918
        %v7988 = vmul.f32 %v7919, %v7919
        %v7989 = vmul.f32 %v7920, %v7920
        %v7990 = vmul.f32 %v7921, %v7921
        %v7991 = vmul.f32 %v7922, %v7922
        %v7992 = vmul.f32 %v7923, %v7923
        %v7993 = vmul.f32 %v7924, %v7924
        %v7994 = vmul.f32 %v7925, %v7925
        %v7995 = vmul.f32 %v7926, %v7926
        %v7996 = vmul.f32 %v7927, %v7927
        %v7997 = vmul.f32 %v7928, %v7928
        %v7998 = vmul.f32 %v7929, %v7929
        %v7999 = vmul.f32 %v7930, %v7930
        %v8000 = vmul.f32 %v7931, %v7931
        %v8001 = vmul.f32 %v7932, %v7932
        %v8002 = vmul.f32 %v7933, %v7933
        %v8003 = vmul.f32 %v7934, %v7934
        %v8004 = vmul.f32 %v7935, %v7935
        %v8005 = vmul.f32 %v7936, %v7936
        %v8006 = vmul.f32 %v7937, %v7937
        %v8007 = vmul.f32 %v7938, %v7938
        %v8008 = vmul.f32 %v7939, %v7939
        %v8009 = vmul.f32 %v7940, %v7940
        %v8010 = vmul.f32 %v7941, %v7941
        %v8011 = vmul.f32 %v7942, %v7942
        %v8012 = vmul.f32 %v7943, %v7943
        %v8013 = vmul.f32 %v7944, %v7944
        %v8014 = vmul.f32 %v7945, %v7945
        %v8015 = vmul.f32 %v7946, %v7946
        %v8016 = vmul.f32 %v7947, %v7947
        %v8017 = vmul.f32 %v7948, %v7948
        %v8018 = vmul.f32 %v7949, %v7949
        %v8019 = vadd.f32 %v7987, %v7988
        %v8020 = vadd.f32 %v8019, %v7989
        %v8021 = vadd.f32 %v8020, %v7990
        %v8022 = vadd.f32 %v8021, %v7991
        %v8023 = vadd.f32 %v8022, %v7992
        %v8024 = vadd.f32 %v8023, %v7993
        %v8025 = vadd.f32 %v8024, %v7994
        %v8026 = vadd.f32 %v8025, %v7995
        %v8027 = vadd.f32 %v8026, %v7996
        %v8028 = vadd.f32 %v8027, %v7997
        %v8029 = vadd.f32 %v8028, %v7998
        %v8030 = vadd.f32 %v8029, %v7999
        %v8031 = vadd.f32 %v8030, %v8000
        %v8032 = vadd.f32 %v8031, %v8001
        %v8033 = vadd.f32 %v8032, %v8002
        %v8034 = vadd.f32 %v8033, %v8003
        %v8035 = vadd.f32 %v8034, %v8004
        %v8036 = vadd.f32 %v8035, %v8005
        %v8037 = vadd.f32 %v8036, %v8006
        %v8038 = vadd.f32 %v8037, %v8007
        %v8039 = vadd.f32 %v8038, %v8008
        %v8040 = vadd.f32 %v8039, %v8009
        %v8041 = vadd.f32 %v8040, %v8010
        %v8042 = vadd.f32 %v8041, %v8011
        %v8043 = vadd.f32 %v8042, %v8012
        %v8044 = vadd.f32 %v8043, %v8013
        %v8045 = vadd.f32 %v8044, %v8014
        %v8046 = vadd.f32 %v8045, %v8015
        %v8047 = vadd.f32 %v8046, %v8016
        %v8048 = vadd.f32 %v8047, %v8017
        %v8049 = vadd.f32 %v8048, %v8018
        %v8050 = vrot.slane %v8049, 4
        %v8051 = vadd.f32 %v8049, %v8050
        %v8052 = vrot.slane %v8051, 2
        %v8053 = vadd.f32 %v8051, %v8052
        %v8054 = vrot.slane %v8053, 1
        %v8055 = vadd.f32 %v8053, %v8054
        %v8056 = vmul.f32 %v7986, 0.00390625
        %v8057 = vmul.f32 %v8055, 0.00390625
        %v8058 = vmul.f32 %v8056, %v8056
        %v8059 = vsub.f32 %v8057, %v8058
        %v8060 = vmax.f32 %v8059, 0.0
        %v8061 = vsub.f32 %v7918, %v8056
        %v8062 = vsub.f32 %v7919, %v8056
        %v8063 = vsub.f32 %v7920, %v8056
        %v8064 = vsub.f32 %v7921, %v8056
        %v8065 = vsub.f32 %v7922, %v8056
        %v8066 = vsub.f32 %v7923, %v8056
        %v8067 = vsub.f32 %v7924, %v8056
        %v8068 = vsub.f32 %v7925, %v8056
        %v8069 = vsub.f32 %v7926, %v8056
        %v8070 = vsub.f32 %v7927, %v8056
        %v8071 = vsub.f32 %v7928, %v8056
        %v8072 = vsub.f32 %v7929, %v8056
        %v8073 = vsub.f32 %v7930, %v8056
        %v8074 = vsub.f32 %v7931, %v8056
        %v8075 = vsub.f32 %v7932, %v8056
        %v8076 = vsub.f32 %v7933, %v8056
        %v8077 = vsub.f32 %v7934, %v8056
        %v8078 = vsub.f32 %v7935, %v8056
        %v8079 = vsub.f32 %v7936, %v8056
        %v8080 = vsub.f32 %v7937, %v8056
        %v8081 = vsub.f32 %v7938, %v8056
        %v8082 = vsub.f32 %v7939, %v8056
        %v8083 = vsub.f32 %v7940, %v8056
        %v8084 = vsub.f32 %v7941, %v8056
        %v8085 = vsub.f32 %v7942, %v8056
        %v8086 = vsub.f32 %v7943, %v8056
        %v8087 = vsub.f32 %v7944, %v8056
        %v8088 = vsub.f32 %v7945, %v8056
        %v8089 = vsub.f32 %v7946, %v8056
        %v8090 = vsub.f32 %v7947, %v8056
        %v8091 = vsub.f32 %v7948, %v8056
        %v8092 = vsub.f32 %v7949, %v8056
        %v8093 = vadd.f32 %v8060, 1e-05
        %v8094 = vrsqrt.pop %v8093
        %v8095 = vmul.f32 %v8061, %v8094
        %v8096 = vmul.f32 %v8062, %v8094
        %v8097 = vmul.f32 %v8063, %v8094
        %v8098 = vmul.f32 %v8064, %v8094
        %v8099 = vmul.f32 %v8065, %v8094
        %v8100 = vmul.f32 %v8066, %v8094
        %v8101 = vmul.f32 %v8067, %v8094
        %v8102 = vmul.f32 %v8068, %v8094
        %v8103 = vmul.f32 %v8069, %v8094
        %v8104 = vmul.f32 %v8070, %v8094
        %v8105 = vmul.f32 %v8071, %v8094
        %v8106 = vmul.f32 %v8072, %v8094
        %v8107 = vmul.f32 %v8073, %v8094
        %v8108 = vmul.f32 %v8074, %v8094
        %v8109 = vmul.f32 %v8075, %v8094
        %v8110 = vmul.f32 %v8076, %v8094
        %v8111 = vmul.f32 %v8077, %v8094
        %v8112 = vmul.f32 %v8078, %v8094
        %v8113 = vmul.f32 %v8079, %v8094
        %v8114 = vmul.f32 %v8080, %v8094
        %v8115 = vmul.f32 %v8081, %v8094
        %v8116 = vmul.f32 %v8082, %v8094
        %v8117 = vmul.f32 %v8083, %v8094
        %v8118 = vmul.f32 %v8084, %v8094
        %v8119 = vmul.f32 %v8085, %v8094
        %v8120 = vmul.f32 %v8086, %v8094
        %v8121 = vmul.f32 %v8087, %v8094
        %v8122 = vmul.f32 %v8088, %v8094
        %v8123 = vmul.f32 %v8089, %v8094
        %v8124 = vmul.f32 %v8090, %v8094
        %v8125 = vmul.f32 %v8091, %v8094
        %v8126 = vmul.f32 %v8092, %v8094
        %v8127 = vld [vmem:[%s254] sm:$0xff]
        %v8128 = vld [vmem:[%s254 + $0x8] sm:$0xff]
        %v8129 = vld [vmem:[%s254 + $0x10] sm:$0xff]
        %v8130 = vld [vmem:[%s254 + $0x18] sm:$0xff]
        %v8131 = vld [vmem:[%s254 + $0x20] sm:$0xff]
        %v8132 = vld [vmem:[%s254 + $0x28] sm:$0xff]
        %v8133 = vld [vmem:[%s254 + $0x30] sm:$0xff]
        %v8134 = vld [vmem:[%s254 + $0x38] sm:$0xff]
        %v8135 = vld [vmem:[%s254 + $0x40] sm:$0xff]
        %v8136 = vld [vmem:[%s254 + $0x48] sm:$0xff]
        %v8137 = vld [vmem:[%s254 + $0x50] sm:$0xff]
        %v8138 = vld [vmem:[%s254 + $0x58] sm:$0xff]
        %v8139 = vld [vmem:[%s254 + $0x60] sm:$0xff]
        %v8140 = vld [vmem:[%s254 + $0x68] sm:$0xff]
        %v8141 = vld [vmem:[%s254 + $0x70] sm:$0xff]
        %v8142 = vld [vmem:[%s254 + $0x78] sm:$0xff]
        %v8143 = vld [vmem:[%s254 + $0x80] sm:$0xff]
        %v8144 = vld [vmem:[%s254 + $0x88] sm:$0xff]
        %v8145 = vld [vmem:[%s254 + $0x90] sm:$0xff]
        %v8146 = vld [vmem:[%s254 + $0x98] sm:$0xff]
        %v8147 = vld [vmem:[%s254 + $0xa0] sm:$0xff]
        %v8148 = vld [vmem:[%s254 + $0xa8] sm:$0xff]
        %v8149 = vld [vmem:[%s254 + $0xb0] sm:$0xff]
        %v8150 = vld [vmem:[%s254 + $0xb8] sm:$0xff]
        %v8151 = vld [vmem:[%s254 + $0xc0] sm:$0xff]
        %v8152 = vld [vmem:[%s254 + $0xc8] sm:$0xff]
        %v8153 = vld [vmem:[%s254 + $0xd0] sm:$0xff]
        %v8154 = vld [vmem:[%s254 + $0xd8] sm:$0xff]
        %v8155 = vld [vmem:[%s254 + $0xe0] sm:$0xff]
        %v8156 = vld [vmem:[%s254 + $0xe8] sm:$0xff]
        %v8157 = vld [vmem:[%s254 + $0xf0] sm:$0xff]
        %v8158 = vld [vmem:[%s254 + $0xf8] sm:$0xff]
        %v8159 = vadd.f32 %v8127, %v8095
        %v8160 = vadd.f32 %v8128, %v8096
        %v8161 = vadd.f32 %v8129, %v8097
        %v8162 = vadd.f32 %v8130, %v8098
        %v8163 = vadd.f32 %v8131, %v8099
        %v8164 = vadd.f32 %v8132, %v8100
        %v8165 = vadd.f32 %v8133, %v8101
        %v8166 = vadd.f32 %v8134, %v8102
        %v8167 = vadd.f32 %v8135, %v8103
        %v8168 = vadd.f32 %v8136, %v8104
        %v8169 = vadd.f32 %v8137, %v8105
        %v8170 = vadd.f32 %v8138, %v8106
        %v8171 = vadd.f32 %v8139, %v8107
        %v8172 = vadd.f32 %v8140, %v8108
        %v8173 = vadd.f32 %v8141, %v8109
        %v8174 = vadd.f32 %v8142, %v8110
        %v8175 = vadd.f32 %v8143, %v8111
        %v8176 = vadd.f32 %v8144, %v8112
        %v8177 = vadd.f32 %v8145, %v8113
        %v8178 = vadd.f32 %v8146, %v8114
        %v8179 = vadd.f32 %v8147, %v8115
        %v8180 = vadd.f32 %v8148, %v8116
        %v8181 = vadd.f32 %v8149, %v8117
        %v8182 = vadd.f32 %v8150, %v8118
        %v8183 = vadd.f32 %v8151, %v8119
        %v8184 = vadd.f32 %v8152, %v8120
        %v8185 = vadd.f32 %v8153, %v8121
        %v8186 = vadd.f32 %v8154, %v8122
        %v8187 = vadd.f32 %v8155, %v8123
        %v8188 = vadd.f32 %v8156, %v8124
        %v8189 = vadd.f32 %v8157, %v8125
        %v8190 = vadd.f32 %v8158, %v8126
        %8191 = vst [vmem:[%s296] sm:$0xff] %v8159
        %8192 = vst [vmem:[%s296 + $0x8] sm:$0xff] %v8160
        %8193 = vst [vmem:[%s296 + $0x10] sm:$0xff] %v8161
        %8194 = vst [vmem:[%s296 + $0x18] sm:$0xff] %v8162
        %8195 = vst [vmem:[%s296 + $0x20] sm:$0xff] %v8163
        %8196 = vst [vmem:[%s296 + $0x28] sm:$0xff] %v8164
        %8197 = vst [vmem:[%s296 + $0x30] sm:$0xff] %v8165
        %8198 = vst [vmem:[%s296 + $0x38] sm:$0xff] %v8166
        %8199 = vst [vmem:[%s296 + $0x40] sm:$0xff] %v8167
        %8200 = vst [vmem:[%s296 + $0x48] sm:$0xff] %v8168
        %8201 = vst [vmem:[%s296 + $0x50] sm:$0xff] %v8169
        %8202 = vst [vmem:[%s296 + $0x58] sm:$0xff] %v8170
        %8203 = vst [vmem:[%s296 + $0x60] sm:$0xff] %v8171
        %8204 = vst [vmem:[%s296 + $0x68] sm:$0xff] %v8172
        %8205 = vst [vmem:[%s296 + $0x70] sm:$0xff] %v8173
        %8206 = vst [vmem:[%s296 + $0x78] sm:$0xff] %v8174
        %8207 = vst [vmem:[%s296 + $0x80] sm:$0xff] %v8175
        %8208 = vst [vmem:[%s296 + $0x88] sm:$0xff] %v8176
        %8209 = vst [vmem:[%s296 + $0x90] sm:$0xff] %v8177
        %8210 = vst [vmem:[%s296 + $0x98] sm:$0xff] %v8178
        %8211 = vst [vmem:[%s296 + $0xa0] sm:$0xff] %v8179
        %8212 = vst [vmem:[%s296 + $0xa8] sm:$0xff] %v8180
        %8213 = vst [vmem:[%s296 + $0xb0] sm:$0xff] %v8181
        %8214 = vst [vmem:[%s296 + $0xb8] sm:$0xff] %v8182
        %8215 = vst [vmem:[%s296 + $0xc0] sm:$0xff] %v8183
        %8216 = vst [vmem:[%s296 + $0xc8] sm:$0xff] %v8184
        %8217 = vst [vmem:[%s296 + $0xd0] sm:$0xff] %v8185
        %8218 = vst [vmem:[%s296 + $0xd8] sm:$0xff] %v8186
        %8219 = vst [vmem:[%s296 + $0xe0] sm:$0xff] %v8187
        %8220 = vst [vmem:[%s296 + $0xe8] sm:$0xff] %v8188
        %8221 = vst [vmem:[%s296 + $0xf0] sm:$0xff] %v8189
        %8222 = vst [vmem:[%s296 + $0xf8] sm:$0xff] %v8190
        %s8223 = sand.u32 %s142, 1
        %s8224 = scalar_lea.sflag [#allocation5], %s8223
        %s8225 = sand.u32 %s142, 1
        %s8226 = smul.addr %s8225, 256
        %s8227 = scalar_lea.vmem [#allocation12], %s8226
        // Predicated region
        $region61: #{residual_block.1} parent=39 // pred_check
          %p8228 = pneg %p152
        $region62: #{residual_block.1} parent=39 // pred_check_branch
          %8230 = sbr.rel (%p8228) target = $region64
        $region63: #{residual_block.1} parent=39 // pred_region
          %s8232 = ssub.s32 4096, 4096
          %8233 = vsyncadd %s8224, %s8232
          %s8234 = smul.addr %s24, 32
          %s8235 = smul.addr %s8234, 128
          %s8236 = scalar_lea.hbm %s5, %s8235
          %s8237 = sshll.u32 %s8227, 4
          %s8238 = int_to_ptr.vmem [resolvable:$true] %s8237
          %8243 = dma.vmem_to_hbm [thread:$0]  %s8238, 4096, %s8236, %s8224, 128, 128, 8
        $region64: #{residual_block.1} parent=39 // pred_fallthru
          _
      $region40: #{residual_block.1} parent=5 // pred_fallthru
        _
      %p8244 = scmp.le.s32.totalorder 2, %s19
      // Predicated region
      $region65: #{residual_block.1} parent=5 // pred_check
        %p8245 = pneg %p8244
      $region66: #{residual_block.1} parent=5 // pred_check_branch
        %8247 = sbr.rel (%p8245) target = $region68
      $region67: #{residual_block.1} parent=5 // pred_region
        %s8248 = ssub.s32 %s19, 2
        // Predicated region
        $region69: #{residual_block.1} parent=67 // pred_check
          %p8249 = pneg %p158
        $region70: #{residual_block.1} parent=67 // pred_check_branch
          %8251 = sbr.rel (%p8249) target = $region72
        $region71: #{residual_block.1} parent=67 // pred_region
          %s8252 = sand.u32 %s143, 1
          %s8253 = scalar_lea.sflag [#allocation5], %s8252
          %s8254 = sand.u32 %s143, 1
          %s8255 = smul.addr %s8254, 256
          %s8256 = scalar_lea.vmem [#allocation12], %s8255
          %8257 = dma.done %s8253, 4096
        $region72: #{residual_block.1} parent=67 // pred_fallthru
          _
      $region68: #{residual_block.1} parent=5 // pred_fallthru
        _
    $region6: #{residual_block.1} parent=1 // loop_footer
      %s23 = sadd.s32 1, %s19
    $region7: #{residual_block.1} parent=1 // loop_footer_branch
      %18 = sbr.rel target = $region3
    $region8: #{residual_block.1} parent=1 // loop_exit
      _
    %8258 = vsyncpa [#allocation4], 1
    %s8259 = scalar_lea.sflag [#allocation4], 1
    %8260 = vsyncpa %s8259, 1
    %8261 = vsyncpa [#allocation7], 1
    %8262 = vsyncpa [#allocation10], 1
    %8263 = vsyncpa [#allocation5], 1
    %s8264 = scalar_lea.sflag [#allocation5], 1
    %8265 = vsyncpa %s8264, 1

</llo_original>
